<compile_context>
chip_gen: v7x
topology: tpu7x:2x2x1
jax: 0.10.0
libtpu: 0.0.40
codegen_flags: <defaults>
</compile_context>

<pallas_src>
import math
import functools

import jax
import jax.numpy as jnp
from jax.experimental import pallas as pl
from jax.experimental.pallas import tpu as pltpu

LN_EPS = 1e-5
# Explicit scoped-VMEM budget (<= default on v6e/v7x, raises v5e's 16 MiB default).
# Per-step footprint here is tiny; the V-tiling of the vocab projection keeps it bounded
# for real vocab sizes on v7x's 64 MiB part.
_VMEM_LIMIT = 32 * 1024 * 1024


# ------------------------------ in-kernel helpers ------------------------------


def _layernorm(r, g, b, eps):
    mu = jnp.mean(r, axis=-1, keepdims=True)
    var = jnp.mean(jnp.square(r - mu), axis=-1, keepdims=True)
    return (r - mu) * jax.lax.rsqrt(var + eps) * g + b


def _ffn(x, w1, b1, w2, b2):
    h = jnp.dot(x.astype(jnp.bfloat16), w1, preferred_element_type=jnp.float32) + b1
    h = jnp.maximum(h, 0.0)
    return jnp.dot(h.astype(jnp.bfloat16), w2, preferred_element_type=jnp.float32) + b2


def _mha(x_q, x_kv, wqkv_ref, bqkv_ref, wo_ref, bo_ref, keep, *, causal, scale, num_heads):
    """Multi-head attention for one row.  Head-batched dot_generals, no lane slicing,
    per-head output projection accumulated in f32 (no lane-dim concatenate)."""
    Sq, D = x_q.shape
    Sk = x_kv.shape[0]
    H = num_heads

    xq = jnp.broadcast_to(x_q.astype(jnp.bfloat16)[None], (H, Sq, D))
    xkv = jnp.broadcast_to(x_kv.astype(jnp.bfloat16)[None], (H, Sk, D))

    def proj(x_b, idx):
        w = wqkv_ref[idx]                      # (H, D, dk) bf16, pre-split per head
        b = bqkv_ref[idx]                      # (H, 1, dk) f32
        return jnp.einsum("hsd,hde->hse", x_b, w,
                          preferred_element_type=jnp.float32) + b

    q = proj(xq, 0)                            # (H, Sq, dk) f32
    k = proj(xkv, 1)                           # (H, Sk, dk)
    v = proj(xkv, 2)                           # (H, Sk, dk)

    s = jnp.einsum("hqe,hke->hqk", q.astype(jnp.bfloat16), k.astype(jnp.bfloat16),
                   preferred_element_type=jnp.float32) * scale        # (H, Sq, Sk)

    neg = jnp.float32(-1e9)                    # == masked_fill(mask == 0, -1e9)
    if keep is not None:
        # keep is (1, Sk) key-keep or (Sq, 1) query-keep; broadcasts over heads.
        s = jnp.where(keep[None] > 0.5, s, neg)
    if causal:
        rows = jax.lax.broadcasted_iota(jnp.int32, (Sq, Sk), 0)
        cols = jax.lax.broadcasted_iota(jnp.int32, (Sq, Sk), 1)
        s = jnp.where((rows >= cols)[None], s, neg)

    m = jnp.max(s, axis=-1, keepdims=True)
    e = jnp.exp(s - m)
    p = e * pl.reciprocal(jnp.sum(e, axis=-1, keepdims=True))          # exact (parity)

    ctx = jnp.einsum("hqk,hke->hqe", p.astype(jnp.bfloat16), v.astype(jnp.bfloat16),
                     preferred_element_type=jnp.float32)               # (H, Sq, dk)

    # Per-head output projection accumulated over heads in f32 -> no lane concat.
    out_h = jnp.einsum("hqe,hed->hqd", ctx.astype(jnp.bfloat16), wo_ref[...],
                       preferred_element_type=jnp.float32)             # (H, Sq, D)
    return jnp.sum(out_h, axis=0) + bo_ref[...]


# ------------------------------ fused layer kernels ------------------------------


def _encoder_layer_kernel(x_ref, keepk_ref, wqkv_ref, bqkv_ref, wo_ref, bo_ref,
                          g1_ref, b1_ref, w1_ref, bf1_ref, w2_ref, bf2_ref,
                          g2_ref, b2_ref, o_ref, *, num_heads, scale, eps):
    for i in range(x_ref.shape[0]):            # static unroll over rows in this block
        x = x_ref[i]                           # (S, D) f32
        attn = _mha(x, x, wqkv_ref, bqkv_ref, wo_ref, bo_ref, keepk_ref[i],
                    causal=False, scale=scale, num_heads=num_heads)
        x1 = _layernorm(x + attn, g1_ref[...], b1_ref[...], eps)
        ff = _ffn(x1, w1_ref[...], bf1_ref[...], w2_ref[...], bf2_ref[...])
        o_ref[i] = _layernorm(x1 + ff, g2_ref[...], b2_ref[...], eps)


def _decoder_layer_kernel(x_ref, enc_ref, keepq_ref, keepk_ref,
                          s_wqkv, s_bqkv, s_wo, s_bo, g1_ref, b1_ref,
                          c_wqkv, c_bqkv, c_wo, c_bo, g2_ref, b2_ref,
                          w1_ref, bf1_ref, w2_ref, bf2_ref, g3_ref, b3_ref,
                          o_ref, *, num_heads, scale, eps):
    for i in range(x_ref.shape[0]):
        x = x_ref[i]                           # (St, D) f32
        enc = enc_ref[i]                       # (Ss, D) f32
        a1 = _mha(x, x, s_wqkv, s_bqkv, s_wo, s_bo, keepq_ref[i],
                  causal=True, scale=scale, num_heads=num_heads)
        x1 = _layernorm(x + a1, g1_ref[...], b1_ref[...], eps)
        a2 = _mha(x1, enc, c_wqkv, c_bqkv, c_wo, c_bo, keepk_ref[i],
                  causal=False, scale=scale, num_heads=num_heads)
        x2 = _layernorm(x1 + a2, g2_ref[...], b2_ref[...], eps)
        ff = _ffn(x2, w1_ref[...], bf1_ref[...], w2_ref[...], bf2_ref[...])
        o_ref[i] = _layernorm(x2 + ff, g3_ref[...], b3_ref[...], eps)


def _out_proj_kernel(x_ref, w_ref, b_ref, o_ref):
    for i in range(x_ref.shape[0]):
        o_ref[i] = jnp.dot(x_ref[i].astype(jnp.bfloat16), w_ref[...],
                           preferred_element_type=jnp.float32) + b_ref[...]


# ------------------------------ pallas_call wrappers ------------------------------


def _row_block(batch, max_rows=8, min_steps=2):
    """Largest divisor of `batch` (<= max_rows) that still leaves >= min_steps grid steps."""
    best = 1
    for r in range(1, min(batch, max_rows) + 1):
        if batch % r == 0 and batch // r >= min_steps:
            best = r
    return best


def _pick_tile(n, preferred=(512, 256, 128)):
    for t in preferred:
        if n % t == 0:
            return t
    return n


def _cparams(n_axes=1):
    return pltpu.CompilerParams(dimension_semantics=("parallel",) * n_axes,
                                vmem_limit_bytes=_VMEM_LIMIT)


def encoder_layer(p, x, keep_k, num_heads, eps=LN_EPS):
    B, S, D = x.shape
    H = num_heads
    dk = D // H
    F = p["fc1_w"].shape[1]
    rpb = _row_block(B)
    scale = 1.0 / math.sqrt(dk)

    const = lambda shape: pl.BlockSpec(shape, lambda b: (0,) * len(shape))
    row = lambda shape: pl.BlockSpec((rpb,) + shape, lambda b: (b,) + (0,) * len(shape))
    a = p["self_attn"]

    return pl.pallas_call(
        functools.partial(_encoder_layer_kernel, num_heads=H, scale=scale, eps=eps),
        out_shape=jax.ShapeDtypeStruct((B, S, D), jnp.float32),
        grid=(B // rpb,),
        in_specs=[
            row((S, D)),                                  # x
            row((1, S)),                                  # key-keep vector (src != 0)
            const((3, H, D, dk)), const((3, H, 1, dk)),   # per-head QKV weights / biases
            const((H, dk, D)), const((1, D)),             # per-head W_o / b_o
            const((1, D)), const((1, D)),                 # LN1
            const((D, F)), const((1, F)),                 # fc1
            const((F, D)), const((1, D)),                 # fc2
            const((1, D)), const((1, D)),                 # LN2
        ],
        out_specs=row((S, D)),
        compiler_params=_cparams(1),
    )(x, keep_k, a["wqkv"], a["bqkv"], a["wo"], a["bo"],
      p["ln1_g"], p["ln1_b"], p["fc1_w"], p["fc1_b"], p["fc2_w"], p["fc2_b"],
      p["ln2_g"], p["ln2_b"])


def decoder_layer(p, x, enc, keep_k_src, keep_q_tgt, num_heads, eps=LN_EPS):
    B, St, D = x.shape
    Ss = enc.shape[1]
    H = num_heads
    dk = D // H
    F = p["fc1_w"].shape[1]
    rpb = _row_block(B)
    scale = 1.0 / math.sqrt(dk)

    const = lambda shape: pl.BlockSpec(shape, lambda b: (0,) * len(shape))
    row = lambda shape: pl.BlockSpec((rpb,) + shape, lambda b: (b,) + (0,) * len(shape))
    sa, ca = p["self_attn"], p["cross_attn"]

    return pl.pallas_call(
        functools.partial(_decoder_layer_kernel, num_heads=H, scale=scale, eps=eps),
        out_shape=jax.ShapeDtypeStruct((B, St, D), jnp.float32),
        grid=(B // rpb,),
        in_specs=[
            row((St, D)),                                 # x (decoder input)
            row((Ss, D)),                                 # encoder output
            row((St, 1)),                                 # query-keep vector (tgt != 0)
            row((1, Ss)),                                 # key-keep vector (src != 0)
            const((3, H, D, dk)), const((3, H, 1, dk)),   # self-attn QKV
            const((H, dk, D)), const((1, D)),             # self-attn W_o / b_o
            const((1, D)), const((1, D)),                 # LN1
            const((3, H, D, dk)), const((3, H, 1, dk)),   # cross-attn QKV
            const((H, dk, D)), const((1, D)),             # cross-attn W_o / b_o
            const((1, D)), const((1, D)),                 # LN2
            const((D, F)), const((1, F)),                 # fc1
            const((F, D)), const((1, D)),                 # fc2
            const((1, D)), const((1, D)),                 # LN3
        ],
        out_specs=row((St, D)),
        compiler_params=_cparams(1),
    )(x, enc, keep_q_tgt, keep_k_src,
      sa["wqkv"], sa["bqkv"], sa["wo"], sa["bo"], p["ln1_g"], p["ln1_b"],
      ca["wqkv"], ca["bqkv"], ca["wo"], ca["bo"], p["ln2_g"], p["ln2_b"],
      p["fc1_w"], p["fc1_b"], p["fc2_w"], p["fc2_b"], p["ln3_g"], p["ln3_b"])


def output_projection(x, w, b):
    B, S, D = x.shape
    V = w.shape[1]
    rpb = _row_block(B)
    vt = _pick_tile(V)                                    # V tiled so weight never needs
    return pl.pallas_call(                                # to be fully VMEM-resident (v7x)
        _out_proj_kernel,
        out_shape=jax.ShapeDtypeStruct((B, S, V), jnp.float32),
        grid=(B // rpb, V // vt),
        in_specs=[
            pl.BlockSpec((rpb, S, D), lambda bi, vi: (bi, 0, 0)),
            pl.BlockSpec((D, vt), lambda bi, vi: (0, vi)),
            pl.BlockSpec((1, vt), lambda bi, vi: (0, vi)),
        ],
        out_specs=pl.BlockSpec((rpb, S, vt), lambda bi, vi: (bi, 0, vi)),
        compiler_params=_cparams(2),
    )(x, w, b)


# --------------------------------- model glue ---------------------------------


def positional_encoding(max_seq, d_model):
    pos = jnp.arange(max_seq, dtype=jnp.float32)[:, None]
    div = jnp.exp(
        jnp.arange(0, d_model, 2, dtype=jnp.float32) * -(math.log(10000.0) / d_model)
    )
    pe = jnp.zeros((max_seq, d_model), jnp.float32)
    pe = pe.at[:, 0::2].set(jnp.sin(pos * div))
    pe = pe.at[:, 1::2].set(jnp.cos(pos * div))
    return pe


def transformer_forward(params, src, tgt, num_heads):
    B, Ss = src.shape
    St = tgt.shape[1]

    # Only the tiny keep vectors are materialized; full (Sq, Sk) masks are rebuilt
    # in-kernel with iota + compare (matches generate_mask in the PyTorch module).
    src_keep = (src != 0).astype(jnp.float32).reshape(B, 1, Ss)   # key-keep
    tgt_keep = (tgt != 0).astype(jnp.float32).reshape(B, St, 1)   # query-keep (+ causal)

    pe = params["pe"]
    # Embedding gather + positional encoding kept in plain JAX (irregular gather, tiny).
    src_x = jnp.take(params["enc_emb"], src, axis=0) + pe[None, :Ss, :]
    tgt_x = jnp.take(params["dec_emb"], tgt, axis=0) + pe[None, :St, :]
    # TODO(synk): nn.Dropout(p=0.05) is stochastic in training; treated as identity here.

    enc = src_x
    for lp in params["enc_layers"]:
        enc = encoder_layer(lp, enc, src_keep, num_heads)

    dec = tgt_x
    for lp in params["dec_layers"]:
        dec = decoder_layer(lp, dec, enc, src_keep, tgt_keep, num_heads)

    return output_projection(dec, params["fc_w"], params["fc_b"])


# ------------------------------- parameter init -------------------------------


def init_params(key, src_vocab, tgt_vocab, d_model, num_heads, num_layers, d_ff, max_seq):
    assert d_model % num_heads == 0
    dk = d_model // num_heads
    keys = iter(jax.random.split(key, 4096))

    def lin(d_in, d_out):
        lim = 1.0 / math.sqrt(d_in)
        w = jax.random.uniform(next(keys), (d_in, d_out), jnp.float32, -lim, lim)
        b = jax.random.uniform(next(keys), (d_out,), jnp.float32, -lim, lim)
        return w, b

    def mha_p():
        wq, bq = lin(d_model, d_model)
        wk, bk = lin(d_model, d_model)
        wv, bv = lin(d_model, d_model)
        wo, bo = lin(d_model, d_model)
        # Pre-split per head on the host so the kernel never lane-slices weights.
        head_w = lambda w: w.reshape(d_model, num_heads, dk).transpose(1, 0, 2)  # (H,D,dk)
        head_b = lambda b: b.reshape(num_heads, 1, dk)                           # (H,1,dk)
        return dict(
            wqkv=jnp.stack([head_w(wq), head_w(wk), head_w(wv)]).astype(jnp.bfloat16),
            bqkv=jnp.stack([head_b(bq), head_b(bk), head_b(bv)]),
            wo=wo.reshape(num_heads, dk, d_model).astype(jnp.bfloat16),           # (H,dk,D)
            bo=bo.reshape(1, d_model),
        )

    def ln_p():
        return jnp.ones((1, d_model), jnp.float32), jnp.zeros((1, d_model), jnp.float32)

    def enc_layer_p():
        fc1_w, fc1_b = lin(d_model, d_ff)
        fc2_w, fc2_b = lin(d_ff, d_model)
        g1, b1 = ln_p()
        g2, b2 = ln_p()
        return dict(
            self_attn=mha_p(),
            fc1_w=fc1_w.astype(jnp.bfloat16), fc1_b=fc1_b.reshape(1, d_ff),
            fc2_w=fc2_w.astype(jnp.bfloat16), fc2_b=fc2_b.reshape(1, d_model),
            ln1_g=g1, ln1_b=b1, ln2_g=g2, ln2_b=b2,
        )

    def dec_layer_p():
        p = enc_layer_p()
        p["cross_attn"] = mha_p()
        g3, b3 = ln_p()
        p["ln3_g"], p["ln3_b"] = g3, b3
        return p

    fc_w, fc_b = lin(d_model, tgt_vocab)
    return dict(
        enc_emb=jax.random.normal(next(keys), (src_vocab, d_model), jnp.float32),
        dec_emb=jax.random.normal(next(keys), (tgt_vocab, d_model), jnp.float32),
        pe=positional_encoding(max_seq, d_model),
        enc_layers=[enc_layer_p() for _ in range(num_layers)],
        dec_layers=[dec_layer_p() for _ in range(num_layers)],
        fc_w=fc_w.astype(jnp.bfloat16),
        fc_b=fc_b.reshape(1, tgt_vocab),
    )


# ------------------------------------ main ------------------------------------

if __name__ == "__main__":
    src_vocab = 32
    tgt_vocab = 32
    d_model = 32
    num_heads = 4
    num_layers = 2
    d_ff = 64
    max_seq_length = 16
    B, S = 2, 8

    key = jax.random.PRNGKey(0)
    k_params, k_src, k_tgt = jax.random.split(key, 3)
    params = init_params(
        k_params, src_vocab, tgt_vocab, d_model, num_heads, num_layers, d_ff, max_seq_length
    )
    src = jax.random.randint(k_src, (B, S), 0, src_vocab, dtype=jnp.int32)
    tgt = jax.random.randint(k_tgt, (B, S), 0, tgt_vocab, dtype=jnp.int32)

    fwd = jax.jit(functools.partial(transformer_forward, num_heads=num_heads))
    out = jax.block_until_ready(fwd(params, src, tgt))
    assert out.shape == (B, S, tgt_vocab), out.shape
    assert bool(jnp.all(jnp.isfinite(out)))
    print("KERNEL_OK")
</pallas_src>

<mosaic_0001>
module attributes {stable_mosaic.version = 11 : i64} {
  func.func @_decoder_layer_kernel(%arg0: i32, %arg1: memref<1x8x32xf32, #tpu.memory_space<vmem>>, %arg2: memref<1x8x32xf32, #tpu.memory_space<vmem>>, %arg3: memref<1x8x1xf32, #tpu.memory_space<vmem>>, %arg4: memref<1x1x8xf32, #tpu.memory_space<vmem>>, %arg5: memref<3x4x32x8xbf16, #tpu.memory_space<vmem>>, %arg6: memref<3x4x1x8xf32, #tpu.memory_space<vmem>>, %arg7: memref<4x8x32xbf16, #tpu.memory_space<vmem>>, %arg8: memref<1x32xf32, #tpu.memory_space<vmem>>, %arg9: memref<1x32xf32, #tpu.memory_space<vmem>>, %arg10: memref<1x32xf32, #tpu.memory_space<vmem>>, %arg11: memref<3x4x32x8xbf16, #tpu.memory_space<vmem>>, %arg12: memref<3x4x1x8xf32, #tpu.memory_space<vmem>>, %arg13: memref<4x8x32xbf16, #tpu.memory_space<vmem>>, %arg14: memref<1x32xf32, #tpu.memory_space<vmem>>, %arg15: memref<1x32xf32, #tpu.memory_space<vmem>>, %arg16: memref<1x32xf32, #tpu.memory_space<vmem>>, %arg17: memref<32x64xbf16, #tpu.memory_space<vmem>>, %arg18: memref<1x64xf32, #tpu.memory_space<vmem>>, %arg19: memref<64x32xbf16, #tpu.memory_space<vmem>>, %arg20: memref<1x32xf32, #tpu.memory_space<vmem>>, %arg21: memref<1x32xf32, #tpu.memory_space<vmem>>, %arg22: memref<1x32xf32, #tpu.memory_space<vmem>>, %arg23: memref<1x8x32xf32, #tpu.memory_space<vmem>>) attributes {dimension_semantics = [#tpu.dimension_semantics<parallel>], iteration_bounds = array<i64: 2>, scalar_prefetch = 0 : i64, scratch_operands = 0 : i64, tpu.core_type = #tpu.core_type<tc>, window_params = [{transform_indices = @transform_0, window_bounds = array<i64: 1, 8, 32>}, {transform_indices = @transform_1, window_bounds = array<i64: 1, 8, 32>}, {transform_indices = @transform_2, window_bounds = array<i64: 1, 8, 1>}, {transform_indices = @transform_3, window_bounds = array<i64: 1, 1, 8>}, {pipeline_mode = #tpu.pipeline_mode<synchronous>, transform_indices = @transform_4, window_bounds = array<i64: 3, 4, 32, 8>}, {pipeline_mode = #tpu.pipeline_mode<synchronous>, transform_indices = @transform_5, window_bounds = array<i64: 3, 4, 1, 8>}, {pipeline_mode = #tpu.pipeline_mode<synchronous>, transform_indices = @transform_6, window_bounds = array<i64: 4, 8, 32>}, {pipeline_mode = #tpu.pipeline_mode<synchronous>, transform_indices = @transform_7, window_bounds = array<i64: 1, 32>}, {pipeline_mode = #tpu.pipeline_mode<synchronous>, transform_indices = @transform_8, window_bounds = array<i64: 1, 32>}, {pipeline_mode = #tpu.pipeline_mode<synchronous>, transform_indices = @transform_9, window_bounds = array<i64: 1, 32>}, {pipeline_mode = #tpu.pipeline_mode<synchronous>, transform_indices = @transform_10, window_bounds = array<i64: 3, 4, 32, 8>}, {pipeline_mode = #tpu.pipeline_mode<synchronous>, transform_indices = @transform_11, window_bounds = array<i64: 3, 4, 1, 8>}, {pipeline_mode = #tpu.pipeline_mode<synchronous>, transform_indices = @transform_12, window_bounds = array<i64: 4, 8, 32>}, {pipeline_mode = #tpu.pipeline_mode<synchronous>, transform_indices = @transform_13, window_bounds = array<i64: 1, 32>}, {pipeline_mode = #tpu.pipeline_mode<synchronous>, transform_indices = @transform_14, window_bounds = array<i64: 1, 32>}, {pipeline_mode = #tpu.pipeline_mode<synchronous>, transform_indices = @transform_15, window_bounds = array<i64: 1, 32>}, {pipeline_mode = #tpu.pipeline_mode<synchronous>, transform_indices = @transform_16, window_bounds = array<i64: 32, 64>}, {pipeline_mode = #tpu.pipeline_mode<synchronous>, transform_indices = @transform_17, window_bounds = array<i64: 1, 64>}, {pipeline_mode = #tpu.pipeline_mode<synchronous>, transform_indices = @transform_18, window_bounds = array<i64: 64, 32>}, {pipeline_mode = #tpu.pipeline_mode<synchronous>, transform_indices = @transform_19, window_bounds = array<i64: 1, 32>}, {pipeline_mode = #tpu.pipeline_mode<synchronous>, transform_indices = @transform_20, window_bounds = array<i64: 1, 32>}, {pipeline_mode = #tpu.pipeline_mode<synchronous>, transform_indices = @transform_21, window_bounds = array<i64: 1, 32>}, {transform_indices = @transform_22, window_bounds = array<i64: 1, 8, 32>}]} {
    %c0 = arith.constant 0 : index
    %c0_0 = arith.constant 0 : index
    %c0_1 = arith.constant 0 : index
    %0 = vector.load %arg1[%c0, %c0_0, %c0_1] : memref<1x8x32xf32, #tpu.memory_space<vmem>>, vector<1x8x32xf32>
    %1 = vector.shape_cast %0 : vector<1x8x32xf32> to vector<8x32xf32>
    %c0_2 = arith.constant 0 : index
    %c0_3 = arith.constant 0 : index
    %c0_4 = arith.constant 0 : index
    %2 = vector.load %arg2[%c0_2, %c0_3, %c0_4] : memref<1x8x32xf32, #tpu.memory_space<vmem>>, vector<1x8x32xf32>
    %3 = vector.shape_cast %2 : vector<1x8x32xf32> to vector<8x32xf32>
    %c0_5 = arith.constant 0 : index
    %c0_6 = arith.constant 0 : index
    %c0_7 = arith.constant 0 : index
    %4 = vector.load %arg3[%c0_5, %c0_6, %c0_7] : memref<1x8x1xf32, #tpu.memory_space<vmem>>, vector<1x8x1xf32>
    %5 = vector.shape_cast %4 : vector<1x8x1xf32> to vector<8x1xf32>
    %6 = arith.truncf %1 : vector<8x32xf32> to vector<8x32xbf16>
    %7 = vector.shape_cast %6 : vector<8x32xbf16> to vector<1x8x32xbf16>
    %8 = vector.shape_cast %7 : vector<1x8x32xbf16> to vector<1x8x32xbf16>
    %9 = vector.broadcast %8 : vector<1x8x32xbf16> to vector<4x8x32xbf16>
    %10 = arith.truncf %1 : vector<8x32xf32> to vector<8x32xbf16>
    %11 = vector.shape_cast %10 : vector<8x32xbf16> to vector<1x8x32xbf16>
    %12 = vector.shape_cast %11 : vector<1x8x32xbf16> to vector<1x8x32xbf16>
    %13 = vector.broadcast %12 : vector<1x8x32xbf16> to vector<4x8x32xbf16>
    %c0_8 = arith.constant 0 : index
    %c0_9 = arith.constant 0 : index
    %c0_10 = arith.constant 0 : index
    %c0_11 = arith.constant 0 : index
    %14 = vector.load %arg5[%c0_8, %c0_9, %c0_10, %c0_11] : memref<3x4x32x8xbf16, #tpu.memory_space<vmem>>, vector<1x4x32x8xbf16>
    %15 = vector.shape_cast %14 : vector<1x4x32x8xbf16> to vector<4x32x8xbf16>
    %c0_12 = arith.constant 0 : index
    %c0_13 = arith.constant 0 : index
    %c0_14 = arith.constant 0 : index
    %c0_15 = arith.constant 0 : index
    %16 = vector.load %arg6[%c0_12, %c0_13, %c0_14, %c0_15] : memref<3x4x1x8xf32, #tpu.memory_space<vmem>>, vector<1x4x1x8xf32>
    %17 = vector.shape_cast %16 : vector<1x4x1x8xf32> to vector<4x1x8xf32>
    "tpu.trace_start"() <{level = 10 : i32, message = "hsd,hde->hse"}> : () -> ()
    %cst = arith.constant dense<0.000000e+00> : vector<4x8x8xf32>
    %18 = tpu.matmul %9, %15, %cst {dimension_numbers = #tpu.dot_dimension_numbers<[2], [1], [1], [2], [0, 0, 0, 1, 1, 2], [0], [0]>} : vector<4x8x32xbf16>, vector<4x32x8xbf16>, vector<4x8x8xf32> -> vector<4x8x8xf32>
    "tpu.trace_stop"() : () -> ()
    %19 = vector.broadcast %17 : vector<4x1x8xf32> to vector<4x8x8xf32>
    %20 = arith.addf %18, %19 : vector<4x8x8xf32>
    %c1 = arith.constant 1 : index
    %c0_16 = arith.constant 0 : index
    %c0_17 = arith.constant 0 : index
    %c0_18 = arith.constant 0 : index
    %21 = vector.load %arg5[%c1, %c0_16, %c0_17, %c0_18] : memref<3x4x32x8xbf16, #tpu.memory_space<vmem>>, vector<1x4x32x8xbf16>
    %22 = vector.shape_cast %21 : vector<1x4x32x8xbf16> to vector<4x32x8xbf16>
    %c1_19 = arith.constant 1 : index
    %c0_20 = arith.constant 0 : index
    %c0_21 = arith.constant 0 : index
    %c0_22 = arith.constant 0 : index
    %23 = vector.load %arg6[%c1_19, %c0_20, %c0_21, %c0_22] : memref<3x4x1x8xf32, #tpu.memory_space<vmem>>, vector<1x4x1x8xf32>
    %24 = vector.shape_cast %23 : vector<1x4x1x8xf32> to vector<4x1x8xf32>
    "tpu.trace_start"() <{level = 10 : i32, message = "hsd,hde->hse"}> : () -> ()
    %cst_23 = arith.constant dense<0.000000e+00> : vector<4x8x8xf32>
    %25 = tpu.matmul %13, %22, %cst_23 {dimension_numbers = #tpu.dot_dimension_numbers<[2], [1], [1], [2], [0, 0, 0, 1, 1, 2], [0], [0]>} : vector<4x8x32xbf16>, vector<4x32x8xbf16>, vector<4x8x8xf32> -> vector<4x8x8xf32>
    "tpu.trace_stop"() : () -> ()
    %26 = vector.broadcast %24 : vector<4x1x8xf32> to vector<4x8x8xf32>
    %27 = arith.addf %25, %26 : vector<4x8x8xf32>
    %c2 = arith.constant 2 : index
    %c0_24 = arith.constant 0 : index
    %c0_25 = arith.constant 0 : index
    %c0_26 = arith.constant 0 : index
    %28 = vector.load %arg5[%c2, %c0_24, %c0_25, %c0_26] : memref<3x4x32x8xbf16, #tpu.memory_space<vmem>>, vector<1x4x32x8xbf16>
    %29 = vector.shape_cast %28 : vector<1x4x32x8xbf16> to vector<4x32x8xbf16>
    %c2_27 = arith.constant 2 : index
    %c0_28 = arith.constant 0 : index
    %c0_29 = arith.constant 0 : index
    %c0_30 = arith.constant 0 : index
    %30 = vector.load %arg6[%c2_27, %c0_28, %c0_29, %c0_30] : memref<3x4x1x8xf32, #tpu.memory_space<vmem>>, vector<1x4x1x8xf32>
    %31 = vector.shape_cast %30 : vector<1x4x1x8xf32> to vector<4x1x8xf32>
    "tpu.trace_start"() <{level = 10 : i32, message = "hsd,hde->hse"}> : () -> ()
    %cst_31 = arith.constant dense<0.000000e+00> : vector<4x8x8xf32>
    %32 = tpu.matmul %13, %29, %cst_31 {dimension_numbers = #tpu.dot_dimension_numbers<[2], [1], [1], [2], [0, 0, 0, 1, 1, 2], [0], [0]>} : vector<4x8x32xbf16>, vector<4x32x8xbf16>, vector<4x8x8xf32> -> vector<4x8x8xf32>
    "tpu.trace_stop"() : () -> ()
    %33 = vector.broadcast %31 : vector<4x1x8xf32> to vector<4x8x8xf32>
    %34 = arith.addf %32, %33 : vector<4x8x8xf32>
    %35 = arith.truncf %20 : vector<4x8x8xf32> to vector<4x8x8xbf16>
    %36 = arith.truncf %27 : vector<4x8x8xf32> to vector<4x8x8xbf16>
    "tpu.trace_start"() <{level = 10 : i32, message = "hqe,hke->hqk"}> : () -> ()
    %cst_32 = arith.constant dense<0.000000e+00> : vector<4x8x8xf32>
    %37 = tpu.matmul %35, %36, %cst_32 {dimension_numbers = #tpu.dot_dimension_numbers<[2], [2], [1], [1], [0, 0, 0, 1, 1, 1], [0], [0]>} : vector<4x8x8xbf16>, vector<4x8x8xbf16>, vector<4x8x8xf32> -> vector<4x8x8xf32>
    "tpu.trace_stop"() : () -> ()
    %cst_33 = arith.constant 0.353553385 : f32
    %38 = vector.broadcast %cst_33 : f32 to vector<4x8x8xf32>
    %39 = arith.mulf %37, %38 : vector<4x8x8xf32>
    %40 = vector.shape_cast %5 : vector<8x1xf32> to vector<1x8x1xf32>
    %cst_34 = arith.constant 5.000000e-01 : f32
    %41 = vector.broadcast %cst_34 : f32 to vector<1x8x1xf32>
    %42 = arith.cmpf ogt, %40, %41 : vector<1x8x1xf32>
    %cst_35 = arith.constant -1.000000e+09 : f32
    %43 = vector.shape_cast %42 : vector<1x8x1xi1> to vector<1x8x1xi1>
    %44 = vector.broadcast %43 : vector<1x8x1xi1> to vector<4x8x8xi1>
    %45 = vector.broadcast %cst_35 : f32 to vector<4x8x8xf32>
    %46 = arith.select %44, %39, %45 : vector<4x8x8xi1>, vector<4x8x8xf32>
    %47 = tpu.iota {dimensions = array<i32: 0>} : vector<8x8xi32>
    %48 = tpu.iota {dimensions = array<i32: 1>} : vector<8x8xi32>
    %49 = arith.cmpi sge, %47, %48 : vector<8x8xi32>
    %50 = vector.shape_cast %49 : vector<8x8xi1> to vector<1x8x8xi1>
    %cst_36 = arith.constant -1.000000e+09 : f32
    %51 = vector.shape_cast %50 : vector<1x8x8xi1> to vector<1x8x8xi1>
    %52 = vector.broadcast %51 : vector<1x8x8xi1> to vector<4x8x8xi1>
    %53 = vector.broadcast %cst_36 : f32 to vector<4x8x8xf32>
    %54 = arith.select %52, %46, %53 : vector<4x8x8xi1>, vector<4x8x8xf32>
    %cst_37 = arith.constant dense<0xFF800000> : vector<4x8xf32>
    %55 = vector.multi_reduction <maximumf>, %54, %cst_37 [2] : vector<4x8x8xf32> to vector<4x8xf32>
    %56 = vector.shape_cast %55 : vector<4x8xf32> to vector<4x8x1xf32>
    %57 = vector.broadcast %56 : vector<4x8x1xf32> to vector<4x8x8xf32>
    %58 = arith.subf %54, %57 : vector<4x8x8xf32>
    %59 = math.exp %58 : vector<4x8x8xf32>
    %cst_38 = arith.constant dense<0.000000e+00> : vector<4x8xf32>
    %60 = vector.multi_reduction <add>, %59, %cst_38 [2] : vector<4x8x8xf32> to vector<4x8xf32>
    %61 = vector.shape_cast %60 : vector<4x8xf32> to vector<4x8x1xf32>
    %62 = tpu.reciprocal %61 : vector<4x8x1xf32> -> vector<4x8x1xf32>
    %63 = vector.broadcast %62 : vector<4x8x1xf32> to vector<4x8x8xf32>
    %64 = arith.mulf %59, %63 : vector<4x8x8xf32>
    %65 = arith.truncf %64 : vector<4x8x8xf32> to vector<4x8x8xbf16>
    %66 = arith.truncf %34 : vector<4x8x8xf32> to vector<4x8x8xbf16>
    "tpu.trace_start"() <{level = 10 : i32, message = "hqk,hke->hqe"}> : () -> ()
    %cst_39 = arith.constant dense<0.000000e+00> : vector<4x8x8xf32>
    %67 = tpu.matmul %65, %66, %cst_39 {dimension_numbers = #tpu.dot_dimension_numbers<[2], [1], [1], [2], [0, 0, 0, 1, 1, 2], [0], [0]>} : vector<4x8x8xbf16>, vector<4x8x8xbf16>, vector<4x8x8xf32> -> vector<4x8x8xf32>
    "tpu.trace_stop"() : () -> ()
    %68 = arith.truncf %67 : vector<4x8x8xf32> to vector<4x8x8xbf16>
    %c0_40 = arith.constant 0 : index
    %c0_41 = arith.constant 0 : index
    %c0_42 = arith.constant 0 : index
    %69 = vector.load %arg7[%c0_40, %c0_41, %c0_42] : memref<4x8x32xbf16, #tpu.memory_space<vmem>>, vector<4x8x32xbf16>
    "tpu.trace_start"() <{level = 10 : i32, message = "hqe,hed->hqd"}> : () -> ()
    %cst_43 = arith.constant dense<0.000000e+00> : vector<4x8x32xf32>
    %70 = tpu.matmul %68, %69, %cst_43 {dimension_numbers = #tpu.dot_dimension_numbers<[2], [1], [1], [2], [0, 0, 0, 1, 1, 2], [0], [0]>} : vector<4x8x8xbf16>, vector<4x8x32xbf16>, vector<4x8x32xf32> -> vector<4x8x32xf32>
    "tpu.trace_stop"() : () -> ()
    %cst_44 = arith.constant dense<0.000000e+00> : vector<8x32xf32>
    %71 = vector.multi_reduction <add>, %70, %cst_44 [0] : vector<4x8x32xf32> to vector<8x32xf32>
    %c0_45 = arith.constant 0 : index
    %c0_46 = arith.constant 0 : index
    %72 = vector.load %arg8[%c0_45, %c0_46] : memref<1x32xf32, #tpu.memory_space<vmem>>, vector<1x32xf32>
    %73 = vector.broadcast %72 : vector<1x32xf32> to vector<8x32xf32>
    %74 = arith.addf %71, %73 : vector<8x32xf32>
    %75 = arith.addf %1, %74 : vector<8x32xf32>
    %c0_47 = arith.constant 0 : index
    %c0_48 = arith.constant 0 : index
    %76 = vector.load %arg9[%c0_47, %c0_48] : memref<1x32xf32, #tpu.memory_space<vmem>>, vector<1x32xf32>
    %c0_49 = arith.constant 0 : index
    %c0_50 = arith.constant 0 : index
    %77 = vector.load %arg10[%c0_49, %c0_50] : memref<1x32xf32, #tpu.memory_space<vmem>>, vector<1x32xf32>
    %cst_51 = arith.constant dense<0.000000e+00> : vector<8xf32>
    %78 = vector.multi_reduction <add>, %75, %cst_51 [1] : vector<8x32xf32> to vector<8xf32>
    %79 = vector.shape_cast %78 : vector<8xf32> to vector<8x1xf32>
    %cst_52 = arith.constant 3.200000e+01 : f32
    %80 = vector.broadcast %cst_52 : f32 to vector<8x1xf32>
    %81 = arith.divf %79, %80 : vector<8x1xf32>
    %82 = vector.broadcast %81 : vector<8x1xf32> to vector<8x32xf32>
    %83 = arith.subf %75, %82 : vector<8x32xf32>
    %84 = arith.mulf %83, %83 : vector<8x32xf32>
    %cst_53 = arith.constant dense<0.000000e+00> : vector<8xf32>
    %85 = vector.multi_reduction <add>, %84, %cst_53 [1] : vector<8x32xf32> to vector<8xf32>
    %86 = vector.shape_cast %85 : vector<8xf32> to vector<8x1xf32>
    %cst_54 = arith.constant 3.200000e+01 : f32
    %87 = vector.broadcast %cst_54 : f32 to vector<8x1xf32>
    %88 = arith.divf %86, %87 : vector<8x1xf32>
    %89 = vector.broadcast %81 : vector<8x1xf32> to vector<8x32xf32>
    %90 = arith.subf %75, %89 : vector<8x32xf32>
    %cst_55 = arith.constant 9.99999974E-6 : f32
    %91 = vector.broadcast %cst_55 : f32 to vector<8x1xf32>
    %92 = arith.addf %88, %91 : vector<8x1xf32>
    %93 = math.rsqrt %92 : vector<8x1xf32>
    %94 = vector.broadcast %93 : vector<8x1xf32> to vector<8x32xf32>
    %95 = arith.mulf %90, %94 : vector<8x32xf32>
    %96 = vector.broadcast %76 : vector<1x32xf32> to vector<8x32xf32>
    %97 = arith.mulf %95, %96 : vector<8x32xf32>
    %98 = vector.broadcast %77 : vector<1x32xf32> to vector<8x32xf32>
    %99 = arith.addf %97, %98 : vector<8x32xf32>
    %c0_56 = arith.constant 0 : index
    %c0_57 = arith.constant 0 : index
    %c0_58 = arith.constant 0 : index
    %100 = vector.load %arg4[%c0_56, %c0_57, %c0_58] : memref<1x1x8xf32, #tpu.memory_space<vmem>>, vector<1x1x8xf32>
    %101 = vector.shape_cast %100 : vector<1x1x8xf32> to vector<1x8xf32>
    %102 = arith.truncf %99 : vector<8x32xf32> to vector<8x32xbf16>
    %103 = vector.shape_cast %102 : vector<8x32xbf16> to vector<1x8x32xbf16>
    %104 = vector.shape_cast %103 : vector<1x8x32xbf16> to vector<1x8x32xbf16>
    %105 = vector.broadcast %104 : vector<1x8x32xbf16> to vector<4x8x32xbf16>
    %106 = arith.truncf %3 : vector<8x32xf32> to vector<8x32xbf16>
    %107 = vector.shape_cast %106 : vector<8x32xbf16> to vector<1x8x32xbf16>
    %108 = vector.shape_cast %107 : vector<1x8x32xbf16> to vector<1x8x32xbf16>
    %109 = vector.broadcast %108 : vector<1x8x32xbf16> to vector<4x8x32xbf16>
    %c0_59 = arith.constant 0 : index
    %c0_60 = arith.constant 0 : index
    %c0_61 = arith.constant 0 : index
    %c0_62 = arith.constant 0 : index
    %110 = vector.load %arg11[%c0_59, %c0_60, %c0_61, %c0_62] : memref<3x4x32x8xbf16, #tpu.memory_space<vmem>>, vector<1x4x32x8xbf16>
    %111 = vector.shape_cast %110 : vector<1x4x32x8xbf16> to vector<4x32x8xbf16>
    %c0_63 = arith.constant 0 : index
    %c0_64 = arith.constant 0 : index
    %c0_65 = arith.constant 0 : index
    %c0_66 = arith.constant 0 : index
    %112 = vector.load %arg12[%c0_63, %c0_64, %c0_65, %c0_66] : memref<3x4x1x8xf32, #tpu.memory_space<vmem>>, vector<1x4x1x8xf32>
    %113 = vector.shape_cast %112 : vector<1x4x1x8xf32> to vector<4x1x8xf32>
    "tpu.trace_start"() <{level = 10 : i32, message = "hsd,hde->hse"}> : () -> ()
    %cst_67 = arith.constant dense<0.000000e+00> : vector<4x8x8xf32>
    %114 = tpu.matmul %105, %111, %cst_67 {dimension_numbers = #tpu.dot_dimension_numbers<[2], [1], [1], [2], [0, 0, 0, 1, 1, 2], [0], [0]>} : vector<4x8x32xbf16>, vector<4x32x8xbf16>, vector<4x8x8xf32> -> vector<4x8x8xf32>
    "tpu.trace_stop"() : () -> ()
    %115 = vector.broadcast %113 : vector<4x1x8xf32> to vector<4x8x8xf32>
    %116 = arith.addf %114, %115 : vector<4x8x8xf32>
    %c1_68 = arith.constant 1 : index
    %c0_69 = arith.constant 0 : index
    %c0_70 = arith.constant 0 : index
    %c0_71 = arith.constant 0 : index
    %117 = vector.load %arg11[%c1_68, %c0_69, %c0_70, %c0_71] : memref<3x4x32x8xbf16, #tpu.memory_space<vmem>>, vector<1x4x32x8xbf16>
    %118 = vector.shape_cast %117 : vector<1x4x32x8xbf16> to vector<4x32x8xbf16>
    %c1_72 = arith.constant 1 : index
    %c0_73 = arith.constant 0 : index
    %c0_74 = arith.constant 0 : index
    %c0_75 = arith.constant 0 : index
    %119 = vector.load %arg12[%c1_72, %c0_73, %c0_74, %c0_75] : memref<3x4x1x8xf32, #tpu.memory_space<vmem>>, vector<1x4x1x8xf32>
    %120 = vector.shape_cast %119 : vector<1x4x1x8xf32> to vector<4x1x8xf32>
    "tpu.trace_start"() <{level = 10 : i32, message = "hsd,hde->hse"}> : () -> ()
    %cst_76 = arith.constant dense<0.000000e+00> : vector<4x8x8xf32>
    %121 = tpu.matmul %109, %118, %cst_76 {dimension_numbers = #tpu.dot_dimension_numbers<[2], [1], [1], [2], [0, 0, 0, 1, 1, 2], [0], [0]>} : vector<4x8x32xbf16>, vector<4x32x8xbf16>, vector<4x8x8xf32> -> vector<4x8x8xf32>
    "tpu.trace_stop"() : () -> ()
    %122 = vector.broadcast %120 : vector<4x1x8xf32> to vector<4x8x8xf32>
    %123 = arith.addf %121, %122 : vector<4x8x8xf32>
    %c2_77 = arith.constant 2 : index
    %c0_78 = arith.constant 0 : index
    %c0_79 = arith.constant 0 : index
    %c0_80 = arith.constant 0 : index
    %124 = vector.load %arg11[%c2_77, %c0_78, %c0_79, %c0_80] : memref<3x4x32x8xbf16, #tpu.memory_space<vmem>>, vector<1x4x32x8xbf16>
    %125 = vector.shape_cast %124 : vector<1x4x32x8xbf16> to vector<4x32x8xbf16>
    %c2_81 = arith.constant 2 : index
    %c0_82 = arith.constant 0 : index
    %c0_83 = arith.constant 0 : index
    %c0_84 = arith.constant 0 : index
    %126 = vector.load %arg12[%c2_81, %c0_82, %c0_83, %c0_84] : memref<3x4x1x8xf32, #tpu.memory_space<vmem>>, vector<1x4x1x8xf32>
    %127 = vector.shape_cast %126 : vector<1x4x1x8xf32> to vector<4x1x8xf32>
    "tpu.trace_start"() <{level = 10 : i32, message = "hsd,hde->hse"}> : () -> ()
    %cst_85 = arith.constant dense<0.000000e+00> : vector<4x8x8xf32>
    %128 = tpu.matmul %109, %125, %cst_85 {dimension_numbers = #tpu.dot_dimension_numbers<[2], [1], [1], [2], [0, 0, 0, 1, 1, 2], [0], [0]>} : vector<4x8x32xbf16>, vector<4x32x8xbf16>, vector<4x8x8xf32> -> vector<4x8x8xf32>
    "tpu.trace_stop"() : () -> ()
    %129 = vector.broadcast %127 : vector<4x1x8xf32> to vector<4x8x8xf32>
    %130 = arith.addf %128, %129 : vector<4x8x8xf32>
    %131 = arith.truncf %116 : vector<4x8x8xf32> to vector<4x8x8xbf16>
    %132 = arith.truncf %123 : vector<4x8x8xf32> to vector<4x8x8xbf16>
    "tpu.trace_start"() <{level = 10 : i32, message = "hqe,hke->hqk"}> : () -> ()
    %cst_86 = arith.constant dense<0.000000e+00> : vector<4x8x8xf32>
    %133 = tpu.matmul %131, %132, %cst_86 {dimension_numbers = #tpu.dot_dimension_numbers<[2], [2], [1], [1], [0, 0, 0, 1, 1, 1], [0], [0]>} : vector<4x8x8xbf16>, vector<4x8x8xbf16>, vector<4x8x8xf32> -> vector<4x8x8xf32>
    "tpu.trace_stop"() : () -> ()
    %cst_87 = arith.constant 0.353553385 : f32
    %134 = vector.broadcast %cst_87 : f32 to vector<4x8x8xf32>
    %135 = arith.mulf %133, %134 : vector<4x8x8xf32>
    %136 = vector.shape_cast %101 : vector<1x8xf32> to vector<1x1x8xf32>
    %cst_88 = arith.constant 5.000000e-01 : f32
    %137 = vector.broadcast %cst_88 : f32 to vector<1x1x8xf32>
    %138 = arith.cmpf ogt, %136, %137 : vector<1x1x8xf32>
    %cst_89 = arith.constant -1.000000e+09 : f32
    %139 = vector.shape_cast %138 : vector<1x1x8xi1> to vector<1x1x8xi1>
    %140 = vector.broadcast %139 : vector<1x1x8xi1> to vector<4x8x8xi1>
    %141 = vector.broadcast %cst_89 : f32 to vector<4x8x8xf32>
    %142 = arith.select %140, %135, %141 : vector<4x8x8xi1>, vector<4x8x8xf32>
    %cst_90 = arith.constant dense<0xFF800000> : vector<4x8xf32>
    %143 = vector.multi_reduction <maximumf>, %142, %cst_90 [2] : vector<4x8x8xf32> to vector<4x8xf32>
    %144 = vector.shape_cast %143 : vector<4x8xf32> to vector<4x8x1xf32>
    %145 = vector.broadcast %144 : vector<4x8x1xf32> to vector<4x8x8xf32>
    %146 = arith.subf %142, %145 : vector<4x8x8xf32>
    %147 = math.exp %146 : vector<4x8x8xf32>
    %cst_91 = arith.constant dense<0.000000e+00> : vector<4x8xf32>
    %148 = vector.multi_reduction <add>, %147, %cst_91 [2] : vector<4x8x8xf32> to vector<4x8xf32>
    %149 = vector.shape_cast %148 : vector<4x8xf32> to vector<4x8x1xf32>
    %150 = tpu.reciprocal %149 : vector<4x8x1xf32> -> vector<4x8x1xf32>
    %151 = vector.broadcast %150 : vector<4x8x1xf32> to vector<4x8x8xf32>
    %152 = arith.mulf %147, %151 : vector<4x8x8xf32>
    %153 = arith.truncf %152 : vector<4x8x8xf32> to vector<4x8x8xbf16>
    %154 = arith.truncf %130 : vector<4x8x8xf32> to vector<4x8x8xbf16>
    "tpu.trace_start"() <{level = 10 : i32, message = "hqk,hke->hqe"}> : () -> ()
    %cst_92 = arith.constant dense<0.000000e+00> : vector<4x8x8xf32>
    %155 = tpu.matmul %153, %154, %cst_92 {dimension_numbers = #tpu.dot_dimension_numbers<[2], [1], [1], [2], [0, 0, 0, 1, 1, 2], [0], [0]>} : vector<4x8x8xbf16>, vector<4x8x8xbf16>, vector<4x8x8xf32> -> vector<4x8x8xf32>
    "tpu.trace_stop"() : () -> ()
    %156 = arith.truncf %155 : vector<4x8x8xf32> to vector<4x8x8xbf16>
    %c0_93 = arith.constant 0 : index
    %c0_94 = arith.constant 0 : index
    %c0_95 = arith.constant 0 : index
    %157 = vector.load %arg13[%c0_93, %c0_94, %c0_95] : memref<4x8x32xbf16, #tpu.memory_space<vmem>>, vector<4x8x32xbf16>
    "tpu.trace_start"() <{level = 10 : i32, message = "hqe,hed->hqd"}> : () -> ()
    %cst_96 = arith.constant dense<0.000000e+00> : vector<4x8x32xf32>
    %158 = tpu.matmul %156, %157, %cst_96 {dimension_numbers = #tpu.dot_dimension_numbers<[2], [1], [1], [2], [0, 0, 0, 1, 1, 2], [0], [0]>} : vector<4x8x8xbf16>, vector<4x8x32xbf16>, vector<4x8x32xf32> -> vector<4x8x32xf32>
    "tpu.trace_stop"() : () -> ()
    %cst_97 = arith.constant dense<0.000000e+00> : vector<8x32xf32>
    %159 = vector.multi_reduction <add>, %158, %cst_97 [0] : vector<4x8x32xf32> to vector<8x32xf32>
    %c0_98 = arith.constant 0 : index
    %c0_99 = arith.constant 0 : index
    %160 = vector.load %arg14[%c0_98, %c0_99] : memref<1x32xf32, #tpu.memory_space<vmem>>, vector<1x32xf32>
    %161 = vector.broadcast %160 : vector<1x32xf32> to vector<8x32xf32>
    %162 = arith.addf %159, %161 : vector<8x32xf32>
    %163 = arith.addf %99, %162 : vector<8x32xf32>
    %c0_100 = arith.constant 0 : index
    %c0_101 = arith.constant 0 : index
    %164 = vector.load %arg15[%c0_100, %c0_101] : memref<1x32xf32, #tpu.memory_space<vmem>>, vector<1x32xf32>
    %c0_102 = arith.constant 0 : index
    %c0_103 = arith.constant 0 : index
    %165 = vector.load %arg16[%c0_102, %c0_103] : memref<1x32xf32, #tpu.memory_space<vmem>>, vector<1x32xf32>
    %cst_104 = arith.constant dense<0.000000e+00> : vector<8xf32>
    %166 = vector.multi_reduction <add>, %163, %cst_104 [1] : vector<8x32xf32> to vector<8xf32>
    %167 = vector.shape_cast %166 : vector<8xf32> to vector<8x1xf32>
    %cst_105 = arith.constant 3.200000e+01 : f32
    %168 = vector.broadcast %cst_105 : f32 to vector<8x1xf32>
    %169 = arith.divf %167, %168 : vector<8x1xf32>
    %170 = vector.broadcast %169 : vector<8x1xf32> to vector<8x32xf32>
    %171 = arith.subf %163, %170 : vector<8x32xf32>
    %172 = arith.mulf %171, %171 : vector<8x32xf32>
    %cst_106 = arith.constant dense<0.000000e+00> : vector<8xf32>
    %173 = vector.multi_reduction <add>, %172, %cst_106 [1] : vector<8x32xf32> to vector<8xf32>
    %174 = vector.shape_cast %173 : vector<8xf32> to vector<8x1xf32>
    %cst_107 = arith.constant 3.200000e+01 : f32
    %175 = vector.broadcast %cst_107 : f32 to vector<8x1xf32>
    %176 = arith.divf %174, %175 : vector<8x1xf32>
    %177 = vector.broadcast %169 : vector<8x1xf32> to vector<8x32xf32>
    %178 = arith.subf %163, %177 : vector<8x32xf32>
    %cst_108 = arith.constant 9.99999974E-6 : f32
    %179 = vector.broadcast %cst_108 : f32 to vector<8x1xf32>
    %180 = arith.addf %176, %179 : vector<8x1xf32>
    %181 = math.rsqrt %180 : vector<8x1xf32>
    %182 = vector.broadcast %181 : vector<8x1xf32> to vector<8x32xf32>
    %183 = arith.mulf %178, %182 : vector<8x32xf32>
    %184 = vector.broadcast %164 : vector<1x32xf32> to vector<8x32xf32>
    %185 = arith.mulf %183, %184 : vector<8x32xf32>
    %186 = vector.broadcast %165 : vector<1x32xf32> to vector<8x32xf32>
    %187 = arith.addf %185, %186 : vector<8x32xf32>
    %c0_109 = arith.constant 0 : index
    %c0_110 = arith.constant 0 : index
    %188 = vector.load %arg17[%c0_109, %c0_110] : memref<32x64xbf16, #tpu.memory_space<vmem>>, vector<32x64xbf16>
    %c0_111 = arith.constant 0 : index
    %c0_112 = arith.constant 0 : index
    %189 = vector.load %arg18[%c0_111, %c0_112] : memref<1x64xf32, #tpu.memory_space<vmem>>, vector<1x64xf32>
    %c0_113 = arith.constant 0 : index
    %c0_114 = arith.constant 0 : index
    %190 = vector.load %arg19[%c0_113, %c0_114] : memref<64x32xbf16, #tpu.memory_space<vmem>>, vector<64x32xbf16>
    %c0_115 = arith.constant 0 : index
    %c0_116 = arith.constant 0 : index
    %191 = vector.load %arg20[%c0_115, %c0_116] : memref<1x32xf32, #tpu.memory_space<vmem>>, vector<1x32xf32>
    %192 = arith.truncf %187 : vector<8x32xf32> to vector<8x32xbf16>
    %cst_117 = arith.constant dense<0.000000e+00> : vector<8x64xf32>
    %193 = tpu.matmul %192, %188, %cst_117 {dimension_numbers = #tpu.dot_dimension_numbers<[1], [0], [0], [1], [0, 0, 1, 1], [], []>} : vector<8x32xbf16>, vector<32x64xbf16>, vector<8x64xf32> -> vector<8x64xf32>
    %194 = vector.broadcast %189 : vector<1x64xf32> to vector<8x64xf32>
    %195 = arith.addf %193, %194 : vector<8x64xf32>
    %cst_118 = arith.constant 0.000000e+00 : f32
    %196 = vector.broadcast %cst_118 : f32 to vector<8x64xf32>
    %197 = arith.maximumf %195, %196 : vector<8x64xf32>
    %198 = arith.truncf %197 : vector<8x64xf32> to vector<8x64xbf16>
    %cst_119 = arith.constant dense<0.000000e+00> : vector<8x32xf32>
    %199 = tpu.matmul %198, %190, %cst_119 {dimension_numbers = #tpu.dot_dimension_numbers<[1], [0], [0], [1], [0, 0, 1, 1], [], []>} : vector<8x64xbf16>, vector<64x32xbf16>, vector<8x32xf32> -> vector<8x32xf32>
    %200 = vector.broadcast %191 : vector<1x32xf32> to vector<8x32xf32>
    %201 = arith.addf %199, %200 : vector<8x32xf32>
    %202 = arith.addf %187, %201 : vector<8x32xf32>
    %c0_120 = arith.constant 0 : index
    %c0_121 = arith.constant 0 : index
    %203 = vector.load %arg21[%c0_120, %c0_121] : memref<1x32xf32, #tpu.memory_space<vmem>>, vector<1x32xf32>
    %c0_122 = arith.constant 0 : index
    %c0_123 = arith.constant 0 : index
    %204 = vector.load %arg22[%c0_122, %c0_123] : memref<1x32xf32, #tpu.memory_space<vmem>>, vector<1x32xf32>
    %cst_124 = arith.constant dense<0.000000e+00> : vector<8xf32>
    %205 = vector.multi_reduction <add>, %202, %cst_124 [1] : vector<8x32xf32> to vector<8xf32>
    %206 = vector.shape_cast %205 : vector<8xf32> to vector<8x1xf32>
    %cst_125 = arith.constant 3.200000e+01 : f32
    %207 = vector.broadcast %cst_125 : f32 to vector<8x1xf32>
    %208 = arith.divf %206, %207 : vector<8x1xf32>
    %209 = vector.broadcast %208 : vector<8x1xf32> to vector<8x32xf32>
    %210 = arith.subf %202, %209 : vector<8x32xf32>
    %211 = arith.mulf %210, %210 : vector<8x32xf32>
    %cst_126 = arith.constant dense<0.000000e+00> : vector<8xf32>
    %212 = vector.multi_reduction <add>, %211, %cst_126 [1] : vector<8x32xf32> to vector<8xf32>
    %213 = vector.shape_cast %212 : vector<8xf32> to vector<8x1xf32>
    %cst_127 = arith.constant 3.200000e+01 : f32
    %214 = vector.broadcast %cst_127 : f32 to vector<8x1xf32>
    %215 = arith.divf %213, %214 : vector<8x1xf32>
    %216 = vector.broadcast %208 : vector<8x1xf32> to vector<8x32xf32>
    %217 = arith.subf %202, %216 : vector<8x32xf32>
    %cst_128 = arith.constant 9.99999974E-6 : f32
    %218 = vector.broadcast %cst_128 : f32 to vector<8x1xf32>
    %219 = arith.addf %215, %218 : vector<8x1xf32>
    %220 = math.rsqrt %219 : vector<8x1xf32>
    %221 = vector.broadcast %220 : vector<8x1xf32> to vector<8x32xf32>
    %222 = arith.mulf %217, %221 : vector<8x32xf32>
    %223 = vector.broadcast %203 : vector<1x32xf32> to vector<8x32xf32>
    %224 = arith.mulf %222, %223 : vector<8x32xf32>
    %225 = vector.broadcast %204 : vector<1x32xf32> to vector<8x32xf32>
    %226 = arith.addf %224, %225 : vector<8x32xf32>
    %c0_129 = arith.constant 0 : index
    %c0_130 = arith.constant 0 : index
    %c0_131 = arith.constant 0 : index
    %227 = vector.load %arg23[%c0_129, %c0_130, %c0_131] : memref<1x8x32xf32, #tpu.memory_space<vmem>>, vector<1x8x32xf32>
    %228 = vector.shape_cast %227 : vector<1x8x32xf32> to vector<8x32xf32>
    %229 = vector.shape_cast %226 : vector<8x32xf32> to vector<1x8x32xf32>
    tpu.vector_store %arg23[%c0_129, %c0_130, %c0_131], %229 {strides = array<i32>} : memref<1x8x32xf32, #tpu.memory_space<vmem>>, vector<1x8x32xf32>,
    return
  }
  func.func @transform_0(%arg0: i32) -> (i32, i32, i32) {
    %c0_i32 = arith.constant 0 : i32
    %c0_i32_0 = arith.constant 0 : i32
    %c0_i32_1 = arith.constant 0 : i32
    return %arg0, %c0_i32, %c0_i32_0 : i32, i32, i32
  }
  func.func @transform_1(%arg0: i32) -> (i32, i32, i32) {
    %c0_i32 = arith.constant 0 : i32
    %c0_i32_0 = arith.constant 0 : i32
    %c0_i32_1 = arith.constant 0 : i32
    return %arg0, %c0_i32, %c0_i32_0 : i32, i32, i32
  }
  func.func @transform_2(%arg0: i32) -> (i32, i32, i32) {
    %c0_i32 = arith.constant 0 : i32
    %c0_i32_0 = arith.constant 0 : i32
    %c0_i32_1 = arith.constant 0 : i32
    return %arg0, %c0_i32, %c0_i32_0 : i32, i32, i32
  }
  func.func @transform_3(%arg0: i32) -> (i32, i32, i32) {
    %c0_i32 = arith.constant 0 : i32
    %c0_i32_0 = arith.constant 0 : i32
    %c0_i32_1 = arith.constant 0 : i32
    return %arg0, %c0_i32, %c0_i32_0 : i32, i32, i32
  }
  func.func @transform_4(%arg0: i32) -> (i32, i32, i32, i32) {
    %c0_i32 = arith.constant 0 : i32
    %c0_i32_0 = arith.constant 0 : i32
    %c0_i32_1 = arith.constant 0 : i32
    %c0_i32_2 = arith.constant 0 : i32
    %c0_i32_3 = arith.constant 0 : i32
    return %c0_i32, %c0_i32_0, %c0_i32_1, %c0_i32_2 : i32, i32, i32, i32
  }
  func.func @transform_5(%arg0: i32) -> (i32, i32, i32, i32) {
    %c0_i32 = arith.constant 0 : i32
    %c0_i32_0 = arith.constant 0 : i32
    %c0_i32_1 = arith.constant 0 : i32
    %c0_i32_2 = arith.constant 0 : i32
    %c0_i32_3 = arith.constant 0 : i32
    return %c0_i32, %c0_i32_0, %c0_i32_1, %c0_i32_2 : i32, i32, i32, i32
  }
  func.func @transform_6(%arg0: i32) -> (i32, i32, i32) {
    %c0_i32 = arith.constant 0 : i32
    %c0_i32_0 = arith.constant 0 : i32
    %c0_i32_1 = arith.constant 0 : i32
    %c0_i32_2 = arith.constant 0 : i32
    return %c0_i32, %c0_i32_0, %c0_i32_1 : i32, i32, i32
  }
  func.func @transform_7(%arg0: i32) -> (i32, i32) {
    %c0_i32 = arith.constant 0 : i32
    %c0_i32_0 = arith.constant 0 : i32
    %c0_i32_1 = arith.constant 0 : i32
    return %c0_i32, %c0_i32_0 : i32, i32
  }
  func.func @transform_8(%arg0: i32) -> (i32, i32) {
    %c0_i32 = arith.constant 0 : i32
    %c0_i32_0 = arith.constant 0 : i32
    %c0_i32_1 = arith.constant 0 : i32
    return %c0_i32, %c0_i32_0 : i32, i32
  }
  func.func @transform_9(%arg0: i32) -> (i32, i32) {
    %c0_i32 = arith.constant 0 : i32
    %c0_i32_0 = arith.constant 0 : i32
    %c0_i32_1 = arith.constant 0 : i32
    return %c0_i32, %c0_i32_0 : i32, i32
  }
  func.func @transform_10(%arg0: i32) -> (i32, i32, i32, i32) {
    %c0_i32 = arith.constant 0 : i32
    %c0_i32_0 = arith.constant 0 : i32
    %c0_i32_1 = arith.constant 0 : i32
    %c0_i32_2 = arith.constant 0 : i32
    %c0_i32_3 = arith.constant 0 : i32
    return %c0_i32, %c0_i32_0, %c0_i32_1, %c0_i32_2 : i32, i32, i32, i32
  }
  func.func @transform_11(%arg0: i32) -> (i32, i32, i32, i32) {
    %c0_i32 = arith.constant 0 : i32
    %c0_i32_0 = arith.constant 0 : i32
    %c0_i32_1 = arith.constant 0 : i32
    %c0_i32_2 = arith.constant 0 : i32
    %c0_i32_3 = arith.constant 0 : i32
    return %c0_i32, %c0_i32_0, %c0_i32_1, %c0_i32_2 : i32, i32, i32, i32
  }
  func.func @transform_12(%arg0: i32) -> (i32, i32, i32) {
    %c0_i32 = arith.constant 0 : i32
    %c0_i32_0 = arith.constant 0 : i32
    %c0_i32_1 = arith.constant 0 : i32
    %c0_i32_2 = arith.constant 0 : i32
    return %c0_i32, %c0_i32_0, %c0_i32_1 : i32, i32, i32
  }
  func.func @transform_13(%arg0: i32) -> (i32, i32) {
    %c0_i32 = arith.constant 0 : i32
    %c0_i32_0 = arith.constant 0 : i32
    %c0_i32_1 = arith.constant 0 : i32
    return %c0_i32, %c0_i32_0 : i32, i32
  }
  func.func @transform_14(%arg0: i32) -> (i32, i32) {
    %c0_i32 = arith.constant 0 : i32
    %c0_i32_0 = arith.constant 0 : i32
    %c0_i32_1 = arith.constant 0 : i32
    return %c0_i32, %c0_i32_0 : i32, i32
  }
  func.func @transform_15(%arg0: i32) -> (i32, i32) {
    %c0_i32 = arith.constant 0 : i32
    %c0_i32_0 = arith.constant 0 : i32
    %c0_i32_1 = arith.constant 0 : i32
    return %c0_i32, %c0_i32_0 : i32, i32
  }
  func.func @transform_16(%arg0: i32) -> (i32, i32) {
    %c0_i32 = arith.constant 0 : i32
    %c0_i32_0 = arith.constant 0 : i32
    %c0_i32_1 = arith.constant 0 : i32
    return %c0_i32, %c0_i32_0 : i32, i32
  }
  func.func @transform_17(%arg0: i32) -> (i32, i32) {
    %c0_i32 = arith.constant 0 : i32
    %c0_i32_0 = arith.constant 0 : i32
    %c0_i32_1 = arith.constant 0 : i32
    return %c0_i32, %c0_i32_0 : i32, i32
  }
  func.func @transform_18(%arg0: i32) -> (i32, i32) {
    %c0_i32 = arith.constant 0 : i32
    %c0_i32_0 = arith.constant 0 : i32
    %c0_i32_1 = arith.constant 0 : i32
    return %c0_i32, %c0_i32_0 : i32, i32
  }
  func.func @transform_19(%arg0: i32) -> (i32, i32) {
    %c0_i32 = arith.constant 0 : i32
    %c0_i32_0 = arith.constant 0 : i32
    %c0_i32_1 = arith.constant 0 : i32
    return %c0_i32, %c0_i32_0 : i32, i32
  }
  func.func @transform_20(%arg0: i32) -> (i32, i32) {
    %c0_i32 = arith.constant 0 : i32
    %c0_i32_0 = arith.constant 0 : i32
    %c0_i32_1 = arith.constant 0 : i32
    return %c0_i32, %c0_i32_0 : i32, i32
  }
  func.func @transform_21(%arg0: i32) -> (i32, i32) {
    %c0_i32 = arith.constant 0 : i32
    %c0_i32_0 = arith.constant 0 : i32
    %c0_i32_1 = arith.constant 0 : i32
    return %c0_i32, %c0_i32_0 : i32, i32
  }
  func.func @transform_22(%arg0: i32) -> (i32, i32, i32) {
    %c0_i32 = arith.constant 0 : i32
    %c0_i32_0 = arith.constant 0 : i32
    %c0_i32_1 = arith.constant 0 : i32
    return %arg0, %c0_i32, %c0_i32_0 : i32, i32, i32
  }
}

module attributes {stable_mosaic.version = 11 : i64} {
  func.func @_out_proj_kernel(%arg0: i32, %arg1: i32, %arg2: memref<1x8x32xf32, #tpu.memory_space<vmem>>, %arg3: memref<32x32xbf16, #tpu.memory_space<vmem>>, %arg4: memref<1x32xf32, #tpu.memory_space<vmem>>, %arg5: memref<1x8x32xf32, #tpu.memory_space<vmem>>) attributes {dimension_semantics = [#tpu.dimension_semantics<parallel>, #tpu.dimension_semantics<parallel>], iteration_bounds = array<i64: 2, 1>, scalar_prefetch = 0 : i64, scratch_operands = 0 : i64, tpu.core_type = #tpu.core_type<tc>, window_params = [{transform_indices = @transform_0, window_bounds = array<i64: 1, 8, 32>}, {transform_indices = @transform_1, window_bounds = array<i64: 32, 32>}, {transform_indices = @transform_2, window_bounds = array<i64: 1, 32>}, {transform_indices = @transform_3, window_bounds = array<i64: 1, 8, 32>}]} {
    %c0 = arith.constant 0 : index
    %c0_0 = arith.constant 0 : index
    %c0_1 = arith.constant 0 : index
    %0 = vector.load %arg2[%c0, %c0_0, %c0_1] : memref<1x8x32xf32, #tpu.memory_space<vmem>>, vector<1x8x32xf32>
    %1 = vector.shape_cast %0 : vector<1x8x32xf32> to vector<8x32xf32>
    %2 = arith.truncf %1 : vector<8x32xf32> to vector<8x32xbf16>
    %c0_2 = arith.constant 0 : index
    %c0_3 = arith.constant 0 : index
    %3 = vector.load %arg3[%c0_2, %c0_3] : memref<32x32xbf16, #tpu.memory_space<vmem>>, vector<32x32xbf16>
    %cst = arith.constant dense<0.000000e+00> : vector<8x32xf32>
    %4 = tpu.matmul %2, %3, %cst {dimension_numbers = #tpu.dot_dimension_numbers<[1], [0], [0], [1], [0, 0, 1, 1], [], []>} : vector<8x32xbf16>, vector<32x32xbf16>, vector<8x32xf32> -> vector<8x32xf32>
    %c0_4 = arith.constant 0 : index
    %c0_5 = arith.constant 0 : index
    %5 = vector.load %arg4[%c0_4, %c0_5] : memref<1x32xf32, #tpu.memory_space<vmem>>, vector<1x32xf32>
    %6 = vector.broadcast %5 : vector<1x32xf32> to vector<8x32xf32>
    %7 = arith.addf %4, %6 : vector<8x32xf32>
    %c0_6 = arith.constant 0 : index
    %c0_7 = arith.constant 0 : index
    %c0_8 = arith.constant 0 : index
    %8 = vector.load %arg5[%c0_6, %c0_7, %c0_8] : memref<1x8x32xf32, #tpu.memory_space<vmem>>, vector<1x8x32xf32>
    %9 = vector.shape_cast %8 : vector<1x8x32xf32> to vector<8x32xf32>
    %10 = vector.shape_cast %7 : vector<8x32xf32> to vector<1x8x32xf32>
    tpu.vector_store %arg5[%c0_6, %c0_7, %c0_8], %10 {strides = array<i32>} : memref<1x8x32xf32, #tpu.memory_space<vmem>>, vector<1x8x32xf32>,
    return
  }
  func.func @transform_0(%arg0: i32, %arg1: i32) -> (i32, i32, i32) {
    %c0_i32 = arith.constant 0 : i32
    %c0_i32_0 = arith.constant 0 : i32
    %c0_i32_1 = arith.constant 0 : i32
    return %arg0, %c0_i32, %c0_i32_0 : i32, i32, i32
  }
  func.func @transform_1(%arg0: i32, %arg1: i32) -> (i32, i32) {
    %c0_i32 = arith.constant 0 : i32
    %c0_i32_0 = arith.constant 0 : i32
    return %c0_i32, %arg1 : i32, i32
  }
  func.func @transform_2(%arg0: i32, %arg1: i32) -> (i32, i32) {
    %c0_i32 = arith.constant 0 : i32
    %c0_i32_0 = arith.constant 0 : i32
    return %c0_i32, %arg1 : i32, i32
  }
  func.func @transform_3(%arg0: i32, %arg1: i32) -> (i32, i32, i32) {
    %c0_i32 = arith.constant 0 : i32
    %c0_i32_0 = arith.constant 0 : i32
    return %arg0, %c0_i32, %arg1 : i32, i32, i32
  }
}

module attributes {stable_mosaic.version = 11 : i64} {
  func.func @_encoder_layer_kernel(%arg0: i32, %arg1: memref<1x8x32xf32, #tpu.memory_space<vmem>>, %arg2: memref<1x1x8xf32, #tpu.memory_space<vmem>>, %arg3: memref<3x4x32x8xbf16, #tpu.memory_space<vmem>>, %arg4: memref<3x4x1x8xf32, #tpu.memory_space<vmem>>, %arg5: memref<4x8x32xbf16, #tpu.memory_space<vmem>>, %arg6: memref<1x32xf32, #tpu.memory_space<vmem>>, %arg7: memref<1x32xf32, #tpu.memory_space<vmem>>, %arg8: memref<1x32xf32, #tpu.memory_space<vmem>>, %arg9: memref<32x64xbf16, #tpu.memory_space<vmem>>, %arg10: memref<1x64xf32, #tpu.memory_space<vmem>>, %arg11: memref<64x32xbf16, #tpu.memory_space<vmem>>, %arg12: memref<1x32xf32, #tpu.memory_space<vmem>>, %arg13: memref<1x32xf32, #tpu.memory_space<vmem>>, %arg14: memref<1x32xf32, #tpu.memory_space<vmem>>, %arg15: memref<1x8x32xf32, #tpu.memory_space<vmem>>) attributes {dimension_semantics = [#tpu.dimension_semantics<parallel>], iteration_bounds = array<i64: 2>, scalar_prefetch = 0 : i64, scratch_operands = 0 : i64, tpu.core_type = #tpu.core_type<tc>, window_params = [{transform_indices = @transform_0, window_bounds = array<i64: 1, 8, 32>}, {transform_indices = @transform_1, window_bounds = array<i64: 1, 1, 8>}, {pipeline_mode = #tpu.pipeline_mode<synchronous>, transform_indices = @transform_2, window_bounds = array<i64: 3, 4, 32, 8>}, {pipeline_mode = #tpu.pipeline_mode<synchronous>, transform_indices = @transform_3, window_bounds = array<i64: 3, 4, 1, 8>}, {pipeline_mode = #tpu.pipeline_mode<synchronous>, transform_indices = @transform_4, window_bounds = array<i64: 4, 8, 32>}, {pipeline_mode = #tpu.pipeline_mode<synchronous>, transform_indices = @transform_5, window_bounds = array<i64: 1, 32>}, {pipeline_mode = #tpu.pipeline_mode<synchronous>, transform_indices = @transform_6, window_bounds = array<i64: 1, 32>}, {pipeline_mode = #tpu.pipeline_mode<synchronous>, transform_indices = @transform_7, window_bounds = array<i64: 1, 32>}, {pipeline_mode = #tpu.pipeline_mode<synchronous>, transform_indices = @transform_8, window_bounds = array<i64: 32, 64>}, {pipeline_mode = #tpu.pipeline_mode<synchronous>, transform_indices = @transform_9, window_bounds = array<i64: 1, 64>}, {pipeline_mode = #tpu.pipeline_mode<synchronous>, transform_indices = @transform_10, window_bounds = array<i64: 64, 32>}, {pipeline_mode = #tpu.pipeline_mode<synchronous>, transform_indices = @transform_11, window_bounds = array<i64: 1, 32>}, {pipeline_mode = #tpu.pipeline_mode<synchronous>, transform_indices = @transform_12, window_bounds = array<i64: 1, 32>}, {pipeline_mode = #tpu.pipeline_mode<synchronous>, transform_indices = @transform_13, window_bounds = array<i64: 1, 32>}, {transform_indices = @transform_14, window_bounds = array<i64: 1, 8, 32>}]} {
    %c0 = arith.constant 0 : index
    %c0_0 = arith.constant 0 : index
    %c0_1 = arith.constant 0 : index
    %0 = vector.load %arg1[%c0, %c0_0, %c0_1] : memref<1x8x32xf32, #tpu.memory_space<vmem>>, vector<1x8x32xf32>
    %1 = vector.shape_cast %0 : vector<1x8x32xf32> to vector<8x32xf32>
    %c0_2 = arith.constant 0 : index
    %c0_3 = arith.constant 0 : index
    %c0_4 = arith.constant 0 : index
    %2 = vector.load %arg2[%c0_2, %c0_3, %c0_4] : memref<1x1x8xf32, #tpu.memory_space<vmem>>, vector<1x1x8xf32>
    %3 = vector.shape_cast %2 : vector<1x1x8xf32> to vector<1x8xf32>
    %4 = arith.truncf %1 : vector<8x32xf32> to vector<8x32xbf16>
    %5 = vector.shape_cast %4 : vector<8x32xbf16> to vector<1x8x32xbf16>
    %6 = vector.shape_cast %5 : vector<1x8x32xbf16> to vector<1x8x32xbf16>
    %7 = vector.broadcast %6 : vector<1x8x32xbf16> to vector<4x8x32xbf16>
    %8 = arith.truncf %1 : vector<8x32xf32> to vector<8x32xbf16>
    %9 = vector.shape_cast %8 : vector<8x32xbf16> to vector<1x8x32xbf16>
    %10 = vector.shape_cast %9 : vector<1x8x32xbf16> to vector<1x8x32xbf16>
    %11 = vector.broadcast %10 : vector<1x8x32xbf16> to vector<4x8x32xbf16>
    %c0_5 = arith.constant 0 : index
    %c0_6 = arith.constant 0 : index
    %c0_7 = arith.constant 0 : index
    %c0_8 = arith.constant 0 : index
    %12 = vector.load %arg3[%c0_5, %c0_6, %c0_7, %c0_8] : memref<3x4x32x8xbf16, #tpu.memory_space<vmem>>, vector<1x4x32x8xbf16>
    %13 = vector.shape_cast %12 : vector<1x4x32x8xbf16> to vector<4x32x8xbf16>
    %c0_9 = arith.constant 0 : index
    %c0_10 = arith.constant 0 : index
    %c0_11 = arith.constant 0 : index
    %c0_12 = arith.constant 0 : index
    %14 = vector.load %arg4[%c0_9, %c0_10, %c0_11, %c0_12] : memref<3x4x1x8xf32, #tpu.memory_space<vmem>>, vector<1x4x1x8xf32>
    %15 = vector.shape_cast %14 : vector<1x4x1x8xf32> to vector<4x1x8xf32>
    "tpu.trace_start"() <{level = 10 : i32, message = "hsd,hde->hse"}> : () -> ()
    %cst = arith.constant dense<0.000000e+00> : vector<4x8x8xf32>
    %16 = tpu.matmul %7, %13, %cst {dimension_numbers = #tpu.dot_dimension_numbers<[2], [1], [1], [2], [0, 0, 0, 1, 1, 2], [0], [0]>} : vector<4x8x32xbf16>, vector<4x32x8xbf16>, vector<4x8x8xf32> -> vector<4x8x8xf32>
    "tpu.trace_stop"() : () -> ()
    %17 = vector.broadcast %15 : vector<4x1x8xf32> to vector<4x8x8xf32>
    %18 = arith.addf %16, %17 : vector<4x8x8xf32>
    %c1 = arith.constant 1 : index
    %c0_13 = arith.constant 0 : index
    %c0_14 = arith.constant 0 : index
    %c0_15 = arith.constant 0 : index
    %19 = vector.load %arg3[%c1, %c0_13, %c0_14, %c0_15] : memref<3x4x32x8xbf16, #tpu.memory_space<vmem>>, vector<1x4x32x8xbf16>
    %20 = vector.shape_cast %19 : vector<1x4x32x8xbf16> to vector<4x32x8xbf16>
    %c1_16 = arith.constant 1 : index
    %c0_17 = arith.constant 0 : index
    %c0_18 = arith.constant 0 : index
    %c0_19 = arith.constant 0 : index
    %21 = vector.load %arg4[%c1_16, %c0_17, %c0_18, %c0_19] : memref<3x4x1x8xf32, #tpu.memory_space<vmem>>, vector<1x4x1x8xf32>
    %22 = vector.shape_cast %21 : vector<1x4x1x8xf32> to vector<4x1x8xf32>
    "tpu.trace_start"() <{level = 10 : i32, message = "hsd,hde->hse"}> : () -> ()
    %cst_20 = arith.constant dense<0.000000e+00> : vector<4x8x8xf32>
    %23 = tpu.matmul %11, %20, %cst_20 {dimension_numbers = #tpu.dot_dimension_numbers<[2], [1], [1], [2], [0, 0, 0, 1, 1, 2], [0], [0]>} : vector<4x8x32xbf16>, vector<4x32x8xbf16>, vector<4x8x8xf32> -> vector<4x8x8xf32>
    "tpu.trace_stop"() : () -> ()
    %24 = vector.broadcast %22 : vector<4x1x8xf32> to vector<4x8x8xf32>
    %25 = arith.addf %23, %24 : vector<4x8x8xf32>
    %c2 = arith.constant 2 : index
    %c0_21 = arith.constant 0 : index
    %c0_22 = arith.constant 0 : index
    %c0_23 = arith.constant 0 : index
    %26 = vector.load %arg3[%c2, %c0_21, %c0_22, %c0_23] : memref<3x4x32x8xbf16, #tpu.memory_space<vmem>>, vector<1x4x32x8xbf16>
    %27 = vector.shape_cast %26 : vector<1x4x32x8xbf16> to vector<4x32x8xbf16>
    %c2_24 = arith.constant 2 : index
    %c0_25 = arith.constant 0 : index
    %c0_26 = arith.constant 0 : index
    %c0_27 = arith.constant 0 : index
    %28 = vector.load %arg4[%c2_24, %c0_25, %c0_26, %c0_27] : memref<3x4x1x8xf32, #tpu.memory_space<vmem>>, vector<1x4x1x8xf32>
    %29 = vector.shape_cast %28 : vector<1x4x1x8xf32> to vector<4x1x8xf32>
    "tpu.trace_start"() <{level = 10 : i32, message = "hsd,hde->hse"}> : () -> ()
    %cst_28 = arith.constant dense<0.000000e+00> : vector<4x8x8xf32>
    %30 = tpu.matmul %11, %27, %cst_28 {dimension_numbers = #tpu.dot_dimension_numbers<[2], [1], [1], [2], [0, 0, 0, 1, 1, 2], [0], [0]>} : vector<4x8x32xbf16>, vector<4x32x8xbf16>, vector<4x8x8xf32> -> vector<4x8x8xf32>
    "tpu.trace_stop"() : () -> ()
    %31 = vector.broadcast %29 : vector<4x1x8xf32> to vector<4x8x8xf32>
    %32 = arith.addf %30, %31 : vector<4x8x8xf32>
    %33 = arith.truncf %18 : vector<4x8x8xf32> to vector<4x8x8xbf16>
    %34 = arith.truncf %25 : vector<4x8x8xf32> to vector<4x8x8xbf16>
    "tpu.trace_start"() <{level = 10 : i32, message = "hqe,hke->hqk"}> : () -> ()
    %cst_29 = arith.constant dense<0.000000e+00> : vector<4x8x8xf32>
    %35 = tpu.matmul %33, %34, %cst_29 {dimension_numbers = #tpu.dot_dimension_numbers<[2], [2], [1], [1], [0, 0, 0, 1, 1, 1], [0], [0]>} : vector<4x8x8xbf16>, vector<4x8x8xbf16>, vector<4x8x8xf32> -> vector<4x8x8xf32>
    "tpu.trace_stop"() : () -> ()
    %cst_30 = arith.constant 0.353553385 : f32
    %36 = vector.broadcast %cst_30 : f32 to vector<4x8x8xf32>
    %37 = arith.mulf %35, %36 : vector<4x8x8xf32>
    %38 = vector.shape_cast %3 : vector<1x8xf32> to vector<1x1x8xf32>
    %cst_31 = arith.constant 5.000000e-01 : f32
    %39 = vector.broadcast %cst_31 : f32 to vector<1x1x8xf32>
    %40 = arith.cmpf ogt, %38, %39 : vector<1x1x8xf32>
    %cst_32 = arith.constant -1.000000e+09 : f32
    %41 = vector.shape_cast %40 : vector<1x1x8xi1> to vector<1x1x8xi1>
    %42 = vector.broadcast %41 : vector<1x1x8xi1> to vector<4x8x8xi1>
    %43 = vector.broadcast %cst_32 : f32 to vector<4x8x8xf32>
    %44 = arith.select %42, %37, %43 : vector<4x8x8xi1>, vector<4x8x8xf32>
    %cst_33 = arith.constant dense<0xFF800000> : vector<4x8xf32>
    %45 = vector.multi_reduction <maximumf>, %44, %cst_33 [2] : vector<4x8x8xf32> to vector<4x8xf32>
    %46 = vector.shape_cast %45 : vector<4x8xf32> to vector<4x8x1xf32>
    %47 = vector.broadcast %46 : vector<4x8x1xf32> to vector<4x8x8xf32>
    %48 = arith.subf %44, %47 : vector<4x8x8xf32>
    %49 = math.exp %48 : vector<4x8x8xf32>
    %cst_34 = arith.constant dense<0.000000e+00> : vector<4x8xf32>
    %50 = vector.multi_reduction <add>, %49, %cst_34 [2] : vector<4x8x8xf32> to vector<4x8xf32>
    %51 = vector.shape_cast %50 : vector<4x8xf32> to vector<4x8x1xf32>
    %52 = tpu.reciprocal %51 : vector<4x8x1xf32> -> vector<4x8x1xf32>
    %53 = vector.broadcast %52 : vector<4x8x1xf32> to vector<4x8x8xf32>
    %54 = arith.mulf %49, %53 : vector<4x8x8xf32>
    %55 = arith.truncf %54 : vector<4x8x8xf32> to vector<4x8x8xbf16>
    %56 = arith.truncf %32 : vector<4x8x8xf32> to vector<4x8x8xbf16>
    "tpu.trace_start"() <{level = 10 : i32, message = "hqk,hke->hqe"}> : () -> ()
    %cst_35 = arith.constant dense<0.000000e+00> : vector<4x8x8xf32>
    %57 = tpu.matmul %55, %56, %cst_35 {dimension_numbers = #tpu.dot_dimension_numbers<[2], [1], [1], [2], [0, 0, 0, 1, 1, 2], [0], [0]>} : vector<4x8x8xbf16>, vector<4x8x8xbf16>, vector<4x8x8xf32> -> vector<4x8x8xf32>
    "tpu.trace_stop"() : () -> ()
    %58 = arith.truncf %57 : vector<4x8x8xf32> to vector<4x8x8xbf16>
    %c0_36 = arith.constant 0 : index
    %c0_37 = arith.constant 0 : index
    %c0_38 = arith.constant 0 : index
    %59 = vector.load %arg5[%c0_36, %c0_37, %c0_38] : memref<4x8x32xbf16, #tpu.memory_space<vmem>>, vector<4x8x32xbf16>
    "tpu.trace_start"() <{level = 10 : i32, message = "hqe,hed->hqd"}> : () -> ()
    %cst_39 = arith.constant dense<0.000000e+00> : vector<4x8x32xf32>
    %60 = tpu.matmul %58, %59, %cst_39 {dimension_numbers = #tpu.dot_dimension_numbers<[2], [1], [1], [2], [0, 0, 0, 1, 1, 2], [0], [0]>} : vector<4x8x8xbf16>, vector<4x8x32xbf16>, vector<4x8x32xf32> -> vector<4x8x32xf32>
    "tpu.trace_stop"() : () -> ()
    %cst_40 = arith.constant dense<0.000000e+00> : vector<8x32xf32>
    %61 = vector.multi_reduction <add>, %60, %cst_40 [0] : vector<4x8x32xf32> to vector<8x32xf32>
    %c0_41 = arith.constant 0 : index
    %c0_42 = arith.constant 0 : index
    %62 = vector.load %arg6[%c0_41, %c0_42] : memref<1x32xf32, #tpu.memory_space<vmem>>, vector<1x32xf32>
    %63 = vector.broadcast %62 : vector<1x32xf32> to vector<8x32xf32>
    %64 = arith.addf %61, %63 : vector<8x32xf32>
    %65 = arith.addf %1, %64 : vector<8x32xf32>
    %c0_43 = arith.constant 0 : index
    %c0_44 = arith.constant 0 : index
    %66 = vector.load %arg7[%c0_43, %c0_44] : memref<1x32xf32, #tpu.memory_space<vmem>>, vector<1x32xf32>
    %c0_45 = arith.constant 0 : index
    %c0_46 = arith.constant 0 : index
    %67 = vector.load %arg8[%c0_45, %c0_46] : memref<1x32xf32, #tpu.memory_space<vmem>>, vector<1x32xf32>
    %cst_47 = arith.constant dense<0.000000e+00> : vector<8xf32>
    %68 = vector.multi_reduction <add>, %65, %cst_47 [1] : vector<8x32xf32> to vector<8xf32>
    %69 = vector.shape_cast %68 : vector<8xf32> to vector<8x1xf32>
    %cst_48 = arith.constant 3.200000e+01 : f32
    %70 = vector.broadcast %cst_48 : f32 to vector<8x1xf32>
    %71 = arith.divf %69, %70 : vector<8x1xf32>
    %72 = vector.broadcast %71 : vector<8x1xf32> to vector<8x32xf32>
    %73 = arith.subf %65, %72 : vector<8x32xf32>
    %74 = arith.mulf %73, %73 : vector<8x32xf32>
    %cst_49 = arith.constant dense<0.000000e+00> : vector<8xf32>
    %75 = vector.multi_reduction <add>, %74, %cst_49 [1] : vector<8x32xf32> to vector<8xf32>
    %76 = vector.shape_cast %75 : vector<8xf32> to vector<8x1xf32>
    %cst_50 = arith.constant 3.200000e+01 : f32
    %77 = vector.broadcast %cst_50 : f32 to vector<8x1xf32>
    %78 = arith.divf %76, %77 : vector<8x1xf32>
    %79 = vector.broadcast %71 : vector<8x1xf32> to vector<8x32xf32>
    %80 = arith.subf %65, %79 : vector<8x32xf32>
    %cst_51 = arith.constant 9.99999974E-6 : f32
    %81 = vector.broadcast %cst_51 : f32 to vector<8x1xf32>
    %82 = arith.addf %78, %81 : vector<8x1xf32>
    %83 = math.rsqrt %82 : vector<8x1xf32>
    %84 = vector.broadcast %83 : vector<8x1xf32> to vector<8x32xf32>
    %85 = arith.mulf %80, %84 : vector<8x32xf32>
    %86 = vector.broadcast %66 : vector<1x32xf32> to vector<8x32xf32>
    %87 = arith.mulf %85, %86 : vector<8x32xf32>
    %88 = vector.broadcast %67 : vector<1x32xf32> to vector<8x32xf32>
    %89 = arith.addf %87, %88 : vector<8x32xf32>
    %c0_52 = arith.constant 0 : index
    %c0_53 = arith.constant 0 : index
    %90 = vector.load %arg9[%c0_52, %c0_53] : memref<32x64xbf16, #tpu.memory_space<vmem>>, vector<32x64xbf16>
    %c0_54 = arith.constant 0 : index
    %c0_55 = arith.constant 0 : index
    %91 = vector.load %arg10[%c0_54, %c0_55] : memref<1x64xf32, #tpu.memory_space<vmem>>, vector<1x64xf32>
    %c0_56 = arith.constant 0 : index
    %c0_57 = arith.constant 0 : index
    %92 = vector.load %arg11[%c0_56, %c0_57] : memref<64x32xbf16, #tpu.memory_space<vmem>>, vector<64x32xbf16>
    %c0_58 = arith.constant 0 : index
    %c0_59 = arith.constant 0 : index
    %93 = vector.load %arg12[%c0_58, %c0_59] : memref<1x32xf32, #tpu.memory_space<vmem>>, vector<1x32xf32>
    %94 = arith.truncf %89 : vector<8x32xf32> to vector<8x32xbf16>
    %cst_60 = arith.constant dense<0.000000e+00> : vector<8x64xf32>
    %95 = tpu.matmul %94, %90, %cst_60 {dimension_numbers = #tpu.dot_dimension_numbers<[1], [0], [0], [1], [0, 0, 1, 1], [], []>} : vector<8x32xbf16>, vector<32x64xbf16>, vector<8x64xf32> -> vector<8x64xf32>
    %96 = vector.broadcast %91 : vector<1x64xf32> to vector<8x64xf32>
    %97 = arith.addf %95, %96 : vector<8x64xf32>
    %cst_61 = arith.constant 0.000000e+00 : f32
    %98 = vector.broadcast %cst_61 : f32 to vector<8x64xf32>
    %99 = arith.maximumf %97, %98 : vector<8x64xf32>
    %100 = arith.truncf %99 : vector<8x64xf32> to vector<8x64xbf16>
    %cst_62 = arith.constant dense<0.000000e+00> : vector<8x32xf32>
    %101 = tpu.matmul %100, %92, %cst_62 {dimension_numbers = #tpu.dot_dimension_numbers<[1], [0], [0], [1], [0, 0, 1, 1], [], []>} : vector<8x64xbf16>, vector<64x32xbf16>, vector<8x32xf32> -> vector<8x32xf32>
    %102 = vector.broadcast %93 : vector<1x32xf32> to vector<8x32xf32>
    %103 = arith.addf %101, %102 : vector<8x32xf32>
    %104 = arith.addf %89, %103 : vector<8x32xf32>
    %c0_63 = arith.constant 0 : index
    %c0_64 = arith.constant 0 : index
    %105 = vector.load %arg13[%c0_63, %c0_64] : memref<1x32xf32, #tpu.memory_space<vmem>>, vector<1x32xf32>
    %c0_65 = arith.constant 0 : index
    %c0_66 = arith.constant 0 : index
    %106 = vector.load %arg14[%c0_65, %c0_66] : memref<1x32xf32, #tpu.memory_space<vmem>>, vector<1x32xf32>
    %cst_67 = arith.constant dense<0.000000e+00> : vector<8xf32>
    %107 = vector.multi_reduction <add>, %104, %cst_67 [1] : vector<8x32xf32> to vector<8xf32>
    %108 = vector.shape_cast %107 : vector<8xf32> to vector<8x1xf32>
    %cst_68 = arith.constant 3.200000e+01 : f32
    %109 = vector.broadcast %cst_68 : f32 to vector<8x1xf32>
    %110 = arith.divf %108, %109 : vector<8x1xf32>
    %111 = vector.broadcast %110 : vector<8x1xf32> to vector<8x32xf32>
    %112 = arith.subf %104, %111 : vector<8x32xf32>
    %113 = arith.mulf %112, %112 : vector<8x32xf32>
    %cst_69 = arith.constant dense<0.000000e+00> : vector<8xf32>
    %114 = vector.multi_reduction <add>, %113, %cst_69 [1] : vector<8x32xf32> to vector<8xf32>
    %115 = vector.shape_cast %114 : vector<8xf32> to vector<8x1xf32>
    %cst_70 = arith.constant 3.200000e+01 : f32
    %116 = vector.broadcast %cst_70 : f32 to vector<8x1xf32>
    %117 = arith.divf %115, %116 : vector<8x1xf32>
    %118 = vector.broadcast %110 : vector<8x1xf32> to vector<8x32xf32>
    %119 = arith.subf %104, %118 : vector<8x32xf32>
    %cst_71 = arith.constant 9.99999974E-6 : f32
    %120 = vector.broadcast %cst_71 : f32 to vector<8x1xf32>
    %121 = arith.addf %117, %120 : vector<8x1xf32>
    %122 = math.rsqrt %121 : vector<8x1xf32>
    %123 = vector.broadcast %122 : vector<8x1xf32> to vector<8x32xf32>
    %124 = arith.mulf %119, %123 : vector<8x32xf32>
    %125 = vector.broadcast %105 : vector<1x32xf32> to vector<8x32xf32>
    %126 = arith.mulf %124, %125 : vector<8x32xf32>
    %127 = vector.broadcast %106 : vector<1x32xf32> to vector<8x32xf32>
    %128 = arith.addf %126, %127 : vector<8x32xf32>
    %c0_72 = arith.constant 0 : index
    %c0_73 = arith.constant 0 : index
    %c0_74 = arith.constant 0 : index
    %129 = vector.load %arg15[%c0_72, %c0_73, %c0_74] : memref<1x8x32xf32, #tpu.memory_space<vmem>>, vector<1x8x32xf32>
    %130 = vector.shape_cast %129 : vector<1x8x32xf32> to vector<8x32xf32>
    %131 = vector.shape_cast %128 : vector<8x32xf32> to vector<1x8x32xf32>
    tpu.vector_store %arg15[%c0_72, %c0_73, %c0_74], %131 {strides = array<i32>} : memref<1x8x32xf32, #tpu.memory_space<vmem>>, vector<1x8x32xf32>,
    return
  }
  func.func @transform_0(%arg0: i32) -> (i32, i32, i32) {
    %c0_i32 = arith.constant 0 : i32
    %c0_i32_0 = arith.constant 0 : i32
    %c0_i32_1 = arith.constant 0 : i32
    return %arg0, %c0_i32, %c0_i32_0 : i32, i32, i32
  }
  func.func @transform_1(%arg0: i32) -> (i32, i32, i32) {
    %c0_i32 = arith.constant 0 : i32
    %c0_i32_0 = arith.constant 0 : i32
    %c0_i32_1 = arith.constant 0 : i32
    return %arg0, %c0_i32, %c0_i32_0 : i32, i32, i32
  }
  func.func @transform_2(%arg0: i32) -> (i32, i32, i32, i32) {
    %c0_i32 = arith.constant 0 : i32
    %c0_i32_0 = arith.constant 0 : i32
    %c0_i32_1 = arith.constant 0 : i32
    %c0_i32_2 = arith.constant 0 : i32
    %c0_i32_3 = arith.constant 0 : i32
    return %c0_i32, %c0_i32_0, %c0_i32_1, %c0_i32_2 : i32, i32, i32, i32
  }
  func.func @transform_3(%arg0: i32) -> (i32, i32, i32, i32) {
    %c0_i32 = arith.constant 0 : i32
    %c0_i32_0 = arith.constant 0 : i32
    %c0_i32_1 = arith.constant 0 : i32
    %c0_i32_2 = arith.constant 0 : i32
    %c0_i32_3 = arith.constant 0 : i32
    return %c0_i32, %c0_i32_0, %c0_i32_1, %c0_i32_2 : i32, i32, i32, i32
  }
  func.func @transform_4(%arg0: i32) -> (i32, i32, i32) {
    %c0_i32 = arith.constant 0 : i32
    %c0_i32_0 = arith.constant 0 : i32
    %c0_i32_1 = arith.constant 0 : i32
    %c0_i32_2 = arith.constant 0 : i32
    return %c0_i32, %c0_i32_0, %c0_i32_1 : i32, i32, i32
  }
  func.func @transform_5(%arg0: i32) -> (i32, i32) {
    %c0_i32 = arith.constant 0 : i32
    %c0_i32_0 = arith.constant 0 : i32
    %c0_i32_1 = arith.constant 0 : i32
    return %c0_i32, %c0_i32_0 : i32, i32
  }
  func.func @transform_6(%arg0: i32) -> (i32, i32) {
    %c0_i32 = arith.constant 0 : i32
    %c0_i32_0 = arith.constant 0 : i32
    %c0_i32_1 = arith.constant 0 : i32
    return %c0_i32, %c0_i32_0 : i32, i32
  }
  func.func @transform_7(%arg0: i32) -> (i32, i32) {
    %c0_i32 = arith.constant 0 : i32
    %c0_i32_0 = arith.constant 0 : i32
    %c0_i32_1 = arith.constant 0 : i32
    return %c0_i32, %c0_i32_0 : i32, i32
  }
  func.func @transform_8(%arg0: i32) -> (i32, i32) {
    %c0_i32 = arith.constant 0 : i32
    %c0_i32_0 = arith.constant 0 : i32
    %c0_i32_1 = arith.constant 0 : i32
    return %c0_i32, %c0_i32_0 : i32, i32
  }
  func.func @transform_9(%arg0: i32) -> (i32, i32) {
    %c0_i32 = arith.constant 0 : i32
    %c0_i32_0 = arith.constant 0 : i32
    %c0_i32_1 = arith.constant 0 : i32
    return %c0_i32, %c0_i32_0 : i32, i32
  }
  func.func @transform_10(%arg0: i32) -> (i32, i32) {
    %c0_i32 = arith.constant 0 : i32
    %c0_i32_0 = arith.constant 0 : i32
    %c0_i32_1 = arith.constant 0 : i32
    return %c0_i32, %c0_i32_0 : i32, i32
  }
  func.func @transform_11(%arg0: i32) -> (i32, i32) {
    %c0_i32 = arith.constant 0 : i32
    %c0_i32_0 = arith.constant 0 : i32
    %c0_i32_1 = arith.constant 0 : i32
    return %c0_i32, %c0_i32_0 : i32, i32
  }
  func.func @transform_12(%arg0: i32) -> (i32, i32) {
    %c0_i32 = arith.constant 0 : i32
    %c0_i32_0 = arith.constant 0 : i32
    %c0_i32_1 = arith.constant 0 : i32
    return %c0_i32, %c0_i32_0 : i32, i32
  }
  func.func @transform_13(%arg0: i32) -> (i32, i32) {
    %c0_i32 = arith.constant 0 : i32
    %c0_i32_0 = arith.constant 0 : i32
    %c0_i32_1 = arith.constant 0 : i32
    return %c0_i32, %c0_i32_0 : i32, i32
  }
  func.func @transform_14(%arg0: i32) -> (i32, i32, i32) {
    %c0_i32 = arith.constant 0 : i32
    %c0_i32_0 = arith.constant 0 : i32
    %c0_i32_1 = arith.constant 0 : i32
    return %arg0, %c0_i32, %c0_i32_0 : i32, i32, i32
  }
}

</mosaic_0001>

<llo_original>
// kernel: transformer_forward.9
$region0: #{transformer_forward.9}
  #allocation0 [shape = 'u32[]', space=smem, size = 0x4, offset = 0x4, fixed_abs, tag = 'smem constant byte address 0x4 - core index']
  #allocation1 [shape = 'u32[144,128]{1,0:T(1,128)}', space=vmem, size = 0x12000, scoped, tag = 'internal scratch']
  %s0 = inlined_call_operand.vmem [shape: f32[2,8,32], index: 0, kind: input, shape index: {}]
  %s1 = inlined_call_operand.vmem [shape: bf16[32,32], index: 1, kind: input, shape index: {}]
  %s2 = inlined_call_operand.vmem [shape: f32[1,32], index: 2, kind: input, shape index: {}]
  %s3 = inlined_call_operand.hbm [shape: f32[2,8,32], index: 3, kind: output, shape index: {}]
  %s4 = sld [smem:[#allocation0]]
  $region45: #{transformer_forward.9} parent=0
    _
  %s6 = ssub.s32 1, %s4
  %s7 = scalar_select 0, %s6, %s4
  $region1: #{transformer_forward.9} parent=0
    #allocation2 [shape = 'u8[8192]{0}', space=vmem, size = 0x2000, scoped, tag = 'output window, operand 0']
    #allocation3 [shape = 's32[2]{0}', space=sflag, size = 0x8, scoped, tag = 'scoped memory for transformer_forward.9']
    %8 = vsyncpa [#allocation3], 0
    %s9 = scalar_lea.sflag [#allocation3], 1
    %10 = vsyncpa %s9, 0
    loop: start=0, step=1, limit=4
    $region2: #{transformer_forward.9} parent=1 // loop_pre_header
      _
    $region3: #{transformer_forward.9} parent=1 // loop_header
      %s12 = sphi 0, %s16
      %p13 = scmp.ge.s32.totalorder %s12, 4
      %s19 = sphi 0, %s31
      %s20 = sphi 0, %s27
      %s21 = sphi 0, %s19
      %s22 = sphi 0, %s20
      %s23 = sphi 0, %s21
      %s24 = sphi 0, %s22
      %s34 = sphi 0, %s36
      %s37 = sphi 0, %s34
      %s38 = sphi 0, %s37
      %s54 = sphi 0, %s38
      %s60 = sphi 0, %s62
      %s63 = sphi 0, %s60
      %s64 = sphi 0, %s63
      %s80 = sphi 0, %s64
      %s86 = sphi 0, %s88
      %s89 = sphi 0, %s86
      %s90 = sphi 0, %s89
      %s106 = sphi 0, %s90
      %s114 = sphi 0, %s116
      %s117 = sphi 0, %s114
      %s118 = sphi 0, %s117
      %s134 = sphi 0, %s118
    $region4: #{transformer_forward.9} parent=1 // loop_header_branch
      %15 = sbr.rel (%p13) target = $region8
    $region5: #{transformer_forward.9} parent=1 // loop_body
      %s17 = ssub.s32 %s12, 1
      %s18 = ssub.s32 %s12, 2
      %s25 = sadd.s32 1, %s20
      %p26 = scmp.ge.s32.totalorder %s25, 1
      %s27 = scalar_select %p26, 0, %s25
      %s28 = sadd.s32 1, %s19
      %s29 = scalar_select %p26, %s28, %s19
      %p30 = scmp.ge.s32.totalorder %s29, 2
      %s31 = scalar_select %p30, 0, %s29
      %s32 = ssub.s32 %s19, %s31
      %p33 = scmp.eq.s32.totalorder %s32, 0
      %s35 = sadd.s32 %s34, 1
      %s36 = scalar_select %p33, %s34, %s35
      %p39 = pneg %p33
      %p40 = scmp.eq.s32.totalorder %s12, 1
      %p41 = por %p39, %p40
      %p42 = scmp.ne.s32.totalorder %s34, %s37
      %p43 = scmp.eq.s32.totalorder %s12, 0
      %p44 = por %p42, %p43
      %p45 = scmp.ne.s32.totalorder %s34, %s37
      %p46 = scmp.eq.s32.totalorder %s17, 1
      %p47 = por %p45, %p46
      %p48 = scmp.ne.s32.totalorder %s37, %s38
      %p49 = scmp.eq.s32.totalorder %s17, 0
      %p50 = por %p48, %p49
      %p51 = scmp.ne.s32.totalorder %s37, %s38
      %p52 = scmp.eq.s32.totalorder %s18, 1
      %p53 = por %p51, %p52
      %p55 = scmp.ne.s32.totalorder %s38, %s54
      %p56 = scmp.eq.s32.totalorder %s18, 0
      %p57 = por %p55, %p56
      %s58 = ssub.s32 %s20, %s27
      %p59 = scmp.eq.s32.totalorder %s58, 0
      %s61 = sadd.s32 %s60, 1
      %s62 = scalar_select %p59, %s60, %s61
      %p65 = pneg %p59
      %p66 = scmp.eq.s32.totalorder %s12, 1
      %p67 = por %p65, %p66
      %p68 = scmp.ne.s32.totalorder %s60, %s63
      %p69 = scmp.eq.s32.totalorder %s12, 0
      %p70 = por %p68, %p69
      %p71 = scmp.ne.s32.totalorder %s60, %s63
      %p72 = scmp.eq.s32.totalorder %s17, 1
      %p73 = por %p71, %p72
      %p74 = scmp.ne.s32.totalorder %s63, %s64
      %p75 = scmp.eq.s32.totalorder %s17, 0
      %p76 = por %p74, %p75
      %p77 = scmp.ne.s32.totalorder %s63, %s64
      %p78 = scmp.eq.s32.totalorder %s18, 1
      %p79 = por %p77, %p78
      %p81 = scmp.ne.s32.totalorder %s64, %s80
      %p82 = scmp.eq.s32.totalorder %s18, 0
      %p83 = por %p81, %p82
      %s84 = ssub.s32 %s20, %s27
      %p85 = scmp.eq.s32.totalorder %s84, 0
      %s87 = sadd.s32 %s86, 1
      %s88 = scalar_select %p85, %s86, %s87
      %p91 = pneg %p85
      %p92 = scmp.eq.s32.totalorder %s12, 1
      %p93 = por %p91, %p92
      %p94 = scmp.ne.s32.totalorder %s86, %s89
      %p95 = scmp.eq.s32.totalorder %s12, 0
      %p96 = por %p94, %p95
      %p97 = scmp.ne.s32.totalorder %s86, %s89
      %p98 = scmp.eq.s32.totalorder %s17, 1
      %p99 = por %p97, %p98
      %p100 = scmp.ne.s32.totalorder %s89, %s90
      %p101 = scmp.eq.s32.totalorder %s17, 0
      %p102 = por %p100, %p101
      %p103 = scmp.ne.s32.totalorder %s89, %s90
      %p104 = scmp.eq.s32.totalorder %s18, 1
      %p105 = por %p103, %p104
      %p107 = scmp.ne.s32.totalorder %s90, %s106
      %p108 = scmp.eq.s32.totalorder %s18, 0
      %p109 = por %p107, %p108
      %s110 = ssub.s32 %s19, %s31
      %s111 = ssub.s32 %s20, %s27
      %s112 = sor.u32 %s110, %s111
      %p113 = scmp.eq.s32.totalorder %s112, 0
      %s115 = sadd.s32 %s114, 1
      %s116 = scalar_select %p113, %s114, %s115
      %p119 = pneg %p113
      %p120 = scmp.eq.s32.totalorder %s12, 1
      %p121 = por %p119, %p120
      %p122 = scmp.ne.s32.totalorder %s114, %s117
      %p123 = scmp.eq.s32.totalorder %s12, 0
      %p124 = por %p122, %p123
      %p125 = scmp.ne.s32.totalorder %s114, %s117
      %p126 = scmp.eq.s32.totalorder %s17, 1
      %p127 = por %p125, %p126
      %p128 = scmp.ne.s32.totalorder %s117, %s118
      %p129 = scmp.eq.s32.totalorder %s17, 0
      %p130 = por %p128, %p129
      %p131 = scmp.ne.s32.totalorder %s117, %s118
      %p132 = scmp.eq.s32.totalorder %s18, 1
      %p133 = por %p131, %p132
      %p135 = scmp.ne.s32.totalorder %s118, %s134
      %p136 = scmp.eq.s32.totalorder %s18, 0
      %p137 = por %p135, %p136
      %p138 = scmp.le.s32.totalorder 1, %s12
      %p139 = scmp.lt.s32.totalorder %s12, 3
      %p140 = pnand %p138, %p139
      %p141 = pneg %p140
      // Predicated region
      $region9: #{transformer_forward.9} parent=5 // pred_check
        _
      $region10: #{transformer_forward.9} parent=5 // pred_check_branch
        %143 = sbr.rel (%p140) target = $region12
      $region11: #{transformer_forward.9} parent=5 // pred_region
        %s144 = ssub.s32 %s12, 1
        // Predicated region
        $region13: #{transformer_forward.9} parent=11 // pred_check
          %p145 = pneg %p76
        $region14: #{transformer_forward.9} parent=11 // pred_check_branch
          %147 = sbr.rel (%p145) target = $region16
        $region15: #{transformer_forward.9} parent=11 // pred_region
          %p148 = scmp.lt.s32.totalorder %s22, 0
          %s149 = scalar_select %p148, %s22, 0
          %s150 = smul.addr %s149, 4
          %s151 = scalar_lea.vmem %s1, %s150
        $region16: #{transformer_forward.9} parent=11 // pred_fallthru
          _
        // Predicated region
        $region17: #{transformer_forward.9} parent=11 // pred_check
          %p152 = pneg %p102
        $region18: #{transformer_forward.9} parent=11 // pred_check_branch
          %154 = sbr.rel (%p152) target = $region20
        $region19: #{transformer_forward.9} parent=11 // pred_region
          %p155 = scmp.lt.s32.totalorder %s22, 0
          %s156 = scalar_select %p155, %s22, 0
          %s157 = scalar_lea.vmem %s2, %s156
        $region20: #{transformer_forward.9} parent=11 // pred_fallthru
          _
      $region12: #{transformer_forward.9} parent=5 // pred_fallthru
        _
      %p158 = scmp.lt.s32.totalorder %s12, 2
      // Predicated region
      $region21: #{transformer_forward.9} parent=5 // pred_check
        %p159 = pneg %p158
      $region22: #{transformer_forward.9} parent=5 // pred_check_branch
        %161 = sbr.rel (%p159) target = $region24
      $region23: #{transformer_forward.9} parent=5 // pred_region
        // Predicated region
        $region25: #{transformer_forward.9} parent=23 // pred_check
          %p162 = pneg %p44
        $region26: #{transformer_forward.9} parent=23 // pred_check_branch
          %164 = sbr.rel (%p162) target = $region28
        $region27: #{transformer_forward.9} parent=23 // pred_region
          %p165 = scmp.lt.s32.totalorder %s19, 1
          %s166 = scalar_select %p165, %s19, 1
          %s167 = smul.addr %s166, 8
          %s168 = scalar_lea.vmem %s0, %s167
        $region28: #{transformer_forward.9} parent=23 // pred_fallthru
          _
      $region24: #{transformer_forward.9} parent=5 // pred_fallthru
        _
      %p169 = scmp.le.s32.totalorder 1, %s12
      %p170 = scmp.lt.s32.totalorder %s12, 3
      %p171 = pnand %p169, %p170
      %p172 = pneg %p171
      // Predicated region
      $region29: #{transformer_forward.9} parent=5 // pred_check
        _
      $region30: #{transformer_forward.9} parent=5 // pred_check_branch
        %174 = sbr.rel (%p171) target = $region32
      $region31: #{transformer_forward.9} parent=5 // pred_region
        %s175 = ssub.s32 %s12, 1
        %p176 = scmp.lt.s32.totalorder %s21, 1
        %s177 = scalar_select %p176, %s21, 1
        %s178 = smul.addr %s177, 8
        %s179 = scalar_lea.vmem %s0, %s178
        %p180 = pneg %p50
        %p181 = pneg %p47
        %p182 = scmp.lt.s32.totalorder %s22, 0
        %s183 = scalar_select %p182, %s22, 0
        %s184 = smul.addr %s183, 4
        %s185 = scalar_lea.vmem %s1, %s184
        %p186 = pneg %p76
        %p187 = pneg %p73
        %p188 = scmp.lt.s32.totalorder %s22, 0
        %s189 = scalar_select %p188, %s22, 0
        %s190 = scalar_lea.vmem %s2, %s189
        %p191 = pneg %p102
        %p192 = pneg %p99
        %p193 = pneg %p130
        %p194 = pneg %p127
        %s195 = sand.u32 %s117, 1
        %s196 = scalar_lea.sflag [#allocation3], %s195
        %s197 = sand.u32 %s117, 1
        %s198 = smul.addr %s197, 8
        %s199 = scalar_lea.vmem [#allocation2], %s198
        %p200 = scmp.lt.s32.totalorder %s21, 1
        %s201 = scalar_select %p200, %s21, 1
        %s202 = smul.addr %s201, 8
        %s203 = scalar_lea.vmem %s0, %s202
        %p204 = scmp.lt.s32.totalorder %s22, 0
        %s205 = scalar_select %p204, %s22, 0
        %s206 = smul.addr %s205, 4
        %s207 = scalar_lea.vmem %s1, %s206
        %p208 = scmp.lt.s32.totalorder %s22, 0
        %s209 = scalar_select %p208, %s22, 0
        %s210 = scalar_lea.vmem %s2, %s209
        %v212 = vld [vmem:[%s203] sm:$0xff]
        %v213 = vpack.c.bf16 %v212, %v212
        %v214 = vld [vmem:[%s207] sm:$0xf]
        %v215 = vld [vmem:[%s207 + $0x4] sm:$0xf]
        %v216 = vld [vmem:[%s207 + $0x8] sm:$0xf]
        %v217 = vld [vmem:[%s207 + $0xc] sm:$0xf]
        %v218 = vld [vmem:[%s210] sm:$0x1]
        %v220 = vlaneseq
        %v221 = vshrl.u32 %v220, 7
        %v222 = vsub.s32 0, %v221
        %v223 = vrot.slane %v218, %v222
        %v229 = vunpack.c.l.b16 %v214
        %v230 = vunpack.c.l.b16 %v215
        %v231 = vunpack.c.l.b16 %v216
        %v232 = vunpack.c.l.b16 %v217
        %v233 = vpack.c.b16 %v230, %v229
        %v234 = vpack.c.b16 %v232, %v231
        %vm237 = vcmask 261120
        %v239 = vsel %vm237, %v213, 0
        %241 = vmatprep.subr.bf16.mxu0 0
        %242 = vmatpush1.bf16.msra.mxu0 %v233
        %243 = vmatprep.subr.bf16.mxu0 0
        %244 = vmatpush1.bf16.msra.mxu0 %v234
        %245 = vmatprep.subr.bf16.mxu0 0
        %246 = vmatpush1.bf16.msra.mxu0 0
        %247 = vmatprep.subr.bf16.mxu0 0
        %248 = vmatpush1.bf16.msra.mxu0 0
        %249 = vmatprep.subr.bf16.mxu0 0
        %250 = vmatpush1.bf16.msra.mxu0 0
        %251 = vmatprep.subr.bf16.mxu0 0
        %252 = vmatpush1.bf16.msra.mxu0 0
        %253 = vmatprep.subr.bf16.mxu0 0
        %254 = vmatpush1.bf16.msra.mxu0 0
        %255 = vmatprep.subr.bf16.mxu0 0
        %256 = vmatpush1.bf16.msra.mxu0 0
        %257 = vmatprep.subr.bf16.mxu0 0
        %258 = vmatpush1.bf16.msra.mxu0 0
        %259 = vmatprep.subr.bf16.mxu0 0
        %260 = vmatpush1.bf16.msra.mxu0 0
        %261 = vmatprep.subr.bf16.mxu0 0
        %262 = vmatpush1.bf16.msra.mxu0 0
        %263 = vmatprep.subr.bf16.mxu0 0
        %264 = vmatpush1.bf16.msra.mxu0 0
        %265 = vmatprep.subr.bf16.mxu0 0
        %266 = vmatpush1.bf16.msra.mxu0 0
        %267 = vmatprep.subr.bf16.mxu0 0
        %268 = vmatpush1.bf16.msra.mxu0 0
        %269 = vmatprep.subr.bf16.mxu0 0
        %270 = vmatpush1.bf16.msra.mxu0 0
        %271 = vmatprep.subr.bf16.mxu0 0
        %272 = vmatpush1.bf16.msra.mxu0 0
        %273 = vmatprep.mubr.bf16.mxu0 0
        %274 = vmatmul.mubr.bf16.gmra.mrb[0].mxu0 %v239
        %v275 = vpop.f32.mrb[0].mxu0
        %v276 = vadd.f32 %v223, %v275
        %v277 = vpop.f32.mrb[0].mxu0
        %v278 = vpop.f32.mrb[0].mxu0
        %v279 = vpop.f32.mrb[0].mxu0
        %280 = vdwg.mxu0
        %281 = vst.msk [vmem:[%s199] sm:$0xff] %vm237, %v276
        %s282 = sand.u32 %s117, 1
        %s283 = scalar_lea.sflag [#allocation3], %s282
        %s284 = sand.u32 %s117, 1
        %s285 = smul.addr %s284, 8
        %s286 = scalar_lea.vmem [#allocation2], %s285
        // Predicated region
        $region33: #{transformer_forward.9} parent=31 // pred_check
          %p287 = pneg %p127
        $region34: #{transformer_forward.9} parent=31 // pred_check_branch
          %289 = sbr.rel (%p287) target = $region36
        $region35: #{transformer_forward.9} parent=31 // pred_region
          %s291 = ssub.s32 128, 128
          %292 = vsyncadd %s283, %s291
          %s293 = sadd.s32 %s22, %s21
          %s294 = smul.addr %s293, 128
          %s295 = scalar_lea.hbm %s3, %s294
          %s297 = sshll.u32 %s286, 4
          %s298 = int_to_ptr.vmem [resolvable:$true] %s297
          %300 = dma.vmem_to_hbm [thread:$0]  %s298, 128, %s295, %s283
        $region36: #{transformer_forward.9} parent=31 // pred_fallthru
          _
      $region32: #{transformer_forward.9} parent=5 // pred_fallthru
        _
      %p301 = scmp.le.s32.totalorder 2, %s12
      // Predicated region
      $region37: #{transformer_forward.9} parent=5 // pred_check
        %p302 = pneg %p301
      $region38: #{transformer_forward.9} parent=5 // pred_check_branch
        %304 = sbr.rel (%p302) target = $region40
      $region39: #{transformer_forward.9} parent=5 // pred_region
        %s305 = ssub.s32 %s12, 2
        // Predicated region
        $region41: #{transformer_forward.9} parent=39 // pred_check
          %p306 = pneg %p133
        $region42: #{transformer_forward.9} parent=39 // pred_check_branch
          %308 = sbr.rel (%p306) target = $region44
        $region43: #{transformer_forward.9} parent=39 // pred_region
          %s309 = sand.u32 %s118, 1
          %s310 = scalar_lea.sflag [#allocation3], %s309
          %s311 = sand.u32 %s118, 1
          %s312 = smul.addr %s311, 8
          %s313 = scalar_lea.vmem [#allocation2], %s312
          %314 = dma.done %s310, 128
        $region44: #{transformer_forward.9} parent=39 // pred_fallthru
          _
      $region40: #{transformer_forward.9} parent=5 // pred_fallthru
        _
    $region6: #{transformer_forward.9} parent=1 // loop_footer
      %s16 = sadd.s32 1, %s12
    $region7: #{transformer_forward.9} parent=1 // loop_footer_branch
      %11 = sbr.rel target = $region3
    $region8: #{transformer_forward.9} parent=1 // loop_exit
      _
    %315 = vsyncpa [#allocation3], 1
    %s316 = scalar_lea.sflag [#allocation3], 1
    %317 = vsyncpa %s316, 1

// kernel: transformer_forward.5
$region0: #{transformer_forward.5}
  #allocation0 [shape = 'u32[]', space=smem, size = 0x4, offset = 0x4, fixed_abs, tag = 'smem constant byte address 0x4 - core index']
  #allocation1 [shape = 'u32[144,128]{1,0:T(1,128)}', space=vmem, size = 0x12000, scoped, tag = 'internal scratch']
  %s0 = inlined_call_operand.vmem [shape: f32[2,8,32], index: 0, kind: input, shape index: {}]
  %s1 = inlined_call_operand.vmem [shape: f32[2,1,8], index: 1, kind: input, shape index: {}]
  %s2 = inlined_call_operand.vmem [shape: bf16[3,4,32,8], index: 2, kind: input, shape index: {}]
  %s3 = inlined_call_operand.vmem [shape: f32[3,4,1,8], index: 3, kind: input, shape index: {}]
  %s4 = inlined_call_operand.vmem [shape: bf16[4,8,32], index: 4, kind: input, shape index: {}]
  %s5 = inlined_call_operand.vmem [shape: f32[1,32], index: 5, kind: input, shape index: {}]
  %s6 = inlined_call_operand.vmem [shape: f32[1,32], index: 6, kind: input, shape index: {}]
  %s7 = inlined_call_operand.vmem [shape: f32[1,32], index: 7, kind: input, shape index: {}]
  %s8 = inlined_call_operand.vmem [shape: bf16[32,64], index: 8, kind: input, shape index: {}]
  %s9 = inlined_call_operand.vmem [shape: f32[1,64], index: 9, kind: input, shape index: {}]
  %s10 = inlined_call_operand.vmem [shape: bf16[64,32], index: 10, kind: input, shape index: {}]
  %s11 = inlined_call_operand.vmem [shape: f32[1,32], index: 11, kind: input, shape index: {}]
  %s12 = inlined_call_operand.vmem [shape: f32[1,32], index: 12, kind: input, shape index: {}]
  %s13 = inlined_call_operand.vmem [shape: f32[1,32], index: 13, kind: input, shape index: {}]
  %s14 = inlined_call_operand.vmem [shape: f32[2,8,32], index: 14, kind: output, shape index: {}]
  %s15 = sld [smem:[#allocation0]]
  $region89: #{transformer_forward.5} parent=0
    _
  %s17 = ssub.s32 1, %s15
  %s18 = scalar_select 0, %s17, %s15
  loop: start=0, step=1, limit=4
  $region2: #{transformer_forward.5} parent=0 // loop_pre_header
    _
  $region3: #{transformer_forward.5} parent=0 // loop_header
    %s20 = sphi 0, %s24
    %p21 = scmp.ge.s32.totalorder %s20, 4
    %s30 = sphi 0, %s32
    %s33 = sphi 0, %s30
    %s34 = sphi 0, %s33
    %s50 = sphi 0, %s34
    %s56 = sphi 0, %s58
    %s59 = sphi 0, %s56
    %s60 = sphi 0, %s59
    %s76 = sphi 0, %s60
    %s80 = sphi 0, %s80
    %s82 = sphi 0, %s80
    %s83 = sphi 0, %s82
    %s97 = sphi 0, %s83
    %s101 = sphi 0, %s101
    %s103 = sphi 0, %s101
    %s104 = sphi 0, %s103
    %s118 = sphi 0, %s104
    %s122 = sphi 0, %s122
    %s124 = sphi 0, %s122
    %s125 = sphi 0, %s124
    %s139 = sphi 0, %s125
    %s143 = sphi 0, %s143
    %s145 = sphi 0, %s143
    %s146 = sphi 0, %s145
    %s160 = sphi 0, %s146
    %s164 = sphi 0, %s164
    %s166 = sphi 0, %s164
    %s167 = sphi 0, %s166
    %s181 = sphi 0, %s167
    %s185 = sphi 0, %s185
    %s187 = sphi 0, %s185
    %s188 = sphi 0, %s187
    %s202 = sphi 0, %s188
    %s206 = sphi 0, %s206
    %s208 = sphi 0, %s206
    %s209 = sphi 0, %s208
    %s223 = sphi 0, %s209
    %s227 = sphi 0, %s227
    %s229 = sphi 0, %s227
    %s230 = sphi 0, %s229
    %s244 = sphi 0, %s230
    %s248 = sphi 0, %s248
    %s250 = sphi 0, %s248
    %s251 = sphi 0, %s250
    %s265 = sphi 0, %s251
    %s269 = sphi 0, %s269
    %s271 = sphi 0, %s269
    %s272 = sphi 0, %s271
    %s286 = sphi 0, %s272
    %s290 = sphi 0, %s290
    %s292 = sphi 0, %s290
    %s293 = sphi 0, %s292
    %s307 = sphi 0, %s293
    %s311 = sphi 0, %s311
    %s313 = sphi 0, %s311
    %s314 = sphi 0, %s313
    %s328 = sphi 0, %s314
    %s334 = sphi 0, %s336
    %s337 = sphi 0, %s334
    %s338 = sphi 0, %s337
    %s354 = sphi 0, %s338
  $region4: #{transformer_forward.5} parent=0 // loop_header_branch
    %23 = sbr.rel (%p21) target = $region8
  $region5: #{transformer_forward.5} parent=0 // loop_body
    %s25 = ssub.s32 %s20, 1
    %s26 = ssub.s32 %s20, 2
    %s27 = sadd.s32 %s20, 1
    %s28 = ssub.s32 %s20, %s27
    %p29 = scmp.eq.s32.totalorder %s28, 0
    %s31 = sadd.s32 %s30, 1
    %s32 = scalar_select %p29, %s30, %s31
    %p35 = pneg %p29
    %p36 = scmp.eq.s32.totalorder %s20, 1
    %p37 = por %p35, %p36
    %p38 = scmp.ne.s32.totalorder %s30, %s33
    %p39 = scmp.eq.s32.totalorder %s20, 0
    %p40 = por %p38, %p39
    %p41 = scmp.ne.s32.totalorder %s30, %s33
    %p42 = scmp.eq.s32.totalorder %s25, 1
    %p43 = por %p41, %p42
    %p44 = scmp.ne.s32.totalorder %s33, %s34
    %p45 = scmp.eq.s32.totalorder %s25, 0
    %p46 = por %p44, %p45
    %p47 = scmp.ne.s32.totalorder %s33, %s34
    %p48 = scmp.eq.s32.totalorder %s26, 1
    %p49 = por %p47, %p48
    %p51 = scmp.ne.s32.totalorder %s34, %s50
    %p52 = scmp.eq.s32.totalorder %s26, 0
    %p53 = por %p51, %p52
    %s54 = ssub.s32 %s20, %s27
    %p55 = scmp.eq.s32.totalorder %s54, 0
    %s57 = sadd.s32 %s56, 1
    %s58 = scalar_select %p55, %s56, %s57
    %p61 = pneg %p55
    %p62 = scmp.eq.s32.totalorder %s20, 1
    %p63 = por %p61, %p62
    %p64 = scmp.ne.s32.totalorder %s56, %s59
    %p65 = scmp.eq.s32.totalorder %s20, 0
    %p66 = por %p64, %p65
    %p67 = scmp.ne.s32.totalorder %s56, %s59
    %p68 = scmp.eq.s32.totalorder %s25, 1
    %p69 = por %p67, %p68
    %p70 = scmp.ne.s32.totalorder %s59, %s60
    %p71 = scmp.eq.s32.totalorder %s25, 0
    %p72 = por %p70, %p71
    %p73 = scmp.ne.s32.totalorder %s59, %s60
    %p74 = scmp.eq.s32.totalorder %s26, 1
    %p75 = por %p73, %p74
    %p77 = scmp.ne.s32.totalorder %s60, %s76
    %p78 = scmp.eq.s32.totalorder %s26, 0
    %p79 = por %p77, %p78
    %s81 = sadd.s32 %s80, 1
    %p84 = scmp.eq.s32.totalorder %s20, 1
    %p85 = scmp.ne.s32.totalorder %s80, %s82
    %p86 = scmp.eq.s32.totalorder %s20, 0
    %p87 = por %p85, %p86
    %p88 = scmp.ne.s32.totalorder %s80, %s82
    %p89 = scmp.eq.s32.totalorder %s25, 1
    %p90 = por %p88, %p89
    %p91 = scmp.ne.s32.totalorder %s82, %s83
    %p92 = scmp.eq.s32.totalorder %s25, 0
    %p93 = por %p91, %p92
    %p94 = scmp.ne.s32.totalorder %s82, %s83
    %p95 = scmp.eq.s32.totalorder %s26, 1
    %p96 = por %p94, %p95
    %p98 = scmp.ne.s32.totalorder %s83, %s97
    %p99 = scmp.eq.s32.totalorder %s26, 0
    %p100 = por %p98, %p99
    %s102 = sadd.s32 %s101, 1
    %p105 = scmp.eq.s32.totalorder %s20, 1
    %p106 = scmp.ne.s32.totalorder %s101, %s103
    %p107 = scmp.eq.s32.totalorder %s20, 0
    %p108 = por %p106, %p107
    %p109 = scmp.ne.s32.totalorder %s101, %s103
    %p110 = scmp.eq.s32.totalorder %s25, 1
    %p111 = por %p109, %p110
    %p112 = scmp.ne.s32.totalorder %s103, %s104
    %p113 = scmp.eq.s32.totalorder %s25, 0
    %p114 = por %p112, %p113
    %p115 = scmp.ne.s32.totalorder %s103, %s104
    %p116 = scmp.eq.s32.totalorder %s26, 1
    %p117 = por %p115, %p116
    %p119 = scmp.ne.s32.totalorder %s104, %s118
    %p120 = scmp.eq.s32.totalorder %s26, 0
    %p121 = por %p119, %p120
    %s123 = sadd.s32 %s122, 1
    %p126 = scmp.eq.s32.totalorder %s20, 1
    %p127 = scmp.ne.s32.totalorder %s122, %s124
    %p128 = scmp.eq.s32.totalorder %s20, 0
    %p129 = por %p127, %p128
    %p130 = scmp.ne.s32.totalorder %s122, %s124
    %p131 = scmp.eq.s32.totalorder %s25, 1
    %p132 = por %p130, %p131
    %p133 = scmp.ne.s32.totalorder %s124, %s125
    %p134 = scmp.eq.s32.totalorder %s25, 0
    %p135 = por %p133, %p134
    %p136 = scmp.ne.s32.totalorder %s124, %s125
    %p137 = scmp.eq.s32.totalorder %s26, 1
    %p138 = por %p136, %p137
    %p140 = scmp.ne.s32.totalorder %s125, %s139
    %p141 = scmp.eq.s32.totalorder %s26, 0
    %p142 = por %p140, %p141
    %s144 = sadd.s32 %s143, 1
    %p147 = scmp.eq.s32.totalorder %s20, 1
    %p148 = scmp.ne.s32.totalorder %s143, %s145
    %p149 = scmp.eq.s32.totalorder %s20, 0
    %p150 = por %p148, %p149
    %p151 = scmp.ne.s32.totalorder %s143, %s145
    %p152 = scmp.eq.s32.totalorder %s25, 1
    %p153 = por %p151, %p152
    %p154 = scmp.ne.s32.totalorder %s145, %s146
    %p155 = scmp.eq.s32.totalorder %s25, 0
    %p156 = por %p154, %p155
    %p157 = scmp.ne.s32.totalorder %s145, %s146
    %p158 = scmp.eq.s32.totalorder %s26, 1
    %p159 = por %p157, %p158
    %p161 = scmp.ne.s32.totalorder %s146, %s160
    %p162 = scmp.eq.s32.totalorder %s26, 0
    %p163 = por %p161, %p162
    %s165 = sadd.s32 %s164, 1
    %p168 = scmp.eq.s32.totalorder %s20, 1
    %p169 = scmp.ne.s32.totalorder %s164, %s166
    %p170 = scmp.eq.s32.totalorder %s20, 0
    %p171 = por %p169, %p170
    %p172 = scmp.ne.s32.totalorder %s164, %s166
    %p173 = scmp.eq.s32.totalorder %s25, 1
    %p174 = por %p172, %p173
    %p175 = scmp.ne.s32.totalorder %s166, %s167
    %p176 = scmp.eq.s32.totalorder %s25, 0
    %p177 = por %p175, %p176
    %p178 = scmp.ne.s32.totalorder %s166, %s167
    %p179 = scmp.eq.s32.totalorder %s26, 1
    %p180 = por %p178, %p179
    %p182 = scmp.ne.s32.totalorder %s167, %s181
    %p183 = scmp.eq.s32.totalorder %s26, 0
    %p184 = por %p182, %p183
    %s186 = sadd.s32 %s185, 1
    %p189 = scmp.eq.s32.totalorder %s20, 1
    %p190 = scmp.ne.s32.totalorder %s185, %s187
    %p191 = scmp.eq.s32.totalorder %s20, 0
    %p192 = por %p190, %p191
    %p193 = scmp.ne.s32.totalorder %s185, %s187
    %p194 = scmp.eq.s32.totalorder %s25, 1
    %p195 = por %p193, %p194
    %p196 = scmp.ne.s32.totalorder %s187, %s188
    %p197 = scmp.eq.s32.totalorder %s25, 0
    %p198 = por %p196, %p197
    %p199 = scmp.ne.s32.totalorder %s187, %s188
    %p200 = scmp.eq.s32.totalorder %s26, 1
    %p201 = por %p199, %p200
    %p203 = scmp.ne.s32.totalorder %s188, %s202
    %p204 = scmp.eq.s32.totalorder %s26, 0
    %p205 = por %p203, %p204
    %s207 = sadd.s32 %s206, 1
    %p210 = scmp.eq.s32.totalorder %s20, 1
    %p211 = scmp.ne.s32.totalorder %s206, %s208
    %p212 = scmp.eq.s32.totalorder %s20, 0
    %p213 = por %p211, %p212
    %p214 = scmp.ne.s32.totalorder %s206, %s208
    %p215 = scmp.eq.s32.totalorder %s25, 1
    %p216 = por %p214, %p215
    %p217 = scmp.ne.s32.totalorder %s208, %s209
    %p218 = scmp.eq.s32.totalorder %s25, 0
    %p219 = por %p217, %p218
    %p220 = scmp.ne.s32.totalorder %s208, %s209
    %p221 = scmp.eq.s32.totalorder %s26, 1
    %p222 = por %p220, %p221
    %p224 = scmp.ne.s32.totalorder %s209, %s223
    %p225 = scmp.eq.s32.totalorder %s26, 0
    %p226 = por %p224, %p225
    %s228 = sadd.s32 %s227, 1
    %p231 = scmp.eq.s32.totalorder %s20, 1
    %p232 = scmp.ne.s32.totalorder %s227, %s229
    %p233 = scmp.eq.s32.totalorder %s20, 0
    %p234 = por %p232, %p233
    %p235 = scmp.ne.s32.totalorder %s227, %s229
    %p236 = scmp.eq.s32.totalorder %s25, 1
    %p237 = por %p235, %p236
    %p238 = scmp.ne.s32.totalorder %s229, %s230
    %p239 = scmp.eq.s32.totalorder %s25, 0
    %p240 = por %p238, %p239
    %p241 = scmp.ne.s32.totalorder %s229, %s230
    %p242 = scmp.eq.s32.totalorder %s26, 1
    %p243 = por %p241, %p242
    %p245 = scmp.ne.s32.totalorder %s230, %s244
    %p246 = scmp.eq.s32.totalorder %s26, 0
    %p247 = por %p245, %p246
    %s249 = sadd.s32 %s248, 1
    %p252 = scmp.eq.s32.totalorder %s20, 1
    %p253 = scmp.ne.s32.totalorder %s248, %s250
    %p254 = scmp.eq.s32.totalorder %s20, 0
    %p255 = por %p253, %p254
    %p256 = scmp.ne.s32.totalorder %s248, %s250
    %p257 = scmp.eq.s32.totalorder %s25, 1
    %p258 = por %p256, %p257
    %p259 = scmp.ne.s32.totalorder %s250, %s251
    %p260 = scmp.eq.s32.totalorder %s25, 0
    %p261 = por %p259, %p260
    %p262 = scmp.ne.s32.totalorder %s250, %s251
    %p263 = scmp.eq.s32.totalorder %s26, 1
    %p264 = por %p262, %p263
    %p266 = scmp.ne.s32.totalorder %s251, %s265
    %p267 = scmp.eq.s32.totalorder %s26, 0
    %p268 = por %p266, %p267
    %s270 = sadd.s32 %s269, 1
    %p273 = scmp.eq.s32.totalorder %s20, 1
    %p274 = scmp.ne.s32.totalorder %s269, %s271
    %p275 = scmp.eq.s32.totalorder %s20, 0
    %p276 = por %p274, %p275
    %p277 = scmp.ne.s32.totalorder %s269, %s271
    %p278 = scmp.eq.s32.totalorder %s25, 1
    %p279 = por %p277, %p278
    %p280 = scmp.ne.s32.totalorder %s271, %s272
    %p281 = scmp.eq.s32.totalorder %s25, 0
    %p282 = por %p280, %p281
    %p283 = scmp.ne.s32.totalorder %s271, %s272
    %p284 = scmp.eq.s32.totalorder %s26, 1
    %p285 = por %p283, %p284
    %p287 = scmp.ne.s32.totalorder %s272, %s286
    %p288 = scmp.eq.s32.totalorder %s26, 0
    %p289 = por %p287, %p288
    %s291 = sadd.s32 %s290, 1
    %p294 = scmp.eq.s32.totalorder %s20, 1
    %p295 = scmp.ne.s32.totalorder %s290, %s292
    %p296 = scmp.eq.s32.totalorder %s20, 0
    %p297 = por %p295, %p296
    %p298 = scmp.ne.s32.totalorder %s290, %s292
    %p299 = scmp.eq.s32.totalorder %s25, 1
    %p300 = por %p298, %p299
    %p301 = scmp.ne.s32.totalorder %s292, %s293
    %p302 = scmp.eq.s32.totalorder %s25, 0
    %p303 = por %p301, %p302
    %p304 = scmp.ne.s32.totalorder %s292, %s293
    %p305 = scmp.eq.s32.totalorder %s26, 1
    %p306 = por %p304, %p305
    %p308 = scmp.ne.s32.totalorder %s293, %s307
    %p309 = scmp.eq.s32.totalorder %s26, 0
    %p310 = por %p308, %p309
    %s312 = sadd.s32 %s311, 1
    %p315 = scmp.eq.s32.totalorder %s20, 1
    %p316 = scmp.ne.s32.totalorder %s311, %s313
    %p317 = scmp.eq.s32.totalorder %s20, 0
    %p318 = por %p316, %p317
    %p319 = scmp.ne.s32.totalorder %s311, %s313
    %p320 = scmp.eq.s32.totalorder %s25, 1
    %p321 = por %p319, %p320
    %p322 = scmp.ne.s32.totalorder %s313, %s314
    %p323 = scmp.eq.s32.totalorder %s25, 0
    %p324 = por %p322, %p323
    %p325 = scmp.ne.s32.totalorder %s313, %s314
    %p326 = scmp.eq.s32.totalorder %s26, 1
    %p327 = por %p325, %p326
    %p329 = scmp.ne.s32.totalorder %s314, %s328
    %p330 = scmp.eq.s32.totalorder %s26, 0
    %p331 = por %p329, %p330
    %s332 = ssub.s32 %s20, %s27
    %p333 = scmp.eq.s32.totalorder %s332, 0
    %s335 = sadd.s32 %s334, 1
    %s336 = scalar_select %p333, %s334, %s335
    %p339 = pneg %p333
    %p340 = scmp.eq.s32.totalorder %s20, 1
    %p341 = por %p339, %p340
    %p342 = scmp.ne.s32.totalorder %s334, %s337
    %p343 = scmp.eq.s32.totalorder %s20, 0
    %p344 = por %p342, %p343
    %p345 = scmp.ne.s32.totalorder %s334, %s337
    %p346 = scmp.eq.s32.totalorder %s25, 1
    %p347 = por %p345, %p346
    %p348 = scmp.ne.s32.totalorder %s337, %s338
    %p349 = scmp.eq.s32.totalorder %s25, 0
    %p350 = por %p348, %p349
    %p351 = scmp.ne.s32.totalorder %s337, %s338
    %p352 = scmp.eq.s32.totalorder %s26, 1
    %p353 = por %p351, %p352
    %p355 = scmp.ne.s32.totalorder %s338, %s354
    %p356 = scmp.eq.s32.totalorder %s26, 0
    %p357 = por %p355, %p356
    %p358 = scmp.le.s32.totalorder 1, %s20
    %p359 = scmp.lt.s32.totalorder %s20, 3
    %p360 = pnand %p358, %p359
    %p361 = pneg %p360
    // Predicated region
    $region9: #{transformer_forward.5} parent=5 // pred_check
      _
    $region10: #{transformer_forward.5} parent=5 // pred_check_branch
      %363 = sbr.rel (%p360) target = $region12
    $region11: #{transformer_forward.5} parent=5 // pred_region
      %s364 = ssub.s32 %s20, 1
      // Predicated region
      $region13: #{transformer_forward.5} parent=11 // pred_check
        %p365 = pneg %p93
      $region14: #{transformer_forward.5} parent=11 // pred_check_branch
        %367 = sbr.rel (%p365) target = $region16
      $region15: #{transformer_forward.5} parent=11 // pred_region
        _
      $region16: #{transformer_forward.5} parent=11 // pred_fallthru
        _
      // Predicated region
      $region17: #{transformer_forward.5} parent=11 // pred_check
        %p368 = pneg %p114
      $region18: #{transformer_forward.5} parent=11 // pred_check_branch
        %370 = sbr.rel (%p368) target = $region20
      $region19: #{transformer_forward.5} parent=11 // pred_region
        _
      $region20: #{transformer_forward.5} parent=11 // pred_fallthru
        _
      // Predicated region
      $region21: #{transformer_forward.5} parent=11 // pred_check
        %p371 = pneg %p135
      $region22: #{transformer_forward.5} parent=11 // pred_check_branch
        %373 = sbr.rel (%p371) target = $region24
      $region23: #{transformer_forward.5} parent=11 // pred_region
        _
      $region24: #{transformer_forward.5} parent=11 // pred_fallthru
        _
      // Predicated region
      $region25: #{transformer_forward.5} parent=11 // pred_check
        %p374 = pneg %p156
      $region26: #{transformer_forward.5} parent=11 // pred_check_branch
        %376 = sbr.rel (%p374) target = $region28
      $region27: #{transformer_forward.5} parent=11 // pred_region
        _
      $region28: #{transformer_forward.5} parent=11 // pred_fallthru
        _
      // Predicated region
      $region29: #{transformer_forward.5} parent=11 // pred_check
        %p377 = pneg %p177
      $region30: #{transformer_forward.5} parent=11 // pred_check_branch
        %379 = sbr.rel (%p377) target = $region32
      $region31: #{transformer_forward.5} parent=11 // pred_region
        _
      $region32: #{transformer_forward.5} parent=11 // pred_fallthru
        _
      // Predicated region
      $region33: #{transformer_forward.5} parent=11 // pred_check
        %p380 = pneg %p198
      $region34: #{transformer_forward.5} parent=11 // pred_check_branch
        %382 = sbr.rel (%p380) target = $region36
      $region35: #{transformer_forward.5} parent=11 // pred_region
        _
      $region36: #{transformer_forward.5} parent=11 // pred_fallthru
        _
      // Predicated region
      $region37: #{transformer_forward.5} parent=11 // pred_check
        %p383 = pneg %p219
      $region38: #{transformer_forward.5} parent=11 // pred_check_branch
        %385 = sbr.rel (%p383) target = $region40
      $region39: #{transformer_forward.5} parent=11 // pred_region
        _
      $region40: #{transformer_forward.5} parent=11 // pred_fallthru
        _
      // Predicated region
      $region41: #{transformer_forward.5} parent=11 // pred_check
        %p386 = pneg %p240
      $region42: #{transformer_forward.5} parent=11 // pred_check_branch
        %388 = sbr.rel (%p386) target = $region44
      $region43: #{transformer_forward.5} parent=11 // pred_region
        _
      $region44: #{transformer_forward.5} parent=11 // pred_fallthru
        _
      // Predicated region
      $region45: #{transformer_forward.5} parent=11 // pred_check
        %p389 = pneg %p261
      $region46: #{transformer_forward.5} parent=11 // pred_check_branch
        %391 = sbr.rel (%p389) target = $region48
      $region47: #{transformer_forward.5} parent=11 // pred_region
        _
      $region48: #{transformer_forward.5} parent=11 // pred_fallthru
        _
      // Predicated region
      $region49: #{transformer_forward.5} parent=11 // pred_check
        %p392 = pneg %p282
      $region50: #{transformer_forward.5} parent=11 // pred_check_branch
        %394 = sbr.rel (%p392) target = $region52
      $region51: #{transformer_forward.5} parent=11 // pred_region
        _
      $region52: #{transformer_forward.5} parent=11 // pred_fallthru
        _
      // Predicated region
      $region53: #{transformer_forward.5} parent=11 // pred_check
        %p395 = pneg %p303
      $region54: #{transformer_forward.5} parent=11 // pred_check_branch
        %397 = sbr.rel (%p395) target = $region56
      $region55: #{transformer_forward.5} parent=11 // pred_region
        _
      $region56: #{transformer_forward.5} parent=11 // pred_fallthru
        _
      // Predicated region
      $region57: #{transformer_forward.5} parent=11 // pred_check
        %p398 = pneg %p324
      $region58: #{transformer_forward.5} parent=11 // pred_check_branch
        %400 = sbr.rel (%p398) target = $region60
      $region59: #{transformer_forward.5} parent=11 // pred_region
        _
      $region60: #{transformer_forward.5} parent=11 // pred_fallthru
        _
    $region12: #{transformer_forward.5} parent=5 // pred_fallthru
      _
    %p401 = scmp.lt.s32.totalorder %s20, 2
    // Predicated region
    $region61: #{transformer_forward.5} parent=5 // pred_check
      %p402 = pneg %p401
    $region62: #{transformer_forward.5} parent=5 // pred_check_branch
      %404 = sbr.rel (%p402) target = $region64
    $region63: #{transformer_forward.5} parent=5 // pred_region
      // Predicated region
      $region65: #{transformer_forward.5} parent=63 // pred_check
        %p405 = pneg %p40
      $region66: #{transformer_forward.5} parent=63 // pred_check_branch
        %407 = sbr.rel (%p405) target = $region68
      $region67: #{transformer_forward.5} parent=63 // pred_region
        %p408 = scmp.lt.s32.totalorder %s20, 1
        %s409 = scalar_select %p408, %s20, 1
        %s410 = smul.addr %s409, 8
        %s411 = scalar_lea.vmem %s0, %s410
      $region68: #{transformer_forward.5} parent=63 // pred_fallthru
        _
      // Predicated region
      $region69: #{transformer_forward.5} parent=63 // pred_check
        %p412 = pneg %p66
      $region70: #{transformer_forward.5} parent=63 // pred_check_branch
        %414 = sbr.rel (%p412) target = $region72
      $region71: #{transformer_forward.5} parent=63 // pred_region
        %p415 = scmp.lt.s32.totalorder %s20, 1
        %s416 = scalar_select %p415, %s20, 1
        %s417 = scalar_lea.vmem %s1, %s416
      $region72: #{transformer_forward.5} parent=63 // pred_fallthru
        _
    $region64: #{transformer_forward.5} parent=5 // pred_fallthru
      _
    %p418 = scmp.le.s32.totalorder 1, %s20
    %p419 = scmp.lt.s32.totalorder %s20, 3
    %p420 = pnand %p418, %p419
    %p421 = pneg %p420
    // Predicated region
    $region73: #{transformer_forward.5} parent=5 // pred_check
      _
    $region74: #{transformer_forward.5} parent=5 // pred_check_branch
      %423 = sbr.rel (%p420) target = $region76
    $region75: #{transformer_forward.5} parent=5 // pred_region
      %s424 = ssub.s32 %s20, 1
      %p425 = scmp.lt.s32.totalorder %s25, 1
      %s426 = scalar_select %p425, %s25, 1
      %s427 = smul.addr %s426, 8
      %s428 = scalar_lea.vmem %s0, %s427
      %p429 = pneg %p46
      %p430 = pneg %p43
      %p431 = scmp.lt.s32.totalorder %s25, 1
      %s432 = scalar_select %p431, %s25, 1
      %s433 = scalar_lea.vmem %s1, %s432
      %p434 = pneg %p72
      %p435 = pneg %p69
      %p436 = pneg %p93
      %p437 = pneg %p90
      %p438 = pneg %p114
      %p439 = pneg %p111
      %p440 = pneg %p135
      %p441 = pneg %p132
      %p442 = pneg %p156
      %p443 = pneg %p153
      %p444 = pneg %p177
      %p445 = pneg %p174
      %p446 = pneg %p198
      %p447 = pneg %p195
      %p448 = pneg %p219
      %p449 = pneg %p216
      %p450 = pneg %p240
      %p451 = pneg %p237
      %p452 = pneg %p261
      %p453 = pneg %p258
      %p454 = pneg %p282
      %p455 = pneg %p279
      %p456 = pneg %p303
      %p457 = pneg %p300
      %p458 = pneg %p324
      %p459 = pneg %p321
      %p460 = pneg %p350
      %p461 = pneg %p347
      %p462 = scmp.lt.s32.totalorder %s25, 1
      %s463 = scalar_select %p462, %s25, 1
      %s464 = smul.addr %s463, 8
      %s465 = scalar_lea.vmem %s14, %s464
      %p466 = scmp.lt.s32.totalorder %s25, 1
      %s467 = scalar_select %p466, %s25, 1
      %s468 = smul.addr %s467, 8
      %s469 = scalar_lea.vmem %s0, %s468
      %p470 = scmp.lt.s32.totalorder %s25, 1
      %s471 = scalar_select %p470, %s25, 1
      %s472 = scalar_lea.vmem %s1, %s471
      %p473 = scmp.lt.s32.totalorder %s25, 1
      %s474 = scalar_select %p473, %s25, 1
      %s475 = smul.addr %s474, 8
      %s476 = scalar_lea.vmem %s14, %s475
      %v478 = vld [vmem:[%s469] sm:$0xff]
      %v479 = vld [vmem:[%s472] sm:$0x1]
      %v480 = vpack.c.bf16 %v478, %v478
      %v481 = vld [vmem:[%s2] sm:$0xf]
      %v482 = vld [vmem:[%s2 + $0x4] sm:$0xf]
      %v483 = vld [vmem:[%s2 + $0x8] sm:$0xf]
      %v484 = vld [vmem:[%s2 + $0xc] sm:$0xf]
      %v485 = vld [vmem:[%s2 + $0x10] sm:$0xf]
      %v486 = vld [vmem:[%s2 + $0x14] sm:$0xf]
      %v487 = vld [vmem:[%s2 + $0x18] sm:$0xf]
      %v488 = vld [vmem:[%s2 + $0x1c] sm:$0xf]
      %v489 = vld [vmem:[%s2 + $0x20] sm:$0xf]
      %v490 = vld [vmem:[%s2 + $0x24] sm:$0xf]
      %v491 = vld [vmem:[%s2 + $0x28] sm:$0xf]
      %v492 = vld [vmem:[%s2 + $0x2c] sm:$0xf]
      %v493 = vld [vmem:[%s2 + $0x30] sm:$0xf]
      %v494 = vld [vmem:[%s2 + $0x34] sm:$0xf]
      %v495 = vld [vmem:[%s2 + $0x38] sm:$0xf]
      %v496 = vld [vmem:[%s2 + $0x3c] sm:$0xf]
      %v497 = vld [vmem:[%s3] sm:$0x1]
      %v498 = vld [vmem:[%s3 + $0x1] sm:$0x1]
      %v499 = vld [vmem:[%s3 + $0x2] sm:$0x1]
      %v500 = vld [vmem:[%s3 + $0x3] sm:$0x1]
      %v505 = vlaneseq
      %v506 = vshrl.u32 %v505, 7
      %v507 = vsub.s32 0, %v506
      %v508 = vrot.slane %v497, %v507
      %v509 = vlaneseq
      %v510 = vshrl.u32 %v509, 7
      %v511 = vsub.s32 0, %v510
      %v512 = vrot.slane %v498, %v511
      %v513 = vlaneseq
      %v514 = vshrl.u32 %v513, 7
      %v515 = vsub.s32 0, %v514
      %v516 = vrot.slane %v499, %v515
      %v517 = vlaneseq
      %v518 = vshrl.u32 %v517, 7
      %v519 = vsub.s32 0, %v518
      %v520 = vrot.slane %v500, %v519
      %v529 = vunpack.c.l.b16 %v481
      %v530 = vunpack.c.l.b16 %v482
      %v531 = vunpack.c.l.b16 %v483
      %v532 = vunpack.c.l.b16 %v484
      %v533 = vpack.c.b16 %v530, %v529
      %v534 = vpack.c.b16 %v532, %v531
      %vm537 = vcmask 261120
      %v539 = vsel %vm537, %v480, 0
      %541 = vmatprep.subr.bf16.mxu0 0
      %542 = vmatpush1.bf16.msra.mxu0 %v533
      %543 = vmatprep.subr.bf16.mxu0 0
      %544 = vmatpush1.bf16.msra.mxu0 %v534
      %545 = vmatprep.subr.bf16.mxu0 0
      %546 = vmatpush1.bf16.msra.mxu0 0
      %547 = vmatprep.subr.bf16.mxu0 0
      %548 = vmatpush1.bf16.msra.mxu0 0
      %549 = vmatprep.subr.bf16.mxu0 0
      %550 = vmatpush1.bf16.msra.mxu0 0
      %551 = vmatprep.subr.bf16.mxu0 0
      %552 = vmatpush1.bf16.msra.mxu0 0
      %553 = vmatprep.subr.bf16.mxu0 0
      %554 = vmatpush1.bf16.msra.mxu0 0
      %555 = vmatprep.subr.bf16.mxu0 0
      %556 = vmatpush1.bf16.msra.mxu0 0
      %557 = vmatprep.subr.bf16.mxu0 0
      %558 = vmatpush1.bf16.msra.mxu0 0
      %559 = vmatprep.subr.bf16.mxu0 0
      %560 = vmatpush1.bf16.msra.mxu0 0
      %561 = vmatprep.subr.bf16.mxu0 0
      %562 = vmatpush1.bf16.msra.mxu0 0
      %563 = vmatprep.subr.bf16.mxu0 0
      %564 = vmatpush1.bf16.msra.mxu0 0
      %565 = vmatprep.subr.bf16.mxu0 0
      %566 = vmatpush1.bf16.msra.mxu0 0
      %567 = vmatprep.subr.bf16.mxu0 0
      %568 = vmatpush1.bf16.msra.mxu0 0
      %569 = vmatprep.subr.bf16.mxu0 0
      %570 = vmatpush1.bf16.msra.mxu0 0
      %571 = vmatprep.subr.bf16.mxu0 0
      %572 = vmatpush1.bf16.msra.mxu0 0
      %573 = vmatprep.mubr.bf16.mxu0 0
      %574 = vmatmul.mubr.bf16.gmra.mrb[0].mxu0 %v539
      %v575 = vpop.f32.mrb[0].mxu0
      %v576 = vadd.f32 %v508, %v575
      %v577 = vpop.f32.mrb[0].mxu0
      %v578 = vpop.f32.mrb[0].mxu0
      %v579 = vpop.f32.mrb[0].mxu0
      %580 = vdwg.mxu0
      %v585 = vunpack.c.l.b16 %v485
      %v586 = vunpack.c.l.b16 %v486
      %v587 = vunpack.c.l.b16 %v487
      %v588 = vunpack.c.l.b16 %v488
      %v589 = vpack.c.b16 %v586, %v585
      %v590 = vpack.c.b16 %v588, %v587
      %593 = vmatprep.subr.bf16.mxu0 0
      %594 = vmatpush1.bf16.msra.mxu0 %v589
      %595 = vmatprep.subr.bf16.mxu0 0
      %596 = vmatpush1.bf16.msra.mxu0 %v590
      %597 = vmatprep.subr.bf16.mxu0 0
      %598 = vmatpush1.bf16.msra.mxu0 0
      %599 = vmatprep.subr.bf16.mxu0 0
      %600 = vmatpush1.bf16.msra.mxu0 0
      %601 = vmatprep.subr.bf16.mxu0 0
      %602 = vmatpush1.bf16.msra.mxu0 0
      %603 = vmatprep.subr.bf16.mxu0 0
      %604 = vmatpush1.bf16.msra.mxu0 0
      %605 = vmatprep.subr.bf16.mxu0 0
      %606 = vmatpush1.bf16.msra.mxu0 0
      %607 = vmatprep.subr.bf16.mxu0 0
      %608 = vmatpush1.bf16.msra.mxu0 0
      %609 = vmatprep.subr.bf16.mxu0 0
      %610 = vmatpush1.bf16.msra.mxu0 0
      %611 = vmatprep.subr.bf16.mxu0 0
      %612 = vmatpush1.bf16.msra.mxu0 0
      %613 = vmatprep.subr.bf16.mxu0 0
      %614 = vmatpush1.bf16.msra.mxu0 0
      %615 = vmatprep.subr.bf16.mxu0 0
      %616 = vmatpush1.bf16.msra.mxu0 0
      %617 = vmatprep.subr.bf16.mxu0 0
      %618 = vmatpush1.bf16.msra.mxu0 0
      %619 = vmatprep.subr.bf16.mxu0 0
      %620 = vmatpush1.bf16.msra.mxu0 0
      %621 = vmatprep.subr.bf16.mxu0 0
      %622 = vmatpush1.bf16.msra.mxu0 0
      %623 = vmatprep.subr.bf16.mxu0 0
      %624 = vmatpush1.bf16.msra.mxu0 0
      %625 = vmatprep.mubr.bf16.mxu0 0
      %626 = vmatmul.mubr.bf16.gmra.mrb[0].mxu0 %v539
      %v627 = vpop.f32.mrb[0].mxu0
      %v628 = vadd.f32 %v512, %v627
      %v629 = vpop.f32.mrb[0].mxu0
      %v630 = vpop.f32.mrb[0].mxu0
      %v631 = vpop.f32.mrb[0].mxu0
      %632 = vdwg.mxu0
      %v637 = vunpack.c.l.b16 %v489
      %v638 = vunpack.c.l.b16 %v490
      %v639 = vunpack.c.l.b16 %v491
      %v640 = vunpack.c.l.b16 %v492
      %v641 = vpack.c.b16 %v638, %v637
      %v642 = vpack.c.b16 %v640, %v639
      %645 = vmatprep.subr.bf16.mxu0 0
      %646 = vmatpush1.bf16.msra.mxu0 %v641
      %647 = vmatprep.subr.bf16.mxu0 0
      %648 = vmatpush1.bf16.msra.mxu0 %v642
      %649 = vmatprep.subr.bf16.mxu0 0
      %650 = vmatpush1.bf16.msra.mxu0 0
      %651 = vmatprep.subr.bf16.mxu0 0
      %652 = vmatpush1.bf16.msra.mxu0 0
      %653 = vmatprep.subr.bf16.mxu0 0
      %654 = vmatpush1.bf16.msra.mxu0 0
      %655 = vmatprep.subr.bf16.mxu0 0
      %656 = vmatpush1.bf16.msra.mxu0 0
      %657 = vmatprep.subr.bf16.mxu0 0
      %658 = vmatpush1.bf16.msra.mxu0 0
      %659 = vmatprep.subr.bf16.mxu0 0
      %660 = vmatpush1.bf16.msra.mxu0 0
      %661 = vmatprep.subr.bf16.mxu0 0
      %662 = vmatpush1.bf16.msra.mxu0 0
      %663 = vmatprep.subr.bf16.mxu0 0
      %664 = vmatpush1.bf16.msra.mxu0 0
      %665 = vmatprep.subr.bf16.mxu0 0
      %666 = vmatpush1.bf16.msra.mxu0 0
      %667 = vmatprep.subr.bf16.mxu0 0
      %668 = vmatpush1.bf16.msra.mxu0 0
      %669 = vmatprep.subr.bf16.mxu0 0
      %670 = vmatpush1.bf16.msra.mxu0 0
      %671 = vmatprep.subr.bf16.mxu0 0
      %672 = vmatpush1.bf16.msra.mxu0 0
      %673 = vmatprep.subr.bf16.mxu0 0
      %674 = vmatpush1.bf16.msra.mxu0 0
      %675 = vmatprep.subr.bf16.mxu0 0
      %676 = vmatpush1.bf16.msra.mxu0 0
      %677 = vmatprep.mubr.bf16.mxu0 0
      %678 = vmatmul.mubr.bf16.gmra.mrb[0].mxu0 %v539
      %v679 = vpop.f32.mrb[0].mxu0
      %v680 = vadd.f32 %v516, %v679
      %v681 = vpop.f32.mrb[0].mxu0
      %v682 = vpop.f32.mrb[0].mxu0
      %v683 = vpop.f32.mrb[0].mxu0
      %684 = vdwg.mxu0
      %v689 = vunpack.c.l.b16 %v493
      %v690 = vunpack.c.l.b16 %v494
      %v691 = vunpack.c.l.b16 %v495
      %v692 = vunpack.c.l.b16 %v496
      %v693 = vpack.c.b16 %v690, %v689
      %v694 = vpack.c.b16 %v692, %v691
      %697 = vmatprep.subr.bf16.mxu0 0
      %698 = vmatpush1.bf16.msra.mxu0 %v693
      %699 = vmatprep.subr.bf16.mxu0 0
      %700 = vmatpush1.bf16.msra.mxu0 %v694
      %701 = vmatprep.subr.bf16.mxu0 0
      %702 = vmatpush1.bf16.msra.mxu0 0
      %703 = vmatprep.subr.bf16.mxu0 0
      %704 = vmatpush1.bf16.msra.mxu0 0
      %705 = vmatprep.subr.bf16.mxu0 0
      %706 = vmatpush1.bf16.msra.mxu0 0
      %707 = vmatprep.subr.bf16.mxu0 0
      %708 = vmatpush1.bf16.msra.mxu0 0
      %709 = vmatprep.subr.bf16.mxu0 0
      %710 = vmatpush1.bf16.msra.mxu0 0
      %711 = vmatprep.subr.bf16.mxu0 0
      %712 = vmatpush1.bf16.msra.mxu0 0
      %713 = vmatprep.subr.bf16.mxu0 0
      %714 = vmatpush1.bf16.msra.mxu0 0
      %715 = vmatprep.subr.bf16.mxu0 0
      %716 = vmatpush1.bf16.msra.mxu0 0
      %717 = vmatprep.subr.bf16.mxu0 0
      %718 = vmatpush1.bf16.msra.mxu0 0
      %719 = vmatprep.subr.bf16.mxu0 0
      %720 = vmatpush1.bf16.msra.mxu0 0
      %721 = vmatprep.subr.bf16.mxu0 0
      %722 = vmatpush1.bf16.msra.mxu0 0
      %723 = vmatprep.subr.bf16.mxu0 0
      %724 = vmatpush1.bf16.msra.mxu0 0
      %725 = vmatprep.subr.bf16.mxu0 0
      %726 = vmatpush1.bf16.msra.mxu0 0
      %727 = vmatprep.subr.bf16.mxu0 0
      %728 = vmatpush1.bf16.msra.mxu0 0
      %729 = vmatprep.mubr.bf16.mxu0 0
      %730 = vmatmul.mubr.bf16.gmra.mrb[0].mxu0 %v539
      %v731 = vpop.f32.mrb[0].mxu0
      %v732 = vadd.f32 %v520, %v731
      %v733 = vpop.f32.mrb[0].mxu0
      %v734 = vpop.f32.mrb[0].mxu0
      %v735 = vpop.f32.mrb[0].mxu0
      %736 = vdwg.mxu0
      %s737 = scalar_lea.vmem %s2, 64
      %v738 = vld [vmem:[%s737] sm:$0xf]
      %v739 = vld [vmem:[%s737 + $0x4] sm:$0xf]
      %v740 = vld [vmem:[%s737 + $0x8] sm:$0xf]
      %v741 = vld [vmem:[%s737 + $0xc] sm:$0xf]
      %v742 = vld [vmem:[%s737 + $0x10] sm:$0xf]
      %v743 = vld [vmem:[%s737 + $0x14] sm:$0xf]
      %v744 = vld [vmem:[%s737 + $0x18] sm:$0xf]
      %v745 = vld [vmem:[%s737 + $0x1c] sm:$0xf]
      %v746 = vld [vmem:[%s737 + $0x20] sm:$0xf]
      %v747 = vld [vmem:[%s737 + $0x24] sm:$0xf]
      %v748 = vld [vmem:[%s737 + $0x28] sm:$0xf]
      %v749 = vld [vmem:[%s737 + $0x2c] sm:$0xf]
      %v750 = vld [vmem:[%s737 + $0x30] sm:$0xf]
      %v751 = vld [vmem:[%s737 + $0x34] sm:$0xf]
      %v752 = vld [vmem:[%s737 + $0x38] sm:$0xf]
      %v753 = vld [vmem:[%s737 + $0x3c] sm:$0xf]
      %s754 = scalar_lea.vmem %s3, 4
      %v755 = vld [vmem:[%s754] sm:$0x1]
      %v756 = vld [vmem:[%s754 + $0x1] sm:$0x1]
      %v757 = vld [vmem:[%s754 + $0x2] sm:$0x1]
      %v758 = vld [vmem:[%s754 + $0x3] sm:$0x1]
      %v763 = vlaneseq
      %v764 = vshrl.u32 %v763, 7
      %v765 = vsub.s32 0, %v764
      %v766 = vrot.slane %v755, %v765
      %v767 = vlaneseq
      %v768 = vshrl.u32 %v767, 7
      %v769 = vsub.s32 0, %v768
      %v770 = vrot.slane %v756, %v769
      %v771 = vlaneseq
      %v772 = vshrl.u32 %v771, 7
      %v773 = vsub.s32 0, %v772
      %v774 = vrot.slane %v757, %v773
      %v775 = vlaneseq
      %v776 = vshrl.u32 %v775, 7
      %v777 = vsub.s32 0, %v776
      %v778 = vrot.slane %v758, %v777
      %v787 = vunpack.c.l.b16 %v738
      %v788 = vunpack.c.l.b16 %v739
      %v789 = vunpack.c.l.b16 %v740
      %v790 = vunpack.c.l.b16 %v741
      %v791 = vpack.c.b16 %v788, %v787
      %v792 = vpack.c.b16 %v790, %v789
      %795 = vmatprep.subr.bf16.mxu0 0
      %796 = vmatpush1.bf16.msra.mxu0 %v791
      %797 = vmatprep.subr.bf16.mxu0 0
      %798 = vmatpush1.bf16.msra.mxu0 %v792
      %799 = vmatprep.subr.bf16.mxu0 0
      %800 = vmatpush1.bf16.msra.mxu0 0
      %801 = vmatprep.subr.bf16.mxu0 0
      %802 = vmatpush1.bf16.msra.mxu0 0
      %803 = vmatprep.subr.bf16.mxu0 0
      %804 = vmatpush1.bf16.msra.mxu0 0
      %805 = vmatprep.subr.bf16.mxu0 0
      %806 = vmatpush1.bf16.msra.mxu0 0
      %807 = vmatprep.subr.bf16.mxu0 0
      %808 = vmatpush1.bf16.msra.mxu0 0
      %809 = vmatprep.subr.bf16.mxu0 0
      %810 = vmatpush1.bf16.msra.mxu0 0
      %811 = vmatprep.subr.bf16.mxu0 0
      %812 = vmatpush1.bf16.msra.mxu0 0
      %813 = vmatprep.subr.bf16.mxu0 0
      %814 = vmatpush1.bf16.msra.mxu0 0
      %815 = vmatprep.subr.bf16.mxu0 0
      %816 = vmatpush1.bf16.msra.mxu0 0
      %817 = vmatprep.subr.bf16.mxu0 0
      %818 = vmatpush1.bf16.msra.mxu0 0
      %819 = vmatprep.subr.bf16.mxu0 0
      %820 = vmatpush1.bf16.msra.mxu0 0
      %821 = vmatprep.subr.bf16.mxu0 0
      %822 = vmatpush1.bf16.msra.mxu0 0
      %823 = vmatprep.subr.bf16.mxu0 0
      %824 = vmatpush1.bf16.msra.mxu0 0
      %825 = vmatprep.subr.bf16.mxu0 0
      %826 = vmatpush1.bf16.msra.mxu0 0
      %827 = vmatprep.mubr.bf16.mxu0 0
      %828 = vmatmul.mubr.bf16.gmra.mrb[0].mxu0 %v539
      %v829 = vpop.f32.mrb[0].mxu0
      %v830 = vadd.f32 %v766, %v829
      %v831 = vpop.f32.mrb[0].mxu0
      %v832 = vpop.f32.mrb[0].mxu0
      %v833 = vpop.f32.mrb[0].mxu0
      %834 = vdwg.mxu0
      %v839 = vunpack.c.l.b16 %v742
      %v840 = vunpack.c.l.b16 %v743
      %v841 = vunpack.c.l.b16 %v744
      %v842 = vunpack.c.l.b16 %v745
      %v843 = vpack.c.b16 %v840, %v839
      %v844 = vpack.c.b16 %v842, %v841
      %847 = vmatprep.subr.bf16.mxu0 0
      %848 = vmatpush1.bf16.msra.mxu0 %v843
      %849 = vmatprep.subr.bf16.mxu0 0
      %850 = vmatpush1.bf16.msra.mxu0 %v844
      %851 = vmatprep.subr.bf16.mxu0 0
      %852 = vmatpush1.bf16.msra.mxu0 0
      %853 = vmatprep.subr.bf16.mxu0 0
      %854 = vmatpush1.bf16.msra.mxu0 0
      %855 = vmatprep.subr.bf16.mxu0 0
      %856 = vmatpush1.bf16.msra.mxu0 0
      %857 = vmatprep.subr.bf16.mxu0 0
      %858 = vmatpush1.bf16.msra.mxu0 0
      %859 = vmatprep.subr.bf16.mxu0 0
      %860 = vmatpush1.bf16.msra.mxu0 0
      %861 = vmatprep.subr.bf16.mxu0 0
      %862 = vmatpush1.bf16.msra.mxu0 0
      %863 = vmatprep.subr.bf16.mxu0 0
      %864 = vmatpush1.bf16.msra.mxu0 0
      %865 = vmatprep.subr.bf16.mxu0 0
      %866 = vmatpush1.bf16.msra.mxu0 0
      %867 = vmatprep.subr.bf16.mxu0 0
      %868 = vmatpush1.bf16.msra.mxu0 0
      %869 = vmatprep.subr.bf16.mxu0 0
      %870 = vmatpush1.bf16.msra.mxu0 0
      %871 = vmatprep.subr.bf16.mxu0 0
      %872 = vmatpush1.bf16.msra.mxu0 0
      %873 = vmatprep.subr.bf16.mxu0 0
      %874 = vmatpush1.bf16.msra.mxu0 0
      %875 = vmatprep.subr.bf16.mxu0 0
      %876 = vmatpush1.bf16.msra.mxu0 0
      %877 = vmatprep.subr.bf16.mxu0 0
      %878 = vmatpush1.bf16.msra.mxu0 0
      %879 = vmatprep.mubr.bf16.mxu0 0
      %880 = vmatmul.mubr.bf16.gmra.mrb[0].mxu0 %v539
      %v881 = vpop.f32.mrb[0].mxu0
      %v882 = vadd.f32 %v770, %v881
      %v883 = vpop.f32.mrb[0].mxu0
      %v884 = vpop.f32.mrb[0].mxu0
      %v885 = vpop.f32.mrb[0].mxu0
      %886 = vdwg.mxu0
      %v891 = vunpack.c.l.b16 %v746
      %v892 = vunpack.c.l.b16 %v747
      %v893 = vunpack.c.l.b16 %v748
      %v894 = vunpack.c.l.b16 %v749
      %v895 = vpack.c.b16 %v892, %v891
      %v896 = vpack.c.b16 %v894, %v893
      %899 = vmatprep.subr.bf16.mxu0 0
      %900 = vmatpush1.bf16.msra.mxu0 %v895
      %901 = vmatprep.subr.bf16.mxu0 0
      %902 = vmatpush1.bf16.msra.mxu0 %v896
      %903 = vmatprep.subr.bf16.mxu0 0
      %904 = vmatpush1.bf16.msra.mxu0 0
      %905 = vmatprep.subr.bf16.mxu0 0
      %906 = vmatpush1.bf16.msra.mxu0 0
      %907 = vmatprep.subr.bf16.mxu0 0
      %908 = vmatpush1.bf16.msra.mxu0 0
      %909 = vmatprep.subr.bf16.mxu0 0
      %910 = vmatpush1.bf16.msra.mxu0 0
      %911 = vmatprep.subr.bf16.mxu0 0
      %912 = vmatpush1.bf16.msra.mxu0 0
      %913 = vmatprep.subr.bf16.mxu0 0
      %914 = vmatpush1.bf16.msra.mxu0 0
      %915 = vmatprep.subr.bf16.mxu0 0
      %916 = vmatpush1.bf16.msra.mxu0 0
      %917 = vmatprep.subr.bf16.mxu0 0
      %918 = vmatpush1.bf16.msra.mxu0 0
      %919 = vmatprep.subr.bf16.mxu0 0
      %920 = vmatpush1.bf16.msra.mxu0 0
      %921 = vmatprep.subr.bf16.mxu0 0
      %922 = vmatpush1.bf16.msra.mxu0 0
      %923 = vmatprep.subr.bf16.mxu0 0
      %924 = vmatpush1.bf16.msra.mxu0 0
      %925 = vmatprep.subr.bf16.mxu0 0
      %926 = vmatpush1.bf16.msra.mxu0 0
      %927 = vmatprep.subr.bf16.mxu0 0
      %928 = vmatpush1.bf16.msra.mxu0 0
      %929 = vmatprep.subr.bf16.mxu0 0
      %930 = vmatpush1.bf16.msra.mxu0 0
      %931 = vmatprep.mubr.bf16.mxu0 0
      %932 = vmatmul.mubr.bf16.gmra.mrb[0].mxu0 %v539
      %v933 = vpop.f32.mrb[0].mxu0
      %v934 = vadd.f32 %v774, %v933
      %v935 = vpop.f32.mrb[0].mxu0
      %v936 = vpop.f32.mrb[0].mxu0
      %v937 = vpop.f32.mrb[0].mxu0
      %938 = vdwg.mxu0
      %v943 = vunpack.c.l.b16 %v750
      %v944 = vunpack.c.l.b16 %v751
      %v945 = vunpack.c.l.b16 %v752
      %v946 = vunpack.c.l.b16 %v753
      %v947 = vpack.c.b16 %v944, %v943
      %v948 = vpack.c.b16 %v946, %v945
      %951 = vmatprep.subr.bf16.mxu0 0
      %952 = vmatpush1.bf16.msra.mxu0 %v947
      %953 = vmatprep.subr.bf16.mxu0 0
      %954 = vmatpush1.bf16.msra.mxu0 %v948
      %955 = vmatprep.subr.bf16.mxu0 0
      %956 = vmatpush1.bf16.msra.mxu0 0
      %957 = vmatprep.subr.bf16.mxu0 0
      %958 = vmatpush1.bf16.msra.mxu0 0
      %959 = vmatprep.subr.bf16.mxu0 0
      %960 = vmatpush1.bf16.msra.mxu0 0
      %961 = vmatprep.subr.bf16.mxu0 0
      %962 = vmatpush1.bf16.msra.mxu0 0
      %963 = vmatprep.subr.bf16.mxu0 0
      %964 = vmatpush1.bf16.msra.mxu0 0
      %965 = vmatprep.subr.bf16.mxu0 0
      %966 = vmatpush1.bf16.msra.mxu0 0
      %967 = vmatprep.subr.bf16.mxu0 0
      %968 = vmatpush1.bf16.msra.mxu0 0
      %969 = vmatprep.subr.bf16.mxu0 0
      %970 = vmatpush1.bf16.msra.mxu0 0
      %971 = vmatprep.subr.bf16.mxu0 0
      %972 = vmatpush1.bf16.msra.mxu0 0
      %973 = vmatprep.subr.bf16.mxu0 0
      %974 = vmatpush1.bf16.msra.mxu0 0
      %975 = vmatprep.subr.bf16.mxu0 0
      %976 = vmatpush1.bf16.msra.mxu0 0
      %977 = vmatprep.subr.bf16.mxu0 0
      %978 = vmatpush1.bf16.msra.mxu0 0
      %979 = vmatprep.subr.bf16.mxu0 0
      %980 = vmatpush1.bf16.msra.mxu0 0
      %981 = vmatprep.subr.bf16.mxu0 0
      %982 = vmatpush1.bf16.msra.mxu0 0
      %983 = vmatprep.mubr.bf16.mxu0 0
      %984 = vmatmul.mubr.bf16.gmra.mrb[0].mxu0 %v539
      %v985 = vpop.f32.mrb[0].mxu0
      %v986 = vadd.f32 %v778, %v985
      %v987 = vpop.f32.mrb[0].mxu0
      %v988 = vpop.f32.mrb[0].mxu0
      %v989 = vpop.f32.mrb[0].mxu0
      %990 = vdwg.mxu0
      %s991 = scalar_lea.vmem %s2, 128
      %v992 = vld [vmem:[%s991] sm:$0xf]
      %v993 = vld [vmem:[%s991 + $0x4] sm:$0xf]
      %v994 = vld [vmem:[%s991 + $0x8] sm:$0xf]
      %v995 = vld [vmem:[%s991 + $0xc] sm:$0xf]
      %v996 = vld [vmem:[%s991 + $0x10] sm:$0xf]
      %v997 = vld [vmem:[%s991 + $0x14] sm:$0xf]
      %v998 = vld [vmem:[%s991 + $0x18] sm:$0xf]
      %v999 = vld [vmem:[%s991 + $0x1c] sm:$0xf]
      %v1000 = vld [vmem:[%s991 + $0x20] sm:$0xf]
      %v1001 = vld [vmem:[%s991 + $0x24] sm:$0xf]
      %v1002 = vld [vmem:[%s991 + $0x28] sm:$0xf]
      %v1003 = vld [vmem:[%s991 + $0x2c] sm:$0xf]
      %v1004 = vld [vmem:[%s991 + $0x30] sm:$0xf]
      %v1005 = vld [vmem:[%s991 + $0x34] sm:$0xf]
      %v1006 = vld [vmem:[%s991 + $0x38] sm:$0xf]
      %v1007 = vld [vmem:[%s991 + $0x3c] sm:$0xf]
      %s1008 = scalar_lea.vmem %s3, 8
      %v1009 = vld [vmem:[%s1008] sm:$0x1]
      %v1010 = vld [vmem:[%s1008 + $0x1] sm:$0x1]
      %v1011 = vld [vmem:[%s1008 + $0x2] sm:$0x1]
      %v1012 = vld [vmem:[%s1008 + $0x3] sm:$0x1]
      %v1017 = vlaneseq
      %v1018 = vshrl.u32 %v1017, 7
      %v1019 = vsub.s32 0, %v1018
      %v1020 = vrot.slane %v1009, %v1019
      %v1021 = vlaneseq
      %v1022 = vshrl.u32 %v1021, 7
      %v1023 = vsub.s32 0, %v1022
      %v1024 = vrot.slane %v1010, %v1023
      %v1025 = vlaneseq
      %v1026 = vshrl.u32 %v1025, 7
      %v1027 = vsub.s32 0, %v1026
      %v1028 = vrot.slane %v1011, %v1027
      %v1029 = vlaneseq
      %v1030 = vshrl.u32 %v1029, 7
      %v1031 = vsub.s32 0, %v1030
      %v1032 = vrot.slane %v1012, %v1031
      %v1041 = vunpack.c.l.b16 %v992
      %v1042 = vunpack.c.l.b16 %v993
      %v1043 = vunpack.c.l.b16 %v994
      %v1044 = vunpack.c.l.b16 %v995
      %v1045 = vpack.c.b16 %v1042, %v1041
      %v1046 = vpack.c.b16 %v1044, %v1043
      %1049 = vmatprep.subr.bf16.mxu0 0
      %1050 = vmatpush1.bf16.msra.mxu0 %v1045
      %1051 = vmatprep.subr.bf16.mxu0 0
      %1052 = vmatpush1.bf16.msra.mxu0 %v1046
      %1053 = vmatprep.subr.bf16.mxu0 0
      %1054 = vmatpush1.bf16.msra.mxu0 0
      %1055 = vmatprep.subr.bf16.mxu0 0
      %1056 = vmatpush1.bf16.msra.mxu0 0
      %1057 = vmatprep.subr.bf16.mxu0 0
      %1058 = vmatpush1.bf16.msra.mxu0 0
      %1059 = vmatprep.subr.bf16.mxu0 0
      %1060 = vmatpush1.bf16.msra.mxu0 0
      %1061 = vmatprep.subr.bf16.mxu0 0
      %1062 = vmatpush1.bf16.msra.mxu0 0
      %1063 = vmatprep.subr.bf16.mxu0 0
      %1064 = vmatpush1.bf16.msra.mxu0 0
      %1065 = vmatprep.subr.bf16.mxu0 0
      %1066 = vmatpush1.bf16.msra.mxu0 0
      %1067 = vmatprep.subr.bf16.mxu0 0
      %1068 = vmatpush1.bf16.msra.mxu0 0
      %1069 = vmatprep.subr.bf16.mxu0 0
      %1070 = vmatpush1.bf16.msra.mxu0 0
      %1071 = vmatprep.subr.bf16.mxu0 0
      %1072 = vmatpush1.bf16.msra.mxu0 0
      %1073 = vmatprep.subr.bf16.mxu0 0
      %1074 = vmatpush1.bf16.msra.mxu0 0
      %1075 = vmatprep.subr.bf16.mxu0 0
      %1076 = vmatpush1.bf16.msra.mxu0 0
      %1077 = vmatprep.subr.bf16.mxu0 0
      %1078 = vmatpush1.bf16.msra.mxu0 0
      %1079 = vmatprep.subr.bf16.mxu0 0
      %1080 = vmatpush1.bf16.msra.mxu0 0
      %1081 = vmatprep.mubr.bf16.mxu0 0
      %1082 = vmatmul.mubr.bf16.gmra.mrb[0].mxu0 %v539
      %v1083 = vpop.f32.mrb[0].mxu0
      %v1084 = vadd.f32 %v1020, %v1083
      %v1085 = vpop.f32.mrb[0].mxu0
      %v1086 = vpop.f32.mrb[0].mxu0
      %v1087 = vpop.f32.mrb[0].mxu0
      %1088 = vdwg.mxu0
      %v1093 = vunpack.c.l.b16 %v996
      %v1094 = vunpack.c.l.b16 %v997
      %v1095 = vunpack.c.l.b16 %v998
      %v1096 = vunpack.c.l.b16 %v999
      %v1097 = vpack.c.b16 %v1094, %v1093
      %v1098 = vpack.c.b16 %v1096, %v1095
      %1101 = vmatprep.subr.bf16.mxu0 0
      %1102 = vmatpush1.bf16.msra.mxu0 %v1097
      %1103 = vmatprep.subr.bf16.mxu0 0
      %1104 = vmatpush1.bf16.msra.mxu0 %v1098
      %1105 = vmatprep.subr.bf16.mxu0 0
      %1106 = vmatpush1.bf16.msra.mxu0 0
      %1107 = vmatprep.subr.bf16.mxu0 0
      %1108 = vmatpush1.bf16.msra.mxu0 0
      %1109 = vmatprep.subr.bf16.mxu0 0
      %1110 = vmatpush1.bf16.msra.mxu0 0
      %1111 = vmatprep.subr.bf16.mxu0 0
      %1112 = vmatpush1.bf16.msra.mxu0 0
      %1113 = vmatprep.subr.bf16.mxu0 0
      %1114 = vmatpush1.bf16.msra.mxu0 0
      %1115 = vmatprep.subr.bf16.mxu0 0
      %1116 = vmatpush1.bf16.msra.mxu0 0
      %1117 = vmatprep.subr.bf16.mxu0 0
      %1118 = vmatpush1.bf16.msra.mxu0 0
      %1119 = vmatprep.subr.bf16.mxu0 0
      %1120 = vmatpush1.bf16.msra.mxu0 0
      %1121 = vmatprep.subr.bf16.mxu0 0
      %1122 = vmatpush1.bf16.msra.mxu0 0
      %1123 = vmatprep.subr.bf16.mxu0 0
      %1124 = vmatpush1.bf16.msra.mxu0 0
      %1125 = vmatprep.subr.bf16.mxu0 0
      %1126 = vmatpush1.bf16.msra.mxu0 0
      %1127 = vmatprep.subr.bf16.mxu0 0
      %1128 = vmatpush1.bf16.msra.mxu0 0
      %1129 = vmatprep.subr.bf16.mxu0 0
      %1130 = vmatpush1.bf16.msra.mxu0 0
      %1131 = vmatprep.subr.bf16.mxu0 0
      %1132 = vmatpush1.bf16.msra.mxu0 0
      %1133 = vmatprep.mubr.bf16.mxu0 0
      %1134 = vmatmul.mubr.bf16.gmra.mrb[0].mxu0 %v539
      %v1135 = vpop.f32.mrb[0].mxu0
      %v1136 = vadd.f32 %v1024, %v1135
      %v1137 = vpop.f32.mrb[0].mxu0
      %v1138 = vpop.f32.mrb[0].mxu0
      %v1139 = vpop.f32.mrb[0].mxu0
      %1140 = vdwg.mxu0
      %v1145 = vunpack.c.l.b16 %v1000
      %v1146 = vunpack.c.l.b16 %v1001
      %v1147 = vunpack.c.l.b16 %v1002
      %v1148 = vunpack.c.l.b16 %v1003
      %v1149 = vpack.c.b16 %v1146, %v1145
      %v1150 = vpack.c.b16 %v1148, %v1147
      %1153 = vmatprep.subr.bf16.mxu0 0
      %1154 = vmatpush1.bf16.msra.mxu0 %v1149
      %1155 = vmatprep.subr.bf16.mxu0 0
      %1156 = vmatpush1.bf16.msra.mxu0 %v1150
      %1157 = vmatprep.subr.bf16.mxu0 0
      %1158 = vmatpush1.bf16.msra.mxu0 0
      %1159 = vmatprep.subr.bf16.mxu0 0
      %1160 = vmatpush1.bf16.msra.mxu0 0
      %1161 = vmatprep.subr.bf16.mxu0 0
      %1162 = vmatpush1.bf16.msra.mxu0 0
      %1163 = vmatprep.subr.bf16.mxu0 0
      %1164 = vmatpush1.bf16.msra.mxu0 0
      %1165 = vmatprep.subr.bf16.mxu0 0
      %1166 = vmatpush1.bf16.msra.mxu0 0
      %1167 = vmatprep.subr.bf16.mxu0 0
      %1168 = vmatpush1.bf16.msra.mxu0 0
      %1169 = vmatprep.subr.bf16.mxu0 0
      %1170 = vmatpush1.bf16.msra.mxu0 0
      %1171 = vmatprep.subr.bf16.mxu0 0
      %1172 = vmatpush1.bf16.msra.mxu0 0
      %1173 = vmatprep.subr.bf16.mxu0 0
      %1174 = vmatpush1.bf16.msra.mxu0 0
      %1175 = vmatprep.subr.bf16.mxu0 0
      %1176 = vmatpush1.bf16.msra.mxu0 0
      %1177 = vmatprep.subr.bf16.mxu0 0
      %1178 = vmatpush1.bf16.msra.mxu0 0
      %1179 = vmatprep.subr.bf16.mxu0 0
      %1180 = vmatpush1.bf16.msra.mxu0 0
      %1181 = vmatprep.subr.bf16.mxu0 0
      %1182 = vmatpush1.bf16.msra.mxu0 0
      %1183 = vmatprep.subr.bf16.mxu0 0
      %1184 = vmatpush1.bf16.msra.mxu0 0
      %1185 = vmatprep.mubr.bf16.mxu0 0
      %1186 = vmatmul.mubr.bf16.gmra.mrb[0].mxu0 %v539
      %v1187 = vpop.f32.mrb[0].mxu0
      %v1188 = vadd.f32 %v1028, %v1187
      %v1189 = vpop.f32.mrb[0].mxu0
      %v1190 = vpop.f32.mrb[0].mxu0
      %v1191 = vpop.f32.mrb[0].mxu0
      %1192 = vdwg.mxu0
      %v1197 = vunpack.c.l.b16 %v1004
      %v1198 = vunpack.c.l.b16 %v1005
      %v1199 = vunpack.c.l.b16 %v1006
      %v1200 = vunpack.c.l.b16 %v1007
      %v1201 = vpack.c.b16 %v1198, %v1197
      %v1202 = vpack.c.b16 %v1200, %v1199
      %1205 = vmatprep.subr.bf16.mxu0 0
      %1206 = vmatpush1.bf16.msra.mxu0 %v1201
      %1207 = vmatprep.subr.bf16.mxu0 0
      %1208 = vmatpush1.bf16.msra.mxu0 %v1202
      %1209 = vmatprep.subr.bf16.mxu0 0
      %1210 = vmatpush1.bf16.msra.mxu0 0
      %1211 = vmatprep.subr.bf16.mxu0 0
      %1212 = vmatpush1.bf16.msra.mxu0 0
      %1213 = vmatprep.subr.bf16.mxu0 0
      %1214 = vmatpush1.bf16.msra.mxu0 0
      %1215 = vmatprep.subr.bf16.mxu0 0
      %1216 = vmatpush1.bf16.msra.mxu0 0
      %1217 = vmatprep.subr.bf16.mxu0 0
      %1218 = vmatpush1.bf16.msra.mxu0 0
      %1219 = vmatprep.subr.bf16.mxu0 0
      %1220 = vmatpush1.bf16.msra.mxu0 0
      %1221 = vmatprep.subr.bf16.mxu0 0
      %1222 = vmatpush1.bf16.msra.mxu0 0
      %1223 = vmatprep.subr.bf16.mxu0 0
      %1224 = vmatpush1.bf16.msra.mxu0 0
      %1225 = vmatprep.subr.bf16.mxu0 0
      %1226 = vmatpush1.bf16.msra.mxu0 0
      %1227 = vmatprep.subr.bf16.mxu0 0
      %1228 = vmatpush1.bf16.msra.mxu0 0
      %1229 = vmatprep.subr.bf16.mxu0 0
      %1230 = vmatpush1.bf16.msra.mxu0 0
      %1231 = vmatprep.subr.bf16.mxu0 0
      %1232 = vmatpush1.bf16.msra.mxu0 0
      %1233 = vmatprep.subr.bf16.mxu0 0
      %1234 = vmatpush1.bf16.msra.mxu0 0
      %1235 = vmatprep.subr.bf16.mxu0 0
      %1236 = vmatpush1.bf16.msra.mxu0 0
      %1237 = vmatprep.mubr.bf16.mxu0 0
      %1238 = vmatmul.mubr.bf16.gmra.mrb[0].mxu0 %v539
      %v1239 = vpop.f32.mrb[0].mxu0
      %v1240 = vadd.f32 %v1032, %v1239
      %v1241 = vpop.f32.mrb[0].mxu0
      %v1242 = vpop.f32.mrb[0].mxu0
      %v1243 = vpop.f32.mrb[0].mxu0
      %1244 = vdwg.mxu0
      %v1245 = vpack.c.bf16 %v576, %v576
      %v1246 = vpack.c.bf16 %v628, %v628
      %v1247 = vpack.c.bf16 %v680, %v680
      %v1248 = vpack.c.bf16 %v732, %v732
      %v1249 = vpack.c.bf16 %v830, %v830
      %v1250 = vpack.c.bf16 %v882, %v882
      %v1251 = vpack.c.bf16 %v934, %v934
      %v1252 = vpack.c.bf16 %v986, %v986
      %vm1253 = vcmask 64512
      %v1255 = vsel %vm1253, %v1245, 0
      %v1258 = vsel %vm1253, %v1249, 0
      %1260 = vmatprep.subr.bf16.mxu0 0
      %1261 = vmatpush1.bf16.xpose.msra.mxu0 %v1258
      %1262 = vmatprep.subr.bf16.mxu0 0
      %1263 = vmatpush1.bf16.xpose.msra.mxu0 0
      %1264 = vmatprep.subr.bf16.mxu0 0
      %1265 = vmatpush1.bf16.xpose.msra.mxu0 0
      %1266 = vmatprep.subr.bf16.mxu0 0
      %1267 = vmatpush1.bf16.xpose.msra.mxu0 0
      %1268 = vmatprep.subr.bf16.mxu0 0
      %1269 = vmatpush1.bf16.xpose.msra.mxu0 0
      %1270 = vmatprep.subr.bf16.mxu0 0
      %1271 = vmatpush1.bf16.xpose.msra.mxu0 0
      %1272 = vmatprep.subr.bf16.mxu0 0
      %1273 = vmatpush1.bf16.xpose.msra.mxu0 0
      %1274 = vmatprep.subr.bf16.mxu0 0
      %1275 = vmatpush1.bf16.xpose.msra.mxu0 0
      %1276 = vmatprep.subr.bf16.mxu0 0
      %1277 = vmatpush1.bf16.xpose.msra.mxu0 0
      %1278 = vmatprep.subr.bf16.mxu0 0
      %1279 = vmatpush1.bf16.xpose.msra.mxu0 0
      %1280 = vmatprep.subr.bf16.mxu0 0
      %1281 = vmatpush1.bf16.xpose.msra.mxu0 0
      %1282 = vmatprep.subr.bf16.mxu0 0
      %1283 = vmatpush1.bf16.xpose.msra.mxu0 0
      %1284 = vmatprep.subr.bf16.mxu0 0
      %1285 = vmatpush1.bf16.xpose.msra.mxu0 0
      %1286 = vmatprep.subr.bf16.mxu0 0
      %1287 = vmatpush1.bf16.xpose.msra.mxu0 0
      %1288 = vmatprep.subr.bf16.mxu0 0
      %1289 = vmatpush1.bf16.xpose.msra.mxu0 0
      %1290 = vmatprep.subr.bf16.mxu0 0
      %1291 = vmatpush1.bf16.xpose.msra.mxu0 0
      %1292 = vmatprep.mubr.bf16.mxu0 0
      %1293 = vmatmul.mubr.bf16.gmra.mrb[0].mxu0 %v1255
      %v1294 = vpop.f32.mrb[0].mxu0
      %v1295 = vadd.f32 0.0, %v1294
      %v1296 = vpop.f32.mrb[0].mxu0
      %v1297 = vpop.f32.mrb[0].mxu0
      %v1298 = vpop.f32.mrb[0].mxu0
      %1299 = vdwg.mxu0
      %v1301 = vsel %vm1253, %v1246, 0
      %v1304 = vsel %vm1253, %v1250, 0
      %1306 = vmatprep.subr.bf16.mxu0 0
      %1307 = vmatpush1.bf16.xpose.msra.mxu0 %v1304
      %1308 = vmatprep.subr.bf16.mxu0 0
      %1309 = vmatpush1.bf16.xpose.msra.mxu0 0
      %1310 = vmatprep.subr.bf16.mxu0 0
      %1311 = vmatpush1.bf16.xpose.msra.mxu0 0
      %1312 = vmatprep.subr.bf16.mxu0 0
      %1313 = vmatpush1.bf16.xpose.msra.mxu0 0
      %1314 = vmatprep.subr.bf16.mxu0 0
      %1315 = vmatpush1.bf16.xpose.msra.mxu0 0
      %1316 = vmatprep.subr.bf16.mxu0 0
      %1317 = vmatpush1.bf16.xpose.msra.mxu0 0
      %1318 = vmatprep.subr.bf16.mxu0 0
      %1319 = vmatpush1.bf16.xpose.msra.mxu0 0
      %1320 = vmatprep.subr.bf16.mxu0 0
      %1321 = vmatpush1.bf16.xpose.msra.mxu0 0
      %1322 = vmatprep.subr.bf16.mxu0 0
      %1323 = vmatpush1.bf16.xpose.msra.mxu0 0
      %1324 = vmatprep.subr.bf16.mxu0 0
      %1325 = vmatpush1.bf16.xpose.msra.mxu0 0
      %1326 = vmatprep.subr.bf16.mxu0 0
      %1327 = vmatpush1.bf16.xpose.msra.mxu0 0
      %1328 = vmatprep.subr.bf16.mxu0 0
      %1329 = vmatpush1.bf16.xpose.msra.mxu0 0
      %1330 = vmatprep.subr.bf16.mxu0 0
      %1331 = vmatpush1.bf16.xpose.msra.mxu0 0
      %1332 = vmatprep.subr.bf16.mxu0 0
      %1333 = vmatpush1.bf16.xpose.msra.mxu0 0
      %1334 = vmatprep.subr.bf16.mxu0 0
      %1335 = vmatpush1.bf16.xpose.msra.mxu0 0
      %1336 = vmatprep.subr.bf16.mxu0 0
      %1337 = vmatpush1.bf16.xpose.msra.mxu0 0
      %1338 = vmatprep.mubr.bf16.mxu0 0
      %1339 = vmatmul.mubr.bf16.gmra.mrb[0].mxu0 %v1301
      %v1340 = vpop.f32.mrb[0].mxu0
      %v1341 = vadd.f32 0.0, %v1340
      %v1342 = vpop.f32.mrb[0].mxu0
      %v1343 = vpop.f32.mrb[0].mxu0
      %v1344 = vpop.f32.mrb[0].mxu0
      %1345 = vdwg.mxu0
      %v1347 = vsel %vm1253, %v1247, 0
      %v1350 = vsel %vm1253, %v1251, 0
      %1352 = vmatprep.subr.bf16.mxu0 0
      %1353 = vmatpush1.bf16.xpose.msra.mxu0 %v1350
      %1354 = vmatprep.subr.bf16.mxu0 0
      %1355 = vmatpush1.bf16.xpose.msra.mxu0 0
      %1356 = vmatprep.subr.bf16.mxu0 0
      %1357 = vmatpush1.bf16.xpose.msra.mxu0 0
      %1358 = vmatprep.subr.bf16.mxu0 0
      %1359 = vmatpush1.bf16.xpose.msra.mxu0 0
      %1360 = vmatprep.subr.bf16.mxu0 0
      %1361 = vmatpush1.bf16.xpose.msra.mxu0 0
      %1362 = vmatprep.subr.bf16.mxu0 0
      %1363 = vmatpush1.bf16.xpose.msra.mxu0 0
      %1364 = vmatprep.subr.bf16.mxu0 0
      %1365 = vmatpush1.bf16.xpose.msra.mxu0 0
      %1366 = vmatprep.subr.bf16.mxu0 0
      %1367 = vmatpush1.bf16.xpose.msra.mxu0 0
      %1368 = vmatprep.subr.bf16.mxu0 0
      %1369 = vmatpush1.bf16.xpose.msra.mxu0 0
      %1370 = vmatprep.subr.bf16.mxu0 0
      %1371 = vmatpush1.bf16.xpose.msra.mxu0 0
      %1372 = vmatprep.subr.bf16.mxu0 0
      %1373 = vmatpush1.bf16.xpose.msra.mxu0 0
      %1374 = vmatprep.subr.bf16.mxu0 0
      %1375 = vmatpush1.bf16.xpose.msra.mxu0 0
      %1376 = vmatprep.subr.bf16.mxu0 0
      %1377 = vmatpush1.bf16.xpose.msra.mxu0 0
      %1378 = vmatprep.subr.bf16.mxu0 0
      %1379 = vmatpush1.bf16.xpose.msra.mxu0 0
      %1380 = vmatprep.subr.bf16.mxu0 0
      %1381 = vmatpush1.bf16.xpose.msra.mxu0 0
      %1382 = vmatprep.subr.bf16.mxu0 0
      %1383 = vmatpush1.bf16.xpose.msra.mxu0 0
      %1384 = vmatprep.mubr.bf16.mxu0 0
      %1385 = vmatmul.mubr.bf16.gmra.mrb[0].mxu0 %v1347
      %v1386 = vpop.f32.mrb[0].mxu0
      %v1387 = vadd.f32 0.0, %v1386
      %v1388 = vpop.f32.mrb[0].mxu0
      %v1389 = vpop.f32.mrb[0].mxu0
      %v1390 = vpop.f32.mrb[0].mxu0
      %1391 = vdwg.mxu0
      %v1393 = vsel %vm1253, %v1248, 0
      %v1396 = vsel %vm1253, %v1252, 0
      %1398 = vmatprep.subr.bf16.mxu0 0
      %1399 = vmatpush1.bf16.xpose.msra.mxu0 %v1396
      %1400 = vmatprep.subr.bf16.mxu0 0
      %1401 = vmatpush1.bf16.xpose.msra.mxu0 0
      %1402 = vmatprep.subr.bf16.mxu0 0
      %1403 = vmatpush1.bf16.xpose.msra.mxu0 0
      %1404 = vmatprep.subr.bf16.mxu0 0
      %1405 = vmatpush1.bf16.xpose.msra.mxu0 0
      %1406 = vmatprep.subr.bf16.mxu0 0
      %1407 = vmatpush1.bf16.xpose.msra.mxu0 0
      %1408 = vmatprep.subr.bf16.mxu0 0
      %1409 = vmatpush1.bf16.xpose.msra.mxu0 0
      %1410 = vmatprep.subr.bf16.mxu0 0
      %1411 = vmatpush1.bf16.xpose.msra.mxu0 0
      %1412 = vmatprep.subr.bf16.mxu0 0
      %1413 = vmatpush1.bf16.xpose.msra.mxu0 0
      %1414 = vmatprep.subr.bf16.mxu0 0
      %1415 = vmatpush1.bf16.xpose.msra.mxu0 0
      %1416 = vmatprep.subr.bf16.mxu0 0
      %1417 = vmatpush1.bf16.xpose.msra.mxu0 0
      %1418 = vmatprep.subr.bf16.mxu0 0
      %1419 = vmatpush1.bf16.xpose.msra.mxu0 0
      %1420 = vmatprep.subr.bf16.mxu0 0
      %1421 = vmatpush1.bf16.xpose.msra.mxu0 0
      %1422 = vmatprep.subr.bf16.mxu0 0
      %1423 = vmatpush1.bf16.xpose.msra.mxu0 0
      %1424 = vmatprep.subr.bf16.mxu0 0
      %1425 = vmatpush1.bf16.xpose.msra.mxu0 0
      %1426 = vmatprep.subr.bf16.mxu0 0
      %1427 = vmatpush1.bf16.xpose.msra.mxu0 0
      %1428 = vmatprep.subr.bf16.mxu0 0
      %1429 = vmatpush1.bf16.xpose.msra.mxu0 0
      %1430 = vmatprep.mubr.bf16.mxu0 0
      %1431 = vmatmul.mubr.bf16.gmra.mrb[0].mxu0 %v1393
      %v1432 = vpop.f32.mrb[0].mxu0
      %v1433 = vadd.f32 0.0, %v1432
      %v1434 = vpop.f32.mrb[0].mxu0
      %v1435 = vpop.f32.mrb[0].mxu0
      %v1436 = vpop.f32.mrb[0].mxu0
      %1437 = vdwg.mxu0
      %v1438 = vmul.f32 %v1295, 0.35355338
      %v1439 = vmul.f32 %v1341, 0.35355338
      %v1440 = vmul.f32 %v1387, 0.35355338
      %v1441 = vmul.f32 %v1433, 0.35355338
      %vm1442 = vcmp.gt.f32.partialorder %v479, 0.5
      %v1443 = vsel %vm1442, 1, 0
      %v1444 = vlaneseq
      %v1445 = vshrl.u32 %v1444, 7
      %v1446 = vsub.s32 0, %v1445
      %v1447 = vrot.slane %v1443, %v1446
      %vm1448 = vcmp.eq.s32.totalorder %v1447, 1
      %v1449 = vsel %vm1448, %v1438, -1e+09
      %v1450 = vsel %vm1448, %v1439, -1e+09
      %v1451 = vsel %vm1448, %v1440, -1e+09
      %v1452 = vsel %vm1448, %v1441, -1e+09
      %v1453 = vsel %vm1253, %v1449, -inf
      %1454 = vmax.xlane.f32.xlu0 %v1453
      %v1455 = vpop.xlane.xlu0 %1454
      %v1456 = vsel %vm1253, %v1450, -inf
      %1457 = vmax.xlane.f32.xlu0 %v1456
      %v1458 = vpop.xlane.xlu0 %1457
      %v1459 = vsel %vm1253, %v1451, -inf
      %1460 = vmax.xlane.f32.xlu0 %v1459
      %v1461 = vpop.xlane.xlu0 %1460
      %v1462 = vsel %vm1253, %v1452, -inf
      %1463 = vmax.xlane.f32.xlu0 %v1462
      %v1464 = vpop.xlane.xlu0 %1463
      %v1465 = vsub.f32 %v1449, %v1455
      %v1466 = vsub.f32 %v1450, %v1458
      %v1467 = vsub.f32 %v1451, %v1461
      %v1468 = vsub.f32 %v1452, %v1464
      %v1469 = vmul.f32 %v1465, 1.442695
      %v1470 = vpow.pop %v1469
      %v1471 = vmul.f32 %v1466, 1.442695
      %v1472 = vpow.pop %v1471
      %v1473 = vmul.f32 %v1467, 1.442695
      %v1474 = vpow.pop %v1473
      %v1475 = vmul.f32 %v1468, 1.442695
      %v1476 = vpow.pop %v1475
      %v1477 = vsel %vm1253, %v1470, 0.0
      %1478 = vadd.xlane.f32.xlu0 %v1477
      %v1479 = vpop.xlane.xlu0 %1478
      %v1480 = vsel %vm1253, %v1472, 0.0
      %1481 = vadd.xlane.f32.xlu0 %v1480
      %v1482 = vpop.xlane.xlu0 %1481
      %v1483 = vsel %vm1253, %v1474, 0.0
      %1484 = vadd.xlane.f32.xlu0 %v1483
      %v1485 = vpop.xlane.xlu0 %1484
      %v1486 = vsel %vm1253, %v1476, 0.0
      %1487 = vadd.xlane.f32.xlu0 %v1486
      %v1488 = vpop.xlane.xlu0 %1487
      %v1489 = vrcp.pop %v1479
      %v1490 = vrcp.pop %v1482
      %v1491 = vrcp.pop %v1485
      %v1492 = vrcp.pop %v1488
      %v1493 = vmul.f32 %v1470, %v1489
      %v1494 = vmul.f32 %v1472, %v1490
      %v1495 = vmul.f32 %v1474, %v1491
      %v1496 = vmul.f32 %v1476, %v1492
      %v1497 = vpack.c.bf16 %v1493, %v1493
      %v1498 = vpack.c.bf16 %v1494, %v1494
      %v1499 = vpack.c.bf16 %v1495, %v1495
      %v1500 = vpack.c.bf16 %v1496, %v1496
      %v1501 = vpack.c.bf16 %v1084, %v1084
      %v1502 = vpack.c.bf16 %v1136, %v1136
      %v1503 = vpack.c.bf16 %v1188, %v1188
      %v1504 = vpack.c.bf16 %v1240, %v1240
      %v1506 = vsel %vm1253, %v1497, 0
      %vm1508 = vcmask 1043456
      %v1510 = vsel %vm1508, %v1501, 0
      %1512 = vmatprep.subr.bf16.mxu0 0
      %1513 = vmatpush1.bf16.msra.mxu0 %v1510
      %1514 = vmatprep.subr.bf16.mxu0 0
      %1515 = vmatpush1.bf16.msra.mxu0 0
      %1516 = vmatprep.subr.bf16.mxu0 0
      %1517 = vmatpush1.bf16.msra.mxu0 0
      %1518 = vmatprep.subr.bf16.mxu0 0
      %1519 = vmatpush1.bf16.msra.mxu0 0
      %1520 = vmatprep.subr.bf16.mxu0 0
      %1521 = vmatpush1.bf16.msra.mxu0 0
      %1522 = vmatprep.subr.bf16.mxu0 0
      %1523 = vmatpush1.bf16.msra.mxu0 0
      %1524 = vmatprep.subr.bf16.mxu0 0
      %1525 = vmatpush1.bf16.msra.mxu0 0
      %1526 = vmatprep.subr.bf16.mxu0 0
      %1527 = vmatpush1.bf16.msra.mxu0 0
      %1528 = vmatprep.subr.bf16.mxu0 0
      %1529 = vmatpush1.bf16.msra.mxu0 0
      %1530 = vmatprep.subr.bf16.mxu0 0
      %1531 = vmatpush1.bf16.msra.mxu0 0
      %1532 = vmatprep.subr.bf16.mxu0 0
      %1533 = vmatpush1.bf16.msra.mxu0 0
      %1534 = vmatprep.subr.bf16.mxu0 0
      %1535 = vmatpush1.bf16.msra.mxu0 0
      %1536 = vmatprep.subr.bf16.mxu0 0
      %1537 = vmatpush1.bf16.msra.mxu0 0
      %1538 = vmatprep.subr.bf16.mxu0 0
      %1539 = vmatpush1.bf16.msra.mxu0 0
      %1540 = vmatprep.subr.bf16.mxu0 0
      %1541 = vmatpush1.bf16.msra.mxu0 0
      %1542 = vmatprep.subr.bf16.mxu0 0
      %1543 = vmatpush1.bf16.msra.mxu0 0
      %1544 = vmatprep.mubr.bf16.mxu0 0
      %1545 = vmatmul.mubr.bf16.gmra.mrb[0].mxu0 %v1506
      %v1546 = vpop.f32.mrb[0].mxu0
      %v1547 = vadd.f32 0.0, %v1546
      %v1548 = vpop.f32.mrb[0].mxu0
      %v1549 = vpop.f32.mrb[0].mxu0
      %v1550 = vpop.f32.mrb[0].mxu0
      %1551 = vdwg.mxu0
      %v1553 = vsel %vm1253, %v1498, 0
      %v1556 = vsel %vm1508, %v1502, 0
      %1558 = vmatprep.subr.bf16.mxu0 0
      %1559 = vmatpush1.bf16.msra.mxu0 %v1556
      %1560 = vmatprep.subr.bf16.mxu0 0
      %1561 = vmatpush1.bf16.msra.mxu0 0
      %1562 = vmatprep.subr.bf16.mxu0 0
      %1563 = vmatpush1.bf16.msra.mxu0 0
      %1564 = vmatprep.subr.bf16.mxu0 0
      %1565 = vmatpush1.bf16.msra.mxu0 0
      %1566 = vmatprep.subr.bf16.mxu0 0
      %1567 = vmatpush1.bf16.msra.mxu0 0
      %1568 = vmatprep.subr.bf16.mxu0 0
      %1569 = vmatpush1.bf16.msra.mxu0 0
      %1570 = vmatprep.subr.bf16.mxu0 0
      %1571 = vmatpush1.bf16.msra.mxu0 0
      %1572 = vmatprep.subr.bf16.mxu0 0
      %1573 = vmatpush1.bf16.msra.mxu0 0
      %1574 = vmatprep.subr.bf16.mxu0 0
      %1575 = vmatpush1.bf16.msra.mxu0 0
      %1576 = vmatprep.subr.bf16.mxu0 0
      %1577 = vmatpush1.bf16.msra.mxu0 0
      %1578 = vmatprep.subr.bf16.mxu0 0
      %1579 = vmatpush1.bf16.msra.mxu0 0
      %1580 = vmatprep.subr.bf16.mxu0 0
      %1581 = vmatpush1.bf16.msra.mxu0 0
      %1582 = vmatprep.subr.bf16.mxu0 0
      %1583 = vmatpush1.bf16.msra.mxu0 0
      %1584 = vmatprep.subr.bf16.mxu0 0
      %1585 = vmatpush1.bf16.msra.mxu0 0
      %1586 = vmatprep.subr.bf16.mxu0 0
      %1587 = vmatpush1.bf16.msra.mxu0 0
      %1588 = vmatprep.subr.bf16.mxu0 0
      %1589 = vmatpush1.bf16.msra.mxu0 0
      %1590 = vmatprep.mubr.bf16.mxu0 0
      %1591 = vmatmul.mubr.bf16.gmra.mrb[0].mxu0 %v1553
      %v1592 = vpop.f32.mrb[0].mxu0
      %v1593 = vadd.f32 0.0, %v1592
      %v1594 = vpop.f32.mrb[0].mxu0
      %v1595 = vpop.f32.mrb[0].mxu0
      %v1596 = vpop.f32.mrb[0].mxu0
      %1597 = vdwg.mxu0
      %v1599 = vsel %vm1253, %v1499, 0
      %v1602 = vsel %vm1508, %v1503, 0
      %1604 = vmatprep.subr.bf16.mxu0 0
      %1605 = vmatpush1.bf16.msra.mxu0 %v1602
      %1606 = vmatprep.subr.bf16.mxu0 0
      %1607 = vmatpush1.bf16.msra.mxu0 0
      %1608 = vmatprep.subr.bf16.mxu0 0
      %1609 = vmatpush1.bf16.msra.mxu0 0
      %1610 = vmatprep.subr.bf16.mxu0 0
      %1611 = vmatpush1.bf16.msra.mxu0 0
      %1612 = vmatprep.subr.bf16.mxu0 0
      %1613 = vmatpush1.bf16.msra.mxu0 0
      %1614 = vmatprep.subr.bf16.mxu0 0
      %1615 = vmatpush1.bf16.msra.mxu0 0
      %1616 = vmatprep.subr.bf16.mxu0 0
      %1617 = vmatpush1.bf16.msra.mxu0 0
      %1618 = vmatprep.subr.bf16.mxu0 0
      %1619 = vmatpush1.bf16.msra.mxu0 0
      %1620 = vmatprep.subr.bf16.mxu0 0
      %1621 = vmatpush1.bf16.msra.mxu0 0
      %1622 = vmatprep.subr.bf16.mxu0 0
      %1623 = vmatpush1.bf16.msra.mxu0 0
      %1624 = vmatprep.subr.bf16.mxu0 0
      %1625 = vmatpush1.bf16.msra.mxu0 0
      %1626 = vmatprep.subr.bf16.mxu0 0
      %1627 = vmatpush1.bf16.msra.mxu0 0
      %1628 = vmatprep.subr.bf16.mxu0 0
      %1629 = vmatpush1.bf16.msra.mxu0 0
      %1630 = vmatprep.subr.bf16.mxu0 0
      %1631 = vmatpush1.bf16.msra.mxu0 0
      %1632 = vmatprep.subr.bf16.mxu0 0
      %1633 = vmatpush1.bf16.msra.mxu0 0
      %1634 = vmatprep.subr.bf16.mxu0 0
      %1635 = vmatpush1.bf16.msra.mxu0 0
      %1636 = vmatprep.mubr.bf16.mxu0 0
      %1637 = vmatmul.mubr.bf16.gmra.mrb[0].mxu0 %v1599
      %v1638 = vpop.f32.mrb[0].mxu0
      %v1639 = vadd.f32 0.0, %v1638
      %v1640 = vpop.f32.mrb[0].mxu0
      %v1641 = vpop.f32.mrb[0].mxu0
      %v1642 = vpop.f32.mrb[0].mxu0
      %1643 = vdwg.mxu0
      %v1645 = vsel %vm1253, %v1500, 0
      %v1648 = vsel %vm1508, %v1504, 0
      %1650 = vmatprep.subr.bf16.mxu0 0
      %1651 = vmatpush1.bf16.msra.mxu0 %v1648
      %1652 = vmatprep.subr.bf16.mxu0 0
      %1653 = vmatpush1.bf16.msra.mxu0 0
      %1654 = vmatprep.subr.bf16.mxu0 0
      %1655 = vmatpush1.bf16.msra.mxu0 0
      %1656 = vmatprep.subr.bf16.mxu0 0
      %1657 = vmatpush1.bf16.msra.mxu0 0
      %1658 = vmatprep.subr.bf16.mxu0 0
      %1659 = vmatpush1.bf16.msra.mxu0 0
      %1660 = vmatprep.subr.bf16.mxu0 0
      %1661 = vmatpush1.bf16.msra.mxu0 0
      %1662 = vmatprep.subr.bf16.mxu0 0
      %1663 = vmatpush1.bf16.msra.mxu0 0
      %1664 = vmatprep.subr.bf16.mxu0 0
      %1665 = vmatpush1.bf16.msra.mxu0 0
      %1666 = vmatprep.subr.bf16.mxu0 0
      %1667 = vmatpush1.bf16.msra.mxu0 0
      %1668 = vmatprep.subr.bf16.mxu0 0
      %1669 = vmatpush1.bf16.msra.mxu0 0
      %1670 = vmatprep.subr.bf16.mxu0 0
      %1671 = vmatpush1.bf16.msra.mxu0 0
      %1672 = vmatprep.subr.bf16.mxu0 0
      %1673 = vmatpush1.bf16.msra.mxu0 0
      %1674 = vmatprep.subr.bf16.mxu0 0
      %1675 = vmatpush1.bf16.msra.mxu0 0
      %1676 = vmatprep.subr.bf16.mxu0 0
      %1677 = vmatpush1.bf16.msra.mxu0 0
      %1678 = vmatprep.subr.bf16.mxu0 0
      %1679 = vmatpush1.bf16.msra.mxu0 0
      %1680 = vmatprep.subr.bf16.mxu0 0
      %1681 = vmatpush1.bf16.msra.mxu0 0
      %1682 = vmatprep.mubr.bf16.mxu0 0
      %1683 = vmatmul.mubr.bf16.gmra.mrb[0].mxu0 %v1645
      %v1684 = vpop.f32.mrb[0].mxu0
      %v1685 = vadd.f32 0.0, %v1684
      %v1686 = vpop.f32.mrb[0].mxu0
      %v1687 = vpop.f32.mrb[0].mxu0
      %v1688 = vpop.f32.mrb[0].mxu0
      %1689 = vdwg.mxu0
      %v1690 = vpack.c.bf16 %v1547, %v1547
      %v1691 = vpack.c.bf16 %v1593, %v1593
      %v1692 = vpack.c.bf16 %v1639, %v1639
      %v1693 = vpack.c.bf16 %v1685, %v1685
      %v1694 = vld [vmem:[%s4] sm:$0xf]
      %v1695 = vld [vmem:[%s4 + $0x4] sm:$0xf]
      %v1696 = vld [vmem:[%s4 + $0x8] sm:$0xf]
      %v1697 = vld [vmem:[%s4 + $0xc] sm:$0xf]
      %v1699 = vsel %vm1253, %v1690, 0
      %v1702 = vsel %vm1508, %v1694, 0
      %1704 = vmatprep.subr.bf16.mxu0 0
      %1705 = vmatpush1.bf16.msra.mxu0 %v1702
      %1706 = vmatprep.subr.bf16.mxu0 0
      %1707 = vmatpush1.bf16.msra.mxu0 0
      %1708 = vmatprep.subr.bf16.mxu0 0
      %1709 = vmatpush1.bf16.msra.mxu0 0
      %1710 = vmatprep.subr.bf16.mxu0 0
      %1711 = vmatpush1.bf16.msra.mxu0 0
      %1712 = vmatprep.subr.bf16.mxu0 0
      %1713 = vmatpush1.bf16.msra.mxu0 0
      %1714 = vmatprep.subr.bf16.mxu0 0
      %1715 = vmatpush1.bf16.msra.mxu0 0
      %1716 = vmatprep.subr.bf16.mxu0 0
      %1717 = vmatpush1.bf16.msra.mxu0 0
      %1718 = vmatprep.subr.bf16.mxu0 0
      %1719 = vmatpush1.bf16.msra.mxu0 0
      %1720 = vmatprep.subr.bf16.mxu0 0
      %1721 = vmatpush1.bf16.msra.mxu0 0
      %1722 = vmatprep.subr.bf16.mxu0 0
      %1723 = vmatpush1.bf16.msra.mxu0 0
      %1724 = vmatprep.subr.bf16.mxu0 0
      %1725 = vmatpush1.bf16.msra.mxu0 0
      %1726 = vmatprep.subr.bf16.mxu0 0
      %1727 = vmatpush1.bf16.msra.mxu0 0
      %1728 = vmatprep.subr.bf16.mxu0 0
      %1729 = vmatpush1.bf16.msra.mxu0 0
      %1730 = vmatprep.subr.bf16.mxu0 0
      %1731 = vmatpush1.bf16.msra.mxu0 0
      %1732 = vmatprep.subr.bf16.mxu0 0
      %1733 = vmatpush1.bf16.msra.mxu0 0
      %1734 = vmatprep.subr.bf16.mxu0 0
      %1735 = vmatpush1.bf16.msra.mxu0 0
      %1736 = vmatprep.mubr.bf16.mxu0 0
      %1737 = vmatmul.mubr.bf16.gmra.mrb[0].mxu0 %v1699
      %v1738 = vpop.f32.mrb[0].mxu0
      %v1739 = vadd.f32 0.0, %v1738
      %v1740 = vpop.f32.mrb[0].mxu0
      %v1741 = vpop.f32.mrb[0].mxu0
      %v1742 = vpop.f32.mrb[0].mxu0
      %1743 = vdwg.mxu0
      %v1745 = vsel %vm1253, %v1691, 0
      %v1748 = vsel %vm1508, %v1695, 0
      %1750 = vmatprep.subr.bf16.mxu0 0
      %1751 = vmatpush1.bf16.msra.mxu0 %v1748
      %1752 = vmatprep.subr.bf16.mxu0 0
      %1753 = vmatpush1.bf16.msra.mxu0 0
      %1754 = vmatprep.subr.bf16.mxu0 0
      %1755 = vmatpush1.bf16.msra.mxu0 0
      %1756 = vmatprep.subr.bf16.mxu0 0
      %1757 = vmatpush1.bf16.msra.mxu0 0
      %1758 = vmatprep.subr.bf16.mxu0 0
      %1759 = vmatpush1.bf16.msra.mxu0 0
      %1760 = vmatprep.subr.bf16.mxu0 0
      %1761 = vmatpush1.bf16.msra.mxu0 0
      %1762 = vmatprep.subr.bf16.mxu0 0
      %1763 = vmatpush1.bf16.msra.mxu0 0
      %1764 = vmatprep.subr.bf16.mxu0 0
      %1765 = vmatpush1.bf16.msra.mxu0 0
      %1766 = vmatprep.subr.bf16.mxu0 0
      %1767 = vmatpush1.bf16.msra.mxu0 0
      %1768 = vmatprep.subr.bf16.mxu0 0
      %1769 = vmatpush1.bf16.msra.mxu0 0
      %1770 = vmatprep.subr.bf16.mxu0 0
      %1771 = vmatpush1.bf16.msra.mxu0 0
      %1772 = vmatprep.subr.bf16.mxu0 0
      %1773 = vmatpush1.bf16.msra.mxu0 0
      %1774 = vmatprep.subr.bf16.mxu0 0
      %1775 = vmatpush1.bf16.msra.mxu0 0
      %1776 = vmatprep.subr.bf16.mxu0 0
      %1777 = vmatpush1.bf16.msra.mxu0 0
      %1778 = vmatprep.subr.bf16.mxu0 0
      %1779 = vmatpush1.bf16.msra.mxu0 0
      %1780 = vmatprep.subr.bf16.mxu0 0
      %1781 = vmatpush1.bf16.msra.mxu0 0
      %1782 = vmatprep.mubr.bf16.mxu0 0
      %1783 = vmatmul.mubr.bf16.gmra.mrb[0].mxu0 %v1745
      %v1784 = vpop.f32.mrb[0].mxu0
      %v1785 = vadd.f32 0.0, %v1784
      %v1786 = vpop.f32.mrb[0].mxu0
      %v1787 = vpop.f32.mrb[0].mxu0
      %v1788 = vpop.f32.mrb[0].mxu0
      %1789 = vdwg.mxu0
      %v1791 = vsel %vm1253, %v1692, 0
      %v1794 = vsel %vm1508, %v1696, 0
      %1796 = vmatprep.subr.bf16.mxu0 0
      %1797 = vmatpush1.bf16.msra.mxu0 %v1794
      %1798 = vmatprep.subr.bf16.mxu0 0
      %1799 = vmatpush1.bf16.msra.mxu0 0
      %1800 = vmatprep.subr.bf16.mxu0 0
      %1801 = vmatpush1.bf16.msra.mxu0 0
      %1802 = vmatprep.subr.bf16.mxu0 0
      %1803 = vmatpush1.bf16.msra.mxu0 0
      %1804 = vmatprep.subr.bf16.mxu0 0
      %1805 = vmatpush1.bf16.msra.mxu0 0
      %1806 = vmatprep.subr.bf16.mxu0 0
      %1807 = vmatpush1.bf16.msra.mxu0 0
      %1808 = vmatprep.subr.bf16.mxu0 0
      %1809 = vmatpush1.bf16.msra.mxu0 0
      %1810 = vmatprep.subr.bf16.mxu0 0
      %1811 = vmatpush1.bf16.msra.mxu0 0
      %1812 = vmatprep.subr.bf16.mxu0 0
      %1813 = vmatpush1.bf16.msra.mxu0 0
      %1814 = vmatprep.subr.bf16.mxu0 0
      %1815 = vmatpush1.bf16.msra.mxu0 0
      %1816 = vmatprep.subr.bf16.mxu0 0
      %1817 = vmatpush1.bf16.msra.mxu0 0
      %1818 = vmatprep.subr.bf16.mxu0 0
      %1819 = vmatpush1.bf16.msra.mxu0 0
      %1820 = vmatprep.subr.bf16.mxu0 0
      %1821 = vmatpush1.bf16.msra.mxu0 0
      %1822 = vmatprep.subr.bf16.mxu0 0
      %1823 = vmatpush1.bf16.msra.mxu0 0
      %1824 = vmatprep.subr.bf16.mxu0 0
      %1825 = vmatpush1.bf16.msra.mxu0 0
      %1826 = vmatprep.subr.bf16.mxu0 0
      %1827 = vmatpush1.bf16.msra.mxu0 0
      %1828 = vmatprep.mubr.bf16.mxu0 0
      %1829 = vmatmul.mubr.bf16.gmra.mrb[0].mxu0 %v1791
      %v1830 = vpop.f32.mrb[0].mxu0
      %v1831 = vadd.f32 0.0, %v1830
      %v1832 = vpop.f32.mrb[0].mxu0
      %v1833 = vpop.f32.mrb[0].mxu0
      %v1834 = vpop.f32.mrb[0].mxu0
      %1835 = vdwg.mxu0
      %v1837 = vsel %vm1253, %v1693, 0
      %v1840 = vsel %vm1508, %v1697, 0
      %1842 = vmatprep.subr.bf16.mxu0 0
      %1843 = vmatpush1.bf16.msra.mxu0 %v1840
      %1844 = vmatprep.subr.bf16.mxu0 0
      %1845 = vmatpush1.bf16.msra.mxu0 0
      %1846 = vmatprep.subr.bf16.mxu0 0
      %1847 = vmatpush1.bf16.msra.mxu0 0
      %1848 = vmatprep.subr.bf16.mxu0 0
      %1849 = vmatpush1.bf16.msra.mxu0 0
      %1850 = vmatprep.subr.bf16.mxu0 0
      %1851 = vmatpush1.bf16.msra.mxu0 0
      %1852 = vmatprep.subr.bf16.mxu0 0
      %1853 = vmatpush1.bf16.msra.mxu0 0
      %1854 = vmatprep.subr.bf16.mxu0 0
      %1855 = vmatpush1.bf16.msra.mxu0 0
      %1856 = vmatprep.subr.bf16.mxu0 0
      %1857 = vmatpush1.bf16.msra.mxu0 0
      %1858 = vmatprep.subr.bf16.mxu0 0
      %1859 = vmatpush1.bf16.msra.mxu0 0
      %1860 = vmatprep.subr.bf16.mxu0 0
      %1861 = vmatpush1.bf16.msra.mxu0 0
      %1862 = vmatprep.subr.bf16.mxu0 0
      %1863 = vmatpush1.bf16.msra.mxu0 0
      %1864 = vmatprep.subr.bf16.mxu0 0
      %1865 = vmatpush1.bf16.msra.mxu0 0
      %1866 = vmatprep.subr.bf16.mxu0 0
      %1867 = vmatpush1.bf16.msra.mxu0 0
      %1868 = vmatprep.subr.bf16.mxu0 0
      %1869 = vmatpush1.bf16.msra.mxu0 0
      %1870 = vmatprep.subr.bf16.mxu0 0
      %1871 = vmatpush1.bf16.msra.mxu0 0
      %1872 = vmatprep.subr.bf16.mxu0 0
      %1873 = vmatpush1.bf16.msra.mxu0 0
      %1874 = vmatprep.mubr.bf16.mxu0 0
      %1875 = vmatmul.mubr.bf16.gmra.mrb[0].mxu0 %v1837
      %v1876 = vpop.f32.mrb[0].mxu0
      %v1877 = vadd.f32 0.0, %v1876
      %v1878 = vpop.f32.mrb[0].mxu0
      %v1879 = vpop.f32.mrb[0].mxu0
      %v1880 = vpop.f32.mrb[0].mxu0
      %1881 = vdwg.mxu0
      %v1882 = vsel %vm537, %v1739, 0.0
      %v1883 = vsel %vm537, %v1785, 0.0
      %v1884 = vadd.f32 %v1882, %v1883
      %v1885 = vsel %vm537, %v1831, 0.0
      %v1886 = vadd.f32 %v1884, %v1885
      %v1887 = vsel %vm537, %v1877, 0.0
      %v1888 = vadd.f32 %v1886, %v1887
      %v1889 = vld [vmem:[%s5] sm:$0x1]
      %v1891 = vlaneseq
      %v1892 = vshrl.u32 %v1891, 7
      %v1893 = vsub.s32 0, %v1892
      %v1894 = vrot.slane %v1889, %v1893
      %v1896 = vadd.f32 %v1888, %v1894
      %v1897 = vadd.f32 %v478, %v1896
      %v1898 = vld [vmem:[%s6] sm:$0x1]
      %v1899 = vld [vmem:[%s7] sm:$0x1]
      %v1900 = vsel %vm537, %v1897, 0.0
      %1901 = vadd.xlane.f32.xlu0 %v1900
      %v1902 = vpop.xlane.xlu0 %1901
      %v1903 = vrcp.pop 32.0
      %v1904 = vmul.f32 %v1902, %v1903
      %v1905 = vsub.f32 %v1897, %v1904
      %v1906 = vmul.f32 %v1905, %v1905
      %v1907 = vsel %vm537, %v1906, 0.0
      %1908 = vadd.xlane.f32.xlu0 %v1907
      %v1909 = vpop.xlane.xlu0 %1908
      %v1910 = vmul.f32 %v1909, %v1903
      %v1911 = vadd.f32 %v1910, 1e-05
      %v1912 = vrsqrt.pop %v1911
      %v1913 = vmul.f32 %v1905, %v1912
      %v1915 = vlaneseq
      %v1916 = vshrl.u32 %v1915, 7
      %v1917 = vsub.s32 0, %v1916
      %v1918 = vrot.slane %v1898, %v1917
      %v1920 = vmul.f32 %v1913, %v1918
      %v1922 = vlaneseq
      %v1923 = vshrl.u32 %v1922, 7
      %v1924 = vsub.s32 0, %v1923
      %v1925 = vrot.slane %v1899, %v1924
      %v1927 = vadd.f32 %v1920, %v1925
      %v1928 = vld [vmem:[%s8] sm:$0xf]
      %v1929 = vld [vmem:[%s8 + $0x4] sm:$0xf]
      %v1930 = vld [vmem:[%s8 + $0x8] sm:$0xf]
      %v1931 = vld [vmem:[%s8 + $0xc] sm:$0xf]
      %v1932 = vld [vmem:[%s9] sm:$0x1]
      %v1933 = vld [vmem:[%s10] sm:$0xf]
      %v1934 = vld [vmem:[%s10 + $0x4] sm:$0xf]
      %v1935 = vld [vmem:[%s10 + $0x8] sm:$0xf]
      %v1936 = vld [vmem:[%s10 + $0xc] sm:$0xf]
      %v1937 = vld [vmem:[%s10 + $0x10] sm:$0xf]
      %v1938 = vld [vmem:[%s10 + $0x14] sm:$0xf]
      %v1939 = vld [vmem:[%s10 + $0x18] sm:$0xf]
      %v1940 = vld [vmem:[%s10 + $0x1c] sm:$0xf]
      %v1941 = vld [vmem:[%s11] sm:$0x1]
      %v1942 = vpack.c.bf16 %v1927, %v1927
      %v1944 = vlaneseq
      %v1945 = vshrl.u32 %v1944, 7
      %v1946 = vsub.s32 0, %v1945
      %v1947 = vrot.slane %v1932, %v1946
      %v1953 = vunpack.c.l.b16 %v1928
      %v1954 = vunpack.c.l.b16 %v1929
      %v1955 = vunpack.c.l.b16 %v1930
      %v1956 = vunpack.c.l.b16 %v1931
      %v1957 = vpack.c.b16 %v1954, %v1953
      %v1958 = vpack.c.b16 %v1956, %v1955
      %v1962 = vsel %vm537, %v1942, 0
      %1964 = vmatprep.subr.bf16.mxu0 0
      %1965 = vmatpush1.bf16.msra.mxu0 %v1957
      %1966 = vmatprep.subr.bf16.mxu0 0
      %1967 = vmatpush1.bf16.msra.mxu0 %v1958
      %1968 = vmatprep.subr.bf16.mxu0 0
      %1969 = vmatpush1.bf16.msra.mxu0 0
      %1970 = vmatprep.subr.bf16.mxu0 0
      %1971 = vmatpush1.bf16.msra.mxu0 0
      %1972 = vmatprep.subr.bf16.mxu0 0
      %1973 = vmatpush1.bf16.msra.mxu0 0
      %1974 = vmatprep.subr.bf16.mxu0 0
      %1975 = vmatpush1.bf16.msra.mxu0 0
      %1976 = vmatprep.subr.bf16.mxu0 0
      %1977 = vmatpush1.bf16.msra.mxu0 0
      %1978 = vmatprep.subr.bf16.mxu0 0
      %1979 = vmatpush1.bf16.msra.mxu0 0
      %1980 = vmatprep.subr.bf16.mxu0 0
      %1981 = vmatpush1.bf16.msra.mxu0 0
      %1982 = vmatprep.subr.bf16.mxu0 0
      %1983 = vmatpush1.bf16.msra.mxu0 0
      %1984 = vmatprep.subr.bf16.mxu0 0
      %1985 = vmatpush1.bf16.msra.mxu0 0
      %1986 = vmatprep.subr.bf16.mxu0 0
      %1987 = vmatpush1.bf16.msra.mxu0 0
      %1988 = vmatprep.subr.bf16.mxu0 0
      %1989 = vmatpush1.bf16.msra.mxu0 0
      %1990 = vmatprep.subr.bf16.mxu0 0
      %1991 = vmatpush1.bf16.msra.mxu0 0
      %1992 = vmatprep.subr.bf16.mxu0 0
      %1993 = vmatpush1.bf16.msra.mxu0 0
      %1994 = vmatprep.subr.bf16.mxu0 0
      %1995 = vmatpush1.bf16.msra.mxu0 0
      %1996 = vmatprep.mubr.bf16.mxu0 0
      %1997 = vmatmul.mubr.bf16.gmra.mrb[0].mxu0 %v1962
      %v1998 = vpop.f32.mrb[0].mxu0
      %v1999 = vadd.f32 %v1947, %v1998
      %v2000 = vpop.f32.mrb[0].mxu0
      %v2001 = vpop.f32.mrb[0].mxu0
      %v2002 = vpop.f32.mrb[0].mxu0
      %2003 = vdwg.mxu0
      %v2004 = vmax.f32 %v1999, 0.0
      %v2005 = vpack.c.bf16 %v2004, %v2004
      %v2007 = vlaneseq
      %v2008 = vshrl.u32 %v2007, 7
      %v2009 = vsub.s32 0, %v2008
      %v2010 = vrot.slane %v1941, %v2009
      %v2020 = vunpack.c.l.b16 %v1933
      %v2021 = vunpack.c.l.b16 %v1934
      %v2022 = vunpack.c.l.b16 %v1935
      %v2023 = vunpack.c.l.b16 %v1936
      %v2024 = vunpack.c.l.b16 %v1937
      %v2025 = vunpack.c.l.b16 %v1938
      %v2026 = vunpack.c.l.b16 %v1939
      %v2027 = vunpack.c.l.b16 %v1940
      %v2028 = vpack.c.b16 %v2021, %v2020
      %v2029 = vpack.c.b16 %v2023, %v2022
      %v2030 = vpack.c.b16 %v2025, %v2024
      %v2031 = vpack.c.b16 %v2027, %v2026
      %vm2036 = vcmask 523264
      %v2038 = vsel %vm2036, %v2005, 0
      %2040 = vmatprep.subr.bf16.mxu0 0
      %2041 = vmatpush1.bf16.msra.mxu0 %v2028
      %2042 = vmatprep.subr.bf16.mxu0 0
      %2043 = vmatpush1.bf16.msra.mxu0 %v2029
      %2044 = vmatprep.subr.bf16.mxu0 0
      %2045 = vmatpush1.bf16.msra.mxu0 %v2030
      %2046 = vmatprep.subr.bf16.mxu0 0
      %2047 = vmatpush1.bf16.msra.mxu0 %v2031
      %2048 = vmatprep.subr.bf16.mxu0 0
      %2049 = vmatpush1.bf16.msra.mxu0 0
      %2050 = vmatprep.subr.bf16.mxu0 0
      %2051 = vmatpush1.bf16.msra.mxu0 0
      %2052 = vmatprep.subr.bf16.mxu0 0
      %2053 = vmatpush1.bf16.msra.mxu0 0
      %2054 = vmatprep.subr.bf16.mxu0 0
      %2055 = vmatpush1.bf16.msra.mxu0 0
      %2056 = vmatprep.subr.bf16.mxu0 0
      %2057 = vmatpush1.bf16.msra.mxu0 0
      %2058 = vmatprep.subr.bf16.mxu0 0
      %2059 = vmatpush1.bf16.msra.mxu0 0
      %2060 = vmatprep.subr.bf16.mxu0 0
      %2061 = vmatpush1.bf16.msra.mxu0 0
      %2062 = vmatprep.subr.bf16.mxu0 0
      %2063 = vmatpush1.bf16.msra.mxu0 0
      %2064 = vmatprep.subr.bf16.mxu0 0
      %2065 = vmatpush1.bf16.msra.mxu0 0
      %2066 = vmatprep.subr.bf16.mxu0 0
      %2067 = vmatpush1.bf16.msra.mxu0 0
      %2068 = vmatprep.subr.bf16.mxu0 0
      %2069 = vmatpush1.bf16.msra.mxu0 0
      %2070 = vmatprep.subr.bf16.mxu0 0
      %2071 = vmatpush1.bf16.msra.mxu0 0
      %2072 = vmatprep.mubr.bf16.mxu0 0
      %2073 = vmatmul.mubr.bf16.gmra.mrb[0].mxu0 %v2038
      %v2074 = vpop.f32.mrb[0].mxu0
      %v2075 = vadd.f32 %v2010, %v2074
      %v2076 = vpop.f32.mrb[0].mxu0
      %v2077 = vpop.f32.mrb[0].mxu0
      %v2078 = vpop.f32.mrb[0].mxu0
      %2079 = vdwg.mxu0
      %v2080 = vadd.f32 %v1927, %v2075
      %v2081 = vld [vmem:[%s12] sm:$0x1]
      %v2082 = vld [vmem:[%s13] sm:$0x1]
      %v2083 = vsel %vm537, %v2080, 0.0
      %2084 = vadd.xlane.f32.xlu0 %v2083
      %v2085 = vpop.xlane.xlu0 %2084
      %v2086 = vmul.f32 %v2085, %v1903
      %v2087 = vsub.f32 %v2080, %v2086
      %v2088 = vmul.f32 %v2087, %v2087
      %v2089 = vsel %vm537, %v2088, 0.0
      %2090 = vadd.xlane.f32.xlu0 %v2089
      %v2091 = vpop.xlane.xlu0 %2090
      %v2092 = vmul.f32 %v2091, %v1903
      %v2093 = vadd.f32 %v2092, 1e-05
      %v2094 = vrsqrt.pop %v2093
      %v2095 = vmul.f32 %v2087, %v2094
      %v2097 = vlaneseq
      %v2098 = vshrl.u32 %v2097, 7
      %v2099 = vsub.s32 0, %v2098
      %v2100 = vrot.slane %v2081, %v2099
      %v2102 = vmul.f32 %v2095, %v2100
      %v2104 = vlaneseq
      %v2105 = vshrl.u32 %v2104, 7
      %v2106 = vsub.s32 0, %v2105
      %v2107 = vrot.slane %v2082, %v2106
      %v2109 = vadd.f32 %v2102, %v2107
      %2110 = vst.msk [vmem:[%s476] sm:$0xff] %vm537, %v2109
      %p2111 = scmp.lt.s32.totalorder %s25, 1
      %s2112 = scalar_select %p2111, %s25, 1
      %s2113 = smul.addr %s2112, 8
      %s2114 = scalar_lea.vmem %s14, %s2113
      // Predicated region
      $region77: #{transformer_forward.5} parent=75 // pred_check
        %p2115 = pneg %p347
      $region78: #{transformer_forward.5} parent=75 // pred_check_branch
        %2117 = sbr.rel (%p2115) target = $region80
      $region79: #{transformer_forward.5} parent=75 // pred_region
        _
      $region80: #{transformer_forward.5} parent=75 // pred_fallthru
        _
    $region76: #{transformer_forward.5} parent=5 // pred_fallthru
      _
    %p2118 = scmp.le.s32.totalorder 2, %s20
    // Predicated region
    $region81: #{transformer_forward.5} parent=5 // pred_check
      %p2119 = pneg %p2118
    $region82: #{transformer_forward.5} parent=5 // pred_check_branch
      %2121 = sbr.rel (%p2119) target = $region84
    $region83: #{transformer_forward.5} parent=5 // pred_region
      %s2122 = ssub.s32 %s20, 2
      // Predicated region
      $region85: #{transformer_forward.5} parent=83 // pred_check
        %p2123 = pneg %p353
      $region86: #{transformer_forward.5} parent=83 // pred_check_branch
        %2125 = sbr.rel (%p2123) target = $region88
      $region87: #{transformer_forward.5} parent=83 // pred_region
        %p2126 = scmp.lt.s32.totalorder %s26, 1
        %s2127 = scalar_select %p2126, %s26, 1
        %s2128 = smul.addr %s2127, 8
        %s2129 = scalar_lea.vmem %s14, %s2128
      $region88: #{transformer_forward.5} parent=83 // pred_fallthru
        _
    $region84: #{transformer_forward.5} parent=5 // pred_fallthru
      _
  $region6: #{transformer_forward.5} parent=0 // loop_footer
    %s24 = sadd.s32 1, %s20
  $region7: #{transformer_forward.5} parent=0 // loop_footer_branch
    %19 = sbr.rel target = $region3
  $region8: #{transformer_forward.5} parent=0 // loop_exit
    _

// kernel: transformer_forward.7
$region0: #{transformer_forward.7}
  #allocation0 [shape = 'u32[]', space=smem, size = 0x4, offset = 0x4, fixed_abs, tag = 'smem constant byte address 0x4 - core index']
  #allocation1 [shape = 'u32[144,128]{1,0:T(1,128)}', space=vmem, size = 0x12000, scoped, tag = 'internal scratch']
  %s0 = inlined_call_operand.vmem [shape: f32[2,8,32], index: 0, kind: input, shape index: {}]
  %s1 = inlined_call_operand.vmem [shape: f32[2,8,32], index: 1, kind: input, shape index: {}]
  %s2 = inlined_call_operand.vmem [shape: f32[2,8,1], index: 2, kind: input, shape index: {}]
  %s3 = inlined_call_operand.vmem [shape: f32[2,1,8], index: 3, kind: input, shape index: {}]
  %s4 = inlined_call_operand.vmem [shape: bf16[3,4,32,8], index: 4, kind: input, shape index: {}]
  %s5 = inlined_call_operand.vmem [shape: f32[3,4,1,8], index: 5, kind: input, shape index: {}]
  %s6 = inlined_call_operand.vmem [shape: bf16[4,8,32], index: 6, kind: input, shape index: {}]
  %s7 = inlined_call_operand.vmem [shape: f32[1,32], index: 7, kind: input, shape index: {}]
  %s8 = inlined_call_operand.vmem [shape: f32[1,32], index: 8, kind: input, shape index: {}]
  %s9 = inlined_call_operand.vmem [shape: f32[1,32], index: 9, kind: input, shape index: {}]
  %s10 = inlined_call_operand.vmem [shape: bf16[3,4,32,8], index: 10, kind: input, shape index: {}]
  %s11 = inlined_call_operand.vmem [shape: f32[3,4,1,8], index: 11, kind: input, shape index: {}]
  %s12 = inlined_call_operand.vmem [shape: bf16[4,8,32], index: 12, kind: input, shape index: {}]
  %s13 = inlined_call_operand.vmem [shape: f32[1,32], index: 13, kind: input, shape index: {}]
  %s14 = inlined_call_operand.vmem [shape: f32[1,32], index: 14, kind: input, shape index: {}]
  %s15 = inlined_call_operand.vmem [shape: f32[1,32], index: 15, kind: input, shape index: {}]
  %s16 = inlined_call_operand.vmem [shape: bf16[32,64], index: 16, kind: input, shape index: {}]
  %s17 = inlined_call_operand.vmem [shape: f32[1,64], index: 17, kind: input, shape index: {}]
  %s18 = inlined_call_operand.vmem [shape: bf16[64,32], index: 18, kind: input, shape index: {}]
  %s19 = inlined_call_operand.vmem [shape: f32[1,32], index: 19, kind: input, shape index: {}]
  %s20 = inlined_call_operand.vmem [shape: f32[1,32], index: 20, kind: input, shape index: {}]
  %s21 = inlined_call_operand.vmem [shape: f32[1,32], index: 21, kind: input, shape index: {}]
  %s22 = inlined_call_operand.vmem [shape: f32[2,8,32], index: 22, kind: output, shape index: {}]
  %s23 = sld [smem:[#allocation0]]
  $region121: #{transformer_forward.7} parent=0
    _
  %s25 = ssub.s32 1, %s23
  %s26 = scalar_select 0, %s25, %s23
  loop: start=0, step=1, limit=4
  $region2: #{transformer_forward.7} parent=0 // loop_pre_header
    _
  $region3: #{transformer_forward.7} parent=0 // loop_header
    %s28 = sphi 0, %s32
    %p29 = scmp.ge.s32.totalorder %s28, 4
    %s38 = sphi 0, %s40
    %s41 = sphi 0, %s38
    %s42 = sphi 0, %s41
    %s58 = sphi 0, %s42
    %s64 = sphi 0, %s66
    %s67 = sphi 0, %s64
    %s68 = sphi 0, %s67
    %s84 = sphi 0, %s68
    %s90 = sphi 0, %s92
    %s93 = sphi 0, %s90
    %s94 = sphi 0, %s93
    %s110 = sphi 0, %s94
    %s116 = sphi 0, %s118
    %s119 = sphi 0, %s116
    %s120 = sphi 0, %s119
    %s136 = sphi 0, %s120
    %s140 = sphi 0, %s140
    %s142 = sphi 0, %s140
    %s143 = sphi 0, %s142
    %s157 = sphi 0, %s143
    %s161 = sphi 0, %s161
    %s163 = sphi 0, %s161
    %s164 = sphi 0, %s163
    %s178 = sphi 0, %s164
    %s182 = sphi 0, %s182
    %s184 = sphi 0, %s182
    %s185 = sphi 0, %s184
    %s199 = sphi 0, %s185
    %s203 = sphi 0, %s203
    %s205 = sphi 0, %s203
    %s206 = sphi 0, %s205
    %s220 = sphi 0, %s206
    %s224 = sphi 0, %s224
    %s226 = sphi 0, %s224
    %s227 = sphi 0, %s226
    %s241 = sphi 0, %s227
    %s245 = sphi 0, %s245
    %s247 = sphi 0, %s245
    %s248 = sphi 0, %s247
    %s262 = sphi 0, %s248
    %s266 = sphi 0, %s266
    %s268 = sphi 0, %s266
    %s269 = sphi 0, %s268
    %s283 = sphi 0, %s269
    %s287 = sphi 0, %s287
    %s289 = sphi 0, %s287
    %s290 = sphi 0, %s289
    %s304 = sphi 0, %s290
    %s308 = sphi 0, %s308
    %s310 = sphi 0, %s308
    %s311 = sphi 0, %s310
    %s325 = sphi 0, %s311
    %s329 = sphi 0, %s329
    %s331 = sphi 0, %s329
    %s332 = sphi 0, %s331
    %s346 = sphi 0, %s332
    %s350 = sphi 0, %s350
    %s352 = sphi 0, %s350
    %s353 = sphi 0, %s352
    %s367 = sphi 0, %s353
    %s371 = sphi 0, %s371
    %s373 = sphi 0, %s371
    %s374 = sphi 0, %s373
    %s388 = sphi 0, %s374
    %s392 = sphi 0, %s392
    %s394 = sphi 0, %s392
    %s395 = sphi 0, %s394
    %s409 = sphi 0, %s395
    %s413 = sphi 0, %s413
    %s415 = sphi 0, %s413
    %s416 = sphi 0, %s415
    %s430 = sphi 0, %s416
    %s434 = sphi 0, %s434
    %s436 = sphi 0, %s434
    %s437 = sphi 0, %s436
    %s451 = sphi 0, %s437
    %s455 = sphi 0, %s455
    %s457 = sphi 0, %s455
    %s458 = sphi 0, %s457
    %s472 = sphi 0, %s458
    %s476 = sphi 0, %s476
    %s478 = sphi 0, %s476
    %s479 = sphi 0, %s478
    %s493 = sphi 0, %s479
    %s497 = sphi 0, %s497
    %s499 = sphi 0, %s497
    %s500 = sphi 0, %s499
    %s514 = sphi 0, %s500
    %s520 = sphi 0, %s522
    %s523 = sphi 0, %s520
    %s524 = sphi 0, %s523
    %s540 = sphi 0, %s524
  $region4: #{transformer_forward.7} parent=0 // loop_header_branch
    %31 = sbr.rel (%p29) target = $region8
  $region5: #{transformer_forward.7} parent=0 // loop_body
    %s33 = ssub.s32 %s28, 1
    %s34 = ssub.s32 %s28, 2
    %s35 = sadd.s32 %s28, 1
    %s36 = ssub.s32 %s28, %s35
    %p37 = scmp.eq.s32.totalorder %s36, 0
    %s39 = sadd.s32 %s38, 1
    %s40 = scalar_select %p37, %s38, %s39
    %p43 = pneg %p37
    %p44 = scmp.eq.s32.totalorder %s28, 1
    %p45 = por %p43, %p44
    %p46 = scmp.ne.s32.totalorder %s38, %s41
    %p47 = scmp.eq.s32.totalorder %s28, 0
    %p48 = por %p46, %p47
    %p49 = scmp.ne.s32.totalorder %s38, %s41
    %p50 = scmp.eq.s32.totalorder %s33, 1
    %p51 = por %p49, %p50
    %p52 = scmp.ne.s32.totalorder %s41, %s42
    %p53 = scmp.eq.s32.totalorder %s33, 0
    %p54 = por %p52, %p53
    %p55 = scmp.ne.s32.totalorder %s41, %s42
    %p56 = scmp.eq.s32.totalorder %s34, 1
    %p57 = por %p55, %p56
    %p59 = scmp.ne.s32.totalorder %s42, %s58
    %p60 = scmp.eq.s32.totalorder %s34, 0
    %p61 = por %p59, %p60
    %s62 = ssub.s32 %s28, %s35
    %p63 = scmp.eq.s32.totalorder %s62, 0
    %s65 = sadd.s32 %s64, 1
    %s66 = scalar_select %p63, %s64, %s65
    %p69 = pneg %p63
    %p70 = scmp.eq.s32.totalorder %s28, 1
    %p71 = por %p69, %p70
    %p72 = scmp.ne.s32.totalorder %s64, %s67
    %p73 = scmp.eq.s32.totalorder %s28, 0
    %p74 = por %p72, %p73
    %p75 = scmp.ne.s32.totalorder %s64, %s67
    %p76 = scmp.eq.s32.totalorder %s33, 1
    %p77 = por %p75, %p76
    %p78 = scmp.ne.s32.totalorder %s67, %s68
    %p79 = scmp.eq.s32.totalorder %s33, 0
    %p80 = por %p78, %p79
    %p81 = scmp.ne.s32.totalorder %s67, %s68
    %p82 = scmp.eq.s32.totalorder %s34, 1
    %p83 = por %p81, %p82
    %p85 = scmp.ne.s32.totalorder %s68, %s84
    %p86 = scmp.eq.s32.totalorder %s34, 0
    %p87 = por %p85, %p86
    %s88 = ssub.s32 %s28, %s35
    %p89 = scmp.eq.s32.totalorder %s88, 0
    %s91 = sadd.s32 %s90, 1
    %s92 = scalar_select %p89, %s90, %s91
    %p95 = pneg %p89
    %p96 = scmp.eq.s32.totalorder %s28, 1
    %p97 = por %p95, %p96
    %p98 = scmp.ne.s32.totalorder %s90, %s93
    %p99 = scmp.eq.s32.totalorder %s28, 0
    %p100 = por %p98, %p99
    %p101 = scmp.ne.s32.totalorder %s90, %s93
    %p102 = scmp.eq.s32.totalorder %s33, 1
    %p103 = por %p101, %p102
    %p104 = scmp.ne.s32.totalorder %s93, %s94
    %p105 = scmp.eq.s32.totalorder %s33, 0
    %p106 = por %p104, %p105
    %p107 = scmp.ne.s32.totalorder %s93, %s94
    %p108 = scmp.eq.s32.totalorder %s34, 1
    %p109 = por %p107, %p108
    %p111 = scmp.ne.s32.totalorder %s94, %s110
    %p112 = scmp.eq.s32.totalorder %s34, 0
    %p113 = por %p111, %p112
    %s114 = ssub.s32 %s28, %s35
    %p115 = scmp.eq.s32.totalorder %s114, 0
    %s117 = sadd.s32 %s116, 1
    %s118 = scalar_select %p115, %s116, %s117
    %p121 = pneg %p115
    %p122 = scmp.eq.s32.totalorder %s28, 1
    %p123 = por %p121, %p122
    %p124 = scmp.ne.s32.totalorder %s116, %s119
    %p125 = scmp.eq.s32.totalorder %s28, 0
    %p126 = por %p124, %p125
    %p127 = scmp.ne.s32.totalorder %s116, %s119
    %p128 = scmp.eq.s32.totalorder %s33, 1
    %p129 = por %p127, %p128
    %p130 = scmp.ne.s32.totalorder %s119, %s120
    %p131 = scmp.eq.s32.totalorder %s33, 0
    %p132 = por %p130, %p131
    %p133 = scmp.ne.s32.totalorder %s119, %s120
    %p134 = scmp.eq.s32.totalorder %s34, 1
    %p135 = por %p133, %p134
    %p137 = scmp.ne.s32.totalorder %s120, %s136
    %p138 = scmp.eq.s32.totalorder %s34, 0
    %p139 = por %p137, %p138
    %s141 = sadd.s32 %s140, 1
    %p144 = scmp.eq.s32.totalorder %s28, 1
    %p145 = scmp.ne.s32.totalorder %s140, %s142
    %p146 = scmp.eq.s32.totalorder %s28, 0
    %p147 = por %p145, %p146
    %p148 = scmp.ne.s32.totalorder %s140, %s142
    %p149 = scmp.eq.s32.totalorder %s33, 1
    %p150 = por %p148, %p149
    %p151 = scmp.ne.s32.totalorder %s142, %s143
    %p152 = scmp.eq.s32.totalorder %s33, 0
    %p153 = por %p151, %p152
    %p154 = scmp.ne.s32.totalorder %s142, %s143
    %p155 = scmp.eq.s32.totalorder %s34, 1
    %p156 = por %p154, %p155
    %p158 = scmp.ne.s32.totalorder %s143, %s157
    %p159 = scmp.eq.s32.totalorder %s34, 0
    %p160 = por %p158, %p159
    %s162 = sadd.s32 %s161, 1
    %p165 = scmp.eq.s32.totalorder %s28, 1
    %p166 = scmp.ne.s32.totalorder %s161, %s163
    %p167 = scmp.eq.s32.totalorder %s28, 0
    %p168 = por %p166, %p167
    %p169 = scmp.ne.s32.totalorder %s161, %s163
    %p170 = scmp.eq.s32.totalorder %s33, 1
    %p171 = por %p169, %p170
    %p172 = scmp.ne.s32.totalorder %s163, %s164
    %p173 = scmp.eq.s32.totalorder %s33, 0
    %p174 = por %p172, %p173
    %p175 = scmp.ne.s32.totalorder %s163, %s164
    %p176 = scmp.eq.s32.totalorder %s34, 1
    %p177 = por %p175, %p176
    %p179 = scmp.ne.s32.totalorder %s164, %s178
    %p180 = scmp.eq.s32.totalorder %s34, 0
    %p181 = por %p179, %p180
    %s183 = sadd.s32 %s182, 1
    %p186 = scmp.eq.s32.totalorder %s28, 1
    %p187 = scmp.ne.s32.totalorder %s182, %s184
    %p188 = scmp.eq.s32.totalorder %s28, 0
    %p189 = por %p187, %p188
    %p190 = scmp.ne.s32.totalorder %s182, %s184
    %p191 = scmp.eq.s32.totalorder %s33, 1
    %p192 = por %p190, %p191
    %p193 = scmp.ne.s32.totalorder %s184, %s185
    %p194 = scmp.eq.s32.totalorder %s33, 0
    %p195 = por %p193, %p194
    %p196 = scmp.ne.s32.totalorder %s184, %s185
    %p197 = scmp.eq.s32.totalorder %s34, 1
    %p198 = por %p196, %p197
    %p200 = scmp.ne.s32.totalorder %s185, %s199
    %p201 = scmp.eq.s32.totalorder %s34, 0
    %p202 = por %p200, %p201
    %s204 = sadd.s32 %s203, 1
    %p207 = scmp.eq.s32.totalorder %s28, 1
    %p208 = scmp.ne.s32.totalorder %s203, %s205
    %p209 = scmp.eq.s32.totalorder %s28, 0
    %p210 = por %p208, %p209
    %p211 = scmp.ne.s32.totalorder %s203, %s205
    %p212 = scmp.eq.s32.totalorder %s33, 1
    %p213 = por %p211, %p212
    %p214 = scmp.ne.s32.totalorder %s205, %s206
    %p215 = scmp.eq.s32.totalorder %s33, 0
    %p216 = por %p214, %p215
    %p217 = scmp.ne.s32.totalorder %s205, %s206
    %p218 = scmp.eq.s32.totalorder %s34, 1
    %p219 = por %p217, %p218
    %p221 = scmp.ne.s32.totalorder %s206, %s220
    %p222 = scmp.eq.s32.totalorder %s34, 0
    %p223 = por %p221, %p222
    %s225 = sadd.s32 %s224, 1
    %p228 = scmp.eq.s32.totalorder %s28, 1
    %p229 = scmp.ne.s32.totalorder %s224, %s226
    %p230 = scmp.eq.s32.totalorder %s28, 0
    %p231 = por %p229, %p230
    %p232 = scmp.ne.s32.totalorder %s224, %s226
    %p233 = scmp.eq.s32.totalorder %s33, 1
    %p234 = por %p232, %p233
    %p235 = scmp.ne.s32.totalorder %s226, %s227
    %p236 = scmp.eq.s32.totalorder %s33, 0
    %p237 = por %p235, %p236
    %p238 = scmp.ne.s32.totalorder %s226, %s227
    %p239 = scmp.eq.s32.totalorder %s34, 1
    %p240 = por %p238, %p239
    %p242 = scmp.ne.s32.totalorder %s227, %s241
    %p243 = scmp.eq.s32.totalorder %s34, 0
    %p244 = por %p242, %p243
    %s246 = sadd.s32 %s245, 1
    %p249 = scmp.eq.s32.totalorder %s28, 1
    %p250 = scmp.ne.s32.totalorder %s245, %s247
    %p251 = scmp.eq.s32.totalorder %s28, 0
    %p252 = por %p250, %p251
    %p253 = scmp.ne.s32.totalorder %s245, %s247
    %p254 = scmp.eq.s32.totalorder %s33, 1
    %p255 = por %p253, %p254
    %p256 = scmp.ne.s32.totalorder %s247, %s248
    %p257 = scmp.eq.s32.totalorder %s33, 0
    %p258 = por %p256, %p257
    %p259 = scmp.ne.s32.totalorder %s247, %s248
    %p260 = scmp.eq.s32.totalorder %s34, 1
    %p261 = por %p259, %p260
    %p263 = scmp.ne.s32.totalorder %s248, %s262
    %p264 = scmp.eq.s32.totalorder %s34, 0
    %p265 = por %p263, %p264
    %s267 = sadd.s32 %s266, 1
    %p270 = scmp.eq.s32.totalorder %s28, 1
    %p271 = scmp.ne.s32.totalorder %s266, %s268
    %p272 = scmp.eq.s32.totalorder %s28, 0
    %p273 = por %p271, %p272
    %p274 = scmp.ne.s32.totalorder %s266, %s268
    %p275 = scmp.eq.s32.totalorder %s33, 1
    %p276 = por %p274, %p275
    %p277 = scmp.ne.s32.totalorder %s268, %s269
    %p278 = scmp.eq.s32.totalorder %s33, 0
    %p279 = por %p277, %p278
    %p280 = scmp.ne.s32.totalorder %s268, %s269
    %p281 = scmp.eq.s32.totalorder %s34, 1
    %p282 = por %p280, %p281
    %p284 = scmp.ne.s32.totalorder %s269, %s283
    %p285 = scmp.eq.s32.totalorder %s34, 0
    %p286 = por %p284, %p285
    %s288 = sadd.s32 %s287, 1
    %p291 = scmp.eq.s32.totalorder %s28, 1
    %p292 = scmp.ne.s32.totalorder %s287, %s289
    %p293 = scmp.eq.s32.totalorder %s28, 0
    %p294 = por %p292, %p293
    %p295 = scmp.ne.s32.totalorder %s287, %s289
    %p296 = scmp.eq.s32.totalorder %s33, 1
    %p297 = por %p295, %p296
    %p298 = scmp.ne.s32.totalorder %s289, %s290
    %p299 = scmp.eq.s32.totalorder %s33, 0
    %p300 = por %p298, %p299
    %p301 = scmp.ne.s32.totalorder %s289, %s290
    %p302 = scmp.eq.s32.totalorder %s34, 1
    %p303 = por %p301, %p302
    %p305 = scmp.ne.s32.totalorder %s290, %s304
    %p306 = scmp.eq.s32.totalorder %s34, 0
    %p307 = por %p305, %p306
    %s309 = sadd.s32 %s308, 1
    %p312 = scmp.eq.s32.totalorder %s28, 1
    %p313 = scmp.ne.s32.totalorder %s308, %s310
    %p314 = scmp.eq.s32.totalorder %s28, 0
    %p315 = por %p313, %p314
    %p316 = scmp.ne.s32.totalorder %s308, %s310
    %p317 = scmp.eq.s32.totalorder %s33, 1
    %p318 = por %p316, %p317
    %p319 = scmp.ne.s32.totalorder %s310, %s311
    %p320 = scmp.eq.s32.totalorder %s33, 0
    %p321 = por %p319, %p320
    %p322 = scmp.ne.s32.totalorder %s310, %s311
    %p323 = scmp.eq.s32.totalorder %s34, 1
    %p324 = por %p322, %p323
    %p326 = scmp.ne.s32.totalorder %s311, %s325
    %p327 = scmp.eq.s32.totalorder %s34, 0
    %p328 = por %p326, %p327
    %s330 = sadd.s32 %s329, 1
    %p333 = scmp.eq.s32.totalorder %s28, 1
    %p334 = scmp.ne.s32.totalorder %s329, %s331
    %p335 = scmp.eq.s32.totalorder %s28, 0
    %p336 = por %p334, %p335
    %p337 = scmp.ne.s32.totalorder %s329, %s331
    %p338 = scmp.eq.s32.totalorder %s33, 1
    %p339 = por %p337, %p338
    %p340 = scmp.ne.s32.totalorder %s331, %s332
    %p341 = scmp.eq.s32.totalorder %s33, 0
    %p342 = por %p340, %p341
    %p343 = scmp.ne.s32.totalorder %s331, %s332
    %p344 = scmp.eq.s32.totalorder %s34, 1
    %p345 = por %p343, %p344
    %p347 = scmp.ne.s32.totalorder %s332, %s346
    %p348 = scmp.eq.s32.totalorder %s34, 0
    %p349 = por %p347, %p348
    %s351 = sadd.s32 %s350, 1
    %p354 = scmp.eq.s32.totalorder %s28, 1
    %p355 = scmp.ne.s32.totalorder %s350, %s352
    %p356 = scmp.eq.s32.totalorder %s28, 0
    %p357 = por %p355, %p356
    %p358 = scmp.ne.s32.totalorder %s350, %s352
    %p359 = scmp.eq.s32.totalorder %s33, 1
    %p360 = por %p358, %p359
    %p361 = scmp.ne.s32.totalorder %s352, %s353
    %p362 = scmp.eq.s32.totalorder %s33, 0
    %p363 = por %p361, %p362
    %p364 = scmp.ne.s32.totalorder %s352, %s353
    %p365 = scmp.eq.s32.totalorder %s34, 1
    %p366 = por %p364, %p365
    %p368 = scmp.ne.s32.totalorder %s353, %s367
    %p369 = scmp.eq.s32.totalorder %s34, 0
    %p370 = por %p368, %p369
    %s372 = sadd.s32 %s371, 1
    %p375 = scmp.eq.s32.totalorder %s28, 1
    %p376 = scmp.ne.s32.totalorder %s371, %s373
    %p377 = scmp.eq.s32.totalorder %s28, 0
    %p378 = por %p376, %p377
    %p379 = scmp.ne.s32.totalorder %s371, %s373
    %p380 = scmp.eq.s32.totalorder %s33, 1
    %p381 = por %p379, %p380
    %p382 = scmp.ne.s32.totalorder %s373, %s374
    %p383 = scmp.eq.s32.totalorder %s33, 0
    %p384 = por %p382, %p383
    %p385 = scmp.ne.s32.totalorder %s373, %s374
    %p386 = scmp.eq.s32.totalorder %s34, 1
    %p387 = por %p385, %p386
    %p389 = scmp.ne.s32.totalorder %s374, %s388
    %p390 = scmp.eq.s32.totalorder %s34, 0
    %p391 = por %p389, %p390
    %s393 = sadd.s32 %s392, 1
    %p396 = scmp.eq.s32.totalorder %s28, 1
    %p397 = scmp.ne.s32.totalorder %s392, %s394
    %p398 = scmp.eq.s32.totalorder %s28, 0
    %p399 = por %p397, %p398
    %p400 = scmp.ne.s32.totalorder %s392, %s394
    %p401 = scmp.eq.s32.totalorder %s33, 1
    %p402 = por %p400, %p401
    %p403 = scmp.ne.s32.totalorder %s394, %s395
    %p404 = scmp.eq.s32.totalorder %s33, 0
    %p405 = por %p403, %p404
    %p406 = scmp.ne.s32.totalorder %s394, %s395
    %p407 = scmp.eq.s32.totalorder %s34, 1
    %p408 = por %p406, %p407
    %p410 = scmp.ne.s32.totalorder %s395, %s409
    %p411 = scmp.eq.s32.totalorder %s34, 0
    %p412 = por %p410, %p411
    %s414 = sadd.s32 %s413, 1
    %p417 = scmp.eq.s32.totalorder %s28, 1
    %p418 = scmp.ne.s32.totalorder %s413, %s415
    %p419 = scmp.eq.s32.totalorder %s28, 0
    %p420 = por %p418, %p419
    %p421 = scmp.ne.s32.totalorder %s413, %s415
    %p422 = scmp.eq.s32.totalorder %s33, 1
    %p423 = por %p421, %p422
    %p424 = scmp.ne.s32.totalorder %s415, %s416
    %p425 = scmp.eq.s32.totalorder %s33, 0
    %p426 = por %p424, %p425
    %p427 = scmp.ne.s32.totalorder %s415, %s416
    %p428 = scmp.eq.s32.totalorder %s34, 1
    %p429 = por %p427, %p428
    %p431 = scmp.ne.s32.totalorder %s416, %s430
    %p432 = scmp.eq.s32.totalorder %s34, 0
    %p433 = por %p431, %p432
    %s435 = sadd.s32 %s434, 1
    %p438 = scmp.eq.s32.totalorder %s28, 1
    %p439 = scmp.ne.s32.totalorder %s434, %s436
    %p440 = scmp.eq.s32.totalorder %s28, 0
    %p441 = por %p439, %p440
    %p442 = scmp.ne.s32.totalorder %s434, %s436
    %p443 = scmp.eq.s32.totalorder %s33, 1
    %p444 = por %p442, %p443
    %p445 = scmp.ne.s32.totalorder %s436, %s437
    %p446 = scmp.eq.s32.totalorder %s33, 0
    %p447 = por %p445, %p446
    %p448 = scmp.ne.s32.totalorder %s436, %s437
    %p449 = scmp.eq.s32.totalorder %s34, 1
    %p450 = por %p448, %p449
    %p452 = scmp.ne.s32.totalorder %s437, %s451
    %p453 = scmp.eq.s32.totalorder %s34, 0
    %p454 = por %p452, %p453
    %s456 = sadd.s32 %s455, 1
    %p459 = scmp.eq.s32.totalorder %s28, 1
    %p460 = scmp.ne.s32.totalorder %s455, %s457
    %p461 = scmp.eq.s32.totalorder %s28, 0
    %p462 = por %p460, %p461
    %p463 = scmp.ne.s32.totalorder %s455, %s457
    %p464 = scmp.eq.s32.totalorder %s33, 1
    %p465 = por %p463, %p464
    %p466 = scmp.ne.s32.totalorder %s457, %s458
    %p467 = scmp.eq.s32.totalorder %s33, 0
    %p468 = por %p466, %p467
    %p469 = scmp.ne.s32.totalorder %s457, %s458
    %p470 = scmp.eq.s32.totalorder %s34, 1
    %p471 = por %p469, %p470
    %p473 = scmp.ne.s32.totalorder %s458, %s472
    %p474 = scmp.eq.s32.totalorder %s34, 0
    %p475 = por %p473, %p474
    %s477 = sadd.s32 %s476, 1
    %p480 = scmp.eq.s32.totalorder %s28, 1
    %p481 = scmp.ne.s32.totalorder %s476, %s478
    %p482 = scmp.eq.s32.totalorder %s28, 0
    %p483 = por %p481, %p482
    %p484 = scmp.ne.s32.totalorder %s476, %s478
    %p485 = scmp.eq.s32.totalorder %s33, 1
    %p486 = por %p484, %p485
    %p487 = scmp.ne.s32.totalorder %s478, %s479
    %p488 = scmp.eq.s32.totalorder %s33, 0
    %p489 = por %p487, %p488
    %p490 = scmp.ne.s32.totalorder %s478, %s479
    %p491 = scmp.eq.s32.totalorder %s34, 1
    %p492 = por %p490, %p491
    %p494 = scmp.ne.s32.totalorder %s479, %s493
    %p495 = scmp.eq.s32.totalorder %s34, 0
    %p496 = por %p494, %p495
    %s498 = sadd.s32 %s497, 1
    %p501 = scmp.eq.s32.totalorder %s28, 1
    %p502 = scmp.ne.s32.totalorder %s497, %s499
    %p503 = scmp.eq.s32.totalorder %s28, 0
    %p504 = por %p502, %p503
    %p505 = scmp.ne.s32.totalorder %s497, %s499
    %p506 = scmp.eq.s32.totalorder %s33, 1
    %p507 = por %p505, %p506
    %p508 = scmp.ne.s32.totalorder %s499, %s500
    %p509 = scmp.eq.s32.totalorder %s33, 0
    %p510 = por %p508, %p509
    %p511 = scmp.ne.s32.totalorder %s499, %s500
    %p512 = scmp.eq.s32.totalorder %s34, 1
    %p513 = por %p511, %p512
    %p515 = scmp.ne.s32.totalorder %s500, %s514
    %p516 = scmp.eq.s32.totalorder %s34, 0
    %p517 = por %p515, %p516
    %s518 = ssub.s32 %s28, %s35
    %p519 = scmp.eq.s32.totalorder %s518, 0
    %s521 = sadd.s32 %s520, 1
    %s522 = scalar_select %p519, %s520, %s521
    %p525 = pneg %p519
    %p526 = scmp.eq.s32.totalorder %s28, 1
    %p527 = por %p525, %p526
    %p528 = scmp.ne.s32.totalorder %s520, %s523
    %p529 = scmp.eq.s32.totalorder %s28, 0
    %p530 = por %p528, %p529
    %p531 = scmp.ne.s32.totalorder %s520, %s523
    %p532 = scmp.eq.s32.totalorder %s33, 1
    %p533 = por %p531, %p532
    %p534 = scmp.ne.s32.totalorder %s523, %s524
    %p535 = scmp.eq.s32.totalorder %s33, 0
    %p536 = por %p534, %p535
    %p537 = scmp.ne.s32.totalorder %s523, %s524
    %p538 = scmp.eq.s32.totalorder %s34, 1
    %p539 = por %p537, %p538
    %p541 = scmp.ne.s32.totalorder %s524, %s540
    %p542 = scmp.eq.s32.totalorder %s34, 0
    %p543 = por %p541, %p542
    %p544 = scmp.le.s32.totalorder 1, %s28
    %p545 = scmp.lt.s32.totalorder %s28, 3
    %p546 = pnand %p544, %p545
    %p547 = pneg %p546
    // Predicated region
    $region9: #{transformer_forward.7} parent=5 // pred_check
      _
    $region10: #{transformer_forward.7} parent=5 // pred_check_branch
      %549 = sbr.rel (%p546) target = $region12
    $region11: #{transformer_forward.7} parent=5 // pred_region
      %s550 = ssub.s32 %s28, 1
      // Predicated region
      $region13: #{transformer_forward.7} parent=11 // pred_check
        %p551 = pneg %p153
      $region14: #{transformer_forward.7} parent=11 // pred_check_branch
        %553 = sbr.rel (%p551) target = $region16
      $region15: #{transformer_forward.7} parent=11 // pred_region
        _
      $region16: #{transformer_forward.7} parent=11 // pred_fallthru
        _
      // Predicated region
      $region17: #{transformer_forward.7} parent=11 // pred_check
        %p554 = pneg %p174
      $region18: #{transformer_forward.7} parent=11 // pred_check_branch
        %556 = sbr.rel (%p554) target = $region20
      $region19: #{transformer_forward.7} parent=11 // pred_region
        _
      $region20: #{transformer_forward.7} parent=11 // pred_fallthru
        _
      // Predicated region
      $region21: #{transformer_forward.7} parent=11 // pred_check
        %p557 = pneg %p195
      $region22: #{transformer_forward.7} parent=11 // pred_check_branch
        %559 = sbr.rel (%p557) target = $region24
      $region23: #{transformer_forward.7} parent=11 // pred_region
        _
      $region24: #{transformer_forward.7} parent=11 // pred_fallthru
        _
      // Predicated region
      $region25: #{transformer_forward.7} parent=11 // pred_check
        %p560 = pneg %p216
      $region26: #{transformer_forward.7} parent=11 // pred_check_branch
        %562 = sbr.rel (%p560) target = $region28
      $region27: #{transformer_forward.7} parent=11 // pred_region
        _
      $region28: #{transformer_forward.7} parent=11 // pred_fallthru
        _
      // Predicated region
      $region29: #{transformer_forward.7} parent=11 // pred_check
        %p563 = pneg %p237
      $region30: #{transformer_forward.7} parent=11 // pred_check_branch
        %565 = sbr.rel (%p563) target = $region32
      $region31: #{transformer_forward.7} parent=11 // pred_region
        _
      $region32: #{transformer_forward.7} parent=11 // pred_fallthru
        _
      // Predicated region
      $region33: #{transformer_forward.7} parent=11 // pred_check
        %p566 = pneg %p258
      $region34: #{transformer_forward.7} parent=11 // pred_check_branch
        %568 = sbr.rel (%p566) target = $region36
      $region35: #{transformer_forward.7} parent=11 // pred_region
        _
      $region36: #{transformer_forward.7} parent=11 // pred_fallthru
        _
      // Predicated region
      $region37: #{transformer_forward.7} parent=11 // pred_check
        %p569 = pneg %p279
      $region38: #{transformer_forward.7} parent=11 // pred_check_branch
        %571 = sbr.rel (%p569) target = $region40
      $region39: #{transformer_forward.7} parent=11 // pred_region
        _
      $region40: #{transformer_forward.7} parent=11 // pred_fallthru
        _
      // Predicated region
      $region41: #{transformer_forward.7} parent=11 // pred_check
        %p572 = pneg %p300
      $region42: #{transformer_forward.7} parent=11 // pred_check_branch
        %574 = sbr.rel (%p572) target = $region44
      $region43: #{transformer_forward.7} parent=11 // pred_region
        _
      $region44: #{transformer_forward.7} parent=11 // pred_fallthru
        _
      // Predicated region
      $region45: #{transformer_forward.7} parent=11 // pred_check
        %p575 = pneg %p321
      $region46: #{transformer_forward.7} parent=11 // pred_check_branch
        %577 = sbr.rel (%p575) target = $region48
      $region47: #{transformer_forward.7} parent=11 // pred_region
        _
      $region48: #{transformer_forward.7} parent=11 // pred_fallthru
        _
      // Predicated region
      $region49: #{transformer_forward.7} parent=11 // pred_check
        %p578 = pneg %p342
      $region50: #{transformer_forward.7} parent=11 // pred_check_branch
        %580 = sbr.rel (%p578) target = $region52
      $region51: #{transformer_forward.7} parent=11 // pred_region
        _
      $region52: #{transformer_forward.7} parent=11 // pred_fallthru
        _
      // Predicated region
      $region53: #{transformer_forward.7} parent=11 // pred_check
        %p581 = pneg %p363
      $region54: #{transformer_forward.7} parent=11 // pred_check_branch
        %583 = sbr.rel (%p581) target = $region56
      $region55: #{transformer_forward.7} parent=11 // pred_region
        _
      $region56: #{transformer_forward.7} parent=11 // pred_fallthru
        _
      // Predicated region
      $region57: #{transformer_forward.7} parent=11 // pred_check
        %p584 = pneg %p384
      $region58: #{transformer_forward.7} parent=11 // pred_check_branch
        %586 = sbr.rel (%p584) target = $region60
      $region59: #{transformer_forward.7} parent=11 // pred_region
        _
      $region60: #{transformer_forward.7} parent=11 // pred_fallthru
        _
      // Predicated region
      $region61: #{transformer_forward.7} parent=11 // pred_check
        %p587 = pneg %p405
      $region62: #{transformer_forward.7} parent=11 // pred_check_branch
        %589 = sbr.rel (%p587) target = $region64
      $region63: #{transformer_forward.7} parent=11 // pred_region
        _
      $region64: #{transformer_forward.7} parent=11 // pred_fallthru
        _
      // Predicated region
      $region65: #{transformer_forward.7} parent=11 // pred_check
        %p590 = pneg %p426
      $region66: #{transformer_forward.7} parent=11 // pred_check_branch
        %592 = sbr.rel (%p590) target = $region68
      $region67: #{transformer_forward.7} parent=11 // pred_region
        _
      $region68: #{transformer_forward.7} parent=11 // pred_fallthru
        _
      // Predicated region
      $region69: #{transformer_forward.7} parent=11 // pred_check
        %p593 = pneg %p447
      $region70: #{transformer_forward.7} parent=11 // pred_check_branch
        %595 = sbr.rel (%p593) target = $region72
      $region71: #{transformer_forward.7} parent=11 // pred_region
        _
      $region72: #{transformer_forward.7} parent=11 // pred_fallthru
        _
      // Predicated region
      $region73: #{transformer_forward.7} parent=11 // pred_check
        %p596 = pneg %p468
      $region74: #{transformer_forward.7} parent=11 // pred_check_branch
        %598 = sbr.rel (%p596) target = $region76
      $region75: #{transformer_forward.7} parent=11 // pred_region
        _
      $region76: #{transformer_forward.7} parent=11 // pred_fallthru
        _
      // Predicated region
      $region77: #{transformer_forward.7} parent=11 // pred_check
        %p599 = pneg %p489
      $region78: #{transformer_forward.7} parent=11 // pred_check_branch
        %601 = sbr.rel (%p599) target = $region80
      $region79: #{transformer_forward.7} parent=11 // pred_region
        _
      $region80: #{transformer_forward.7} parent=11 // pred_fallthru
        _
      // Predicated region
      $region81: #{transformer_forward.7} parent=11 // pred_check
        %p602 = pneg %p510
      $region82: #{transformer_forward.7} parent=11 // pred_check_branch
        %604 = sbr.rel (%p602) target = $region84
      $region83: #{transformer_forward.7} parent=11 // pred_region
        _
      $region84: #{transformer_forward.7} parent=11 // pred_fallthru
        _
    $region12: #{transformer_forward.7} parent=5 // pred_fallthru
      _
    %p605 = scmp.lt.s32.totalorder %s28, 2
    // Predicated region
    $region85: #{transformer_forward.7} parent=5 // pred_check
      %p606 = pneg %p605
    $region86: #{transformer_forward.7} parent=5 // pred_check_branch
      %608 = sbr.rel (%p606) target = $region88
    $region87: #{transformer_forward.7} parent=5 // pred_region
      // Predicated region
      $region89: #{transformer_forward.7} parent=87 // pred_check
        %p609 = pneg %p48
      $region90: #{transformer_forward.7} parent=87 // pred_check_branch
        %611 = sbr.rel (%p609) target = $region92
      $region91: #{transformer_forward.7} parent=87 // pred_region
        %p612 = scmp.lt.s32.totalorder %s28, 1
        %s613 = scalar_select %p612, %s28, 1
        %s614 = smul.addr %s613, 8
        %s615 = scalar_lea.vmem %s0, %s614
      $region92: #{transformer_forward.7} parent=87 // pred_fallthru
        _
      // Predicated region
      $region93: #{transformer_forward.7} parent=87 // pred_check
        %p616 = pneg %p74
      $region94: #{transformer_forward.7} parent=87 // pred_check_branch
        %618 = sbr.rel (%p616) target = $region96
      $region95: #{transformer_forward.7} parent=87 // pred_region
        %p619 = scmp.lt.s32.totalorder %s28, 1
        %s620 = scalar_select %p619, %s28, 1
        %s621 = smul.addr %s620, 8
        %s622 = scalar_lea.vmem %s1, %s621
      $region96: #{transformer_forward.7} parent=87 // pred_fallthru
        _
      // Predicated region
      $region97: #{transformer_forward.7} parent=87 // pred_check
        %p623 = pneg %p100
      $region98: #{transformer_forward.7} parent=87 // pred_check_branch
        %625 = sbr.rel (%p623) target = $region100
      $region99: #{transformer_forward.7} parent=87 // pred_region
        %p626 = scmp.lt.s32.totalorder %s28, 1
        %s627 = scalar_select %p626, %s28, 1
        %s628 = smul.addr %s627, 8
        %s629 = scalar_lea.vmem %s2, %s628
      $region100: #{transformer_forward.7} parent=87 // pred_fallthru
        _
      // Predicated region
      $region101: #{transformer_forward.7} parent=87 // pred_check
        %p630 = pneg %p126
      $region102: #{transformer_forward.7} parent=87 // pred_check_branch
        %632 = sbr.rel (%p630) target = $region104
      $region103: #{transformer_forward.7} parent=87 // pred_region
        %p633 = scmp.lt.s32.totalorder %s28, 1
        %s634 = scalar_select %p633, %s28, 1
        %s635 = scalar_lea.vmem %s3, %s634
      $region104: #{transformer_forward.7} parent=87 // pred_fallthru
        _
    $region88: #{transformer_forward.7} parent=5 // pred_fallthru
      _
    %p636 = scmp.le.s32.totalorder 1, %s28
    %p637 = scmp.lt.s32.totalorder %s28, 3
    %p638 = pnand %p636, %p637
    %p639 = pneg %p638
    // Predicated region
    $region105: #{transformer_forward.7} parent=5 // pred_check
      _
    $region106: #{transformer_forward.7} parent=5 // pred_check_branch
      %641 = sbr.rel (%p638) target = $region108
    $region107: #{transformer_forward.7} parent=5 // pred_region
      %s642 = ssub.s32 %s28, 1
      %p643 = scmp.lt.s32.totalorder %s33, 1
      %s644 = scalar_select %p643, %s33, 1
      %s645 = smul.addr %s644, 8
      %s646 = scalar_lea.vmem %s0, %s645
      %p647 = pneg %p54
      %p648 = pneg %p51
      %p649 = scmp.lt.s32.totalorder %s33, 1
      %s650 = scalar_select %p649, %s33, 1
      %s651 = smul.addr %s650, 8
      %s652 = scalar_lea.vmem %s1, %s651
      %p653 = pneg %p80
      %p654 = pneg %p77
      %p655 = scmp.lt.s32.totalorder %s33, 1
      %s656 = scalar_select %p655, %s33, 1
      %s657 = smul.addr %s656, 8
      %s658 = scalar_lea.vmem %s2, %s657
      %p659 = pneg %p106
      %p660 = pneg %p103
      %p661 = scmp.lt.s32.totalorder %s33, 1
      %s662 = scalar_select %p661, %s33, 1
      %s663 = scalar_lea.vmem %s3, %s662
      %p664 = pneg %p132
      %p665 = pneg %p129
      %p666 = pneg %p153
      %p667 = pneg %p150
      %p668 = pneg %p174
      %p669 = pneg %p171
      %p670 = pneg %p195
      %p671 = pneg %p192
      %p672 = pneg %p216
      %p673 = pneg %p213
      %p674 = pneg %p237
      %p675 = pneg %p234
      %p676 = pneg %p258
      %p677 = pneg %p255
      %p678 = pneg %p279
      %p679 = pneg %p276
      %p680 = pneg %p300
      %p681 = pneg %p297
      %p682 = pneg %p321
      %p683 = pneg %p318
      %p684 = pneg %p342
      %p685 = pneg %p339
      %p686 = pneg %p363
      %p687 = pneg %p360
      %p688 = pneg %p384
      %p689 = pneg %p381
      %p690 = pneg %p405
      %p691 = pneg %p402
      %p692 = pneg %p426
      %p693 = pneg %p423
      %p694 = pneg %p447
      %p695 = pneg %p444
      %p696 = pneg %p468
      %p697 = pneg %p465
      %p698 = pneg %p489
      %p699 = pneg %p486
      %p700 = pneg %p510
      %p701 = pneg %p507
      %p702 = pneg %p536
      %p703 = pneg %p533
      %p704 = scmp.lt.s32.totalorder %s33, 1
      %s705 = scalar_select %p704, %s33, 1
      %s706 = smul.addr %s705, 8
      %s707 = scalar_lea.vmem %s22, %s706
      %p708 = scmp.lt.s32.totalorder %s33, 1
      %s709 = scalar_select %p708, %s33, 1
      %s710 = smul.addr %s709, 8
      %s711 = scalar_lea.vmem %s0, %s710
      %p712 = scmp.lt.s32.totalorder %s33, 1
      %s713 = scalar_select %p712, %s33, 1
      %s714 = smul.addr %s713, 8
      %s715 = scalar_lea.vmem %s1, %s714
      %p716 = scmp.lt.s32.totalorder %s33, 1
      %s717 = scalar_select %p716, %s33, 1
      %s718 = smul.addr %s717, 8
      %s719 = scalar_lea.vmem %s2, %s718
      %p720 = scmp.lt.s32.totalorder %s33, 1
      %s721 = scalar_select %p720, %s33, 1
      %s722 = scalar_lea.vmem %s3, %s721
      %p723 = scmp.lt.s32.totalorder %s33, 1
      %s724 = scalar_select %p723, %s33, 1
      %s725 = smul.addr %s724, 8
      %s726 = scalar_lea.vmem %s22, %s725
      %v728 = vld [vmem:[%s711] sm:$0xff]
      %v729 = vld [vmem:[%s715] sm:$0xff]
      %v730 = vld [vmem:[%s719] sm:$0xff]
      %v731 = vpack.c.bf16 %v728, %v728
      %v732 = vld [vmem:[%s4] sm:$0xf]
      %v733 = vld [vmem:[%s4 + $0x4] sm:$0xf]
      %v734 = vld [vmem:[%s4 + $0x8] sm:$0xf]
      %v735 = vld [vmem:[%s4 + $0xc] sm:$0xf]
      %v736 = vld [vmem:[%s4 + $0x10] sm:$0xf]
      %v737 = vld [vmem:[%s4 + $0x14] sm:$0xf]
      %v738 = vld [vmem:[%s4 + $0x18] sm:$0xf]
      %v739 = vld [vmem:[%s4 + $0x1c] sm:$0xf]
      %v740 = vld [vmem:[%s4 + $0x20] sm:$0xf]
      %v741 = vld [vmem:[%s4 + $0x24] sm:$0xf]
      %v742 = vld [vmem:[%s4 + $0x28] sm:$0xf]
      %v743 = vld [vmem:[%s4 + $0x2c] sm:$0xf]
      %v744 = vld [vmem:[%s4 + $0x30] sm:$0xf]
      %v745 = vld [vmem:[%s4 + $0x34] sm:$0xf]
      %v746 = vld [vmem:[%s4 + $0x38] sm:$0xf]
      %v747 = vld [vmem:[%s4 + $0x3c] sm:$0xf]
      %v748 = vld [vmem:[%s5] sm:$0x1]
      %v749 = vld [vmem:[%s5 + $0x1] sm:$0x1]
      %v750 = vld [vmem:[%s5 + $0x2] sm:$0x1]
      %v751 = vld [vmem:[%s5 + $0x3] sm:$0x1]
      %v756 = vlaneseq
      %v757 = vshrl.u32 %v756, 7
      %v758 = vsub.s32 0, %v757
      %v759 = vrot.slane %v748, %v758
      %v760 = vlaneseq
      %v761 = vshrl.u32 %v760, 7
      %v762 = vsub.s32 0, %v761
      %v763 = vrot.slane %v749, %v762
      %v764 = vlaneseq
      %v765 = vshrl.u32 %v764, 7
      %v766 = vsub.s32 0, %v765
      %v767 = vrot.slane %v750, %v766
      %v768 = vlaneseq
      %v769 = vshrl.u32 %v768, 7
      %v770 = vsub.s32 0, %v769
      %v771 = vrot.slane %v751, %v770
      %v780 = vunpack.c.l.b16 %v732
      %v781 = vunpack.c.l.b16 %v733
      %v782 = vunpack.c.l.b16 %v734
      %v783 = vunpack.c.l.b16 %v735
      %v784 = vpack.c.b16 %v781, %v780
      %v785 = vpack.c.b16 %v783, %v782
      %vm788 = vcmask 261120
      %v790 = vsel %vm788, %v731, 0
      %792 = vmatprep.subr.bf16.mxu0 0
      %793 = vmatpush1.bf16.msra.mxu0 %v784
      %794 = vmatprep.subr.bf16.mxu0 0
      %795 = vmatpush1.bf16.msra.mxu0 %v785
      %796 = vmatprep.subr.bf16.mxu0 0
      %797 = vmatpush1.bf16.msra.mxu0 0
      %798 = vmatprep.subr.bf16.mxu0 0
      %799 = vmatpush1.bf16.msra.mxu0 0
      %800 = vmatprep.subr.bf16.mxu0 0
      %801 = vmatpush1.bf16.msra.mxu0 0
      %802 = vmatprep.subr.bf16.mxu0 0
      %803 = vmatpush1.bf16.msra.mxu0 0
      %804 = vmatprep.subr.bf16.mxu0 0
      %805 = vmatpush1.bf16.msra.mxu0 0
      %806 = vmatprep.subr.bf16.mxu0 0
      %807 = vmatpush1.bf16.msra.mxu0 0
      %808 = vmatprep.subr.bf16.mxu0 0
      %809 = vmatpush1.bf16.msra.mxu0 0
      %810 = vmatprep.subr.bf16.mxu0 0
      %811 = vmatpush1.bf16.msra.mxu0 0
      %812 = vmatprep.subr.bf16.mxu0 0
      %813 = vmatpush1.bf16.msra.mxu0 0
      %814 = vmatprep.subr.bf16.mxu0 0
      %815 = vmatpush1.bf16.msra.mxu0 0
      %816 = vmatprep.subr.bf16.mxu0 0
      %817 = vmatpush1.bf16.msra.mxu0 0
      %818 = vmatprep.subr.bf16.mxu0 0
      %819 = vmatpush1.bf16.msra.mxu0 0
      %820 = vmatprep.subr.bf16.mxu0 0
      %821 = vmatpush1.bf16.msra.mxu0 0
      %822 = vmatprep.subr.bf16.mxu0 0
      %823 = vmatpush1.bf16.msra.mxu0 0
      %824 = vmatprep.mubr.bf16.mxu0 0
      %825 = vmatmul.mubr.bf16.gmra.mrb[0].mxu0 %v790
      %v826 = vpop.f32.mrb[0].mxu0
      %v827 = vadd.f32 %v759, %v826
      %v828 = vpop.f32.mrb[0].mxu0
      %v829 = vpop.f32.mrb[0].mxu0
      %v830 = vpop.f32.mrb[0].mxu0
      %831 = vdwg.mxu0
      %v836 = vunpack.c.l.b16 %v736
      %v837 = vunpack.c.l.b16 %v737
      %v838 = vunpack.c.l.b16 %v738
      %v839 = vunpack.c.l.b16 %v739
      %v840 = vpack.c.b16 %v837, %v836
      %v841 = vpack.c.b16 %v839, %v838
      %844 = vmatprep.subr.bf16.mxu0 0
      %845 = vmatpush1.bf16.msra.mxu0 %v840
      %846 = vmatprep.subr.bf16.mxu0 0
      %847 = vmatpush1.bf16.msra.mxu0 %v841
      %848 = vmatprep.subr.bf16.mxu0 0
      %849 = vmatpush1.bf16.msra.mxu0 0
      %850 = vmatprep.subr.bf16.mxu0 0
      %851 = vmatpush1.bf16.msra.mxu0 0
      %852 = vmatprep.subr.bf16.mxu0 0
      %853 = vmatpush1.bf16.msra.mxu0 0
      %854 = vmatprep.subr.bf16.mxu0 0
      %855 = vmatpush1.bf16.msra.mxu0 0
      %856 = vmatprep.subr.bf16.mxu0 0
      %857 = vmatpush1.bf16.msra.mxu0 0
      %858 = vmatprep.subr.bf16.mxu0 0
      %859 = vmatpush1.bf16.msra.mxu0 0
      %860 = vmatprep.subr.bf16.mxu0 0
      %861 = vmatpush1.bf16.msra.mxu0 0
      %862 = vmatprep.subr.bf16.mxu0 0
      %863 = vmatpush1.bf16.msra.mxu0 0
      %864 = vmatprep.subr.bf16.mxu0 0
      %865 = vmatpush1.bf16.msra.mxu0 0
      %866 = vmatprep.subr.bf16.mxu0 0
      %867 = vmatpush1.bf16.msra.mxu0 0
      %868 = vmatprep.subr.bf16.mxu0 0
      %869 = vmatpush1.bf16.msra.mxu0 0
      %870 = vmatprep.subr.bf16.mxu0 0
      %871 = vmatpush1.bf16.msra.mxu0 0
      %872 = vmatprep.subr.bf16.mxu0 0
      %873 = vmatpush1.bf16.msra.mxu0 0
      %874 = vmatprep.subr.bf16.mxu0 0
      %875 = vmatpush1.bf16.msra.mxu0 0
      %876 = vmatprep.mubr.bf16.mxu0 0
      %877 = vmatmul.mubr.bf16.gmra.mrb[0].mxu0 %v790
      %v878 = vpop.f32.mrb[0].mxu0
      %v879 = vadd.f32 %v763, %v878
      %v880 = vpop.f32.mrb[0].mxu0
      %v881 = vpop.f32.mrb[0].mxu0
      %v882 = vpop.f32.mrb[0].mxu0
      %883 = vdwg.mxu0
      %v888 = vunpack.c.l.b16 %v740
      %v889 = vunpack.c.l.b16 %v741
      %v890 = vunpack.c.l.b16 %v742
      %v891 = vunpack.c.l.b16 %v743
      %v892 = vpack.c.b16 %v889, %v888
      %v893 = vpack.c.b16 %v891, %v890
      %896 = vmatprep.subr.bf16.mxu0 0
      %897 = vmatpush1.bf16.msra.mxu0 %v892
      %898 = vmatprep.subr.bf16.mxu0 0
      %899 = vmatpush1.bf16.msra.mxu0 %v893
      %900 = vmatprep.subr.bf16.mxu0 0
      %901 = vmatpush1.bf16.msra.mxu0 0
      %902 = vmatprep.subr.bf16.mxu0 0
      %903 = vmatpush1.bf16.msra.mxu0 0
      %904 = vmatprep.subr.bf16.mxu0 0
      %905 = vmatpush1.bf16.msra.mxu0 0
      %906 = vmatprep.subr.bf16.mxu0 0
      %907 = vmatpush1.bf16.msra.mxu0 0
      %908 = vmatprep.subr.bf16.mxu0 0
      %909 = vmatpush1.bf16.msra.mxu0 0
      %910 = vmatprep.subr.bf16.mxu0 0
      %911 = vmatpush1.bf16.msra.mxu0 0
      %912 = vmatprep.subr.bf16.mxu0 0
      %913 = vmatpush1.bf16.msra.mxu0 0
      %914 = vmatprep.subr.bf16.mxu0 0
      %915 = vmatpush1.bf16.msra.mxu0 0
      %916 = vmatprep.subr.bf16.mxu0 0
      %917 = vmatpush1.bf16.msra.mxu0 0
      %918 = vmatprep.subr.bf16.mxu0 0
      %919 = vmatpush1.bf16.msra.mxu0 0
      %920 = vmatprep.subr.bf16.mxu0 0
      %921 = vmatpush1.bf16.msra.mxu0 0
      %922 = vmatprep.subr.bf16.mxu0 0
      %923 = vmatpush1.bf16.msra.mxu0 0
      %924 = vmatprep.subr.bf16.mxu0 0
      %925 = vmatpush1.bf16.msra.mxu0 0
      %926 = vmatprep.subr.bf16.mxu0 0
      %927 = vmatpush1.bf16.msra.mxu0 0
      %928 = vmatprep.mubr.bf16.mxu0 0
      %929 = vmatmul.mubr.bf16.gmra.mrb[0].mxu0 %v790
      %v930 = vpop.f32.mrb[0].mxu0
      %v931 = vadd.f32 %v767, %v930
      %v932 = vpop.f32.mrb[0].mxu0
      %v933 = vpop.f32.mrb[0].mxu0
      %v934 = vpop.f32.mrb[0].mxu0
      %935 = vdwg.mxu0
      %v940 = vunpack.c.l.b16 %v744
      %v941 = vunpack.c.l.b16 %v745
      %v942 = vunpack.c.l.b16 %v746
      %v943 = vunpack.c.l.b16 %v747
      %v944 = vpack.c.b16 %v941, %v940
      %v945 = vpack.c.b16 %v943, %v942
      %948 = vmatprep.subr.bf16.mxu0 0
      %949 = vmatpush1.bf16.msra.mxu0 %v944
      %950 = vmatprep.subr.bf16.mxu0 0
      %951 = vmatpush1.bf16.msra.mxu0 %v945
      %952 = vmatprep.subr.bf16.mxu0 0
      %953 = vmatpush1.bf16.msra.mxu0 0
      %954 = vmatprep.subr.bf16.mxu0 0
      %955 = vmatpush1.bf16.msra.mxu0 0
      %956 = vmatprep.subr.bf16.mxu0 0
      %957 = vmatpush1.bf16.msra.mxu0 0
      %958 = vmatprep.subr.bf16.mxu0 0
      %959 = vmatpush1.bf16.msra.mxu0 0
      %960 = vmatprep.subr.bf16.mxu0 0
      %961 = vmatpush1.bf16.msra.mxu0 0
      %962 = vmatprep.subr.bf16.mxu0 0
      %963 = vmatpush1.bf16.msra.mxu0 0
      %964 = vmatprep.subr.bf16.mxu0 0
      %965 = vmatpush1.bf16.msra.mxu0 0
      %966 = vmatprep.subr.bf16.mxu0 0
      %967 = vmatpush1.bf16.msra.mxu0 0
      %968 = vmatprep.subr.bf16.mxu0 0
      %969 = vmatpush1.bf16.msra.mxu0 0
      %970 = vmatprep.subr.bf16.mxu0 0
      %971 = vmatpush1.bf16.msra.mxu0 0
      %972 = vmatprep.subr.bf16.mxu0 0
      %973 = vmatpush1.bf16.msra.mxu0 0
      %974 = vmatprep.subr.bf16.mxu0 0
      %975 = vmatpush1.bf16.msra.mxu0 0
      %976 = vmatprep.subr.bf16.mxu0 0
      %977 = vmatpush1.bf16.msra.mxu0 0
      %978 = vmatprep.subr.bf16.mxu0 0
      %979 = vmatpush1.bf16.msra.mxu0 0
      %980 = vmatprep.mubr.bf16.mxu0 0
      %981 = vmatmul.mubr.bf16.gmra.mrb[0].mxu0 %v790
      %v982 = vpop.f32.mrb[0].mxu0
      %v983 = vadd.f32 %v771, %v982
      %v984 = vpop.f32.mrb[0].mxu0
      %v985 = vpop.f32.mrb[0].mxu0
      %v986 = vpop.f32.mrb[0].mxu0
      %987 = vdwg.mxu0
      %s988 = scalar_lea.vmem %s4, 64
      %v989 = vld [vmem:[%s988] sm:$0xf]
      %v990 = vld [vmem:[%s988 + $0x4] sm:$0xf]
      %v991 = vld [vmem:[%s988 + $0x8] sm:$0xf]
      %v992 = vld [vmem:[%s988 + $0xc] sm:$0xf]
      %v993 = vld [vmem:[%s988 + $0x10] sm:$0xf]
      %v994 = vld [vmem:[%s988 + $0x14] sm:$0xf]
      %v995 = vld [vmem:[%s988 + $0x18] sm:$0xf]
      %v996 = vld [vmem:[%s988 + $0x1c] sm:$0xf]
      %v997 = vld [vmem:[%s988 + $0x20] sm:$0xf]
      %v998 = vld [vmem:[%s988 + $0x24] sm:$0xf]
      %v999 = vld [vmem:[%s988 + $0x28] sm:$0xf]
      %v1000 = vld [vmem:[%s988 + $0x2c] sm:$0xf]
      %v1001 = vld [vmem:[%s988 + $0x30] sm:$0xf]
      %v1002 = vld [vmem:[%s988 + $0x34] sm:$0xf]
      %v1003 = vld [vmem:[%s988 + $0x38] sm:$0xf]
      %v1004 = vld [vmem:[%s988 + $0x3c] sm:$0xf]
      %s1005 = scalar_lea.vmem %s5, 4
      %v1006 = vld [vmem:[%s1005] sm:$0x1]
      %v1007 = vld [vmem:[%s1005 + $0x1] sm:$0x1]
      %v1008 = vld [vmem:[%s1005 + $0x2] sm:$0x1]
      %v1009 = vld [vmem:[%s1005 + $0x3] sm:$0x1]
      %v1014 = vlaneseq
      %v1015 = vshrl.u32 %v1014, 7
      %v1016 = vsub.s32 0, %v1015
      %v1017 = vrot.slane %v1006, %v1016
      %v1018 = vlaneseq
      %v1019 = vshrl.u32 %v1018, 7
      %v1020 = vsub.s32 0, %v1019
      %v1021 = vrot.slane %v1007, %v1020
      %v1022 = vlaneseq
      %v1023 = vshrl.u32 %v1022, 7
      %v1024 = vsub.s32 0, %v1023
      %v1025 = vrot.slane %v1008, %v1024
      %v1026 = vlaneseq
      %v1027 = vshrl.u32 %v1026, 7
      %v1028 = vsub.s32 0, %v1027
      %v1029 = vrot.slane %v1009, %v1028
      %v1038 = vunpack.c.l.b16 %v989
      %v1039 = vunpack.c.l.b16 %v990
      %v1040 = vunpack.c.l.b16 %v991
      %v1041 = vunpack.c.l.b16 %v992
      %v1042 = vpack.c.b16 %v1039, %v1038
      %v1043 = vpack.c.b16 %v1041, %v1040
      %1046 = vmatprep.subr.bf16.mxu0 0
      %1047 = vmatpush1.bf16.msra.mxu0 %v1042
      %1048 = vmatprep.subr.bf16.mxu0 0
      %1049 = vmatpush1.bf16.msra.mxu0 %v1043
      %1050 = vmatprep.subr.bf16.mxu0 0
      %1051 = vmatpush1.bf16.msra.mxu0 0
      %1052 = vmatprep.subr.bf16.mxu0 0
      %1053 = vmatpush1.bf16.msra.mxu0 0
      %1054 = vmatprep.subr.bf16.mxu0 0
      %1055 = vmatpush1.bf16.msra.mxu0 0
      %1056 = vmatprep.subr.bf16.mxu0 0
      %1057 = vmatpush1.bf16.msra.mxu0 0
      %1058 = vmatprep.subr.bf16.mxu0 0
      %1059 = vmatpush1.bf16.msra.mxu0 0
      %1060 = vmatprep.subr.bf16.mxu0 0
      %1061 = vmatpush1.bf16.msra.mxu0 0
      %1062 = vmatprep.subr.bf16.mxu0 0
      %1063 = vmatpush1.bf16.msra.mxu0 0
      %1064 = vmatprep.subr.bf16.mxu0 0
      %1065 = vmatpush1.bf16.msra.mxu0 0
      %1066 = vmatprep.subr.bf16.mxu0 0
      %1067 = vmatpush1.bf16.msra.mxu0 0
      %1068 = vmatprep.subr.bf16.mxu0 0
      %1069 = vmatpush1.bf16.msra.mxu0 0
      %1070 = vmatprep.subr.bf16.mxu0 0
      %1071 = vmatpush1.bf16.msra.mxu0 0
      %1072 = vmatprep.subr.bf16.mxu0 0
      %1073 = vmatpush1.bf16.msra.mxu0 0
      %1074 = vmatprep.subr.bf16.mxu0 0
      %1075 = vmatpush1.bf16.msra.mxu0 0
      %1076 = vmatprep.subr.bf16.mxu0 0
      %1077 = vmatpush1.bf16.msra.mxu0 0
      %1078 = vmatprep.mubr.bf16.mxu0 0
      %1079 = vmatmul.mubr.bf16.gmra.mrb[0].mxu0 %v790
      %v1080 = vpop.f32.mrb[0].mxu0
      %v1081 = vadd.f32 %v1017, %v1080
      %v1082 = vpop.f32.mrb[0].mxu0
      %v1083 = vpop.f32.mrb[0].mxu0
      %v1084 = vpop.f32.mrb[0].mxu0
      %1085 = vdwg.mxu0
      %v1090 = vunpack.c.l.b16 %v993
      %v1091 = vunpack.c.l.b16 %v994
      %v1092 = vunpack.c.l.b16 %v995
      %v1093 = vunpack.c.l.b16 %v996
      %v1094 = vpack.c.b16 %v1091, %v1090
      %v1095 = vpack.c.b16 %v1093, %v1092
      %1098 = vmatprep.subr.bf16.mxu0 0
      %1099 = vmatpush1.bf16.msra.mxu0 %v1094
      %1100 = vmatprep.subr.bf16.mxu0 0
      %1101 = vmatpush1.bf16.msra.mxu0 %v1095
      %1102 = vmatprep.subr.bf16.mxu0 0
      %1103 = vmatpush1.bf16.msra.mxu0 0
      %1104 = vmatprep.subr.bf16.mxu0 0
      %1105 = vmatpush1.bf16.msra.mxu0 0
      %1106 = vmatprep.subr.bf16.mxu0 0
      %1107 = vmatpush1.bf16.msra.mxu0 0
      %1108 = vmatprep.subr.bf16.mxu0 0
      %1109 = vmatpush1.bf16.msra.mxu0 0
      %1110 = vmatprep.subr.bf16.mxu0 0
      %1111 = vmatpush1.bf16.msra.mxu0 0
      %1112 = vmatprep.subr.bf16.mxu0 0
      %1113 = vmatpush1.bf16.msra.mxu0 0
      %1114 = vmatprep.subr.bf16.mxu0 0
      %1115 = vmatpush1.bf16.msra.mxu0 0
      %1116 = vmatprep.subr.bf16.mxu0 0
      %1117 = vmatpush1.bf16.msra.mxu0 0
      %1118 = vmatprep.subr.bf16.mxu0 0
      %1119 = vmatpush1.bf16.msra.mxu0 0
      %1120 = vmatprep.subr.bf16.mxu0 0
      %1121 = vmatpush1.bf16.msra.mxu0 0
      %1122 = vmatprep.subr.bf16.mxu0 0
      %1123 = vmatpush1.bf16.msra.mxu0 0
      %1124 = vmatprep.subr.bf16.mxu0 0
      %1125 = vmatpush1.bf16.msra.mxu0 0
      %1126 = vmatprep.subr.bf16.mxu0 0
      %1127 = vmatpush1.bf16.msra.mxu0 0
      %1128 = vmatprep.subr.bf16.mxu0 0
      %1129 = vmatpush1.bf16.msra.mxu0 0
      %1130 = vmatprep.mubr.bf16.mxu0 0
      %1131 = vmatmul.mubr.bf16.gmra.mrb[0].mxu0 %v790
      %v1132 = vpop.f32.mrb[0].mxu0
      %v1133 = vadd.f32 %v1021, %v1132
      %v1134 = vpop.f32.mrb[0].mxu0
      %v1135 = vpop.f32.mrb[0].mxu0
      %v1136 = vpop.f32.mrb[0].mxu0
      %1137 = vdwg.mxu0
      %v1142 = vunpack.c.l.b16 %v997
      %v1143 = vunpack.c.l.b16 %v998
      %v1144 = vunpack.c.l.b16 %v999
      %v1145 = vunpack.c.l.b16 %v1000
      %v1146 = vpack.c.b16 %v1143, %v1142
      %v1147 = vpack.c.b16 %v1145, %v1144
      %1150 = vmatprep.subr.bf16.mxu0 0
      %1151 = vmatpush1.bf16.msra.mxu0 %v1146
      %1152 = vmatprep.subr.bf16.mxu0 0
      %1153 = vmatpush1.bf16.msra.mxu0 %v1147
      %1154 = vmatprep.subr.bf16.mxu0 0
      %1155 = vmatpush1.bf16.msra.mxu0 0
      %1156 = vmatprep.subr.bf16.mxu0 0
      %1157 = vmatpush1.bf16.msra.mxu0 0
      %1158 = vmatprep.subr.bf16.mxu0 0
      %1159 = vmatpush1.bf16.msra.mxu0 0
      %1160 = vmatprep.subr.bf16.mxu0 0
      %1161 = vmatpush1.bf16.msra.mxu0 0
      %1162 = vmatprep.subr.bf16.mxu0 0
      %1163 = vmatpush1.bf16.msra.mxu0 0
      %1164 = vmatprep.subr.bf16.mxu0 0
      %1165 = vmatpush1.bf16.msra.mxu0 0
      %1166 = vmatprep.subr.bf16.mxu0 0
      %1167 = vmatpush1.bf16.msra.mxu0 0
      %1168 = vmatprep.subr.bf16.mxu0 0
      %1169 = vmatpush1.bf16.msra.mxu0 0
      %1170 = vmatprep.subr.bf16.mxu0 0
      %1171 = vmatpush1.bf16.msra.mxu0 0
      %1172 = vmatprep.subr.bf16.mxu0 0
      %1173 = vmatpush1.bf16.msra.mxu0 0
      %1174 = vmatprep.subr.bf16.mxu0 0
      %1175 = vmatpush1.bf16.msra.mxu0 0
      %1176 = vmatprep.subr.bf16.mxu0 0
      %1177 = vmatpush1.bf16.msra.mxu0 0
      %1178 = vmatprep.subr.bf16.mxu0 0
      %1179 = vmatpush1.bf16.msra.mxu0 0
      %1180 = vmatprep.subr.bf16.mxu0 0
      %1181 = vmatpush1.bf16.msra.mxu0 0
      %1182 = vmatprep.mubr.bf16.mxu0 0
      %1183 = vmatmul.mubr.bf16.gmra.mrb[0].mxu0 %v790
      %v1184 = vpop.f32.mrb[0].mxu0
      %v1185 = vadd.f32 %v1025, %v1184
      %v1186 = vpop.f32.mrb[0].mxu0
      %v1187 = vpop.f32.mrb[0].mxu0
      %v1188 = vpop.f32.mrb[0].mxu0
      %1189 = vdwg.mxu0
      %v1194 = vunpack.c.l.b16 %v1001
      %v1195 = vunpack.c.l.b16 %v1002
      %v1196 = vunpack.c.l.b16 %v1003
      %v1197 = vunpack.c.l.b16 %v1004
      %v1198 = vpack.c.b16 %v1195, %v1194
      %v1199 = vpack.c.b16 %v1197, %v1196
      %1202 = vmatprep.subr.bf16.mxu0 0
      %1203 = vmatpush1.bf16.msra.mxu0 %v1198
      %1204 = vmatprep.subr.bf16.mxu0 0
      %1205 = vmatpush1.bf16.msra.mxu0 %v1199
      %1206 = vmatprep.subr.bf16.mxu0 0
      %1207 = vmatpush1.bf16.msra.mxu0 0
      %1208 = vmatprep.subr.bf16.mxu0 0
      %1209 = vmatpush1.bf16.msra.mxu0 0
      %1210 = vmatprep.subr.bf16.mxu0 0
      %1211 = vmatpush1.bf16.msra.mxu0 0
      %1212 = vmatprep.subr.bf16.mxu0 0
      %1213 = vmatpush1.bf16.msra.mxu0 0
      %1214 = vmatprep.subr.bf16.mxu0 0
      %1215 = vmatpush1.bf16.msra.mxu0 0
      %1216 = vmatprep.subr.bf16.mxu0 0
      %1217 = vmatpush1.bf16.msra.mxu0 0
      %1218 = vmatprep.subr.bf16.mxu0 0
      %1219 = vmatpush1.bf16.msra.mxu0 0
      %1220 = vmatprep.subr.bf16.mxu0 0
      %1221 = vmatpush1.bf16.msra.mxu0 0
      %1222 = vmatprep.subr.bf16.mxu0 0
      %1223 = vmatpush1.bf16.msra.mxu0 0
      %1224 = vmatprep.subr.bf16.mxu0 0
      %1225 = vmatpush1.bf16.msra.mxu0 0
      %1226 = vmatprep.subr.bf16.mxu0 0
      %1227 = vmatpush1.bf16.msra.mxu0 0
      %1228 = vmatprep.subr.bf16.mxu0 0
      %1229 = vmatpush1.bf16.msra.mxu0 0
      %1230 = vmatprep.subr.bf16.mxu0 0
      %1231 = vmatpush1.bf16.msra.mxu0 0
      %1232 = vmatprep.subr.bf16.mxu0 0
      %1233 = vmatpush1.bf16.msra.mxu0 0
      %1234 = vmatprep.mubr.bf16.mxu0 0
      %1235 = vmatmul.mubr.bf16.gmra.mrb[0].mxu0 %v790
      %v1236 = vpop.f32.mrb[0].mxu0
      %v1237 = vadd.f32 %v1029, %v1236
      %v1238 = vpop.f32.mrb[0].mxu0
      %v1239 = vpop.f32.mrb[0].mxu0
      %v1240 = vpop.f32.mrb[0].mxu0
      %1241 = vdwg.mxu0
      %s1242 = scalar_lea.vmem %s4, 128
      %v1243 = vld [vmem:[%s1242] sm:$0xf]
      %v1244 = vld [vmem:[%s1242 + $0x4] sm:$0xf]
      %v1245 = vld [vmem:[%s1242 + $0x8] sm:$0xf]
      %v1246 = vld [vmem:[%s1242 + $0xc] sm:$0xf]
      %v1247 = vld [vmem:[%s1242 + $0x10] sm:$0xf]
      %v1248 = vld [vmem:[%s1242 + $0x14] sm:$0xf]
      %v1249 = vld [vmem:[%s1242 + $0x18] sm:$0xf]
      %v1250 = vld [vmem:[%s1242 + $0x1c] sm:$0xf]
      %v1251 = vld [vmem:[%s1242 + $0x20] sm:$0xf]
      %v1252 = vld [vmem:[%s1242 + $0x24] sm:$0xf]
      %v1253 = vld [vmem:[%s1242 + $0x28] sm:$0xf]
      %v1254 = vld [vmem:[%s1242 + $0x2c] sm:$0xf]
      %v1255 = vld [vmem:[%s1242 + $0x30] sm:$0xf]
      %v1256 = vld [vmem:[%s1242 + $0x34] sm:$0xf]
      %v1257 = vld [vmem:[%s1242 + $0x38] sm:$0xf]
      %v1258 = vld [vmem:[%s1242 + $0x3c] sm:$0xf]
      %s1259 = scalar_lea.vmem %s5, 8
      %v1260 = vld [vmem:[%s1259] sm:$0x1]
      %v1261 = vld [vmem:[%s1259 + $0x1] sm:$0x1]
      %v1262 = vld [vmem:[%s1259 + $0x2] sm:$0x1]
      %v1263 = vld [vmem:[%s1259 + $0x3] sm:$0x1]
      %v1268 = vlaneseq
      %v1269 = vshrl.u32 %v1268, 7
      %v1270 = vsub.s32 0, %v1269
      %v1271 = vrot.slane %v1260, %v1270
      %v1272 = vlaneseq
      %v1273 = vshrl.u32 %v1272, 7
      %v1274 = vsub.s32 0, %v1273
      %v1275 = vrot.slane %v1261, %v1274
      %v1276 = vlaneseq
      %v1277 = vshrl.u32 %v1276, 7
      %v1278 = vsub.s32 0, %v1277
      %v1279 = vrot.slane %v1262, %v1278
      %v1280 = vlaneseq
      %v1281 = vshrl.u32 %v1280, 7
      %v1282 = vsub.s32 0, %v1281
      %v1283 = vrot.slane %v1263, %v1282
      %v1292 = vunpack.c.l.b16 %v1243
      %v1293 = vunpack.c.l.b16 %v1244
      %v1294 = vunpack.c.l.b16 %v1245
      %v1295 = vunpack.c.l.b16 %v1246
      %v1296 = vpack.c.b16 %v1293, %v1292
      %v1297 = vpack.c.b16 %v1295, %v1294
      %1300 = vmatprep.subr.bf16.mxu0 0
      %1301 = vmatpush1.bf16.msra.mxu0 %v1296
      %1302 = vmatprep.subr.bf16.mxu0 0
      %1303 = vmatpush1.bf16.msra.mxu0 %v1297
      %1304 = vmatprep.subr.bf16.mxu0 0
      %1305 = vmatpush1.bf16.msra.mxu0 0
      %1306 = vmatprep.subr.bf16.mxu0 0
      %1307 = vmatpush1.bf16.msra.mxu0 0
      %1308 = vmatprep.subr.bf16.mxu0 0
      %1309 = vmatpush1.bf16.msra.mxu0 0
      %1310 = vmatprep.subr.bf16.mxu0 0
      %1311 = vmatpush1.bf16.msra.mxu0 0
      %1312 = vmatprep.subr.bf16.mxu0 0
      %1313 = vmatpush1.bf16.msra.mxu0 0
      %1314 = vmatprep.subr.bf16.mxu0 0
      %1315 = vmatpush1.bf16.msra.mxu0 0
      %1316 = vmatprep.subr.bf16.mxu0 0
      %1317 = vmatpush1.bf16.msra.mxu0 0
      %1318 = vmatprep.subr.bf16.mxu0 0
      %1319 = vmatpush1.bf16.msra.mxu0 0
      %1320 = vmatprep.subr.bf16.mxu0 0
      %1321 = vmatpush1.bf16.msra.mxu0 0
      %1322 = vmatprep.subr.bf16.mxu0 0
      %1323 = vmatpush1.bf16.msra.mxu0 0
      %1324 = vmatprep.subr.bf16.mxu0 0
      %1325 = vmatpush1.bf16.msra.mxu0 0
      %1326 = vmatprep.subr.bf16.mxu0 0
      %1327 = vmatpush1.bf16.msra.mxu0 0
      %1328 = vmatprep.subr.bf16.mxu0 0
      %1329 = vmatpush1.bf16.msra.mxu0 0
      %1330 = vmatprep.subr.bf16.mxu0 0
      %1331 = vmatpush1.bf16.msra.mxu0 0
      %1332 = vmatprep.mubr.bf16.mxu0 0
      %1333 = vmatmul.mubr.bf16.gmra.mrb[0].mxu0 %v790
      %v1334 = vpop.f32.mrb[0].mxu0
      %v1335 = vadd.f32 %v1271, %v1334
      %v1336 = vpop.f32.mrb[0].mxu0
      %v1337 = vpop.f32.mrb[0].mxu0
      %v1338 = vpop.f32.mrb[0].mxu0
      %1339 = vdwg.mxu0
      %v1344 = vunpack.c.l.b16 %v1247
      %v1345 = vunpack.c.l.b16 %v1248
      %v1346 = vunpack.c.l.b16 %v1249
      %v1347 = vunpack.c.l.b16 %v1250
      %v1348 = vpack.c.b16 %v1345, %v1344
      %v1349 = vpack.c.b16 %v1347, %v1346
      %1352 = vmatprep.subr.bf16.mxu0 0
      %1353 = vmatpush1.bf16.msra.mxu0 %v1348
      %1354 = vmatprep.subr.bf16.mxu0 0
      %1355 = vmatpush1.bf16.msra.mxu0 %v1349
      %1356 = vmatprep.subr.bf16.mxu0 0
      %1357 = vmatpush1.bf16.msra.mxu0 0
      %1358 = vmatprep.subr.bf16.mxu0 0
      %1359 = vmatpush1.bf16.msra.mxu0 0
      %1360 = vmatprep.subr.bf16.mxu0 0
      %1361 = vmatpush1.bf16.msra.mxu0 0
      %1362 = vmatprep.subr.bf16.mxu0 0
      %1363 = vmatpush1.bf16.msra.mxu0 0
      %1364 = vmatprep.subr.bf16.mxu0 0
      %1365 = vmatpush1.bf16.msra.mxu0 0
      %1366 = vmatprep.subr.bf16.mxu0 0
      %1367 = vmatpush1.bf16.msra.mxu0 0
      %1368 = vmatprep.subr.bf16.mxu0 0
      %1369 = vmatpush1.bf16.msra.mxu0 0
      %1370 = vmatprep.subr.bf16.mxu0 0
      %1371 = vmatpush1.bf16.msra.mxu0 0
      %1372 = vmatprep.subr.bf16.mxu0 0
      %1373 = vmatpush1.bf16.msra.mxu0 0
      %1374 = vmatprep.subr.bf16.mxu0 0
      %1375 = vmatpush1.bf16.msra.mxu0 0
      %1376 = vmatprep.subr.bf16.mxu0 0
      %1377 = vmatpush1.bf16.msra.mxu0 0
      %1378 = vmatprep.subr.bf16.mxu0 0
      %1379 = vmatpush1.bf16.msra.mxu0 0
      %1380 = vmatprep.subr.bf16.mxu0 0
      %1381 = vmatpush1.bf16.msra.mxu0 0
      %1382 = vmatprep.subr.bf16.mxu0 0
      %1383 = vmatpush1.bf16.msra.mxu0 0
      %1384 = vmatprep.mubr.bf16.mxu0 0
      %1385 = vmatmul.mubr.bf16.gmra.mrb[0].mxu0 %v790
      %v1386 = vpop.f32.mrb[0].mxu0
      %v1387 = vadd.f32 %v1275, %v1386
      %v1388 = vpop.f32.mrb[0].mxu0
      %v1389 = vpop.f32.mrb[0].mxu0
      %v1390 = vpop.f32.mrb[0].mxu0
      %1391 = vdwg.mxu0
      %v1396 = vunpack.c.l.b16 %v1251
      %v1397 = vunpack.c.l.b16 %v1252
      %v1398 = vunpack.c.l.b16 %v1253
      %v1399 = vunpack.c.l.b16 %v1254
      %v1400 = vpack.c.b16 %v1397, %v1396
      %v1401 = vpack.c.b16 %v1399, %v1398
      %1404 = vmatprep.subr.bf16.mxu0 0
      %1405 = vmatpush1.bf16.msra.mxu0 %v1400
      %1406 = vmatprep.subr.bf16.mxu0 0
      %1407 = vmatpush1.bf16.msra.mxu0 %v1401
      %1408 = vmatprep.subr.bf16.mxu0 0
      %1409 = vmatpush1.bf16.msra.mxu0 0
      %1410 = vmatprep.subr.bf16.mxu0 0
      %1411 = vmatpush1.bf16.msra.mxu0 0
      %1412 = vmatprep.subr.bf16.mxu0 0
      %1413 = vmatpush1.bf16.msra.mxu0 0
      %1414 = vmatprep.subr.bf16.mxu0 0
      %1415 = vmatpush1.bf16.msra.mxu0 0
      %1416 = vmatprep.subr.bf16.mxu0 0
      %1417 = vmatpush1.bf16.msra.mxu0 0
      %1418 = vmatprep.subr.bf16.mxu0 0
      %1419 = vmatpush1.bf16.msra.mxu0 0
      %1420 = vmatprep.subr.bf16.mxu0 0
      %1421 = vmatpush1.bf16.msra.mxu0 0
      %1422 = vmatprep.subr.bf16.mxu0 0
      %1423 = vmatpush1.bf16.msra.mxu0 0
      %1424 = vmatprep.subr.bf16.mxu0 0
      %1425 = vmatpush1.bf16.msra.mxu0 0
      %1426 = vmatprep.subr.bf16.mxu0 0
      %1427 = vmatpush1.bf16.msra.mxu0 0
      %1428 = vmatprep.subr.bf16.mxu0 0
      %1429 = vmatpush1.bf16.msra.mxu0 0
      %1430 = vmatprep.subr.bf16.mxu0 0
      %1431 = vmatpush1.bf16.msra.mxu0 0
      %1432 = vmatprep.subr.bf16.mxu0 0
      %1433 = vmatpush1.bf16.msra.mxu0 0
      %1434 = vmatprep.subr.bf16.mxu0 0
      %1435 = vmatpush1.bf16.msra.mxu0 0
      %1436 = vmatprep.mubr.bf16.mxu0 0
      %1437 = vmatmul.mubr.bf16.gmra.mrb[0].mxu0 %v790
      %v1438 = vpop.f32.mrb[0].mxu0
      %v1439 = vadd.f32 %v1279, %v1438
      %v1440 = vpop.f32.mrb[0].mxu0
      %v1441 = vpop.f32.mrb[0].mxu0
      %v1442 = vpop.f32.mrb[0].mxu0
      %1443 = vdwg.mxu0
      %v1448 = vunpack.c.l.b16 %v1255
      %v1449 = vunpack.c.l.b16 %v1256
      %v1450 = vunpack.c.l.b16 %v1257
      %v1451 = vunpack.c.l.b16 %v1258
      %v1452 = vpack.c.b16 %v1449, %v1448
      %v1453 = vpack.c.b16 %v1451, %v1450
      %1456 = vmatprep.subr.bf16.mxu0 0
      %1457 = vmatpush1.bf16.msra.mxu0 %v1452
      %1458 = vmatprep.subr.bf16.mxu0 0
      %1459 = vmatpush1.bf16.msra.mxu0 %v1453
      %1460 = vmatprep.subr.bf16.mxu0 0
      %1461 = vmatpush1.bf16.msra.mxu0 0
      %1462 = vmatprep.subr.bf16.mxu0 0
      %1463 = vmatpush1.bf16.msra.mxu0 0
      %1464 = vmatprep.subr.bf16.mxu0 0
      %1465 = vmatpush1.bf16.msra.mxu0 0
      %1466 = vmatprep.subr.bf16.mxu0 0
      %1467 = vmatpush1.bf16.msra.mxu0 0
      %1468 = vmatprep.subr.bf16.mxu0 0
      %1469 = vmatpush1.bf16.msra.mxu0 0
      %1470 = vmatprep.subr.bf16.mxu0 0
      %1471 = vmatpush1.bf16.msra.mxu0 0
      %1472 = vmatprep.subr.bf16.mxu0 0
      %1473 = vmatpush1.bf16.msra.mxu0 0
      %1474 = vmatprep.subr.bf16.mxu0 0
      %1475 = vmatpush1.bf16.msra.mxu0 0
      %1476 = vmatprep.subr.bf16.mxu0 0
      %1477 = vmatpush1.bf16.msra.mxu0 0
      %1478 = vmatprep.subr.bf16.mxu0 0
      %1479 = vmatpush1.bf16.msra.mxu0 0
      %1480 = vmatprep.subr.bf16.mxu0 0
      %1481 = vmatpush1.bf16.msra.mxu0 0
      %1482 = vmatprep.subr.bf16.mxu0 0
      %1483 = vmatpush1.bf16.msra.mxu0 0
      %1484 = vmatprep.subr.bf16.mxu0 0
      %1485 = vmatpush1.bf16.msra.mxu0 0
      %1486 = vmatprep.subr.bf16.mxu0 0
      %1487 = vmatpush1.bf16.msra.mxu0 0
      %1488 = vmatprep.mubr.bf16.mxu0 0
      %1489 = vmatmul.mubr.bf16.gmra.mrb[0].mxu0 %v790
      %v1490 = vpop.f32.mrb[0].mxu0
      %v1491 = vadd.f32 %v1283, %v1490
      %v1492 = vpop.f32.mrb[0].mxu0
      %v1493 = vpop.f32.mrb[0].mxu0
      %v1494 = vpop.f32.mrb[0].mxu0
      %1495 = vdwg.mxu0
      %v1496 = vpack.c.bf16 %v827, %v827
      %v1497 = vpack.c.bf16 %v879, %v879
      %v1498 = vpack.c.bf16 %v931, %v931
      %v1499 = vpack.c.bf16 %v983, %v983
      %v1500 = vpack.c.bf16 %v1081, %v1081
      %v1501 = vpack.c.bf16 %v1133, %v1133
      %v1502 = vpack.c.bf16 %v1185, %v1185
      %v1503 = vpack.c.bf16 %v1237, %v1237
      %vm1504 = vcmask 64512
      %v1506 = vsel %vm1504, %v1496, 0
      %v1509 = vsel %vm1504, %v1500, 0
      %1511 = vmatprep.subr.bf16.mxu0 0
      %1512 = vmatpush1.bf16.xpose.msra.mxu0 %v1509
      %1513 = vmatprep.subr.bf16.mxu0 0
      %1514 = vmatpush1.bf16.xpose.msra.mxu0 0
      %1515 = vmatprep.subr.bf16.mxu0 0
      %1516 = vmatpush1.bf16.xpose.msra.mxu0 0
      %1517 = vmatprep.subr.bf16.mxu0 0
      %1518 = vmatpush1.bf16.xpose.msra.mxu0 0
      %1519 = vmatprep.subr.bf16.mxu0 0
      %1520 = vmatpush1.bf16.xpose.msra.mxu0 0
      %1521 = vmatprep.subr.bf16.mxu0 0
      %1522 = vmatpush1.bf16.xpose.msra.mxu0 0
      %1523 = vmatprep.subr.bf16.mxu0 0
      %1524 = vmatpush1.bf16.xpose.msra.mxu0 0
      %1525 = vmatprep.subr.bf16.mxu0 0
      %1526 = vmatpush1.bf16.xpose.msra.mxu0 0
      %1527 = vmatprep.subr.bf16.mxu0 0
      %1528 = vmatpush1.bf16.xpose.msra.mxu0 0
      %1529 = vmatprep.subr.bf16.mxu0 0
      %1530 = vmatpush1.bf16.xpose.msra.mxu0 0
      %1531 = vmatprep.subr.bf16.mxu0 0
      %1532 = vmatpush1.bf16.xpose.msra.mxu0 0
      %1533 = vmatprep.subr.bf16.mxu0 0
      %1534 = vmatpush1.bf16.xpose.msra.mxu0 0
      %1535 = vmatprep.subr.bf16.mxu0 0
      %1536 = vmatpush1.bf16.xpose.msra.mxu0 0
      %1537 = vmatprep.subr.bf16.mxu0 0
      %1538 = vmatpush1.bf16.xpose.msra.mxu0 0
      %1539 = vmatprep.subr.bf16.mxu0 0
      %1540 = vmatpush1.bf16.xpose.msra.mxu0 0
      %1541 = vmatprep.subr.bf16.mxu0 0
      %1542 = vmatpush1.bf16.xpose.msra.mxu0 0
      %1543 = vmatprep.mubr.bf16.mxu0 0
      %1544 = vmatmul.mubr.bf16.gmra.mrb[0].mxu0 %v1506
      %v1545 = vpop.f32.mrb[0].mxu0
      %v1546 = vadd.f32 0.0, %v1545
      %v1547 = vpop.f32.mrb[0].mxu0
      %v1548 = vpop.f32.mrb[0].mxu0
      %v1549 = vpop.f32.mrb[0].mxu0
      %1550 = vdwg.mxu0
      %v1552 = vsel %vm1504, %v1497, 0
      %v1555 = vsel %vm1504, %v1501, 0
      %1557 = vmatprep.subr.bf16.mxu0 0
      %1558 = vmatpush1.bf16.xpose.msra.mxu0 %v1555
      %1559 = vmatprep.subr.bf16.mxu0 0
      %1560 = vmatpush1.bf16.xpose.msra.mxu0 0
      %1561 = vmatprep.subr.bf16.mxu0 0
      %1562 = vmatpush1.bf16.xpose.msra.mxu0 0
      %1563 = vmatprep.subr.bf16.mxu0 0
      %1564 = vmatpush1.bf16.xpose.msra.mxu0 0
      %1565 = vmatprep.subr.bf16.mxu0 0
      %1566 = vmatpush1.bf16.xpose.msra.mxu0 0
      %1567 = vmatprep.subr.bf16.mxu0 0
      %1568 = vmatpush1.bf16.xpose.msra.mxu0 0
      %1569 = vmatprep.subr.bf16.mxu0 0
      %1570 = vmatpush1.bf16.xpose.msra.mxu0 0
      %1571 = vmatprep.subr.bf16.mxu0 0
      %1572 = vmatpush1.bf16.xpose.msra.mxu0 0
      %1573 = vmatprep.subr.bf16.mxu0 0
      %1574 = vmatpush1.bf16.xpose.msra.mxu0 0
      %1575 = vmatprep.subr.bf16.mxu0 0
      %1576 = vmatpush1.bf16.xpose.msra.mxu0 0
      %1577 = vmatprep.subr.bf16.mxu0 0
      %1578 = vmatpush1.bf16.xpose.msra.mxu0 0
      %1579 = vmatprep.subr.bf16.mxu0 0
      %1580 = vmatpush1.bf16.xpose.msra.mxu0 0
      %1581 = vmatprep.subr.bf16.mxu0 0
      %1582 = vmatpush1.bf16.xpose.msra.mxu0 0
      %1583 = vmatprep.subr.bf16.mxu0 0
      %1584 = vmatpush1.bf16.xpose.msra.mxu0 0
      %1585 = vmatprep.subr.bf16.mxu0 0
      %1586 = vmatpush1.bf16.xpose.msra.mxu0 0
      %1587 = vmatprep.subr.bf16.mxu0 0
      %1588 = vmatpush1.bf16.xpose.msra.mxu0 0
      %1589 = vmatprep.mubr.bf16.mxu0 0
      %1590 = vmatmul.mubr.bf16.gmra.mrb[0].mxu0 %v1552
      %v1591 = vpop.f32.mrb[0].mxu0
      %v1592 = vadd.f32 0.0, %v1591
      %v1593 = vpop.f32.mrb[0].mxu0
      %v1594 = vpop.f32.mrb[0].mxu0
      %v1595 = vpop.f32.mrb[0].mxu0
      %1596 = vdwg.mxu0
      %v1598 = vsel %vm1504, %v1498, 0
      %v1601 = vsel %vm1504, %v1502, 0
      %1603 = vmatprep.subr.bf16.mxu0 0
      %1604 = vmatpush1.bf16.xpose.msra.mxu0 %v1601
      %1605 = vmatprep.subr.bf16.mxu0 0
      %1606 = vmatpush1.bf16.xpose.msra.mxu0 0
      %1607 = vmatprep.subr.bf16.mxu0 0
      %1608 = vmatpush1.bf16.xpose.msra.mxu0 0
      %1609 = vmatprep.subr.bf16.mxu0 0
      %1610 = vmatpush1.bf16.xpose.msra.mxu0 0
      %1611 = vmatprep.subr.bf16.mxu0 0
      %1612 = vmatpush1.bf16.xpose.msra.mxu0 0
      %1613 = vmatprep.subr.bf16.mxu0 0
      %1614 = vmatpush1.bf16.xpose.msra.mxu0 0
      %1615 = vmatprep.subr.bf16.mxu0 0
      %1616 = vmatpush1.bf16.xpose.msra.mxu0 0
      %1617 = vmatprep.subr.bf16.mxu0 0
      %1618 = vmatpush1.bf16.xpose.msra.mxu0 0
      %1619 = vmatprep.subr.bf16.mxu0 0
      %1620 = vmatpush1.bf16.xpose.msra.mxu0 0
      %1621 = vmatprep.subr.bf16.mxu0 0
      %1622 = vmatpush1.bf16.xpose.msra.mxu0 0
      %1623 = vmatprep.subr.bf16.mxu0 0
      %1624 = vmatpush1.bf16.xpose.msra.mxu0 0
      %1625 = vmatprep.subr.bf16.mxu0 0
      %1626 = vmatpush1.bf16.xpose.msra.mxu0 0
      %1627 = vmatprep.subr.bf16.mxu0 0
      %1628 = vmatpush1.bf16.xpose.msra.mxu0 0
      %1629 = vmatprep.subr.bf16.mxu0 0
      %1630 = vmatpush1.bf16.xpose.msra.mxu0 0
      %1631 = vmatprep.subr.bf16.mxu0 0
      %1632 = vmatpush1.bf16.xpose.msra.mxu0 0
      %1633 = vmatprep.subr.bf16.mxu0 0
      %1634 = vmatpush1.bf16.xpose.msra.mxu0 0
      %1635 = vmatprep.mubr.bf16.mxu0 0
      %1636 = vmatmul.mubr.bf16.gmra.mrb[0].mxu0 %v1598
      %v1637 = vpop.f32.mrb[0].mxu0
      %v1638 = vadd.f32 0.0, %v1637
      %v1639 = vpop.f32.mrb[0].mxu0
      %v1640 = vpop.f32.mrb[0].mxu0
      %v1641 = vpop.f32.mrb[0].mxu0
      %1642 = vdwg.mxu0
      %v1644 = vsel %vm1504, %v1499, 0
      %v1647 = vsel %vm1504, %v1503, 0
      %1649 = vmatprep.subr.bf16.mxu0 0
      %1650 = vmatpush1.bf16.xpose.msra.mxu0 %v1647
      %1651 = vmatprep.subr.bf16.mxu0 0
      %1652 = vmatpush1.bf16.xpose.msra.mxu0 0
      %1653 = vmatprep.subr.bf16.mxu0 0
      %1654 = vmatpush1.bf16.xpose.msra.mxu0 0
      %1655 = vmatprep.subr.bf16.mxu0 0
      %1656 = vmatpush1.bf16.xpose.msra.mxu0 0
      %1657 = vmatprep.subr.bf16.mxu0 0
      %1658 = vmatpush1.bf16.xpose.msra.mxu0 0
      %1659 = vmatprep.subr.bf16.mxu0 0
      %1660 = vmatpush1.bf16.xpose.msra.mxu0 0
      %1661 = vmatprep.subr.bf16.mxu0 0
      %1662 = vmatpush1.bf16.xpose.msra.mxu0 0
      %1663 = vmatprep.subr.bf16.mxu0 0
      %1664 = vmatpush1.bf16.xpose.msra.mxu0 0
      %1665 = vmatprep.subr.bf16.mxu0 0
      %1666 = vmatpush1.bf16.xpose.msra.mxu0 0
      %1667 = vmatprep.subr.bf16.mxu0 0
      %1668 = vmatpush1.bf16.xpose.msra.mxu0 0
      %1669 = vmatprep.subr.bf16.mxu0 0
      %1670 = vmatpush1.bf16.xpose.msra.mxu0 0
      %1671 = vmatprep.subr.bf16.mxu0 0
      %1672 = vmatpush1.bf16.xpose.msra.mxu0 0
      %1673 = vmatprep.subr.bf16.mxu0 0
      %1674 = vmatpush1.bf16.xpose.msra.mxu0 0
      %1675 = vmatprep.subr.bf16.mxu0 0
      %1676 = vmatpush1.bf16.xpose.msra.mxu0 0
      %1677 = vmatprep.subr.bf16.mxu0 0
      %1678 = vmatpush1.bf16.xpose.msra.mxu0 0
      %1679 = vmatprep.subr.bf16.mxu0 0
      %1680 = vmatpush1.bf16.xpose.msra.mxu0 0
      %1681 = vmatprep.mubr.bf16.mxu0 0
      %1682 = vmatmul.mubr.bf16.gmra.mrb[0].mxu0 %v1644
      %v1683 = vpop.f32.mrb[0].mxu0
      %v1684 = vadd.f32 0.0, %v1683
      %v1685 = vpop.f32.mrb[0].mxu0
      %v1686 = vpop.f32.mrb[0].mxu0
      %v1687 = vpop.f32.mrb[0].mxu0
      %1688 = vdwg.mxu0
      %v1689 = vmul.f32 %v1546, 0.35355338
      %v1690 = vmul.f32 %v1592, 0.35355338
      %v1691 = vmul.f32 %v1638, 0.35355338
      %v1692 = vmul.f32 %v1684, 0.35355338
      %vm1693 = vcmp.gt.f32.partialorder %v730, 0.5
      %v1694 = vsel %vm1693, 1, 0
      %1695 = vset.pattern.permute.xlu0 0
      %1696 = vperm.xlu0 %1695, %v1694
      %v1697 = vpop.permute.xlu0 %1696
      %vm1698 = vcmp.eq.s32.totalorder %v1697, 1
      %v1699 = vsel %vm1698, %v1689, -1e+09
      %v1700 = vsel %vm1698, %v1690, -1e+09
      %v1701 = vsel %vm1698, %v1691, -1e+09
      %v1702 = vsel %vm1698, %v1692, -1e+09
      %v1703 = vlaneseq
      %v1704 = vshrl.u32 %v1703, 7
      %v1705 = vlaneseq
      %v1706 = vand.u32 %v1705, 127
      %vm1707 = vcmp.ge.s32.totalorder %v1704, %v1706
      %v1708 = vsel %vm1707, 1, 0
      %vm1709 = vcmp.eq.s32.totalorder %v1708, 1
      %v1710 = vsel %vm1709, %v1699, -1e+09
      %v1711 = vsel %vm1709, %v1700, -1e+09
      %v1712 = vsel %vm1709, %v1701, -1e+09
      %v1713 = vsel %vm1709, %v1702, -1e+09
      %v1714 = vsel %vm1504, %v1710, -inf
      %1715 = vmax.xlane.f32.xlu0 %v1714
      %v1716 = vpop.xlane.xlu0 %1715
      %v1717 = vsel %vm1504, %v1711, -inf
      %1718 = vmax.xlane.f32.xlu0 %v1717
      %v1719 = vpop.xlane.xlu0 %1718
      %v1720 = vsel %vm1504, %v1712, -inf
      %1721 = vmax.xlane.f32.xlu0 %v1720
      %v1722 = vpop.xlane.xlu0 %1721
      %v1723 = vsel %vm1504, %v1713, -inf
      %1724 = vmax.xlane.f32.xlu0 %v1723
      %v1725 = vpop.xlane.xlu0 %1724
      %v1726 = vsub.f32 %v1710, %v1716
      %v1727 = vsub.f32 %v1711, %v1719
      %v1728 = vsub.f32 %v1712, %v1722
      %v1729 = vsub.f32 %v1713, %v1725
      %v1730 = vmul.f32 %v1726, 1.442695
      %v1731 = vpow.pop %v1730
      %v1732 = vmul.f32 %v1727, 1.442695
      %v1733 = vpow.pop %v1732
      %v1734 = vmul.f32 %v1728, 1.442695
      %v1735 = vpow.pop %v1734
      %v1736 = vmul.f32 %v1729, 1.442695
      %v1737 = vpow.pop %v1736
      %v1738 = vsel %vm1504, %v1731, 0.0
      %1739 = vadd.xlane.f32.xlu0 %v1738
      %v1740 = vpop.xlane.xlu0 %1739
      %v1741 = vsel %vm1504, %v1733, 0.0
      %1742 = vadd.xlane.f32.xlu0 %v1741
      %v1743 = vpop.xlane.xlu0 %1742
      %v1744 = vsel %vm1504, %v1735, 0.0
      %1745 = vadd.xlane.f32.xlu0 %v1744
      %v1746 = vpop.xlane.xlu0 %1745
      %v1747 = vsel %vm1504, %v1737, 0.0
      %1748 = vadd.xlane.f32.xlu0 %v1747
      %v1749 = vpop.xlane.xlu0 %1748
      %v1750 = vrcp.pop %v1740
      %v1751 = vrcp.pop %v1743
      %v1752 = vrcp.pop %v1746
      %v1753 = vrcp.pop %v1749
      %v1754 = vmul.f32 %v1731, %v1750
      %v1755 = vmul.f32 %v1733, %v1751
      %v1756 = vmul.f32 %v1735, %v1752
      %v1757 = vmul.f32 %v1737, %v1753
      %v1758 = vpack.c.bf16 %v1754, %v1754
      %v1759 = vpack.c.bf16 %v1755, %v1755
      %v1760 = vpack.c.bf16 %v1756, %v1756
      %v1761 = vpack.c.bf16 %v1757, %v1757
      %v1762 = vpack.c.bf16 %v1335, %v1335
      %v1763 = vpack.c.bf16 %v1387, %v1387
      %v1764 = vpack.c.bf16 %v1439, %v1439
      %v1765 = vpack.c.bf16 %v1491, %v1491
      %v1767 = vsel %vm1504, %v1758, 0
      %vm1769 = vcmask 1043456
      %v1771 = vsel %vm1769, %v1762, 0
      %1773 = vmatprep.subr.bf16.mxu0 0
      %1774 = vmatpush1.bf16.msra.mxu0 %v1771
      %1775 = vmatprep.subr.bf16.mxu0 0
      %1776 = vmatpush1.bf16.msra.mxu0 0
      %1777 = vmatprep.subr.bf16.mxu0 0
      %1778 = vmatpush1.bf16.msra.mxu0 0
      %1779 = vmatprep.subr.bf16.mxu0 0
      %1780 = vmatpush1.bf16.msra.mxu0 0
      %1781 = vmatprep.subr.bf16.mxu0 0
      %1782 = vmatpush1.bf16.msra.mxu0 0
      %1783 = vmatprep.subr.bf16.mxu0 0
      %1784 = vmatpush1.bf16.msra.mxu0 0
      %1785 = vmatprep.subr.bf16.mxu0 0
      %1786 = vmatpush1.bf16.msra.mxu0 0
      %1787 = vmatprep.subr.bf16.mxu0 0
      %1788 = vmatpush1.bf16.msra.mxu0 0
      %1789 = vmatprep.subr.bf16.mxu0 0
      %1790 = vmatpush1.bf16.msra.mxu0 0
      %1791 = vmatprep.subr.bf16.mxu0 0
      %1792 = vmatpush1.bf16.msra.mxu0 0
      %1793 = vmatprep.subr.bf16.mxu0 0
      %1794 = vmatpush1.bf16.msra.mxu0 0
      %1795 = vmatprep.subr.bf16.mxu0 0
      %1796 = vmatpush1.bf16.msra.mxu0 0
      %1797 = vmatprep.subr.bf16.mxu0 0
      %1798 = vmatpush1.bf16.msra.mxu0 0
      %1799 = vmatprep.subr.bf16.mxu0 0
      %1800 = vmatpush1.bf16.msra.mxu0 0
      %1801 = vmatprep.subr.bf16.mxu0 0
      %1802 = vmatpush1.bf16.msra.mxu0 0
      %1803 = vmatprep.subr.bf16.mxu0 0
      %1804 = vmatpush1.bf16.msra.mxu0 0
      %1805 = vmatprep.mubr.bf16.mxu0 0
      %1806 = vmatmul.mubr.bf16.gmra.mrb[0].mxu0 %v1767
      %v1807 = vpop.f32.mrb[0].mxu0
      %v1808 = vadd.f32 0.0, %v1807
      %v1809 = vpop.f32.mrb[0].mxu0
      %v1810 = vpop.f32.mrb[0].mxu0
      %v1811 = vpop.f32.mrb[0].mxu0
      %1812 = vdwg.mxu0
      %v1814 = vsel %vm1504, %v1759, 0
      %v1817 = vsel %vm1769, %v1763, 0
      %1819 = vmatprep.subr.bf16.mxu0 0
      %1820 = vmatpush1.bf16.msra.mxu0 %v1817
      %1821 = vmatprep.subr.bf16.mxu0 0
      %1822 = vmatpush1.bf16.msra.mxu0 0
      %1823 = vmatprep.subr.bf16.mxu0 0
      %1824 = vmatpush1.bf16.msra.mxu0 0
      %1825 = vmatprep.subr.bf16.mxu0 0
      %1826 = vmatpush1.bf16.msra.mxu0 0
      %1827 = vmatprep.subr.bf16.mxu0 0
      %1828 = vmatpush1.bf16.msra.mxu0 0
      %1829 = vmatprep.subr.bf16.mxu0 0
      %1830 = vmatpush1.bf16.msra.mxu0 0
      %1831 = vmatprep.subr.bf16.mxu0 0
      %1832 = vmatpush1.bf16.msra.mxu0 0
      %1833 = vmatprep.subr.bf16.mxu0 0
      %1834 = vmatpush1.bf16.msra.mxu0 0
      %1835 = vmatprep.subr.bf16.mxu0 0
      %1836 = vmatpush1.bf16.msra.mxu0 0
      %1837 = vmatprep.subr.bf16.mxu0 0
      %1838 = vmatpush1.bf16.msra.mxu0 0
      %1839 = vmatprep.subr.bf16.mxu0 0
      %1840 = vmatpush1.bf16.msra.mxu0 0
      %1841 = vmatprep.subr.bf16.mxu0 0
      %1842 = vmatpush1.bf16.msra.mxu0 0
      %1843 = vmatprep.subr.bf16.mxu0 0
      %1844 = vmatpush1.bf16.msra.mxu0 0
      %1845 = vmatprep.subr.bf16.mxu0 0
      %1846 = vmatpush1.bf16.msra.mxu0 0
      %1847 = vmatprep.subr.bf16.mxu0 0
      %1848 = vmatpush1.bf16.msra.mxu0 0
      %1849 = vmatprep.subr.bf16.mxu0 0
      %1850 = vmatpush1.bf16.msra.mxu0 0
      %1851 = vmatprep.mubr.bf16.mxu0 0
      %1852 = vmatmul.mubr.bf16.gmra.mrb[0].mxu0 %v1814
      %v1853 = vpop.f32.mrb[0].mxu0
      %v1854 = vadd.f32 0.0, %v1853
      %v1855 = vpop.f32.mrb[0].mxu0
      %v1856 = vpop.f32.mrb[0].mxu0
      %v1857 = vpop.f32.mrb[0].mxu0
      %1858 = vdwg.mxu0
      %v1860 = vsel %vm1504, %v1760, 0
      %v1863 = vsel %vm1769, %v1764, 0
      %1865 = vmatprep.subr.bf16.mxu0 0
      %1866 = vmatpush1.bf16.msra.mxu0 %v1863
      %1867 = vmatprep.subr.bf16.mxu0 0
      %1868 = vmatpush1.bf16.msra.mxu0 0
      %1869 = vmatprep.subr.bf16.mxu0 0
      %1870 = vmatpush1.bf16.msra.mxu0 0
      %1871 = vmatprep.subr.bf16.mxu0 0
      %1872 = vmatpush1.bf16.msra.mxu0 0
      %1873 = vmatprep.subr.bf16.mxu0 0
      %1874 = vmatpush1.bf16.msra.mxu0 0
      %1875 = vmatprep.subr.bf16.mxu0 0
      %1876 = vmatpush1.bf16.msra.mxu0 0
      %1877 = vmatprep.subr.bf16.mxu0 0
      %1878 = vmatpush1.bf16.msra.mxu0 0
      %1879 = vmatprep.subr.bf16.mxu0 0
      %1880 = vmatpush1.bf16.msra.mxu0 0
      %1881 = vmatprep.subr.bf16.mxu0 0
      %1882 = vmatpush1.bf16.msra.mxu0 0
      %1883 = vmatprep.subr.bf16.mxu0 0
      %1884 = vmatpush1.bf16.msra.mxu0 0
      %1885 = vmatprep.subr.bf16.mxu0 0
      %1886 = vmatpush1.bf16.msra.mxu0 0
      %1887 = vmatprep.subr.bf16.mxu0 0
      %1888 = vmatpush1.bf16.msra.mxu0 0
      %1889 = vmatprep.subr.bf16.mxu0 0
      %1890 = vmatpush1.bf16.msra.mxu0 0
      %1891 = vmatprep.subr.bf16.mxu0 0
      %1892 = vmatpush1.bf16.msra.mxu0 0
      %1893 = vmatprep.subr.bf16.mxu0 0
      %1894 = vmatpush1.bf16.msra.mxu0 0
      %1895 = vmatprep.subr.bf16.mxu0 0
      %1896 = vmatpush1.bf16.msra.mxu0 0
      %1897 = vmatprep.mubr.bf16.mxu0 0
      %1898 = vmatmul.mubr.bf16.gmra.mrb[0].mxu0 %v1860
      %v1899 = vpop.f32.mrb[0].mxu0
      %v1900 = vadd.f32 0.0, %v1899
      %v1901 = vpop.f32.mrb[0].mxu0
      %v1902 = vpop.f32.mrb[0].mxu0
      %v1903 = vpop.f32.mrb[0].mxu0
      %1904 = vdwg.mxu0
      %v1906 = vsel %vm1504, %v1761, 0
      %v1909 = vsel %vm1769, %v1765, 0
      %1911 = vmatprep.subr.bf16.mxu0 0
      %1912 = vmatpush1.bf16.msra.mxu0 %v1909
      %1913 = vmatprep.subr.bf16.mxu0 0
      %1914 = vmatpush1.bf16.msra.mxu0 0
      %1915 = vmatprep.subr.bf16.mxu0 0
      %1916 = vmatpush1.bf16.msra.mxu0 0
      %1917 = vmatprep.subr.bf16.mxu0 0
      %1918 = vmatpush1.bf16.msra.mxu0 0
      %1919 = vmatprep.subr.bf16.mxu0 0
      %1920 = vmatpush1.bf16.msra.mxu0 0
      %1921 = vmatprep.subr.bf16.mxu0 0
      %1922 = vmatpush1.bf16.msra.mxu0 0
      %1923 = vmatprep.subr.bf16.mxu0 0
      %1924 = vmatpush1.bf16.msra.mxu0 0
      %1925 = vmatprep.subr.bf16.mxu0 0
      %1926 = vmatpush1.bf16.msra.mxu0 0
      %1927 = vmatprep.subr.bf16.mxu0 0
      %1928 = vmatpush1.bf16.msra.mxu0 0
      %1929 = vmatprep.subr.bf16.mxu0 0
      %1930 = vmatpush1.bf16.msra.mxu0 0
      %1931 = vmatprep.subr.bf16.mxu0 0
      %1932 = vmatpush1.bf16.msra.mxu0 0
      %1933 = vmatprep.subr.bf16.mxu0 0
      %1934 = vmatpush1.bf16.msra.mxu0 0
      %1935 = vmatprep.subr.bf16.mxu0 0
      %1936 = vmatpush1.bf16.msra.mxu0 0
      %1937 = vmatprep.subr.bf16.mxu0 0
      %1938 = vmatpush1.bf16.msra.mxu0 0
      %1939 = vmatprep.subr.bf16.mxu0 0
      %1940 = vmatpush1.bf16.msra.mxu0 0
      %1941 = vmatprep.subr.bf16.mxu0 0
      %1942 = vmatpush1.bf16.msra.mxu0 0
      %1943 = vmatprep.mubr.bf16.mxu0 0
      %1944 = vmatmul.mubr.bf16.gmra.mrb[0].mxu0 %v1906
      %v1945 = vpop.f32.mrb[0].mxu0
      %v1946 = vadd.f32 0.0, %v1945
      %v1947 = vpop.f32.mrb[0].mxu0
      %v1948 = vpop.f32.mrb[0].mxu0
      %v1949 = vpop.f32.mrb[0].mxu0
      %1950 = vdwg.mxu0
      %v1951 = vpack.c.bf16 %v1808, %v1808
      %v1952 = vpack.c.bf16 %v1854, %v1854
      %v1953 = vpack.c.bf16 %v1900, %v1900
      %v1954 = vpack.c.bf16 %v1946, %v1946
      %v1955 = vld [vmem:[%s6] sm:$0xf]
      %v1956 = vld [vmem:[%s6 + $0x4] sm:$0xf]
      %v1957 = vld [vmem:[%s6 + $0x8] sm:$0xf]
      %v1958 = vld [vmem:[%s6 + $0xc] sm:$0xf]
      %v1960 = vsel %vm1504, %v1951, 0
      %v1963 = vsel %vm1769, %v1955, 0
      %1965 = vmatprep.subr.bf16.mxu0 0
      %1966 = vmatpush1.bf16.msra.mxu0 %v1963
      %1967 = vmatprep.subr.bf16.mxu0 0
      %1968 = vmatpush1.bf16.msra.mxu0 0
      %1969 = vmatprep.subr.bf16.mxu0 0
      %1970 = vmatpush1.bf16.msra.mxu0 0
      %1971 = vmatprep.subr.bf16.mxu0 0
      %1972 = vmatpush1.bf16.msra.mxu0 0
      %1973 = vmatprep.subr.bf16.mxu0 0
      %1974 = vmatpush1.bf16.msra.mxu0 0
      %1975 = vmatprep.subr.bf16.mxu0 0
      %1976 = vmatpush1.bf16.msra.mxu0 0
      %1977 = vmatprep.subr.bf16.mxu0 0
      %1978 = vmatpush1.bf16.msra.mxu0 0
      %1979 = vmatprep.subr.bf16.mxu0 0
      %1980 = vmatpush1.bf16.msra.mxu0 0
      %1981 = vmatprep.subr.bf16.mxu0 0
      %1982 = vmatpush1.bf16.msra.mxu0 0
      %1983 = vmatprep.subr.bf16.mxu0 0
      %1984 = vmatpush1.bf16.msra.mxu0 0
      %1985 = vmatprep.subr.bf16.mxu0 0
      %1986 = vmatpush1.bf16.msra.mxu0 0
      %1987 = vmatprep.subr.bf16.mxu0 0
      %1988 = vmatpush1.bf16.msra.mxu0 0
      %1989 = vmatprep.subr.bf16.mxu0 0
      %1990 = vmatpush1.bf16.msra.mxu0 0
      %1991 = vmatprep.subr.bf16.mxu0 0
      %1992 = vmatpush1.bf16.msra.mxu0 0
      %1993 = vmatprep.subr.bf16.mxu0 0
      %1994 = vmatpush1.bf16.msra.mxu0 0
      %1995 = vmatprep.subr.bf16.mxu0 0
      %1996 = vmatpush1.bf16.msra.mxu0 0
      %1997 = vmatprep.mubr.bf16.mxu0 0
      %1998 = vmatmul.mubr.bf16.gmra.mrb[0].mxu0 %v1960
      %v1999 = vpop.f32.mrb[0].mxu0
      %v2000 = vadd.f32 0.0, %v1999
      %v2001 = vpop.f32.mrb[0].mxu0
      %v2002 = vpop.f32.mrb[0].mxu0
      %v2003 = vpop.f32.mrb[0].mxu0
      %2004 = vdwg.mxu0
      %v2006 = vsel %vm1504, %v1952, 0
      %v2009 = vsel %vm1769, %v1956, 0
      %2011 = vmatprep.subr.bf16.mxu0 0
      %2012 = vmatpush1.bf16.msra.mxu0 %v2009
      %2013 = vmatprep.subr.bf16.mxu0 0
      %2014 = vmatpush1.bf16.msra.mxu0 0
      %2015 = vmatprep.subr.bf16.mxu0 0
      %2016 = vmatpush1.bf16.msra.mxu0 0
      %2017 = vmatprep.subr.bf16.mxu0 0
      %2018 = vmatpush1.bf16.msra.mxu0 0
      %2019 = vmatprep.subr.bf16.mxu0 0
      %2020 = vmatpush1.bf16.msra.mxu0 0
      %2021 = vmatprep.subr.bf16.mxu0 0
      %2022 = vmatpush1.bf16.msra.mxu0 0
      %2023 = vmatprep.subr.bf16.mxu0 0
      %2024 = vmatpush1.bf16.msra.mxu0 0
      %2025 = vmatprep.subr.bf16.mxu0 0
      %2026 = vmatpush1.bf16.msra.mxu0 0
      %2027 = vmatprep.subr.bf16.mxu0 0
      %2028 = vmatpush1.bf16.msra.mxu0 0
      %2029 = vmatprep.subr.bf16.mxu0 0
      %2030 = vmatpush1.bf16.msra.mxu0 0
      %2031 = vmatprep.subr.bf16.mxu0 0
      %2032 = vmatpush1.bf16.msra.mxu0 0
      %2033 = vmatprep.subr.bf16.mxu0 0
      %2034 = vmatpush1.bf16.msra.mxu0 0
      %2035 = vmatprep.subr.bf16.mxu0 0
      %2036 = vmatpush1.bf16.msra.mxu0 0
      %2037 = vmatprep.subr.bf16.mxu0 0
      %2038 = vmatpush1.bf16.msra.mxu0 0
      %2039 = vmatprep.subr.bf16.mxu0 0
      %2040 = vmatpush1.bf16.msra.mxu0 0
      %2041 = vmatprep.subr.bf16.mxu0 0
      %2042 = vmatpush1.bf16.msra.mxu0 0
      %2043 = vmatprep.mubr.bf16.mxu0 0
      %2044 = vmatmul.mubr.bf16.gmra.mrb[0].mxu0 %v2006
      %v2045 = vpop.f32.mrb[0].mxu0
      %v2046 = vadd.f32 0.0, %v2045
      %v2047 = vpop.f32.mrb[0].mxu0
      %v2048 = vpop.f32.mrb[0].mxu0
      %v2049 = vpop.f32.mrb[0].mxu0
      %2050 = vdwg.mxu0
      %v2052 = vsel %vm1504, %v1953, 0
      %v2055 = vsel %vm1769, %v1957, 0
      %2057 = vmatprep.subr.bf16.mxu0 0
      %2058 = vmatpush1.bf16.msra.mxu0 %v2055
      %2059 = vmatprep.subr.bf16.mxu0 0
      %2060 = vmatpush1.bf16.msra.mxu0 0
      %2061 = vmatprep.subr.bf16.mxu0 0
      %2062 = vmatpush1.bf16.msra.mxu0 0
      %2063 = vmatprep.subr.bf16.mxu0 0
      %2064 = vmatpush1.bf16.msra.mxu0 0
      %2065 = vmatprep.subr.bf16.mxu0 0
      %2066 = vmatpush1.bf16.msra.mxu0 0
      %2067 = vmatprep.subr.bf16.mxu0 0
      %2068 = vmatpush1.bf16.msra.mxu0 0
      %2069 = vmatprep.subr.bf16.mxu0 0
      %2070 = vmatpush1.bf16.msra.mxu0 0
      %2071 = vmatprep.subr.bf16.mxu0 0
      %2072 = vmatpush1.bf16.msra.mxu0 0
      %2073 = vmatprep.subr.bf16.mxu0 0
      %2074 = vmatpush1.bf16.msra.mxu0 0
      %2075 = vmatprep.subr.bf16.mxu0 0
      %2076 = vmatpush1.bf16.msra.mxu0 0
      %2077 = vmatprep.subr.bf16.mxu0 0
      %2078 = vmatpush1.bf16.msra.mxu0 0
      %2079 = vmatprep.subr.bf16.mxu0 0
      %2080 = vmatpush1.bf16.msra.mxu0 0
      %2081 = vmatprep.subr.bf16.mxu0 0
      %2082 = vmatpush1.bf16.msra.mxu0 0
      %2083 = vmatprep.subr.bf16.mxu0 0
      %2084 = vmatpush1.bf16.msra.mxu0 0
      %2085 = vmatprep.subr.bf16.mxu0 0
      %2086 = vmatpush1.bf16.msra.mxu0 0
      %2087 = vmatprep.subr.bf16.mxu0 0
      %2088 = vmatpush1.bf16.msra.mxu0 0
      %2089 = vmatprep.mubr.bf16.mxu0 0
      %2090 = vmatmul.mubr.bf16.gmra.mrb[0].mxu0 %v2052
      %v2091 = vpop.f32.mrb[0].mxu0
      %v2092 = vadd.f32 0.0, %v2091
      %v2093 = vpop.f32.mrb[0].mxu0
      %v2094 = vpop.f32.mrb[0].mxu0
      %v2095 = vpop.f32.mrb[0].mxu0
      %2096 = vdwg.mxu0
      %v2098 = vsel %vm1504, %v1954, 0
      %v2101 = vsel %vm1769, %v1958, 0
      %2103 = vmatprep.subr.bf16.mxu0 0
      %2104 = vmatpush1.bf16.msra.mxu0 %v2101
      %2105 = vmatprep.subr.bf16.mxu0 0
      %2106 = vmatpush1.bf16.msra.mxu0 0
      %2107 = vmatprep.subr.bf16.mxu0 0
      %2108 = vmatpush1.bf16.msra.mxu0 0
      %2109 = vmatprep.subr.bf16.mxu0 0
      %2110 = vmatpush1.bf16.msra.mxu0 0
      %2111 = vmatprep.subr.bf16.mxu0 0
      %2112 = vmatpush1.bf16.msra.mxu0 0
      %2113 = vmatprep.subr.bf16.mxu0 0
      %2114 = vmatpush1.bf16.msra.mxu0 0
      %2115 = vmatprep.subr.bf16.mxu0 0
      %2116 = vmatpush1.bf16.msra.mxu0 0
      %2117 = vmatprep.subr.bf16.mxu0 0
      %2118 = vmatpush1.bf16.msra.mxu0 0
      %2119 = vmatprep.subr.bf16.mxu0 0
      %2120 = vmatpush1.bf16.msra.mxu0 0
      %2121 = vmatprep.subr.bf16.mxu0 0
      %2122 = vmatpush1.bf16.msra.mxu0 0
      %2123 = vmatprep.subr.bf16.mxu0 0
      %2124 = vmatpush1.bf16.msra.mxu0 0
      %2125 = vmatprep.subr.bf16.mxu0 0
      %2126 = vmatpush1.bf16.msra.mxu0 0
      %2127 = vmatprep.subr.bf16.mxu0 0
      %2128 = vmatpush1.bf16.msra.mxu0 0
      %2129 = vmatprep.subr.bf16.mxu0 0
      %2130 = vmatpush1.bf16.msra.mxu0 0
      %2131 = vmatprep.subr.bf16.mxu0 0
      %2132 = vmatpush1.bf16.msra.mxu0 0
      %2133 = vmatprep.subr.bf16.mxu0 0
      %2134 = vmatpush1.bf16.msra.mxu0 0
      %2135 = vmatprep.mubr.bf16.mxu0 0
      %2136 = vmatmul.mubr.bf16.gmra.mrb[0].mxu0 %v2098
      %v2137 = vpop.f32.mrb[0].mxu0
      %v2138 = vadd.f32 0.0, %v2137
      %v2139 = vpop.f32.mrb[0].mxu0
      %v2140 = vpop.f32.mrb[0].mxu0
      %v2141 = vpop.f32.mrb[0].mxu0
      %2142 = vdwg.mxu0
      %v2143 = vsel %vm788, %v2000, 0.0
      %v2144 = vsel %vm788, %v2046, 0.0
      %v2145 = vadd.f32 %v2143, %v2144
      %v2146 = vsel %vm788, %v2092, 0.0
      %v2147 = vadd.f32 %v2145, %v2146
      %v2148 = vsel %vm788, %v2138, 0.0
      %v2149 = vadd.f32 %v2147, %v2148
      %v2150 = vld [vmem:[%s7] sm:$0x1]
      %v2152 = vlaneseq
      %v2153 = vshrl.u32 %v2152, 7
      %v2154 = vsub.s32 0, %v2153
      %v2155 = vrot.slane %v2150, %v2154
      %v2157 = vadd.f32 %v2149, %v2155
      %v2158 = vadd.f32 %v728, %v2157
      %v2159 = vld [vmem:[%s8] sm:$0x1]
      %v2160 = vld [vmem:[%s9] sm:$0x1]
      %v2161 = vsel %vm788, %v2158, 0.0
      %2162 = vadd.xlane.f32.xlu0 %v2161
      %v2163 = vpop.xlane.xlu0 %2162
      %v2164 = vrcp.pop 32.0
      %v2165 = vmul.f32 %v2163, %v2164
      %v2166 = vsub.f32 %v2158, %v2165
      %v2167 = vmul.f32 %v2166, %v2166
      %v2168 = vsel %vm788, %v2167, 0.0
      %2169 = vadd.xlane.f32.xlu0 %v2168
      %v2170 = vpop.xlane.xlu0 %2169
      %v2171 = vmul.f32 %v2170, %v2164
      %v2172 = vadd.f32 %v2171, 1e-05
      %v2173 = vrsqrt.pop %v2172
      %v2174 = vmul.f32 %v2166, %v2173
      %v2176 = vlaneseq
      %v2177 = vshrl.u32 %v2176, 7
      %v2178 = vsub.s32 0, %v2177
      %v2179 = vrot.slane %v2159, %v2178
      %v2181 = vmul.f32 %v2174, %v2179
      %v2183 = vlaneseq
      %v2184 = vshrl.u32 %v2183, 7
      %v2185 = vsub.s32 0, %v2184
      %v2186 = vrot.slane %v2160, %v2185
      %v2188 = vadd.f32 %v2181, %v2186
      %v2189 = vld [vmem:[%s722] sm:$0x1]
      %v2190 = vpack.c.bf16 %v2188, %v2188
      %v2191 = vpack.c.bf16 %v729, %v729
      %v2192 = vld [vmem:[%s10] sm:$0xf]
      %v2193 = vld [vmem:[%s10 + $0x4] sm:$0xf]
      %v2194 = vld [vmem:[%s10 + $0x8] sm:$0xf]
      %v2195 = vld [vmem:[%s10 + $0xc] sm:$0xf]
      %v2196 = vld [vmem:[%s10 + $0x10] sm:$0xf]
      %v2197 = vld [vmem:[%s10 + $0x14] sm:$0xf]
      %v2198 = vld [vmem:[%s10 + $0x18] sm:$0xf]
      %v2199 = vld [vmem:[%s10 + $0x1c] sm:$0xf]
      %v2200 = vld [vmem:[%s10 + $0x20] sm:$0xf]
      %v2201 = vld [vmem:[%s10 + $0x24] sm:$0xf]
      %v2202 = vld [vmem:[%s10 + $0x28] sm:$0xf]
      %v2203 = vld [vmem:[%s10 + $0x2c] sm:$0xf]
      %v2204 = vld [vmem:[%s10 + $0x30] sm:$0xf]
      %v2205 = vld [vmem:[%s10 + $0x34] sm:$0xf]
      %v2206 = vld [vmem:[%s10 + $0x38] sm:$0xf]
      %v2207 = vld [vmem:[%s10 + $0x3c] sm:$0xf]
      %v2208 = vld [vmem:[%s11] sm:$0x1]
      %v2209 = vld [vmem:[%s11 + $0x1] sm:$0x1]
      %v2210 = vld [vmem:[%s11 + $0x2] sm:$0x1]
      %v2211 = vld [vmem:[%s11 + $0x3] sm:$0x1]
      %v2216 = vlaneseq
      %v2217 = vshrl.u32 %v2216, 7
      %v2218 = vsub.s32 0, %v2217
      %v2219 = vrot.slane %v2208, %v2218
      %v2220 = vlaneseq
      %v2221 = vshrl.u32 %v2220, 7
      %v2222 = vsub.s32 0, %v2221
      %v2223 = vrot.slane %v2209, %v2222
      %v2224 = vlaneseq
      %v2225 = vshrl.u32 %v2224, 7
      %v2226 = vsub.s32 0, %v2225
      %v2227 = vrot.slane %v2210, %v2226
      %v2228 = vlaneseq
      %v2229 = vshrl.u32 %v2228, 7
      %v2230 = vsub.s32 0, %v2229
      %v2231 = vrot.slane %v2211, %v2230
      %v2240 = vunpack.c.l.b16 %v2192
      %v2241 = vunpack.c.l.b16 %v2193
      %v2242 = vunpack.c.l.b16 %v2194
      %v2243 = vunpack.c.l.b16 %v2195
      %v2244 = vpack.c.b16 %v2241, %v2240
      %v2245 = vpack.c.b16 %v2243, %v2242
      %v2249 = vsel %vm788, %v2190, 0
      %2251 = vmatprep.subr.bf16.mxu0 0
      %2252 = vmatpush1.bf16.msra.mxu0 %v2244
      %2253 = vmatprep.subr.bf16.mxu0 0
      %2254 = vmatpush1.bf16.msra.mxu0 %v2245
      %2255 = vmatprep.subr.bf16.mxu0 0
      %2256 = vmatpush1.bf16.msra.mxu0 0
      %2257 = vmatprep.subr.bf16.mxu0 0
      %2258 = vmatpush1.bf16.msra.mxu0 0
      %2259 = vmatprep.subr.bf16.mxu0 0
      %2260 = vmatpush1.bf16.msra.mxu0 0
      %2261 = vmatprep.subr.bf16.mxu0 0
      %2262 = vmatpush1.bf16.msra.mxu0 0
      %2263 = vmatprep.subr.bf16.mxu0 0
      %2264 = vmatpush1.bf16.msra.mxu0 0
      %2265 = vmatprep.subr.bf16.mxu0 0
      %2266 = vmatpush1.bf16.msra.mxu0 0
      %2267 = vmatprep.subr.bf16.mxu0 0
      %2268 = vmatpush1.bf16.msra.mxu0 0
      %2269 = vmatprep.subr.bf16.mxu0 0
      %2270 = vmatpush1.bf16.msra.mxu0 0
      %2271 = vmatprep.subr.bf16.mxu0 0
      %2272 = vmatpush1.bf16.msra.mxu0 0
      %2273 = vmatprep.subr.bf16.mxu0 0
      %2274 = vmatpush1.bf16.msra.mxu0 0
      %2275 = vmatprep.subr.bf16.mxu0 0
      %2276 = vmatpush1.bf16.msra.mxu0 0
      %2277 = vmatprep.subr.bf16.mxu0 0
      %2278 = vmatpush1.bf16.msra.mxu0 0
      %2279 = vmatprep.subr.bf16.mxu0 0
      %2280 = vmatpush1.bf16.msra.mxu0 0
      %2281 = vmatprep.subr.bf16.mxu0 0
      %2282 = vmatpush1.bf16.msra.mxu0 0
      %2283 = vmatprep.mubr.bf16.mxu0 0
      %2284 = vmatmul.mubr.bf16.gmra.mrb[0].mxu0 %v2249
      %v2285 = vpop.f32.mrb[0].mxu0
      %v2286 = vadd.f32 %v2219, %v2285
      %v2287 = vpop.f32.mrb[0].mxu0
      %v2288 = vpop.f32.mrb[0].mxu0
      %v2289 = vpop.f32.mrb[0].mxu0
      %2290 = vdwg.mxu0
      %v2295 = vunpack.c.l.b16 %v2196
      %v2296 = vunpack.c.l.b16 %v2197
      %v2297 = vunpack.c.l.b16 %v2198
      %v2298 = vunpack.c.l.b16 %v2199
      %v2299 = vpack.c.b16 %v2296, %v2295
      %v2300 = vpack.c.b16 %v2298, %v2297
      %2303 = vmatprep.subr.bf16.mxu0 0
      %2304 = vmatpush1.bf16.msra.mxu0 %v2299
      %2305 = vmatprep.subr.bf16.mxu0 0
      %2306 = vmatpush1.bf16.msra.mxu0 %v2300
      %2307 = vmatprep.subr.bf16.mxu0 0
      %2308 = vmatpush1.bf16.msra.mxu0 0
      %2309 = vmatprep.subr.bf16.mxu0 0
      %2310 = vmatpush1.bf16.msra.mxu0 0
      %2311 = vmatprep.subr.bf16.mxu0 0
      %2312 = vmatpush1.bf16.msra.mxu0 0
      %2313 = vmatprep.subr.bf16.mxu0 0
      %2314 = vmatpush1.bf16.msra.mxu0 0
      %2315 = vmatprep.subr.bf16.mxu0 0
      %2316 = vmatpush1.bf16.msra.mxu0 0
      %2317 = vmatprep.subr.bf16.mxu0 0
      %2318 = vmatpush1.bf16.msra.mxu0 0
      %2319 = vmatprep.subr.bf16.mxu0 0
      %2320 = vmatpush1.bf16.msra.mxu0 0
      %2321 = vmatprep.subr.bf16.mxu0 0
      %2322 = vmatpush1.bf16.msra.mxu0 0
      %2323 = vmatprep.subr.bf16.mxu0 0
      %2324 = vmatpush1.bf16.msra.mxu0 0
      %2325 = vmatprep.subr.bf16.mxu0 0
      %2326 = vmatpush1.bf16.msra.mxu0 0
      %2327 = vmatprep.subr.bf16.mxu0 0
      %2328 = vmatpush1.bf16.msra.mxu0 0
      %2329 = vmatprep.subr.bf16.mxu0 0
      %2330 = vmatpush1.bf16.msra.mxu0 0
      %2331 = vmatprep.subr.bf16.mxu0 0
      %2332 = vmatpush1.bf16.msra.mxu0 0
      %2333 = vmatprep.subr.bf16.mxu0 0
      %2334 = vmatpush1.bf16.msra.mxu0 0
      %2335 = vmatprep.mubr.bf16.mxu0 0
      %2336 = vmatmul.mubr.bf16.gmra.mrb[0].mxu0 %v2249
      %v2337 = vpop.f32.mrb[0].mxu0
      %v2338 = vadd.f32 %v2223, %v2337
      %v2339 = vpop.f32.mrb[0].mxu0
      %v2340 = vpop.f32.mrb[0].mxu0
      %v2341 = vpop.f32.mrb[0].mxu0
      %2342 = vdwg.mxu0
      %v2347 = vunpack.c.l.b16 %v2200
      %v2348 = vunpack.c.l.b16 %v2201
      %v2349 = vunpack.c.l.b16 %v2202
      %v2350 = vunpack.c.l.b16 %v2203
      %v2351 = vpack.c.b16 %v2348, %v2347
      %v2352 = vpack.c.b16 %v2350, %v2349
      %2355 = vmatprep.subr.bf16.mxu0 0
      %2356 = vmatpush1.bf16.msra.mxu0 %v2351
      %2357 = vmatprep.subr.bf16.mxu0 0
      %2358 = vmatpush1.bf16.msra.mxu0 %v2352
      %2359 = vmatprep.subr.bf16.mxu0 0
      %2360 = vmatpush1.bf16.msra.mxu0 0
      %2361 = vmatprep.subr.bf16.mxu0 0
      %2362 = vmatpush1.bf16.msra.mxu0 0
      %2363 = vmatprep.subr.bf16.mxu0 0
      %2364 = vmatpush1.bf16.msra.mxu0 0
      %2365 = vmatprep.subr.bf16.mxu0 0
      %2366 = vmatpush1.bf16.msra.mxu0 0
      %2367 = vmatprep.subr.bf16.mxu0 0
      %2368 = vmatpush1.bf16.msra.mxu0 0
      %2369 = vmatprep.subr.bf16.mxu0 0
      %2370 = vmatpush1.bf16.msra.mxu0 0
      %2371 = vmatprep.subr.bf16.mxu0 0
      %2372 = vmatpush1.bf16.msra.mxu0 0
      %2373 = vmatprep.subr.bf16.mxu0 0
      %2374 = vmatpush1.bf16.msra.mxu0 0
      %2375 = vmatprep.subr.bf16.mxu0 0
      %2376 = vmatpush1.bf16.msra.mxu0 0
      %2377 = vmatprep.subr.bf16.mxu0 0
      %2378 = vmatpush1.bf16.msra.mxu0 0
      %2379 = vmatprep.subr.bf16.mxu0 0
      %2380 = vmatpush1.bf16.msra.mxu0 0
      %2381 = vmatprep.subr.bf16.mxu0 0
      %2382 = vmatpush1.bf16.msra.mxu0 0
      %2383 = vmatprep.subr.bf16.mxu0 0
      %2384 = vmatpush1.bf16.msra.mxu0 0
      %2385 = vmatprep.subr.bf16.mxu0 0
      %2386 = vmatpush1.bf16.msra.mxu0 0
      %2387 = vmatprep.mubr.bf16.mxu0 0
      %2388 = vmatmul.mubr.bf16.gmra.mrb[0].mxu0 %v2249
      %v2389 = vpop.f32.mrb[0].mxu0
      %v2390 = vadd.f32 %v2227, %v2389
      %v2391 = vpop.f32.mrb[0].mxu0
      %v2392 = vpop.f32.mrb[0].mxu0
      %v2393 = vpop.f32.mrb[0].mxu0
      %2394 = vdwg.mxu0
      %v2399 = vunpack.c.l.b16 %v2204
      %v2400 = vunpack.c.l.b16 %v2205
      %v2401 = vunpack.c.l.b16 %v2206
      %v2402 = vunpack.c.l.b16 %v2207
      %v2403 = vpack.c.b16 %v2400, %v2399
      %v2404 = vpack.c.b16 %v2402, %v2401
      %2407 = vmatprep.subr.bf16.mxu0 0
      %2408 = vmatpush1.bf16.msra.mxu0 %v2403
      %2409 = vmatprep.subr.bf16.mxu0 0
      %2410 = vmatpush1.bf16.msra.mxu0 %v2404
      %2411 = vmatprep.subr.bf16.mxu0 0
      %2412 = vmatpush1.bf16.msra.mxu0 0
      %2413 = vmatprep.subr.bf16.mxu0 0
      %2414 = vmatpush1.bf16.msra.mxu0 0
      %2415 = vmatprep.subr.bf16.mxu0 0
      %2416 = vmatpush1.bf16.msra.mxu0 0
      %2417 = vmatprep.subr.bf16.mxu0 0
      %2418 = vmatpush1.bf16.msra.mxu0 0
      %2419 = vmatprep.subr.bf16.mxu0 0
      %2420 = vmatpush1.bf16.msra.mxu0 0
      %2421 = vmatprep.subr.bf16.mxu0 0
      %2422 = vmatpush1.bf16.msra.mxu0 0
      %2423 = vmatprep.subr.bf16.mxu0 0
      %2424 = vmatpush1.bf16.msra.mxu0 0
      %2425 = vmatprep.subr.bf16.mxu0 0
      %2426 = vmatpush1.bf16.msra.mxu0 0
      %2427 = vmatprep.subr.bf16.mxu0 0
      %2428 = vmatpush1.bf16.msra.mxu0 0
      %2429 = vmatprep.subr.bf16.mxu0 0
      %2430 = vmatpush1.bf16.msra.mxu0 0
      %2431 = vmatprep.subr.bf16.mxu0 0
      %2432 = vmatpush1.bf16.msra.mxu0 0
      %2433 = vmatprep.subr.bf16.mxu0 0
      %2434 = vmatpush1.bf16.msra.mxu0 0
      %2435 = vmatprep.subr.bf16.mxu0 0
      %2436 = vmatpush1.bf16.msra.mxu0 0
      %2437 = vmatprep.subr.bf16.mxu0 0
      %2438 = vmatpush1.bf16.msra.mxu0 0
      %2439 = vmatprep.mubr.bf16.mxu0 0
      %2440 = vmatmul.mubr.bf16.gmra.mrb[0].mxu0 %v2249
      %v2441 = vpop.f32.mrb[0].mxu0
      %v2442 = vadd.f32 %v2231, %v2441
      %v2443 = vpop.f32.mrb[0].mxu0
      %v2444 = vpop.f32.mrb[0].mxu0
      %v2445 = vpop.f32.mrb[0].mxu0
      %2446 = vdwg.mxu0
      %s2447 = scalar_lea.vmem %s10, 64
      %v2448 = vld [vmem:[%s2447] sm:$0xf]
      %v2449 = vld [vmem:[%s2447 + $0x4] sm:$0xf]
      %v2450 = vld [vmem:[%s2447 + $0x8] sm:$0xf]
      %v2451 = vld [vmem:[%s2447 + $0xc] sm:$0xf]
      %v2452 = vld [vmem:[%s2447 + $0x10] sm:$0xf]
      %v2453 = vld [vmem:[%s2447 + $0x14] sm:$0xf]
      %v2454 = vld [vmem:[%s2447 + $0x18] sm:$0xf]
      %v2455 = vld [vmem:[%s2447 + $0x1c] sm:$0xf]
      %v2456 = vld [vmem:[%s2447 + $0x20] sm:$0xf]
      %v2457 = vld [vmem:[%s2447 + $0x24] sm:$0xf]
      %v2458 = vld [vmem:[%s2447 + $0x28] sm:$0xf]
      %v2459 = vld [vmem:[%s2447 + $0x2c] sm:$0xf]
      %v2460 = vld [vmem:[%s2447 + $0x30] sm:$0xf]
      %v2461 = vld [vmem:[%s2447 + $0x34] sm:$0xf]
      %v2462 = vld [vmem:[%s2447 + $0x38] sm:$0xf]
      %v2463 = vld [vmem:[%s2447 + $0x3c] sm:$0xf]
      %s2464 = scalar_lea.vmem %s11, 4
      %v2465 = vld [vmem:[%s2464] sm:$0x1]
      %v2466 = vld [vmem:[%s2464 + $0x1] sm:$0x1]
      %v2467 = vld [vmem:[%s2464 + $0x2] sm:$0x1]
      %v2468 = vld [vmem:[%s2464 + $0x3] sm:$0x1]
      %v2473 = vlaneseq
      %v2474 = vshrl.u32 %v2473, 7
      %v2475 = vsub.s32 0, %v2474
      %v2476 = vrot.slane %v2465, %v2475
      %v2477 = vlaneseq
      %v2478 = vshrl.u32 %v2477, 7
      %v2479 = vsub.s32 0, %v2478
      %v2480 = vrot.slane %v2466, %v2479
      %v2481 = vlaneseq
      %v2482 = vshrl.u32 %v2481, 7
      %v2483 = vsub.s32 0, %v2482
      %v2484 = vrot.slane %v2467, %v2483
      %v2485 = vlaneseq
      %v2486 = vshrl.u32 %v2485, 7
      %v2487 = vsub.s32 0, %v2486
      %v2488 = vrot.slane %v2468, %v2487
      %v2497 = vunpack.c.l.b16 %v2448
      %v2498 = vunpack.c.l.b16 %v2449
      %v2499 = vunpack.c.l.b16 %v2450
      %v2500 = vunpack.c.l.b16 %v2451
      %v2501 = vpack.c.b16 %v2498, %v2497
      %v2502 = vpack.c.b16 %v2500, %v2499
      %v2506 = vsel %vm788, %v2191, 0
      %2508 = vmatprep.subr.bf16.mxu0 0
      %2509 = vmatpush1.bf16.msra.mxu0 %v2501
      %2510 = vmatprep.subr.bf16.mxu0 0
      %2511 = vmatpush1.bf16.msra.mxu0 %v2502
      %2512 = vmatprep.subr.bf16.mxu0 0
      %2513 = vmatpush1.bf16.msra.mxu0 0
      %2514 = vmatprep.subr.bf16.mxu0 0
      %2515 = vmatpush1.bf16.msra.mxu0 0
      %2516 = vmatprep.subr.bf16.mxu0 0
      %2517 = vmatpush1.bf16.msra.mxu0 0
      %2518 = vmatprep.subr.bf16.mxu0 0
      %2519 = vmatpush1.bf16.msra.mxu0 0
      %2520 = vmatprep.subr.bf16.mxu0 0
      %2521 = vmatpush1.bf16.msra.mxu0 0
      %2522 = vmatprep.subr.bf16.mxu0 0
      %2523 = vmatpush1.bf16.msra.mxu0 0
      %2524 = vmatprep.subr.bf16.mxu0 0
      %2525 = vmatpush1.bf16.msra.mxu0 0
      %2526 = vmatprep.subr.bf16.mxu0 0
      %2527 = vmatpush1.bf16.msra.mxu0 0
      %2528 = vmatprep.subr.bf16.mxu0 0
      %2529 = vmatpush1.bf16.msra.mxu0 0
      %2530 = vmatprep.subr.bf16.mxu0 0
      %2531 = vmatpush1.bf16.msra.mxu0 0
      %2532 = vmatprep.subr.bf16.mxu0 0
      %2533 = vmatpush1.bf16.msra.mxu0 0
      %2534 = vmatprep.subr.bf16.mxu0 0
      %2535 = vmatpush1.bf16.msra.mxu0 0
      %2536 = vmatprep.subr.bf16.mxu0 0
      %2537 = vmatpush1.bf16.msra.mxu0 0
      %2538 = vmatprep.subr.bf16.mxu0 0
      %2539 = vmatpush1.bf16.msra.mxu0 0
      %2540 = vmatprep.mubr.bf16.mxu0 0
      %2541 = vmatmul.mubr.bf16.gmra.mrb[0].mxu0 %v2506
      %v2542 = vpop.f32.mrb[0].mxu0
      %v2543 = vadd.f32 %v2476, %v2542
      %v2544 = vpop.f32.mrb[0].mxu0
      %v2545 = vpop.f32.mrb[0].mxu0
      %v2546 = vpop.f32.mrb[0].mxu0
      %2547 = vdwg.mxu0
      %v2552 = vunpack.c.l.b16 %v2452
      %v2553 = vunpack.c.l.b16 %v2453
      %v2554 = vunpack.c.l.b16 %v2454
      %v2555 = vunpack.c.l.b16 %v2455
      %v2556 = vpack.c.b16 %v2553, %v2552
      %v2557 = vpack.c.b16 %v2555, %v2554
      %2560 = vmatprep.subr.bf16.mxu0 0
      %2561 = vmatpush1.bf16.msra.mxu0 %v2556
      %2562 = vmatprep.subr.bf16.mxu0 0
      %2563 = vmatpush1.bf16.msra.mxu0 %v2557
      %2564 = vmatprep.subr.bf16.mxu0 0
      %2565 = vmatpush1.bf16.msra.mxu0 0
      %2566 = vmatprep.subr.bf16.mxu0 0
      %2567 = vmatpush1.bf16.msra.mxu0 0
      %2568 = vmatprep.subr.bf16.mxu0 0
      %2569 = vmatpush1.bf16.msra.mxu0 0
      %2570 = vmatprep.subr.bf16.mxu0 0
      %2571 = vmatpush1.bf16.msra.mxu0 0
      %2572 = vmatprep.subr.bf16.mxu0 0
      %2573 = vmatpush1.bf16.msra.mxu0 0
      %2574 = vmatprep.subr.bf16.mxu0 0
      %2575 = vmatpush1.bf16.msra.mxu0 0
      %2576 = vmatprep.subr.bf16.mxu0 0
      %2577 = vmatpush1.bf16.msra.mxu0 0
      %2578 = vmatprep.subr.bf16.mxu0 0
      %2579 = vmatpush1.bf16.msra.mxu0 0
      %2580 = vmatprep.subr.bf16.mxu0 0
      %2581 = vmatpush1.bf16.msra.mxu0 0
      %2582 = vmatprep.subr.bf16.mxu0 0
      %2583 = vmatpush1.bf16.msra.mxu0 0
      %2584 = vmatprep.subr.bf16.mxu0 0
      %2585 = vmatpush1.bf16.msra.mxu0 0
      %2586 = vmatprep.subr.bf16.mxu0 0
      %2587 = vmatpush1.bf16.msra.mxu0 0
      %2588 = vmatprep.subr.bf16.mxu0 0
      %2589 = vmatpush1.bf16.msra.mxu0 0
      %2590 = vmatprep.subr.bf16.mxu0 0
      %2591 = vmatpush1.bf16.msra.mxu0 0
      %2592 = vmatprep.mubr.bf16.mxu0 0
      %2593 = vmatmul.mubr.bf16.gmra.mrb[0].mxu0 %v2506
      %v2594 = vpop.f32.mrb[0].mxu0
      %v2595 = vadd.f32 %v2480, %v2594
      %v2596 = vpop.f32.mrb[0].mxu0
      %v2597 = vpop.f32.mrb[0].mxu0
      %v2598 = vpop.f32.mrb[0].mxu0
      %2599 = vdwg.mxu0
      %v2604 = vunpack.c.l.b16 %v2456
      %v2605 = vunpack.c.l.b16 %v2457
      %v2606 = vunpack.c.l.b16 %v2458
      %v2607 = vunpack.c.l.b16 %v2459
      %v2608 = vpack.c.b16 %v2605, %v2604
      %v2609 = vpack.c.b16 %v2607, %v2606
      %2612 = vmatprep.subr.bf16.mxu0 0
      %2613 = vmatpush1.bf16.msra.mxu0 %v2608
      %2614 = vmatprep.subr.bf16.mxu0 0
      %2615 = vmatpush1.bf16.msra.mxu0 %v2609
      %2616 = vmatprep.subr.bf16.mxu0 0
      %2617 = vmatpush1.bf16.msra.mxu0 0
      %2618 = vmatprep.subr.bf16.mxu0 0
      %2619 = vmatpush1.bf16.msra.mxu0 0
      %2620 = vmatprep.subr.bf16.mxu0 0
      %2621 = vmatpush1.bf16.msra.mxu0 0
      %2622 = vmatprep.subr.bf16.mxu0 0
      %2623 = vmatpush1.bf16.msra.mxu0 0
      %2624 = vmatprep.subr.bf16.mxu0 0
      %2625 = vmatpush1.bf16.msra.mxu0 0
      %2626 = vmatprep.subr.bf16.mxu0 0
      %2627 = vmatpush1.bf16.msra.mxu0 0
      %2628 = vmatprep.subr.bf16.mxu0 0
      %2629 = vmatpush1.bf16.msra.mxu0 0
      %2630 = vmatprep.subr.bf16.mxu0 0
      %2631 = vmatpush1.bf16.msra.mxu0 0
      %2632 = vmatprep.subr.bf16.mxu0 0
      %2633 = vmatpush1.bf16.msra.mxu0 0
      %2634 = vmatprep.subr.bf16.mxu0 0
      %2635 = vmatpush1.bf16.msra.mxu0 0
      %2636 = vmatprep.subr.bf16.mxu0 0
      %2637 = vmatpush1.bf16.msra.mxu0 0
      %2638 = vmatprep.subr.bf16.mxu0 0
      %2639 = vmatpush1.bf16.msra.mxu0 0
      %2640 = vmatprep.subr.bf16.mxu0 0
      %2641 = vmatpush1.bf16.msra.mxu0 0
      %2642 = vmatprep.subr.bf16.mxu0 0
      %2643 = vmatpush1.bf16.msra.mxu0 0
      %2644 = vmatprep.mubr.bf16.mxu0 0
      %2645 = vmatmul.mubr.bf16.gmra.mrb[0].mxu0 %v2506
      %v2646 = vpop.f32.mrb[0].mxu0
      %v2647 = vadd.f32 %v2484, %v2646
      %v2648 = vpop.f32.mrb[0].mxu0
      %v2649 = vpop.f32.mrb[0].mxu0
      %v2650 = vpop.f32.mrb[0].mxu0
      %2651 = vdwg.mxu0
      %v2656 = vunpack.c.l.b16 %v2460
      %v2657 = vunpack.c.l.b16 %v2461
      %v2658 = vunpack.c.l.b16 %v2462
      %v2659 = vunpack.c.l.b16 %v2463
      %v2660 = vpack.c.b16 %v2657, %v2656
      %v2661 = vpack.c.b16 %v2659, %v2658
      %2664 = vmatprep.subr.bf16.mxu0 0
      %2665 = vmatpush1.bf16.msra.mxu0 %v2660
      %2666 = vmatprep.subr.bf16.mxu0 0
      %2667 = vmatpush1.bf16.msra.mxu0 %v2661
      %2668 = vmatprep.subr.bf16.mxu0 0
      %2669 = vmatpush1.bf16.msra.mxu0 0
      %2670 = vmatprep.subr.bf16.mxu0 0
      %2671 = vmatpush1.bf16.msra.mxu0 0
      %2672 = vmatprep.subr.bf16.mxu0 0
      %2673 = vmatpush1.bf16.msra.mxu0 0
      %2674 = vmatprep.subr.bf16.mxu0 0
      %2675 = vmatpush1.bf16.msra.mxu0 0
      %2676 = vmatprep.subr.bf16.mxu0 0
      %2677 = vmatpush1.bf16.msra.mxu0 0
      %2678 = vmatprep.subr.bf16.mxu0 0
      %2679 = vmatpush1.bf16.msra.mxu0 0
      %2680 = vmatprep.subr.bf16.mxu0 0
      %2681 = vmatpush1.bf16.msra.mxu0 0
      %2682 = vmatprep.subr.bf16.mxu0 0
      %2683 = vmatpush1.bf16.msra.mxu0 0
      %2684 = vmatprep.subr.bf16.mxu0 0
      %2685 = vmatpush1.bf16.msra.mxu0 0
      %2686 = vmatprep.subr.bf16.mxu0 0
      %2687 = vmatpush1.bf16.msra.mxu0 0
      %2688 = vmatprep.subr.bf16.mxu0 0
      %2689 = vmatpush1.bf16.msra.mxu0 0
      %2690 = vmatprep.subr.bf16.mxu0 0
      %2691 = vmatpush1.bf16.msra.mxu0 0
      %2692 = vmatprep.subr.bf16.mxu0 0
      %2693 = vmatpush1.bf16.msra.mxu0 0
      %2694 = vmatprep.subr.bf16.mxu0 0
      %2695 = vmatpush1.bf16.msra.mxu0 0
      %2696 = vmatprep.mubr.bf16.mxu0 0
      %2697 = vmatmul.mubr.bf16.gmra.mrb[0].mxu0 %v2506
      %v2698 = vpop.f32.mrb[0].mxu0
      %v2699 = vadd.f32 %v2488, %v2698
      %v2700 = vpop.f32.mrb[0].mxu0
      %v2701 = vpop.f32.mrb[0].mxu0
      %v2702 = vpop.f32.mrb[0].mxu0
      %2703 = vdwg.mxu0
      %s2704 = scalar_lea.vmem %s10, 128
      %v2705 = vld [vmem:[%s2704] sm:$0xf]
      %v2706 = vld [vmem:[%s2704 + $0x4] sm:$0xf]
      %v2707 = vld [vmem:[%s2704 + $0x8] sm:$0xf]
      %v2708 = vld [vmem:[%s2704 + $0xc] sm:$0xf]
      %v2709 = vld [vmem:[%s2704 + $0x10] sm:$0xf]
      %v2710 = vld [vmem:[%s2704 + $0x14] sm:$0xf]
      %v2711 = vld [vmem:[%s2704 + $0x18] sm:$0xf]
      %v2712 = vld [vmem:[%s2704 + $0x1c] sm:$0xf]
      %v2713 = vld [vmem:[%s2704 + $0x20] sm:$0xf]
      %v2714 = vld [vmem:[%s2704 + $0x24] sm:$0xf]
      %v2715 = vld [vmem:[%s2704 + $0x28] sm:$0xf]
      %v2716 = vld [vmem:[%s2704 + $0x2c] sm:$0xf]
      %v2717 = vld [vmem:[%s2704 + $0x30] sm:$0xf]
      %v2718 = vld [vmem:[%s2704 + $0x34] sm:$0xf]
      %v2719 = vld [vmem:[%s2704 + $0x38] sm:$0xf]
      %v2720 = vld [vmem:[%s2704 + $0x3c] sm:$0xf]
      %s2721 = scalar_lea.vmem %s11, 8
      %v2722 = vld [vmem:[%s2721] sm:$0x1]
      %v2723 = vld [vmem:[%s2721 + $0x1] sm:$0x1]
      %v2724 = vld [vmem:[%s2721 + $0x2] sm:$0x1]
      %v2725 = vld [vmem:[%s2721 + $0x3] sm:$0x1]
      %v2730 = vlaneseq
      %v2731 = vshrl.u32 %v2730, 7
      %v2732 = vsub.s32 0, %v2731
      %v2733 = vrot.slane %v2722, %v2732
      %v2734 = vlaneseq
      %v2735 = vshrl.u32 %v2734, 7
      %v2736 = vsub.s32 0, %v2735
      %v2737 = vrot.slane %v2723, %v2736
      %v2738 = vlaneseq
      %v2739 = vshrl.u32 %v2738, 7
      %v2740 = vsub.s32 0, %v2739
      %v2741 = vrot.slane %v2724, %v2740
      %v2742 = vlaneseq
      %v2743 = vshrl.u32 %v2742, 7
      %v2744 = vsub.s32 0, %v2743
      %v2745 = vrot.slane %v2725, %v2744
      %v2754 = vunpack.c.l.b16 %v2705
      %v2755 = vunpack.c.l.b16 %v2706
      %v2756 = vunpack.c.l.b16 %v2707
      %v2757 = vunpack.c.l.b16 %v2708
      %v2758 = vpack.c.b16 %v2755, %v2754
      %v2759 = vpack.c.b16 %v2757, %v2756
      %2762 = vmatprep.subr.bf16.mxu0 0
      %2763 = vmatpush1.bf16.msra.mxu0 %v2758
      %2764 = vmatprep.subr.bf16.mxu0 0
      %2765 = vmatpush1.bf16.msra.mxu0 %v2759
      %2766 = vmatprep.subr.bf16.mxu0 0
      %2767 = vmatpush1.bf16.msra.mxu0 0
      %2768 = vmatprep.subr.bf16.mxu0 0
      %2769 = vmatpush1.bf16.msra.mxu0 0
      %2770 = vmatprep.subr.bf16.mxu0 0
      %2771 = vmatpush1.bf16.msra.mxu0 0
      %2772 = vmatprep.subr.bf16.mxu0 0
      %2773 = vmatpush1.bf16.msra.mxu0 0
      %2774 = vmatprep.subr.bf16.mxu0 0
      %2775 = vmatpush1.bf16.msra.mxu0 0
      %2776 = vmatprep.subr.bf16.mxu0 0
      %2777 = vmatpush1.bf16.msra.mxu0 0
      %2778 = vmatprep.subr.bf16.mxu0 0
      %2779 = vmatpush1.bf16.msra.mxu0 0
      %2780 = vmatprep.subr.bf16.mxu0 0
      %2781 = vmatpush1.bf16.msra.mxu0 0
      %2782 = vmatprep.subr.bf16.mxu0 0
      %2783 = vmatpush1.bf16.msra.mxu0 0
      %2784 = vmatprep.subr.bf16.mxu0 0
      %2785 = vmatpush1.bf16.msra.mxu0 0
      %2786 = vmatprep.subr.bf16.mxu0 0
      %2787 = vmatpush1.bf16.msra.mxu0 0
      %2788 = vmatprep.subr.bf16.mxu0 0
      %2789 = vmatpush1.bf16.msra.mxu0 0
      %2790 = vmatprep.subr.bf16.mxu0 0
      %2791 = vmatpush1.bf16.msra.mxu0 0
      %2792 = vmatprep.subr.bf16.mxu0 0
      %2793 = vmatpush1.bf16.msra.mxu0 0
      %2794 = vmatprep.mubr.bf16.mxu0 0
      %2795 = vmatmul.mubr.bf16.gmra.mrb[0].mxu0 %v2506
      %v2796 = vpop.f32.mrb[0].mxu0
      %v2797 = vadd.f32 %v2733, %v2796
      %v2798 = vpop.f32.mrb[0].mxu0
      %v2799 = vpop.f32.mrb[0].mxu0
      %v2800 = vpop.f32.mrb[0].mxu0
      %2801 = vdwg.mxu0
      %v2806 = vunpack.c.l.b16 %v2709
      %v2807 = vunpack.c.l.b16 %v2710
      %v2808 = vunpack.c.l.b16 %v2711
      %v2809 = vunpack.c.l.b16 %v2712
      %v2810 = vpack.c.b16 %v2807, %v2806
      %v2811 = vpack.c.b16 %v2809, %v2808
      %2814 = vmatprep.subr.bf16.mxu0 0
      %2815 = vmatpush1.bf16.msra.mxu0 %v2810
      %2816 = vmatprep.subr.bf16.mxu0 0
      %2817 = vmatpush1.bf16.msra.mxu0 %v2811
      %2818 = vmatprep.subr.bf16.mxu0 0
      %2819 = vmatpush1.bf16.msra.mxu0 0
      %2820 = vmatprep.subr.bf16.mxu0 0
      %2821 = vmatpush1.bf16.msra.mxu0 0
      %2822 = vmatprep.subr.bf16.mxu0 0
      %2823 = vmatpush1.bf16.msra.mxu0 0
      %2824 = vmatprep.subr.bf16.mxu0 0
      %2825 = vmatpush1.bf16.msra.mxu0 0
      %2826 = vmatprep.subr.bf16.mxu0 0
      %2827 = vmatpush1.bf16.msra.mxu0 0
      %2828 = vmatprep.subr.bf16.mxu0 0
      %2829 = vmatpush1.bf16.msra.mxu0 0
      %2830 = vmatprep.subr.bf16.mxu0 0
      %2831 = vmatpush1.bf16.msra.mxu0 0
      %2832 = vmatprep.subr.bf16.mxu0 0
      %2833 = vmatpush1.bf16.msra.mxu0 0
      %2834 = vmatprep.subr.bf16.mxu0 0
      %2835 = vmatpush1.bf16.msra.mxu0 0
      %2836 = vmatprep.subr.bf16.mxu0 0
      %2837 = vmatpush1.bf16.msra.mxu0 0
      %2838 = vmatprep.subr.bf16.mxu0 0
      %2839 = vmatpush1.bf16.msra.mxu0 0
      %2840 = vmatprep.subr.bf16.mxu0 0
      %2841 = vmatpush1.bf16.msra.mxu0 0
      %2842 = vmatprep.subr.bf16.mxu0 0
      %2843 = vmatpush1.bf16.msra.mxu0 0
      %2844 = vmatprep.subr.bf16.mxu0 0
      %2845 = vmatpush1.bf16.msra.mxu0 0
      %2846 = vmatprep.mubr.bf16.mxu0 0
      %2847 = vmatmul.mubr.bf16.gmra.mrb[0].mxu0 %v2506
      %v2848 = vpop.f32.mrb[0].mxu0
      %v2849 = vadd.f32 %v2737, %v2848
      %v2850 = vpop.f32.mrb[0].mxu0
      %v2851 = vpop.f32.mrb[0].mxu0
      %v2852 = vpop.f32.mrb[0].mxu0
      %2853 = vdwg.mxu0
      %v2858 = vunpack.c.l.b16 %v2713
      %v2859 = vunpack.c.l.b16 %v2714
      %v2860 = vunpack.c.l.b16 %v2715
      %v2861 = vunpack.c.l.b16 %v2716
      %v2862 = vpack.c.b16 %v2859, %v2858
      %v2863 = vpack.c.b16 %v2861, %v2860
      %2866 = vmatprep.subr.bf16.mxu0 0
      %2867 = vmatpush1.bf16.msra.mxu0 %v2862
      %2868 = vmatprep.subr.bf16.mxu0 0
      %2869 = vmatpush1.bf16.msra.mxu0 %v2863
      %2870 = vmatprep.subr.bf16.mxu0 0
      %2871 = vmatpush1.bf16.msra.mxu0 0
      %2872 = vmatprep.subr.bf16.mxu0 0
      %2873 = vmatpush1.bf16.msra.mxu0 0
      %2874 = vmatprep.subr.bf16.mxu0 0
      %2875 = vmatpush1.bf16.msra.mxu0 0
      %2876 = vmatprep.subr.bf16.mxu0 0
      %2877 = vmatpush1.bf16.msra.mxu0 0
      %2878 = vmatprep.subr.bf16.mxu0 0
      %2879 = vmatpush1.bf16.msra.mxu0 0
      %2880 = vmatprep.subr.bf16.mxu0 0
      %2881 = vmatpush1.bf16.msra.mxu0 0
      %2882 = vmatprep.subr.bf16.mxu0 0
      %2883 = vmatpush1.bf16.msra.mxu0 0
      %2884 = vmatprep.subr.bf16.mxu0 0
      %2885 = vmatpush1.bf16.msra.mxu0 0
      %2886 = vmatprep.subr.bf16.mxu0 0
      %2887 = vmatpush1.bf16.msra.mxu0 0
      %2888 = vmatprep.subr.bf16.mxu0 0
      %2889 = vmatpush1.bf16.msra.mxu0 0
      %2890 = vmatprep.subr.bf16.mxu0 0
      %2891 = vmatpush1.bf16.msra.mxu0 0
      %2892 = vmatprep.subr.bf16.mxu0 0
      %2893 = vmatpush1.bf16.msra.mxu0 0
      %2894 = vmatprep.subr.bf16.mxu0 0
      %2895 = vmatpush1.bf16.msra.mxu0 0
      %2896 = vmatprep.subr.bf16.mxu0 0
      %2897 = vmatpush1.bf16.msra.mxu0 0
      %2898 = vmatprep.mubr.bf16.mxu0 0
      %2899 = vmatmul.mubr.bf16.gmra.mrb[0].mxu0 %v2506
      %v2900 = vpop.f32.mrb[0].mxu0
      %v2901 = vadd.f32 %v2741, %v2900
      %v2902 = vpop.f32.mrb[0].mxu0
      %v2903 = vpop.f32.mrb[0].mxu0
      %v2904 = vpop.f32.mrb[0].mxu0
      %2905 = vdwg.mxu0
      %v2910 = vunpack.c.l.b16 %v2717
      %v2911 = vunpack.c.l.b16 %v2718
      %v2912 = vunpack.c.l.b16 %v2719
      %v2913 = vunpack.c.l.b16 %v2720
      %v2914 = vpack.c.b16 %v2911, %v2910
      %v2915 = vpack.c.b16 %v2913, %v2912
      %2918 = vmatprep.subr.bf16.mxu0 0
      %2919 = vmatpush1.bf16.msra.mxu0 %v2914
      %2920 = vmatprep.subr.bf16.mxu0 0
      %2921 = vmatpush1.bf16.msra.mxu0 %v2915
      %2922 = vmatprep.subr.bf16.mxu0 0
      %2923 = vmatpush1.bf16.msra.mxu0 0
      %2924 = vmatprep.subr.bf16.mxu0 0
      %2925 = vmatpush1.bf16.msra.mxu0 0
      %2926 = vmatprep.subr.bf16.mxu0 0
      %2927 = vmatpush1.bf16.msra.mxu0 0
      %2928 = vmatprep.subr.bf16.mxu0 0
      %2929 = vmatpush1.bf16.msra.mxu0 0
      %2930 = vmatprep.subr.bf16.mxu0 0
      %2931 = vmatpush1.bf16.msra.mxu0 0
      %2932 = vmatprep.subr.bf16.mxu0 0
      %2933 = vmatpush1.bf16.msra.mxu0 0
      %2934 = vmatprep.subr.bf16.mxu0 0
      %2935 = vmatpush1.bf16.msra.mxu0 0
      %2936 = vmatprep.subr.bf16.mxu0 0
      %2937 = vmatpush1.bf16.msra.mxu0 0
      %2938 = vmatprep.subr.bf16.mxu0 0
      %2939 = vmatpush1.bf16.msra.mxu0 0
      %2940 = vmatprep.subr.bf16.mxu0 0
      %2941 = vmatpush1.bf16.msra.mxu0 0
      %2942 = vmatprep.subr.bf16.mxu0 0
      %2943 = vmatpush1.bf16.msra.mxu0 0
      %2944 = vmatprep.subr.bf16.mxu0 0
      %2945 = vmatpush1.bf16.msra.mxu0 0
      %2946 = vmatprep.subr.bf16.mxu0 0
      %2947 = vmatpush1.bf16.msra.mxu0 0
      %2948 = vmatprep.subr.bf16.mxu0 0
      %2949 = vmatpush1.bf16.msra.mxu0 0
      %2950 = vmatprep.mubr.bf16.mxu0 0
      %2951 = vmatmul.mubr.bf16.gmra.mrb[0].mxu0 %v2506
      %v2952 = vpop.f32.mrb[0].mxu0
      %v2953 = vadd.f32 %v2745, %v2952
      %v2954 = vpop.f32.mrb[0].mxu0
      %v2955 = vpop.f32.mrb[0].mxu0
      %v2956 = vpop.f32.mrb[0].mxu0
      %2957 = vdwg.mxu0
      %v2958 = vpack.c.bf16 %v2286, %v2286
      %v2959 = vpack.c.bf16 %v2338, %v2338
      %v2960 = vpack.c.bf16 %v2390, %v2390
      %v2961 = vpack.c.bf16 %v2442, %v2442
      %v2962 = vpack.c.bf16 %v2543, %v2543
      %v2963 = vpack.c.bf16 %v2595, %v2595
      %v2964 = vpack.c.bf16 %v2647, %v2647
      %v2965 = vpack.c.bf16 %v2699, %v2699
      %v2967 = vsel %vm1504, %v2958, 0
      %v2970 = vsel %vm1504, %v2962, 0
      %2972 = vmatprep.subr.bf16.mxu0 0
      %2973 = vmatpush1.bf16.xpose.msra.mxu0 %v2970
      %2974 = vmatprep.subr.bf16.mxu0 0
      %2975 = vmatpush1.bf16.xpose.msra.mxu0 0
      %2976 = vmatprep.subr.bf16.mxu0 0
      %2977 = vmatpush1.bf16.xpose.msra.mxu0 0
      %2978 = vmatprep.subr.bf16.mxu0 0
      %2979 = vmatpush1.bf16.xpose.msra.mxu0 0
      %2980 = vmatprep.subr.bf16.mxu0 0
      %2981 = vmatpush1.bf16.xpose.msra.mxu0 0
      %2982 = vmatprep.subr.bf16.mxu0 0
      %2983 = vmatpush1.bf16.xpose.msra.mxu0 0
      %2984 = vmatprep.subr.bf16.mxu0 0
      %2985 = vmatpush1.bf16.xpose.msra.mxu0 0
      %2986 = vmatprep.subr.bf16.mxu0 0
      %2987 = vmatpush1.bf16.xpose.msra.mxu0 0
      %2988 = vmatprep.subr.bf16.mxu0 0
      %2989 = vmatpush1.bf16.xpose.msra.mxu0 0
      %2990 = vmatprep.subr.bf16.mxu0 0
      %2991 = vmatpush1.bf16.xpose.msra.mxu0 0
      %2992 = vmatprep.subr.bf16.mxu0 0
      %2993 = vmatpush1.bf16.xpose.msra.mxu0 0
      %2994 = vmatprep.subr.bf16.mxu0 0
      %2995 = vmatpush1.bf16.xpose.msra.mxu0 0
      %2996 = vmatprep.subr.bf16.mxu0 0
      %2997 = vmatpush1.bf16.xpose.msra.mxu0 0
      %2998 = vmatprep.subr.bf16.mxu0 0
      %2999 = vmatpush1.bf16.xpose.msra.mxu0 0
      %3000 = vmatprep.subr.bf16.mxu0 0
      %3001 = vmatpush1.bf16.xpose.msra.mxu0 0
      %3002 = vmatprep.subr.bf16.mxu0 0
      %3003 = vmatpush1.bf16.xpose.msra.mxu0 0
      %3004 = vmatprep.mubr.bf16.mxu0 0
      %3005 = vmatmul.mubr.bf16.gmra.mrb[0].mxu0 %v2967
      %v3006 = vpop.f32.mrb[0].mxu0
      %v3007 = vadd.f32 0.0, %v3006
      %v3008 = vpop.f32.mrb[0].mxu0
      %v3009 = vpop.f32.mrb[0].mxu0
      %v3010 = vpop.f32.mrb[0].mxu0
      %3011 = vdwg.mxu0
      %v3013 = vsel %vm1504, %v2959, 0
      %v3016 = vsel %vm1504, %v2963, 0
      %3018 = vmatprep.subr.bf16.mxu0 0
      %3019 = vmatpush1.bf16.xpose.msra.mxu0 %v3016
      %3020 = vmatprep.subr.bf16.mxu0 0
      %3021 = vmatpush1.bf16.xpose.msra.mxu0 0
      %3022 = vmatprep.subr.bf16.mxu0 0
      %3023 = vmatpush1.bf16.xpose.msra.mxu0 0
      %3024 = vmatprep.subr.bf16.mxu0 0
      %3025 = vmatpush1.bf16.xpose.msra.mxu0 0
      %3026 = vmatprep.subr.bf16.mxu0 0
      %3027 = vmatpush1.bf16.xpose.msra.mxu0 0
      %3028 = vmatprep.subr.bf16.mxu0 0
      %3029 = vmatpush1.bf16.xpose.msra.mxu0 0
      %3030 = vmatprep.subr.bf16.mxu0 0
      %3031 = vmatpush1.bf16.xpose.msra.mxu0 0
      %3032 = vmatprep.subr.bf16.mxu0 0
      %3033 = vmatpush1.bf16.xpose.msra.mxu0 0
      %3034 = vmatprep.subr.bf16.mxu0 0
      %3035 = vmatpush1.bf16.xpose.msra.mxu0 0
      %3036 = vmatprep.subr.bf16.mxu0 0
      %3037 = vmatpush1.bf16.xpose.msra.mxu0 0
      %3038 = vmatprep.subr.bf16.mxu0 0
      %3039 = vmatpush1.bf16.xpose.msra.mxu0 0
      %3040 = vmatprep.subr.bf16.mxu0 0
      %3041 = vmatpush1.bf16.xpose.msra.mxu0 0
      %3042 = vmatprep.subr.bf16.mxu0 0
      %3043 = vmatpush1.bf16.xpose.msra.mxu0 0
      %3044 = vmatprep.subr.bf16.mxu0 0
      %3045 = vmatpush1.bf16.xpose.msra.mxu0 0
      %3046 = vmatprep.subr.bf16.mxu0 0
      %3047 = vmatpush1.bf16.xpose.msra.mxu0 0
      %3048 = vmatprep.subr.bf16.mxu0 0
      %3049 = vmatpush1.bf16.xpose.msra.mxu0 0
      %3050 = vmatprep.mubr.bf16.mxu0 0
      %3051 = vmatmul.mubr.bf16.gmra.mrb[0].mxu0 %v3013
      %v3052 = vpop.f32.mrb[0].mxu0
      %v3053 = vadd.f32 0.0, %v3052
      %v3054 = vpop.f32.mrb[0].mxu0
      %v3055 = vpop.f32.mrb[0].mxu0
      %v3056 = vpop.f32.mrb[0].mxu0
      %3057 = vdwg.mxu0
      %v3059 = vsel %vm1504, %v2960, 0
      %v3062 = vsel %vm1504, %v2964, 0
      %3064 = vmatprep.subr.bf16.mxu0 0
      %3065 = vmatpush1.bf16.xpose.msra.mxu0 %v3062
      %3066 = vmatprep.subr.bf16.mxu0 0
      %3067 = vmatpush1.bf16.xpose.msra.mxu0 0
      %3068 = vmatprep.subr.bf16.mxu0 0
      %3069 = vmatpush1.bf16.xpose.msra.mxu0 0
      %3070 = vmatprep.subr.bf16.mxu0 0
      %3071 = vmatpush1.bf16.xpose.msra.mxu0 0
      %3072 = vmatprep.subr.bf16.mxu0 0
      %3073 = vmatpush1.bf16.xpose.msra.mxu0 0
      %3074 = vmatprep.subr.bf16.mxu0 0
      %3075 = vmatpush1.bf16.xpose.msra.mxu0 0
      %3076 = vmatprep.subr.bf16.mxu0 0
      %3077 = vmatpush1.bf16.xpose.msra.mxu0 0
      %3078 = vmatprep.subr.bf16.mxu0 0
      %3079 = vmatpush1.bf16.xpose.msra.mxu0 0
      %3080 = vmatprep.subr.bf16.mxu0 0
      %3081 = vmatpush1.bf16.xpose.msra.mxu0 0
      %3082 = vmatprep.subr.bf16.mxu0 0
      %3083 = vmatpush1.bf16.xpose.msra.mxu0 0
      %3084 = vmatprep.subr.bf16.mxu0 0
      %3085 = vmatpush1.bf16.xpose.msra.mxu0 0
      %3086 = vmatprep.subr.bf16.mxu0 0
      %3087 = vmatpush1.bf16.xpose.msra.mxu0 0
      %3088 = vmatprep.subr.bf16.mxu0 0
      %3089 = vmatpush1.bf16.xpose.msra.mxu0 0
      %3090 = vmatprep.subr.bf16.mxu0 0
      %3091 = vmatpush1.bf16.xpose.msra.mxu0 0
      %3092 = vmatprep.subr.bf16.mxu0 0
      %3093 = vmatpush1.bf16.xpose.msra.mxu0 0
      %3094 = vmatprep.subr.bf16.mxu0 0
      %3095 = vmatpush1.bf16.xpose.msra.mxu0 0
      %3096 = vmatprep.mubr.bf16.mxu0 0
      %3097 = vmatmul.mubr.bf16.gmra.mrb[0].mxu0 %v3059
      %v3098 = vpop.f32.mrb[0].mxu0
      %v3099 = vadd.f32 0.0, %v3098
      %v3100 = vpop.f32.mrb[0].mxu0
      %v3101 = vpop.f32.mrb[0].mxu0
      %v3102 = vpop.f32.mrb[0].mxu0
      %3103 = vdwg.mxu0
      %v3105 = vsel %vm1504, %v2961, 0
      %v3108 = vsel %vm1504, %v2965, 0
      %3110 = vmatprep.subr.bf16.mxu0 0
      %3111 = vmatpush1.bf16.xpose.msra.mxu0 %v3108
      %3112 = vmatprep.subr.bf16.mxu0 0
      %3113 = vmatpush1.bf16.xpose.msra.mxu0 0
      %3114 = vmatprep.subr.bf16.mxu0 0
      %3115 = vmatpush1.bf16.xpose.msra.mxu0 0
      %3116 = vmatprep.subr.bf16.mxu0 0
      %3117 = vmatpush1.bf16.xpose.msra.mxu0 0
      %3118 = vmatprep.subr.bf16.mxu0 0
      %3119 = vmatpush1.bf16.xpose.msra.mxu0 0
      %3120 = vmatprep.subr.bf16.mxu0 0
      %3121 = vmatpush1.bf16.xpose.msra.mxu0 0
      %3122 = vmatprep.subr.bf16.mxu0 0
      %3123 = vmatpush1.bf16.xpose.msra.mxu0 0
      %3124 = vmatprep.subr.bf16.mxu0 0
      %3125 = vmatpush1.bf16.xpose.msra.mxu0 0
      %3126 = vmatprep.subr.bf16.mxu0 0
      %3127 = vmatpush1.bf16.xpose.msra.mxu0 0
      %3128 = vmatprep.subr.bf16.mxu0 0
      %3129 = vmatpush1.bf16.xpose.msra.mxu0 0
      %3130 = vmatprep.subr.bf16.mxu0 0
      %3131 = vmatpush1.bf16.xpose.msra.mxu0 0
      %3132 = vmatprep.subr.bf16.mxu0 0
      %3133 = vmatpush1.bf16.xpose.msra.mxu0 0
      %3134 = vmatprep.subr.bf16.mxu0 0
      %3135 = vmatpush1.bf16.xpose.msra.mxu0 0
      %3136 = vmatprep.subr.bf16.mxu0 0
      %3137 = vmatpush1.bf16.xpose.msra.mxu0 0
      %3138 = vmatprep.subr.bf16.mxu0 0
      %3139 = vmatpush1.bf16.xpose.msra.mxu0 0
      %3140 = vmatprep.subr.bf16.mxu0 0
      %3141 = vmatpush1.bf16.xpose.msra.mxu0 0
      %3142 = vmatprep.mubr.bf16.mxu0 0
      %3143 = vmatmul.mubr.bf16.gmra.mrb[0].mxu0 %v3105
      %v3144 = vpop.f32.mrb[0].mxu0
      %v3145 = vadd.f32 0.0, %v3144
      %v3146 = vpop.f32.mrb[0].mxu0
      %v3147 = vpop.f32.mrb[0].mxu0
      %v3148 = vpop.f32.mrb[0].mxu0
      %3149 = vdwg.mxu0
      %v3150 = vmul.f32 %v3007, 0.35355338
      %v3151 = vmul.f32 %v3053, 0.35355338
      %v3152 = vmul.f32 %v3099, 0.35355338
      %v3153 = vmul.f32 %v3145, 0.35355338
      %vm3154 = vcmp.gt.f32.partialorder %v2189, 0.5
      %v3155 = vsel %vm3154, 1, 0
      %v3156 = vlaneseq
      %v3157 = vshrl.u32 %v3156, 7
      %v3158 = vsub.s32 0, %v3157
      %v3159 = vrot.slane %v3155, %v3158
      %vm3160 = vcmp.eq.s32.totalorder %v3159, 1
      %v3161 = vsel %vm3160, %v3150, -1e+09
      %v3162 = vsel %vm3160, %v3151, -1e+09
      %v3163 = vsel %vm3160, %v3152, -1e+09
      %v3164 = vsel %vm3160, %v3153, -1e+09
      %v3165 = vsel %vm1504, %v3161, -inf
      %3166 = vmax.xlane.f32.xlu0 %v3165
      %v3167 = vpop.xlane.xlu0 %3166
      %v3168 = vsel %vm1504, %v3162, -inf
      %3169 = vmax.xlane.f32.xlu0 %v3168
      %v3170 = vpop.xlane.xlu0 %3169
      %v3171 = vsel %vm1504, %v3163, -inf
      %3172 = vmax.xlane.f32.xlu0 %v3171
      %v3173 = vpop.xlane.xlu0 %3172
      %v3174 = vsel %vm1504, %v3164, -inf
      %3175 = vmax.xlane.f32.xlu0 %v3174
      %v3176 = vpop.xlane.xlu0 %3175
      %v3177 = vsub.f32 %v3161, %v3167
      %v3178 = vsub.f32 %v3162, %v3170
      %v3179 = vsub.f32 %v3163, %v3173
      %v3180 = vsub.f32 %v3164, %v3176
      %v3181 = vmul.f32 %v3177, 1.442695
      %v3182 = vpow.pop %v3181
      %v3183 = vmul.f32 %v3178, 1.442695
      %v3184 = vpow.pop %v3183
      %v3185 = vmul.f32 %v3179, 1.442695
      %v3186 = vpow.pop %v3185
      %v3187 = vmul.f32 %v3180, 1.442695
      %v3188 = vpow.pop %v3187
      %v3189 = vsel %vm1504, %v3182, 0.0
      %3190 = vadd.xlane.f32.xlu0 %v3189
      %v3191 = vpop.xlane.xlu0 %3190
      %v3192 = vsel %vm1504, %v3184, 0.0
      %3193 = vadd.xlane.f32.xlu0 %v3192
      %v3194 = vpop.xlane.xlu0 %3193
      %v3195 = vsel %vm1504, %v3186, 0.0
      %3196 = vadd.xlane.f32.xlu0 %v3195
      %v3197 = vpop.xlane.xlu0 %3196
      %v3198 = vsel %vm1504, %v3188, 0.0
      %3199 = vadd.xlane.f32.xlu0 %v3198
      %v3200 = vpop.xlane.xlu0 %3199
      %v3201 = vrcp.pop %v3191
      %v3202 = vrcp.pop %v3194
      %v3203 = vrcp.pop %v3197
      %v3204 = vrcp.pop %v3200
      %v3205 = vmul.f32 %v3182, %v3201
      %v3206 = vmul.f32 %v3184, %v3202
      %v3207 = vmul.f32 %v3186, %v3203
      %v3208 = vmul.f32 %v3188, %v3204
      %v3209 = vpack.c.bf16 %v3205, %v3205
      %v3210 = vpack.c.bf16 %v3206, %v3206
      %v3211 = vpack.c.bf16 %v3207, %v3207
      %v3212 = vpack.c.bf16 %v3208, %v3208
      %v3213 = vpack.c.bf16 %v2797, %v2797
      %v3214 = vpack.c.bf16 %v2849, %v2849
      %v3215 = vpack.c.bf16 %v2901, %v2901
      %v3216 = vpack.c.bf16 %v2953, %v2953
      %v3218 = vsel %vm1504, %v3209, 0
      %v3221 = vsel %vm1769, %v3213, 0
      %3223 = vmatprep.subr.bf16.mxu0 0
      %3224 = vmatpush1.bf16.msra.mxu0 %v3221
      %3225 = vmatprep.subr.bf16.mxu0 0
      %3226 = vmatpush1.bf16.msra.mxu0 0
      %3227 = vmatprep.subr.bf16.mxu0 0
      %3228 = vmatpush1.bf16.msra.mxu0 0
      %3229 = vmatprep.subr.bf16.mxu0 0
      %3230 = vmatpush1.bf16.msra.mxu0 0
      %3231 = vmatprep.subr.bf16.mxu0 0
      %3232 = vmatpush1.bf16.msra.mxu0 0
      %3233 = vmatprep.subr.bf16.mxu0 0
      %3234 = vmatpush1.bf16.msra.mxu0 0
      %3235 = vmatprep.subr.bf16.mxu0 0
      %3236 = vmatpush1.bf16.msra.mxu0 0
      %3237 = vmatprep.subr.bf16.mxu0 0
      %3238 = vmatpush1.bf16.msra.mxu0 0
      %3239 = vmatprep.subr.bf16.mxu0 0
      %3240 = vmatpush1.bf16.msra.mxu0 0
      %3241 = vmatprep.subr.bf16.mxu0 0
      %3242 = vmatpush1.bf16.msra.mxu0 0
      %3243 = vmatprep.subr.bf16.mxu0 0
      %3244 = vmatpush1.bf16.msra.mxu0 0
      %3245 = vmatprep.subr.bf16.mxu0 0
      %3246 = vmatpush1.bf16.msra.mxu0 0
      %3247 = vmatprep.subr.bf16.mxu0 0
      %3248 = vmatpush1.bf16.msra.mxu0 0
      %3249 = vmatprep.subr.bf16.mxu0 0
      %3250 = vmatpush1.bf16.msra.mxu0 0
      %3251 = vmatprep.subr.bf16.mxu0 0
      %3252 = vmatpush1.bf16.msra.mxu0 0
      %3253 = vmatprep.subr.bf16.mxu0 0
      %3254 = vmatpush1.bf16.msra.mxu0 0
      %3255 = vmatprep.mubr.bf16.mxu0 0
      %3256 = vmatmul.mubr.bf16.gmra.mrb[0].mxu0 %v3218
      %v3257 = vpop.f32.mrb[0].mxu0
      %v3258 = vadd.f32 0.0, %v3257
      %v3259 = vpop.f32.mrb[0].mxu0
      %v3260 = vpop.f32.mrb[0].mxu0
      %v3261 = vpop.f32.mrb[0].mxu0
      %3262 = vdwg.mxu0
      %v3264 = vsel %vm1504, %v3210, 0
      %v3267 = vsel %vm1769, %v3214, 0
      %3269 = vmatprep.subr.bf16.mxu0 0
      %3270 = vmatpush1.bf16.msra.mxu0 %v3267
      %3271 = vmatprep.subr.bf16.mxu0 0
      %3272 = vmatpush1.bf16.msra.mxu0 0
      %3273 = vmatprep.subr.bf16.mxu0 0
      %3274 = vmatpush1.bf16.msra.mxu0 0
      %3275 = vmatprep.subr.bf16.mxu0 0
      %3276 = vmatpush1.bf16.msra.mxu0 0
      %3277 = vmatprep.subr.bf16.mxu0 0
      %3278 = vmatpush1.bf16.msra.mxu0 0
      %3279 = vmatprep.subr.bf16.mxu0 0
      %3280 = vmatpush1.bf16.msra.mxu0 0
      %3281 = vmatprep.subr.bf16.mxu0 0
      %3282 = vmatpush1.bf16.msra.mxu0 0
      %3283 = vmatprep.subr.bf16.mxu0 0
      %3284 = vmatpush1.bf16.msra.mxu0 0
      %3285 = vmatprep.subr.bf16.mxu0 0
      %3286 = vmatpush1.bf16.msra.mxu0 0
      %3287 = vmatprep.subr.bf16.mxu0 0
      %3288 = vmatpush1.bf16.msra.mxu0 0
      %3289 = vmatprep.subr.bf16.mxu0 0
      %3290 = vmatpush1.bf16.msra.mxu0 0
      %3291 = vmatprep.subr.bf16.mxu0 0
      %3292 = vmatpush1.bf16.msra.mxu0 0
      %3293 = vmatprep.subr.bf16.mxu0 0
      %3294 = vmatpush1.bf16.msra.mxu0 0
      %3295 = vmatprep.subr.bf16.mxu0 0
      %3296 = vmatpush1.bf16.msra.mxu0 0
      %3297 = vmatprep.subr.bf16.mxu0 0
      %3298 = vmatpush1.bf16.msra.mxu0 0
      %3299 = vmatprep.subr.bf16.mxu0 0
      %3300 = vmatpush1.bf16.msra.mxu0 0
      %3301 = vmatprep.mubr.bf16.mxu0 0
      %3302 = vmatmul.mubr.bf16.gmra.mrb[0].mxu0 %v3264
      %v3303 = vpop.f32.mrb[0].mxu0
      %v3304 = vadd.f32 0.0, %v3303
      %v3305 = vpop.f32.mrb[0].mxu0
      %v3306 = vpop.f32.mrb[0].mxu0
      %v3307 = vpop.f32.mrb[0].mxu0
      %3308 = vdwg.mxu0
      %v3310 = vsel %vm1504, %v3211, 0
      %v3313 = vsel %vm1769, %v3215, 0
      %3315 = vmatprep.subr.bf16.mxu0 0
      %3316 = vmatpush1.bf16.msra.mxu0 %v3313
      %3317 = vmatprep.subr.bf16.mxu0 0
      %3318 = vmatpush1.bf16.msra.mxu0 0
      %3319 = vmatprep.subr.bf16.mxu0 0
      %3320 = vmatpush1.bf16.msra.mxu0 0
      %3321 = vmatprep.subr.bf16.mxu0 0
      %3322 = vmatpush1.bf16.msra.mxu0 0
      %3323 = vmatprep.subr.bf16.mxu0 0
      %3324 = vmatpush1.bf16.msra.mxu0 0
      %3325 = vmatprep.subr.bf16.mxu0 0
      %3326 = vmatpush1.bf16.msra.mxu0 0
      %3327 = vmatprep.subr.bf16.mxu0 0
      %3328 = vmatpush1.bf16.msra.mxu0 0
      %3329 = vmatprep.subr.bf16.mxu0 0
      %3330 = vmatpush1.bf16.msra.mxu0 0
      %3331 = vmatprep.subr.bf16.mxu0 0
      %3332 = vmatpush1.bf16.msra.mxu0 0
      %3333 = vmatprep.subr.bf16.mxu0 0
      %3334 = vmatpush1.bf16.msra.mxu0 0
      %3335 = vmatprep.subr.bf16.mxu0 0
      %3336 = vmatpush1.bf16.msra.mxu0 0
      %3337 = vmatprep.subr.bf16.mxu0 0
      %3338 = vmatpush1.bf16.msra.mxu0 0
      %3339 = vmatprep.subr.bf16.mxu0 0
      %3340 = vmatpush1.bf16.msra.mxu0 0
      %3341 = vmatprep.subr.bf16.mxu0 0
      %3342 = vmatpush1.bf16.msra.mxu0 0
      %3343 = vmatprep.subr.bf16.mxu0 0
      %3344 = vmatpush1.bf16.msra.mxu0 0
      %3345 = vmatprep.subr.bf16.mxu0 0
      %3346 = vmatpush1.bf16.msra.mxu0 0
      %3347 = vmatprep.mubr.bf16.mxu0 0
      %3348 = vmatmul.mubr.bf16.gmra.mrb[0].mxu0 %v3310
      %v3349 = vpop.f32.mrb[0].mxu0
      %v3350 = vadd.f32 0.0, %v3349
      %v3351 = vpop.f32.mrb[0].mxu0
      %v3352 = vpop.f32.mrb[0].mxu0
      %v3353 = vpop.f32.mrb[0].mxu0
      %3354 = vdwg.mxu0
      %v3356 = vsel %vm1504, %v3212, 0
      %v3359 = vsel %vm1769, %v3216, 0
      %3361 = vmatprep.subr.bf16.mxu0 0
      %3362 = vmatpush1.bf16.msra.mxu0 %v3359
      %3363 = vmatprep.subr.bf16.mxu0 0
      %3364 = vmatpush1.bf16.msra.mxu0 0
      %3365 = vmatprep.subr.bf16.mxu0 0
      %3366 = vmatpush1.bf16.msra.mxu0 0
      %3367 = vmatprep.subr.bf16.mxu0 0
      %3368 = vmatpush1.bf16.msra.mxu0 0
      %3369 = vmatprep.subr.bf16.mxu0 0
      %3370 = vmatpush1.bf16.msra.mxu0 0
      %3371 = vmatprep.subr.bf16.mxu0 0
      %3372 = vmatpush1.bf16.msra.mxu0 0
      %3373 = vmatprep.subr.bf16.mxu0 0
      %3374 = vmatpush1.bf16.msra.mxu0 0
      %3375 = vmatprep.subr.bf16.mxu0 0
      %3376 = vmatpush1.bf16.msra.mxu0 0
      %3377 = vmatprep.subr.bf16.mxu0 0
      %3378 = vmatpush1.bf16.msra.mxu0 0
      %3379 = vmatprep.subr.bf16.mxu0 0
      %3380 = vmatpush1.bf16.msra.mxu0 0
      %3381 = vmatprep.subr.bf16.mxu0 0
      %3382 = vmatpush1.bf16.msra.mxu0 0
      %3383 = vmatprep.subr.bf16.mxu0 0
      %3384 = vmatpush1.bf16.msra.mxu0 0
      %3385 = vmatprep.subr.bf16.mxu0 0
      %3386 = vmatpush1.bf16.msra.mxu0 0
      %3387 = vmatprep.subr.bf16.mxu0 0
      %3388 = vmatpush1.bf16.msra.mxu0 0
      %3389 = vmatprep.subr.bf16.mxu0 0
      %3390 = vmatpush1.bf16.msra.mxu0 0
      %3391 = vmatprep.subr.bf16.mxu0 0
      %3392 = vmatpush1.bf16.msra.mxu0 0
      %3393 = vmatprep.mubr.bf16.mxu0 0
      %3394 = vmatmul.mubr.bf16.gmra.mrb[0].mxu0 %v3356
      %v3395 = vpop.f32.mrb[0].mxu0
      %v3396 = vadd.f32 0.0, %v3395
      %v3397 = vpop.f32.mrb[0].mxu0
      %v3398 = vpop.f32.mrb[0].mxu0
      %v3399 = vpop.f32.mrb[0].mxu0
      %3400 = vdwg.mxu0
      %v3401 = vpack.c.bf16 %v3258, %v3258
      %v3402 = vpack.c.bf16 %v3304, %v3304
      %v3403 = vpack.c.bf16 %v3350, %v3350
      %v3404 = vpack.c.bf16 %v3396, %v3396
      %v3405 = vld [vmem:[%s12] sm:$0xf]
      %v3406 = vld [vmem:[%s12 + $0x4] sm:$0xf]
      %v3407 = vld [vmem:[%s12 + $0x8] sm:$0xf]
      %v3408 = vld [vmem:[%s12 + $0xc] sm:$0xf]
      %v3410 = vsel %vm1504, %v3401, 0
      %v3413 = vsel %vm1769, %v3405, 0
      %3415 = vmatprep.subr.bf16.mxu0 0
      %3416 = vmatpush1.bf16.msra.mxu0 %v3413
      %3417 = vmatprep.subr.bf16.mxu0 0
      %3418 = vmatpush1.bf16.msra.mxu0 0
      %3419 = vmatprep.subr.bf16.mxu0 0
      %3420 = vmatpush1.bf16.msra.mxu0 0
      %3421 = vmatprep.subr.bf16.mxu0 0
      %3422 = vmatpush1.bf16.msra.mxu0 0
      %3423 = vmatprep.subr.bf16.mxu0 0
      %3424 = vmatpush1.bf16.msra.mxu0 0
      %3425 = vmatprep.subr.bf16.mxu0 0
      %3426 = vmatpush1.bf16.msra.mxu0 0
      %3427 = vmatprep.subr.bf16.mxu0 0
      %3428 = vmatpush1.bf16.msra.mxu0 0
      %3429 = vmatprep.subr.bf16.mxu0 0
      %3430 = vmatpush1.bf16.msra.mxu0 0
      %3431 = vmatprep.subr.bf16.mxu0 0
      %3432 = vmatpush1.bf16.msra.mxu0 0
      %3433 = vmatprep.subr.bf16.mxu0 0
      %3434 = vmatpush1.bf16.msra.mxu0 0
      %3435 = vmatprep.subr.bf16.mxu0 0
      %3436 = vmatpush1.bf16.msra.mxu0 0
      %3437 = vmatprep.subr.bf16.mxu0 0
      %3438 = vmatpush1.bf16.msra.mxu0 0
      %3439 = vmatprep.subr.bf16.mxu0 0
      %3440 = vmatpush1.bf16.msra.mxu0 0
      %3441 = vmatprep.subr.bf16.mxu0 0
      %3442 = vmatpush1.bf16.msra.mxu0 0
      %3443 = vmatprep.subr.bf16.mxu0 0
      %3444 = vmatpush1.bf16.msra.mxu0 0
      %3445 = vmatprep.subr.bf16.mxu0 0
      %3446 = vmatpush1.bf16.msra.mxu0 0
      %3447 = vmatprep.mubr.bf16.mxu0 0
      %3448 = vmatmul.mubr.bf16.gmra.mrb[0].mxu0 %v3410
      %v3449 = vpop.f32.mrb[0].mxu0
      %v3450 = vadd.f32 0.0, %v3449
      %v3451 = vpop.f32.mrb[0].mxu0
      %v3452 = vpop.f32.mrb[0].mxu0
      %v3453 = vpop.f32.mrb[0].mxu0
      %3454 = vdwg.mxu0
      %v3456 = vsel %vm1504, %v3402, 0
      %v3459 = vsel %vm1769, %v3406, 0
      %3461 = vmatprep.subr.bf16.mxu0 0
      %3462 = vmatpush1.bf16.msra.mxu0 %v3459
      %3463 = vmatprep.subr.bf16.mxu0 0
      %3464 = vmatpush1.bf16.msra.mxu0 0
      %3465 = vmatprep.subr.bf16.mxu0 0
      %3466 = vmatpush1.bf16.msra.mxu0 0
      %3467 = vmatprep.subr.bf16.mxu0 0
      %3468 = vmatpush1.bf16.msra.mxu0 0
      %3469 = vmatprep.subr.bf16.mxu0 0
      %3470 = vmatpush1.bf16.msra.mxu0 0
      %3471 = vmatprep.subr.bf16.mxu0 0
      %3472 = vmatpush1.bf16.msra.mxu0 0
      %3473 = vmatprep.subr.bf16.mxu0 0
      %3474 = vmatpush1.bf16.msra.mxu0 0
      %3475 = vmatprep.subr.bf16.mxu0 0
      %3476 = vmatpush1.bf16.msra.mxu0 0
      %3477 = vmatprep.subr.bf16.mxu0 0
      %3478 = vmatpush1.bf16.msra.mxu0 0
      %3479 = vmatprep.subr.bf16.mxu0 0
      %3480 = vmatpush1.bf16.msra.mxu0 0
      %3481 = vmatprep.subr.bf16.mxu0 0
      %3482 = vmatpush1.bf16.msra.mxu0 0
      %3483 = vmatprep.subr.bf16.mxu0 0
      %3484 = vmatpush1.bf16.msra.mxu0 0
      %3485 = vmatprep.subr.bf16.mxu0 0
      %3486 = vmatpush1.bf16.msra.mxu0 0
      %3487 = vmatprep.subr.bf16.mxu0 0
      %3488 = vmatpush1.bf16.msra.mxu0 0
      %3489 = vmatprep.subr.bf16.mxu0 0
      %3490 = vmatpush1.bf16.msra.mxu0 0
      %3491 = vmatprep.subr.bf16.mxu0 0
      %3492 = vmatpush1.bf16.msra.mxu0 0
      %3493 = vmatprep.mubr.bf16.mxu0 0
      %3494 = vmatmul.mubr.bf16.gmra.mrb[0].mxu0 %v3456
      %v3495 = vpop.f32.mrb[0].mxu0
      %v3496 = vadd.f32 0.0, %v3495
      %v3497 = vpop.f32.mrb[0].mxu0
      %v3498 = vpop.f32.mrb[0].mxu0
      %v3499 = vpop.f32.mrb[0].mxu0
      %3500 = vdwg.mxu0
      %v3502 = vsel %vm1504, %v3403, 0
      %v3505 = vsel %vm1769, %v3407, 0
      %3507 = vmatprep.subr.bf16.mxu0 0
      %3508 = vmatpush1.bf16.msra.mxu0 %v3505
      %3509 = vmatprep.subr.bf16.mxu0 0
      %3510 = vmatpush1.bf16.msra.mxu0 0
      %3511 = vmatprep.subr.bf16.mxu0 0
      %3512 = vmatpush1.bf16.msra.mxu0 0
      %3513 = vmatprep.subr.bf16.mxu0 0
      %3514 = vmatpush1.bf16.msra.mxu0 0
      %3515 = vmatprep.subr.bf16.mxu0 0
      %3516 = vmatpush1.bf16.msra.mxu0 0
      %3517 = vmatprep.subr.bf16.mxu0 0
      %3518 = vmatpush1.bf16.msra.mxu0 0
      %3519 = vmatprep.subr.bf16.mxu0 0
      %3520 = vmatpush1.bf16.msra.mxu0 0
      %3521 = vmatprep.subr.bf16.mxu0 0
      %3522 = vmatpush1.bf16.msra.mxu0 0
      %3523 = vmatprep.subr.bf16.mxu0 0
      %3524 = vmatpush1.bf16.msra.mxu0 0
      %3525 = vmatprep.subr.bf16.mxu0 0
      %3526 = vmatpush1.bf16.msra.mxu0 0
      %3527 = vmatprep.subr.bf16.mxu0 0
      %3528 = vmatpush1.bf16.msra.mxu0 0
      %3529 = vmatprep.subr.bf16.mxu0 0
      %3530 = vmatpush1.bf16.msra.mxu0 0
      %3531 = vmatprep.subr.bf16.mxu0 0
      %3532 = vmatpush1.bf16.msra.mxu0 0
      %3533 = vmatprep.subr.bf16.mxu0 0
      %3534 = vmatpush1.bf16.msra.mxu0 0
      %3535 = vmatprep.subr.bf16.mxu0 0
      %3536 = vmatpush1.bf16.msra.mxu0 0
      %3537 = vmatprep.subr.bf16.mxu0 0
      %3538 = vmatpush1.bf16.msra.mxu0 0
      %3539 = vmatprep.mubr.bf16.mxu0 0
      %3540 = vmatmul.mubr.bf16.gmra.mrb[0].mxu0 %v3502
      %v3541 = vpop.f32.mrb[0].mxu0
      %v3542 = vadd.f32 0.0, %v3541
      %v3543 = vpop.f32.mrb[0].mxu0
      %v3544 = vpop.f32.mrb[0].mxu0
      %v3545 = vpop.f32.mrb[0].mxu0
      %3546 = vdwg.mxu0
      %v3548 = vsel %vm1504, %v3404, 0
      %v3551 = vsel %vm1769, %v3408, 0
      %3553 = vmatprep.subr.bf16.mxu0 0
      %3554 = vmatpush1.bf16.msra.mxu0 %v3551
      %3555 = vmatprep.subr.bf16.mxu0 0
      %3556 = vmatpush1.bf16.msra.mxu0 0
      %3557 = vmatprep.subr.bf16.mxu0 0
      %3558 = vmatpush1.bf16.msra.mxu0 0
      %3559 = vmatprep.subr.bf16.mxu0 0
      %3560 = vmatpush1.bf16.msra.mxu0 0
      %3561 = vmatprep.subr.bf16.mxu0 0
      %3562 = vmatpush1.bf16.msra.mxu0 0
      %3563 = vmatprep.subr.bf16.mxu0 0
      %3564 = vmatpush1.bf16.msra.mxu0 0
      %3565 = vmatprep.subr.bf16.mxu0 0
      %3566 = vmatpush1.bf16.msra.mxu0 0
      %3567 = vmatprep.subr.bf16.mxu0 0
      %3568 = vmatpush1.bf16.msra.mxu0 0
      %3569 = vmatprep.subr.bf16.mxu0 0
      %3570 = vmatpush1.bf16.msra.mxu0 0
      %3571 = vmatprep.subr.bf16.mxu0 0
      %3572 = vmatpush1.bf16.msra.mxu0 0
      %3573 = vmatprep.subr.bf16.mxu0 0
      %3574 = vmatpush1.bf16.msra.mxu0 0
      %3575 = vmatprep.subr.bf16.mxu0 0
      %3576 = vmatpush1.bf16.msra.mxu0 0
      %3577 = vmatprep.subr.bf16.mxu0 0
      %3578 = vmatpush1.bf16.msra.mxu0 0
      %3579 = vmatprep.subr.bf16.mxu0 0
      %3580 = vmatpush1.bf16.msra.mxu0 0
      %3581 = vmatprep.subr.bf16.mxu0 0
      %3582 = vmatpush1.bf16.msra.mxu0 0
      %3583 = vmatprep.subr.bf16.mxu0 0
      %3584 = vmatpush1.bf16.msra.mxu0 0
      %3585 = vmatprep.mubr.bf16.mxu0 0
      %3586 = vmatmul.mubr.bf16.gmra.mrb[0].mxu0 %v3548
      %v3587 = vpop.f32.mrb[0].mxu0
      %v3588 = vadd.f32 0.0, %v3587
      %v3589 = vpop.f32.mrb[0].mxu0
      %v3590 = vpop.f32.mrb[0].mxu0
      %v3591 = vpop.f32.mrb[0].mxu0
      %3592 = vdwg.mxu0
      %v3593 = vsel %vm788, %v3450, 0.0
      %v3594 = vsel %vm788, %v3496, 0.0
      %v3595 = vadd.f32 %v3593, %v3594
      %v3596 = vsel %vm788, %v3542, 0.0
      %v3597 = vadd.f32 %v3595, %v3596
      %v3598 = vsel %vm788, %v3588, 0.0
      %v3599 = vadd.f32 %v3597, %v3598
      %v3600 = vld [vmem:[%s13] sm:$0x1]
      %v3602 = vlaneseq
      %v3603 = vshrl.u32 %v3602, 7
      %v3604 = vsub.s32 0, %v3603
      %v3605 = vrot.slane %v3600, %v3604
      %v3607 = vadd.f32 %v3599, %v3605
      %v3608 = vadd.f32 %v2188, %v3607
      %v3609 = vld [vmem:[%s14] sm:$0x1]
      %v3610 = vld [vmem:[%s15] sm:$0x1]
      %v3611 = vsel %vm788, %v3608, 0.0
      %3612 = vadd.xlane.f32.xlu0 %v3611
      %v3613 = vpop.xlane.xlu0 %3612
      %v3614 = vmul.f32 %v3613, %v2164
      %v3615 = vsub.f32 %v3608, %v3614
      %v3616 = vmul.f32 %v3615, %v3615
      %v3617 = vsel %vm788, %v3616, 0.0
      %3618 = vadd.xlane.f32.xlu0 %v3617
      %v3619 = vpop.xlane.xlu0 %3618
      %v3620 = vmul.f32 %v3619, %v2164
      %v3621 = vadd.f32 %v3620, 1e-05
      %v3622 = vrsqrt.pop %v3621
      %v3623 = vmul.f32 %v3615, %v3622
      %v3625 = vlaneseq
      %v3626 = vshrl.u32 %v3625, 7
      %v3627 = vsub.s32 0, %v3626
      %v3628 = vrot.slane %v3609, %v3627
      %v3630 = vmul.f32 %v3623, %v3628
      %v3632 = vlaneseq
      %v3633 = vshrl.u32 %v3632, 7
      %v3634 = vsub.s32 0, %v3633
      %v3635 = vrot.slane %v3610, %v3634
      %v3637 = vadd.f32 %v3630, %v3635
      %v3638 = vld [vmem:[%s16] sm:$0xf]
      %v3639 = vld [vmem:[%s16 + $0x4] sm:$0xf]
      %v3640 = vld [vmem:[%s16 + $0x8] sm:$0xf]
      %v3641 = vld [vmem:[%s16 + $0xc] sm:$0xf]
      %v3642 = vld [vmem:[%s17] sm:$0x1]
      %v3643 = vld [vmem:[%s18] sm:$0xf]
      %v3644 = vld [vmem:[%s18 + $0x4] sm:$0xf]
      %v3645 = vld [vmem:[%s18 + $0x8] sm:$0xf]
      %v3646 = vld [vmem:[%s18 + $0xc] sm:$0xf]
      %v3647 = vld [vmem:[%s18 + $0x10] sm:$0xf]
      %v3648 = vld [vmem:[%s18 + $0x14] sm:$0xf]
      %v3649 = vld [vmem:[%s18 + $0x18] sm:$0xf]
      %v3650 = vld [vmem:[%s18 + $0x1c] sm:$0xf]
      %v3651 = vld [vmem:[%s19] sm:$0x1]
      %v3652 = vpack.c.bf16 %v3637, %v3637
      %v3654 = vlaneseq
      %v3655 = vshrl.u32 %v3654, 7
      %v3656 = vsub.s32 0, %v3655
      %v3657 = vrot.slane %v3642, %v3656
      %v3663 = vunpack.c.l.b16 %v3638
      %v3664 = vunpack.c.l.b16 %v3639
      %v3665 = vunpack.c.l.b16 %v3640
      %v3666 = vunpack.c.l.b16 %v3641
      %v3667 = vpack.c.b16 %v3664, %v3663
      %v3668 = vpack.c.b16 %v3666, %v3665
      %v3672 = vsel %vm788, %v3652, 0
      %3674 = vmatprep.subr.bf16.mxu0 0
      %3675 = vmatpush1.bf16.msra.mxu0 %v3667
      %3676 = vmatprep.subr.bf16.mxu0 0
      %3677 = vmatpush1.bf16.msra.mxu0 %v3668
      %3678 = vmatprep.subr.bf16.mxu0 0
      %3679 = vmatpush1.bf16.msra.mxu0 0
      %3680 = vmatprep.subr.bf16.mxu0 0
      %3681 = vmatpush1.bf16.msra.mxu0 0
      %3682 = vmatprep.subr.bf16.mxu0 0
      %3683 = vmatpush1.bf16.msra.mxu0 0
      %3684 = vmatprep.subr.bf16.mxu0 0
      %3685 = vmatpush1.bf16.msra.mxu0 0
      %3686 = vmatprep.subr.bf16.mxu0 0
      %3687 = vmatpush1.bf16.msra.mxu0 0
      %3688 = vmatprep.subr.bf16.mxu0 0
      %3689 = vmatpush1.bf16.msra.mxu0 0
      %3690 = vmatprep.subr.bf16.mxu0 0
      %3691 = vmatpush1.bf16.msra.mxu0 0
      %3692 = vmatprep.subr.bf16.mxu0 0
      %3693 = vmatpush1.bf16.msra.mxu0 0
      %3694 = vmatprep.subr.bf16.mxu0 0
      %3695 = vmatpush1.bf16.msra.mxu0 0
      %3696 = vmatprep.subr.bf16.mxu0 0
      %3697 = vmatpush1.bf16.msra.mxu0 0
      %3698 = vmatprep.subr.bf16.mxu0 0
      %3699 = vmatpush1.bf16.msra.mxu0 0
      %3700 = vmatprep.subr.bf16.mxu0 0
      %3701 = vmatpush1.bf16.msra.mxu0 0
      %3702 = vmatprep.subr.bf16.mxu0 0
      %3703 = vmatpush1.bf16.msra.mxu0 0
      %3704 = vmatprep.subr.bf16.mxu0 0
      %3705 = vmatpush1.bf16.msra.mxu0 0
      %3706 = vmatprep.mubr.bf16.mxu0 0
      %3707 = vmatmul.mubr.bf16.gmra.mrb[0].mxu0 %v3672
      %v3708 = vpop.f32.mrb[0].mxu0
      %v3709 = vadd.f32 %v3657, %v3708
      %v3710 = vpop.f32.mrb[0].mxu0
      %v3711 = vpop.f32.mrb[0].mxu0
      %v3712 = vpop.f32.mrb[0].mxu0
      %3713 = vdwg.mxu0
      %v3714 = vmax.f32 %v3709, 0.0
      %v3715 = vpack.c.bf16 %v3714, %v3714
      %v3717 = vlaneseq
      %v3718 = vshrl.u32 %v3717, 7
      %v3719 = vsub.s32 0, %v3718
      %v3720 = vrot.slane %v3651, %v3719
      %v3730 = vunpack.c.l.b16 %v3643
      %v3731 = vunpack.c.l.b16 %v3644
      %v3732 = vunpack.c.l.b16 %v3645
      %v3733 = vunpack.c.l.b16 %v3646
      %v3734 = vunpack.c.l.b16 %v3647
      %v3735 = vunpack.c.l.b16 %v3648
      %v3736 = vunpack.c.l.b16 %v3649
      %v3737 = vunpack.c.l.b16 %v3650
      %v3738 = vpack.c.b16 %v3731, %v3730
      %v3739 = vpack.c.b16 %v3733, %v3732
      %v3740 = vpack.c.b16 %v3735, %v3734
      %v3741 = vpack.c.b16 %v3737, %v3736
      %vm3746 = vcmask 523264
      %v3748 = vsel %vm3746, %v3715, 0
      %3750 = vmatprep.subr.bf16.mxu0 0
      %3751 = vmatpush1.bf16.msra.mxu0 %v3738
      %3752 = vmatprep.subr.bf16.mxu0 0
      %3753 = vmatpush1.bf16.msra.mxu0 %v3739
      %3754 = vmatprep.subr.bf16.mxu0 0
      %3755 = vmatpush1.bf16.msra.mxu0 %v3740
      %3756 = vmatprep.subr.bf16.mxu0 0
      %3757 = vmatpush1.bf16.msra.mxu0 %v3741
      %3758 = vmatprep.subr.bf16.mxu0 0
      %3759 = vmatpush1.bf16.msra.mxu0 0
      %3760 = vmatprep.subr.bf16.mxu0 0
      %3761 = vmatpush1.bf16.msra.mxu0 0
      %3762 = vmatprep.subr.bf16.mxu0 0
      %3763 = vmatpush1.bf16.msra.mxu0 0
      %3764 = vmatprep.subr.bf16.mxu0 0
      %3765 = vmatpush1.bf16.msra.mxu0 0
      %3766 = vmatprep.subr.bf16.mxu0 0
      %3767 = vmatpush1.bf16.msra.mxu0 0
      %3768 = vmatprep.subr.bf16.mxu0 0
      %3769 = vmatpush1.bf16.msra.mxu0 0
      %3770 = vmatprep.subr.bf16.mxu0 0
      %3771 = vmatpush1.bf16.msra.mxu0 0
      %3772 = vmatprep.subr.bf16.mxu0 0
      %3773 = vmatpush1.bf16.msra.mxu0 0
      %3774 = vmatprep.subr.bf16.mxu0 0
      %3775 = vmatpush1.bf16.msra.mxu0 0
      %3776 = vmatprep.subr.bf16.mxu0 0
      %3777 = vmatpush1.bf16.msra.mxu0 0
      %3778 = vmatprep.subr.bf16.mxu0 0
      %3779 = vmatpush1.bf16.msra.mxu0 0
      %3780 = vmatprep.subr.bf16.mxu0 0
      %3781 = vmatpush1.bf16.msra.mxu0 0
      %3782 = vmatprep.mubr.bf16.mxu0 0
      %3783 = vmatmul.mubr.bf16.gmra.mrb[0].mxu0 %v3748
      %v3784 = vpop.f32.mrb[0].mxu0
      %v3785 = vadd.f32 %v3720, %v3784
      %v3786 = vpop.f32.mrb[0].mxu0
      %v3787 = vpop.f32.mrb[0].mxu0
      %v3788 = vpop.f32.mrb[0].mxu0
      %3789 = vdwg.mxu0
      %v3790 = vadd.f32 %v3637, %v3785
      %v3791 = vld [vmem:[%s20] sm:$0x1]
      %v3792 = vld [vmem:[%s21] sm:$0x1]
      %v3793 = vsel %vm788, %v3790, 0.0
      %3794 = vadd.xlane.f32.xlu0 %v3793
      %v3795 = vpop.xlane.xlu0 %3794
      %v3796 = vmul.f32 %v3795, %v2164
      %v3797 = vsub.f32 %v3790, %v3796
      %v3798 = vmul.f32 %v3797, %v3797
      %v3799 = vsel %vm788, %v3798, 0.0
      %3800 = vadd.xlane.f32.xlu0 %v3799
      %v3801 = vpop.xlane.xlu0 %3800
      %v3802 = vmul.f32 %v3801, %v2164
      %v3803 = vadd.f32 %v3802, 1e-05
      %v3804 = vrsqrt.pop %v3803
      %v3805 = vmul.f32 %v3797, %v3804
      %v3807 = vlaneseq
      %v3808 = vshrl.u32 %v3807, 7
      %v3809 = vsub.s32 0, %v3808
      %v3810 = vrot.slane %v3791, %v3809
      %v3812 = vmul.f32 %v3805, %v3810
      %v3814 = vlaneseq
      %v3815 = vshrl.u32 %v3814, 7
      %v3816 = vsub.s32 0, %v3815
      %v3817 = vrot.slane %v3792, %v3816
      %v3819 = vadd.f32 %v3812, %v3817
      %3820 = vst.msk [vmem:[%s726] sm:$0xff] %vm788, %v3819
      %p3821 = scmp.lt.s32.totalorder %s33, 1
      %s3822 = scalar_select %p3821, %s33, 1
      %s3823 = smul.addr %s3822, 8
      %s3824 = scalar_lea.vmem %s22, %s3823
      // Predicated region
      $region109: #{transformer_forward.7} parent=107 // pred_check
        %p3825 = pneg %p533
      $region110: #{transformer_forward.7} parent=107 // pred_check_branch
        %3827 = sbr.rel (%p3825) target = $region112
      $region111: #{transformer_forward.7} parent=107 // pred_region
        _
      $region112: #{transformer_forward.7} parent=107 // pred_fallthru
        _
    $region108: #{transformer_forward.7} parent=5 // pred_fallthru
      _
    %p3828 = scmp.le.s32.totalorder 2, %s28
    // Predicated region
    $region113: #{transformer_forward.7} parent=5 // pred_check
      %p3829 = pneg %p3828
    $region114: #{transformer_forward.7} parent=5 // pred_check_branch
      %3831 = sbr.rel (%p3829) target = $region116
    $region115: #{transformer_forward.7} parent=5 // pred_region
      %s3832 = ssub.s32 %s28, 2
      // Predicated region
      $region117: #{transformer_forward.7} parent=115 // pred_check
        %p3833 = pneg %p539
      $region118: #{transformer_forward.7} parent=115 // pred_check_branch
        %3835 = sbr.rel (%p3833) target = $region120
      $region119: #{transformer_forward.7} parent=115 // pred_region
        %p3836 = scmp.lt.s32.totalorder %s34, 1
        %s3837 = scalar_select %p3836, %s34, 1
        %s3838 = smul.addr %s3837, 8
        %s3839 = scalar_lea.vmem %s22, %s3838
      $region120: #{transformer_forward.7} parent=115 // pred_fallthru
        _
    $region116: #{transformer_forward.7} parent=5 // pred_fallthru
      _
  $region6: #{transformer_forward.7} parent=0 // loop_footer
    %s32 = sadd.s32 1, %s28
  $region7: #{transformer_forward.7} parent=0 // loop_footer_branch
    %27 = sbr.rel target = $region3
  $region8: #{transformer_forward.7} parent=0 // loop_exit
    _

</llo_original>
